<compile_context>
chip_gen: v7x
topology: tpu7x:2x2x1
jax: 0.10.0
libtpu: 0.0.40
codegen_flags: <defaults>
</compile_context>

<pallas_src>
import functools
import math

import jax
import jax.numpy as jnp
from jax.experimental import pallas as pl
from jax.experimental.pallas import tpu as pltpu


# ---------------------------------------------------------------------------
# helpers
# ---------------------------------------------------------------------------
def _full_spec(shape):
    """Full-array block (block_shape == array dims) for a single-step grid."""
    zeros = (0,) * len(shape)
    return pl.BlockSpec(shape, lambda i, _z=zeros: _z)


_ARB = pltpu.CompilerParams(dimension_semantics=("arbitrary",))


# ---------------------------------------------------------------------------
# Kernel 1: fused domain projections + attention in_proj
#   qkv_flat = x_flat @ W_qkv + b_qkv        (one lane-dense matmul, N = nd*3D)
# ---------------------------------------------------------------------------
def _qkv_proj_kernel(x_ref, w_ref, b_ref, o_ref):
    o_ref[...] = (
        jnp.dot(x_ref[...], w_ref[...], preferred_element_type=jnp.float32)
        + b_ref[...]
    ).astype(o_ref.dtype)


def qkv_proj_pallas(x_flat, w_qkv, b_qkv):
    M, K = x_flat.shape
    N = w_qkv.shape[1]
    cost = pl.CostEstimate(
        flops=2 * M * K * N,
        transcendentals=0,
        bytes_accessed=4 * (M * K + K * N + N + M * N),
    )
    return pl.pallas_call(
        _qkv_proj_kernel,
        out_shape=jax.ShapeDtypeStruct((M, N), jnp.float32),
        grid=(1,),
        in_specs=[_full_spec((M, K)), _full_spec((K, N)), _full_spec((1, N))],
        out_specs=_full_spec((M, N)),
        compiler_params=_ARB,
        cost_estimate=cost,
    )(x_flat, w_qkv, b_qkv)


# ---------------------------------------------------------------------------
# Kernel 2: multi-head self-attention over the (B*nd) pseudo-batch.
#   One grid step; heads handled as static lane slices of the VMEM ref.
# ---------------------------------------------------------------------------
def _mha_kernel(qkv_ref, o_ref, *, n_heads, scale):
    BN, S, threeD = qkv_ref.shape
    D = threeD // 3
    hd = D // n_heads
    for h in range(n_heads):
        qh = qkv_ref[:, :, h * hd:(h + 1) * hd]                 # (BN, S, hd)
        kh = qkv_ref[:, :, D + h * hd:D + (h + 1) * hd]
        vh = qkv_ref[:, :, 2 * D + h * hd:2 * D + (h + 1) * hd]
        s = jnp.einsum("bqd,bkd->bqk", qh, kh,
                       preferred_element_type=jnp.float32) * scale
        m = jnp.max(s, axis=-1, keepdims=True)
        p = jnp.exp(s - m)
        l = jnp.sum(p, axis=-1, keepdims=True)
        o = jnp.einsum("bqk,bkd->bqd", p, vh,
                       preferred_element_type=jnp.float32)
        o_ref[:, :, h * hd:(h + 1) * hd] = (
            o * pl.reciprocal(l, approx=True)).astype(o_ref.dtype)


def mha_pallas(qkv, *, n_heads):
    BN, S, threeD = qkv.shape
    D = threeD // 3
    hd = D // n_heads
    scale = 1.0 / math.sqrt(hd)
    cost = pl.CostEstimate(
        flops=4 * BN * n_heads * S * S * hd,
        transcendentals=BN * n_heads * S * S,
        bytes_accessed=4 * (qkv.size + BN * S * D),
    )
    return pl.pallas_call(
        functools.partial(_mha_kernel, n_heads=n_heads, scale=scale),
        out_shape=jax.ShapeDtypeStruct((BN, S, D), jnp.float32),
        grid=(1,),
        in_specs=[_full_spec((BN, S, threeD))],
        out_specs=_full_spec((BN, S, D)),
        compiler_params=_ARB,
        cost_estimate=cost,
    )(qkv)


# ---------------------------------------------------------------------------
# Kernel 3: attention out_proj + domain_fusion (Linear + GELU + Linear), fused.
#   attn256 is the free (B*S, nd*D) view of the attention output: column block
#   jj of fusion row r is attention token r*nd + jj, which is exactly what the
#   torch .reshape(B, S, nd*D) routes into feature columns jj*D:(jj+1)*D.
#   out_proj is linear, so it is applied per column block and the reshape is
#   folded into a row-split of W1.  All matmuls stay rank-2 / lane-dense.
# ---------------------------------------------------------------------------
def _outproj_fusion_kernel(attn_ref, wo_ref, bo_ref, w1_ref, b1_ref,
                           w2_ref, b2_ref, o_ref, *, n_domains, d_model):
    D = d_model
    wo = wo_ref[...]
    bo = bo_ref[...]
    acc = None
    for jj in range(n_domains):
        tok = attn_ref[:, jj * D:(jj + 1) * D]                   # (B*S, D)
        po = jnp.dot(tok, wo, preferred_element_type=jnp.float32) + bo
        part = jnp.dot(po, w1_ref[jj * D:(jj + 1) * D, :],
                       preferred_element_type=jnp.float32)
        acc = part if acc is None else acc + part
    z = acc + b1_ref[...]
    inv_sqrt2 = jnp.float32(0.7071067811865476)
    z = 0.5 * z * (1.0 + jax.lax.erf(z * inv_sqrt2))             # exact-erf GELU
    o_ref[...] = (jnp.dot(z, w2_ref[...], preferred_element_type=jnp.float32)
                  + b2_ref[...]).astype(o_ref.dtype)


def outproj_fusion_pallas(attn256, wo, bo, w1, b1, w2, b2, *, n_domains):
    M, ndD = attn256.shape
    D = ndD // n_domains
    D2 = w1.shape[1]
    Dout = w2.shape[1]
    cost = pl.CostEstimate(
        flops=2 * M * n_domains * D * (D + D2) + 2 * M * D2 * Dout,
        transcendentals=M * D2,
        bytes_accessed=4 * (attn256.size + wo.size + bo.size + w1.size
                            + b1.size + w2.size + b2.size + M * Dout),
    )
    return pl.pallas_call(
        functools.partial(_outproj_fusion_kernel,
                          n_domains=n_domains, d_model=D),
        out_shape=jax.ShapeDtypeStruct((M, Dout), jnp.float32),
        grid=(1,),
        in_specs=[_full_spec(attn256.shape), _full_spec(wo.shape),
                  _full_spec(bo.shape), _full_spec(w1.shape),
                  _full_spec(b1.shape), _full_spec(w2.shape),
                  _full_spec(b2.shape)],
        out_specs=_full_spec((M, Dout)),
        compiler_params=_ARB,
        cost_estimate=cost,
    )(attn256, wo, bo, w1, b1, w2, b2)


# ---------------------------------------------------------------------------
# One-time weight preparation (hoisted out of the forward pass).
# ---------------------------------------------------------------------------
def prepare_params(raw):
    """Transposes to (K, N) layout and algebraic fold of the n_domains
    projections into the attention in_proj:
        (x @ Wd^T + bd) @ Win^T + bin == x @ (Wd^T @ Win^T) + (bd @ Win^T + bin)
    """
    hi = jax.lax.Precision.HIGHEST
    nd = int(raw["n_domains"])
    w_in, b_in = raw["in_proj_w"], raw["in_proj_b"]
    w_qkv = jnp.concatenate(
        [jnp.matmul(raw["domain_w"][d].T, w_in.T, precision=hi)
         for d in range(nd)], axis=1)                              # (D, nd*3D)
    b_qkv = jnp.concatenate(
        [jnp.matmul(raw["domain_b"][d], w_in.T, precision=hi) + b_in
         for d in range(nd)], axis=0)                              # (nd*3D,)
    return dict(
        n_domains=nd, n_heads=int(raw["n_heads"]),
        w_qkv=w_qkv, b_qkv=b_qkv.reshape(1, -1),
        wo=raw["out_proj_w"].T, bo=raw["out_proj_b"].reshape(1, -1),
        w1=raw["fuse_w1"].T, b1=raw["fuse_b1"].reshape(1, -1),
        w2=raw["fuse_w2"].T, b2=raw["fuse_b2"].reshape(1, -1),
    )


# ---------------------------------------------------------------------------
# Full layer forward (3 pallas_calls + free row-major reshapes only)
# ---------------------------------------------------------------------------
@functools.partial(jax.jit, static_argnames=("n_domains", "n_heads"))
def _forward(x, w_qkv, b_qkv, wo, bo, w1, b1, w2, b2, *, n_domains, n_heads):
    B, S, D = x.shape
    nd = n_domains
    assert D % n_heads == 0

    # (1) fused domain projections + in_proj: one lane-dense matmul.
    qkv_flat = qkv_proj_pallas(x.reshape(B * S, D), w_qkv, b_qkv)  # (B*S, nd*3D)

    # torch: stack(domain_outputs, dim=2).view(B*nd, S, D), then in_proj.
    # qkv is pointwise per feature vector, so that view is exactly this free
    # row-major reshape of the fused projection output.
    qkv = qkv_flat.reshape(B * nd, S, 3 * D)

    # (2) multi-head self-attention over the (B*nd) pseudo-batch.
    attn = mha_pallas(qkv, n_heads=n_heads)                        # (B*nd, S, D)

    # torch: attended.reshape(B, S, nd*D)  ->  free row-major reshape.
    attn256 = attn.reshape(B * S, nd * D)

    # (3) attention out_proj + domain_fusion MLP, fused.
    out = outproj_fusion_pallas(attn256, wo, bo, w1, b1, w2, b2,
                                n_domains=nd)                      # (B*S, D)
    return out.reshape(B, S, D)


def ethical_cross_domain_layer(x, prep):
    return _forward(x, prep["w_qkv"], prep["b_qkv"], prep["wo"], prep["bo"],
                    prep["w1"], prep["b1"], prep["w2"], prep["b2"],
                    n_domains=prep["n_domains"], n_heads=prep["n_heads"])


# ---------------------------------------------------------------------------
# Pure-JAX reference (same math, torch semantics), high-precision matmuls.
# ---------------------------------------------------------------------------
def reference_forward(x, params):
    B, S, D = x.shape
    nd = params["n_domains"]
    H = params["n_heads"]
    hd = D // H
    hi = jax.lax.Precision.HIGHEST

    dom_outs = [jnp.matmul(x, w.T, precision=hi) + b
                for w, b in zip(params["domain_w"], params["domain_b"])]
    split = jnp.stack(dom_outs, axis=2)                            # (B, S, nd, D)
    xr = split.reshape(B * nd, S, D)

    qkv = jnp.matmul(xr, params["in_proj_w"].T, precision=hi) + params["in_proj_b"]
    q, k, v = jnp.split(qkv, 3, axis=-1)

    def to_heads(t):
        return t.reshape(B * nd, S, H, hd).transpose(0, 2, 1, 3)

    q, k, v = to_heads(q), to_heads(k), to_heads(v)
    s = jnp.einsum("bhqd,bhkd->bhqk", q, k, precision=hi) / math.sqrt(hd)
    p = jax.nn.softmax(s, axis=-1)
    o = jnp.einsum("bhqk,bhkd->bhqd", p, v, precision=hi)
    o = o.transpose(0, 2, 1, 3).reshape(B * nd, S, D)
    o = jnp.matmul(o, params["out_proj_w"].T, precision=hi) + params["out_proj_b"]
    attended = o.reshape(B, S, nd * D)

    h = jnp.matmul(attended, params["fuse_w1"].T, precision=hi) + params["fuse_b1"]
    h = jax.nn.gelu(h, approximate=False)
    out = jnp.matmul(h, params["fuse_w2"].T, precision=hi) + params["fuse_b2"]
    return out


if __name__ == "__main__":
    B, S, D = 2, 8, 64           # batch, seq_len, d_model
    ND, H = 4, 8                 # n_domains, n_heads  (head_dim = 8)

    key = jax.random.PRNGKey(0)
    keys = jax.random.split(key, 9)

    def lin_init(k, out_dim, in_dim):
        lim = (1.0 / in_dim) ** 0.5
        kw, kb = jax.random.split(k)
        w = jax.random.uniform(kw, (out_dim, in_dim), jnp.float32, -lim, lim)
        b = jax.random.uniform(kb, (out_dim,), jnp.float32, -lim, lim)
        return w, b

    domain_w, domain_b = [], []
    for i in range(ND):
        w, b = lin_init(keys[i], D, D)
        domain_w.append(w)
        domain_b.append(b)
    in_proj_w, in_proj_b = lin_init(keys[4], 3 * D, D)
    out_proj_w, out_proj_b = lin_init(keys[5], D, D)
    fuse_w1, fuse_b1 = lin_init(keys[6], 2 * D, ND * D)
    fuse_w2, fuse_b2 = lin_init(keys[7], D, 2 * D)
    x = jax.random.normal(keys[8], (B, S, D), dtype=jnp.float32)

    params = dict(
        n_domains=ND, n_heads=H,
        domain_w=domain_w, domain_b=domain_b,
        in_proj_w=in_proj_w, in_proj_b=in_proj_b,
        out_proj_w=out_proj_w, out_proj_b=out_proj_b,
        fuse_w1=fuse_w1, fuse_b1=fuse_b1,
        fuse_w2=fuse_w2, fuse_b2=fuse_b2,
    )

    prep = prepare_params(params)          # hoisted weight prep (done once)
    out = ethical_cross_domain_layer(x, prep)
    jax.block_until_ready(out)

    ref = reference_forward(x, params)
    assert out.shape == (B, S, D)
    err = float(jnp.max(jnp.abs(out - ref)))
    assert jnp.allclose(out, ref, atol=2e-3, rtol=2e-3), \
        f"mismatch vs reference (max abs err {err})"

    print("KERNEL_OK")
</pallas_src>

<mosaic_0001>
module attributes {stable_mosaic.version = 11 : i64} {
  func.func @_qkv_proj_kernel(%arg0: i32, %arg1: memref<16x64xf32, #tpu.memory_space<vmem>>, %arg2: memref<64x768xf32, #tpu.memory_space<vmem>>, %arg3: memref<1x768xf32, #tpu.memory_space<vmem>>, %arg4: memref<16x768xf32, #tpu.memory_space<vmem>>) attributes {dimension_semantics = [#tpu.dimension_semantics<arbitrary>], iteration_bounds = array<i64: 1>, scalar_prefetch = 0 : i64, scratch_operands = 0 : i64, tpu.core_type = #tpu.core_type<tc>, window_params = [{pipeline_mode = #tpu.pipeline_mode<synchronous>, transform_indices = @transform_0, window_bounds = array<i64: 16, 64>}, {pipeline_mode = #tpu.pipeline_mode<synchronous>, transform_indices = @transform_1, window_bounds = array<i64: 64, 768>}, {pipeline_mode = #tpu.pipeline_mode<synchronous>, transform_indices = @transform_2, window_bounds = array<i64: 1, 768>}, {pipeline_mode = #tpu.pipeline_mode<synchronous>, transform_indices = @transform_3, window_bounds = array<i64: 16, 768>}]} {
    %c0 = arith.constant 0 : index
    %c0_0 = arith.constant 0 : index
    %0 = vector.load %arg1[%c0, %c0_0] : memref<16x64xf32, #tpu.memory_space<vmem>>, vector<16x64xf32>
    %c0_1 = arith.constant 0 : index
    %c0_2 = arith.constant 0 : index
    %1 = vector.load %arg2[%c0_1, %c0_2] : memref<64x768xf32, #tpu.memory_space<vmem>>, vector<64x768xf32>
    %cst = arith.constant dense<0.000000e+00> : vector<16x768xf32>
    %2 = tpu.matmul %0, %1, %cst {dimension_numbers = #tpu.dot_dimension_numbers<[1], [0], [0], [1], [0, 0, 1, 1], [], []>} : vector<16x64xf32>, vector<64x768xf32>, vector<16x768xf32> -> vector<16x768xf32>
    %c0_3 = arith.constant 0 : index
    %c0_4 = arith.constant 0 : index
    %3 = vector.load %arg3[%c0_3, %c0_4] : memref<1x768xf32, #tpu.memory_space<vmem>>, vector<1x768xf32>
    %4 = vector.broadcast %3 : vector<1x768xf32> to vector<16x768xf32>
    %5 = arith.addf %2, %4 : vector<16x768xf32>
    %c0_5 = arith.constant 0 : index
    %c0_6 = arith.constant 0 : index
    %6 = vector.load %arg4[%c0_5, %c0_6] : memref<16x768xf32, #tpu.memory_space<vmem>>, vector<16x768xf32>
    tpu.vector_store %arg4[%c0_5, %c0_6], %5 {strides = array<i32>} : memref<16x768xf32, #tpu.memory_space<vmem>>, vector<16x768xf32>,
    return
  }
  func.func @transform_0(%arg0: i32) -> (i32, i32) {
    %c0_i32 = arith.constant 0 : i32
    %c0_i32_0 = arith.constant 0 : i32
    %c0_i32_1 = arith.constant 0 : i32
    return %c0_i32, %c0_i32_0 : i32, i32
  }
  func.func @transform_1(%arg0: i32) -> (i32, i32) {
    %c0_i32 = arith.constant 0 : i32
    %c0_i32_0 = arith.constant 0 : i32
    %c0_i32_1 = arith.constant 0 : i32
    return %c0_i32, %c0_i32_0 : i32, i32
  }
  func.func @transform_2(%arg0: i32) -> (i32, i32) {
    %c0_i32 = arith.constant 0 : i32
    %c0_i32_0 = arith.constant 0 : i32
    %c0_i32_1 = arith.constant 0 : i32
    return %c0_i32, %c0_i32_0 : i32, i32
  }
  func.func @transform_3(%arg0: i32) -> (i32, i32) {
    %c0_i32 = arith.constant 0 : i32
    %c0_i32_0 = arith.constant 0 : i32
    %c0_i32_1 = arith.constant 0 : i32
    return %c0_i32, %c0_i32_0 : i32, i32
  }
}

module attributes {stable_mosaic.version = 11 : i64} {
  func.func @_mha_kernel(%arg0: i32, %arg1: memref<8x8x192xf32, #tpu.memory_space<vmem>>, %arg2: memref<8x8x64xf32, #tpu.memory_space<vmem>>) attributes {dimension_semantics = [#tpu.dimension_semantics<arbitrary>], iteration_bounds = array<i64: 1>, scalar_prefetch = 0 : i64, scratch_operands = 0 : i64, tpu.core_type = #tpu.core_type<tc>, window_params = [{pipeline_mode = #tpu.pipeline_mode<synchronous>, transform_indices = @transform_0, window_bounds = array<i64: 8, 8, 192>}, {pipeline_mode = #tpu.pipeline_mode<synchronous>, transform_indices = @transform_1, window_bounds = array<i64: 8, 8, 64>}]} {
    %c0 = arith.constant 0 : index
    %c0_0 = arith.constant 0 : index
    %c0_1 = arith.constant 0 : index
    %0 = vector.load %arg1[%c0, %c0_0, %c0_1] : memref<8x8x192xf32, #tpu.memory_space<vmem>>, vector<8x8x8xf32>
    %c0_2 = arith.constant 0 : index
    %c0_3 = arith.constant 0 : index
    %c64 = arith.constant 64 : index
    %1 = vector.load %arg1[%c0_2, %c0_3, %c64] : memref<8x8x192xf32, #tpu.memory_space<vmem>>, vector<8x8x8xf32>
    %c0_4 = arith.constant 0 : index
    %c0_5 = arith.constant 0 : index
    %c128 = arith.constant 128 : index
    %2 = vector.load %arg1[%c0_4, %c0_5, %c128] : memref<8x8x192xf32, #tpu.memory_space<vmem>>, vector<8x8x8xf32>
    "tpu.trace_start"() <{level = 10 : i32, message = "bqd,bkd->bqk"}> : () -> ()
    %cst = arith.constant dense<0.000000e+00> : vector<8x8x8xf32>
    %3 = tpu.matmul %0, %1, %cst {dimension_numbers = #tpu.dot_dimension_numbers<[2], [2], [1], [1], [0, 0, 0, 1, 1, 1], [0], [0]>} : vector<8x8x8xf32>, vector<8x8x8xf32>, vector<8x8x8xf32> -> vector<8x8x8xf32>
    "tpu.trace_stop"() : () -> ()
    %cst_6 = arith.constant 0.353553385 : f32
    %4 = vector.broadcast %cst_6 : f32 to vector<8x8x8xf32>
    %5 = arith.mulf %3, %4 : vector<8x8x8xf32>
    %cst_7 = arith.constant dense<0xFF800000> : vector<8x8xf32>
    %6 = vector.multi_reduction <maximumf>, %5, %cst_7 [2] : vector<8x8x8xf32> to vector<8x8xf32>
    %7 = vector.shape_cast %6 : vector<8x8xf32> to vector<8x8x1xf32>
    %8 = vector.broadcast %7 : vector<8x8x1xf32> to vector<8x8x8xf32>
    %9 = arith.subf %5, %8 : vector<8x8x8xf32>
    %10 = math.exp %9 : vector<8x8x8xf32>
    %cst_8 = arith.constant dense<0.000000e+00> : vector<8x8xf32>
    %11 = vector.multi_reduction <add>, %10, %cst_8 [2] : vector<8x8x8xf32> to vector<8x8xf32>
    %12 = vector.shape_cast %11 : vector<8x8xf32> to vector<8x8x1xf32>
    "tpu.trace_start"() <{level = 10 : i32, message = "bqk,bkd->bqd"}> : () -> ()
    %cst_9 = arith.constant dense<0.000000e+00> : vector<8x8x8xf32>
    %13 = tpu.matmul %10, %2, %cst_9 {dimension_numbers = #tpu.dot_dimension_numbers<[2], [1], [1], [2], [0, 0, 0, 1, 1, 2], [0], [0]>} : vector<8x8x8xf32>, vector<8x8x8xf32>, vector<8x8x8xf32> -> vector<8x8x8xf32>
    "tpu.trace_stop"() : () -> ()
    %14 = tpu.reciprocal %12 {approx = true} : vector<8x8x1xf32> -> vector<8x8x1xf32>
    %15 = vector.broadcast %14 : vector<8x8x1xf32> to vector<8x8x8xf32>
    %16 = arith.mulf %13, %15 : vector<8x8x8xf32>
    %c0_10 = arith.constant 0 : index
    %c0_11 = arith.constant 0 : index
    %c0_12 = arith.constant 0 : index
    %17 = vector.load %arg2[%c0_10, %c0_11, %c0_12] : memref<8x8x64xf32, #tpu.memory_space<vmem>>, vector<8x8x8xf32>
    tpu.vector_store %arg2[%c0_10, %c0_11, %c0_12], %16 {strides = array<i32>} : memref<8x8x64xf32, #tpu.memory_space<vmem>>, vector<8x8x8xf32>,
    %c0_13 = arith.constant 0 : index
    %c0_14 = arith.constant 0 : index
    %c8 = arith.constant 8 : index
    %18 = vector.load %arg1[%c0_13, %c0_14, %c8] : memref<8x8x192xf32, #tpu.memory_space<vmem>>, vector<8x8x8xf32>
    %c0_15 = arith.constant 0 : index
    %c0_16 = arith.constant 0 : index
    %c72 = arith.constant 72 : index
    %19 = vector.load %arg1[%c0_15, %c0_16, %c72] : memref<8x8x192xf32, #tpu.memory_space<vmem>>, vector<8x8x8xf32>
    %c0_17 = arith.constant 0 : index
    %c0_18 = arith.constant 0 : index
    %c136 = arith.constant 136 : index
    %20 = vector.load %arg1[%c0_17, %c0_18, %c136] : memref<8x8x192xf32, #tpu.memory_space<vmem>>, vector<8x8x8xf32>
    "tpu.trace_start"() <{level = 10 : i32, message = "bqd,bkd->bqk"}> : () -> ()
    %cst_19 = arith.constant dense<0.000000e+00> : vector<8x8x8xf32>
    %21 = tpu.matmul %18, %19, %cst_19 {dimension_numbers = #tpu.dot_dimension_numbers<[2], [2], [1], [1], [0, 0, 0, 1, 1, 1], [0], [0]>} : vector<8x8x8xf32>, vector<8x8x8xf32>, vector<8x8x8xf32> -> vector<8x8x8xf32>
    "tpu.trace_stop"() : () -> ()
    %cst_20 = arith.constant 0.353553385 : f32
    %22 = vector.broadcast %cst_20 : f32 to vector<8x8x8xf32>
    %23 = arith.mulf %21, %22 : vector<8x8x8xf32>
    %cst_21 = arith.constant dense<0xFF800000> : vector<8x8xf32>
    %24 = vector.multi_reduction <maximumf>, %23, %cst_21 [2] : vector<8x8x8xf32> to vector<8x8xf32>
    %25 = vector.shape_cast %24 : vector<8x8xf32> to vector<8x8x1xf32>
    %26 = vector.broadcast %25 : vector<8x8x1xf32> to vector<8x8x8xf32>
    %27 = arith.subf %23, %26 : vector<8x8x8xf32>
    %28 = math.exp %27 : vector<8x8x8xf32>
    %cst_22 = arith.constant dense<0.000000e+00> : vector<8x8xf32>
    %29 = vector.multi_reduction <add>, %28, %cst_22 [2] : vector<8x8x8xf32> to vector<8x8xf32>
    %30 = vector.shape_cast %29 : vector<8x8xf32> to vector<8x8x1xf32>
    "tpu.trace_start"() <{level = 10 : i32, message = "bqk,bkd->bqd"}> : () -> ()
    %cst_23 = arith.constant dense<0.000000e+00> : vector<8x8x8xf32>
    %31 = tpu.matmul %28, %20, %cst_23 {dimension_numbers = #tpu.dot_dimension_numbers<[2], [1], [1], [2], [0, 0, 0, 1, 1, 2], [0], [0]>} : vector<8x8x8xf32>, vector<8x8x8xf32>, vector<8x8x8xf32> -> vector<8x8x8xf32>
    "tpu.trace_stop"() : () -> ()
    %32 = tpu.reciprocal %30 {approx = true} : vector<8x8x1xf32> -> vector<8x8x1xf32>
    %33 = vector.broadcast %32 : vector<8x8x1xf32> to vector<8x8x8xf32>
    %34 = arith.mulf %31, %33 : vector<8x8x8xf32>
    %c0_24 = arith.constant 0 : index
    %c0_25 = arith.constant 0 : index
    %c8_26 = arith.constant 8 : index
    %35 = vector.load %arg2[%c0_24, %c0_25, %c8_26] : memref<8x8x64xf32, #tpu.memory_space<vmem>>, vector<8x8x8xf32>
    tpu.vector_store %arg2[%c0_24, %c0_25, %c8_26], %34 {strides = array<i32>} : memref<8x8x64xf32, #tpu.memory_space<vmem>>, vector<8x8x8xf32>,
    %c0_27 = arith.constant 0 : index
    %c0_28 = arith.constant 0 : index
    %c16 = arith.constant 16 : index
    %36 = vector.load %arg1[%c0_27, %c0_28, %c16] : memref<8x8x192xf32, #tpu.memory_space<vmem>>, vector<8x8x8xf32>
    %c0_29 = arith.constant 0 : index
    %c0_30 = arith.constant 0 : index
    %c80 = arith.constant 80 : index
    %37 = vector.load %arg1[%c0_29, %c0_30, %c80] : memref<8x8x192xf32, #tpu.memory_space<vmem>>, vector<8x8x8xf32>
    %c0_31 = arith.constant 0 : index
    %c0_32 = arith.constant 0 : index
    %c144 = arith.constant 144 : index
    %38 = vector.load %arg1[%c0_31, %c0_32, %c144] : memref<8x8x192xf32, #tpu.memory_space<vmem>>, vector<8x8x8xf32>
    "tpu.trace_start"() <{level = 10 : i32, message = "bqd,bkd->bqk"}> : () -> ()
    %cst_33 = arith.constant dense<0.000000e+00> : vector<8x8x8xf32>
    %39 = tpu.matmul %36, %37, %cst_33 {dimension_numbers = #tpu.dot_dimension_numbers<[2], [2], [1], [1], [0, 0, 0, 1, 1, 1], [0], [0]>} : vector<8x8x8xf32>, vector<8x8x8xf32>, vector<8x8x8xf32> -> vector<8x8x8xf32>
    "tpu.trace_stop"() : () -> ()
    %cst_34 = arith.constant 0.353553385 : f32
    %40 = vector.broadcast %cst_34 : f32 to vector<8x8x8xf32>
    %41 = arith.mulf %39, %40 : vector<8x8x8xf32>
    %cst_35 = arith.constant dense<0xFF800000> : vector<8x8xf32>
    %42 = vector.multi_reduction <maximumf>, %41, %cst_35 [2] : vector<8x8x8xf32> to vector<8x8xf32>
    %43 = vector.shape_cast %42 : vector<8x8xf32> to vector<8x8x1xf32>
    %44 = vector.broadcast %43 : vector<8x8x1xf32> to vector<8x8x8xf32>
    %45 = arith.subf %41, %44 : vector<8x8x8xf32>
    %46 = math.exp %45 : vector<8x8x8xf32>
    %cst_36 = arith.constant dense<0.000000e+00> : vector<8x8xf32>
    %47 = vector.multi_reduction <add>, %46, %cst_36 [2] : vector<8x8x8xf32> to vector<8x8xf32>
    %48 = vector.shape_cast %47 : vector<8x8xf32> to vector<8x8x1xf32>
    "tpu.trace_start"() <{level = 10 : i32, message = "bqk,bkd->bqd"}> : () -> ()
    %cst_37 = arith.constant dense<0.000000e+00> : vector<8x8x8xf32>
    %49 = tpu.matmul %46, %38, %cst_37 {dimension_numbers = #tpu.dot_dimension_numbers<[2], [1], [1], [2], [0, 0, 0, 1, 1, 2], [0], [0]>} : vector<8x8x8xf32>, vector<8x8x8xf32>, vector<8x8x8xf32> -> vector<8x8x8xf32>
    "tpu.trace_stop"() : () -> ()
    %50 = tpu.reciprocal %48 {approx = true} : vector<8x8x1xf32> -> vector<8x8x1xf32>
    %51 = vector.broadcast %50 : vector<8x8x1xf32> to vector<8x8x8xf32>
    %52 = arith.mulf %49, %51 : vector<8x8x8xf32>
    %c0_38 = arith.constant 0 : index
    %c0_39 = arith.constant 0 : index
    %c16_40 = arith.constant 16 : index
    %53 = vector.load %arg2[%c0_38, %c0_39, %c16_40] : memref<8x8x64xf32, #tpu.memory_space<vmem>>, vector<8x8x8xf32>
    tpu.vector_store %arg2[%c0_38, %c0_39, %c16_40], %52 {strides = array<i32>} : memref<8x8x64xf32, #tpu.memory_space<vmem>>, vector<8x8x8xf32>,
    %c0_41 = arith.constant 0 : index
    %c0_42 = arith.constant 0 : index
    %c24 = arith.constant 24 : index
    %54 = vector.load %arg1[%c0_41, %c0_42, %c24] : memref<8x8x192xf32, #tpu.memory_space<vmem>>, vector<8x8x8xf32>
    %c0_43 = arith.constant 0 : index
    %c0_44 = arith.constant 0 : index
    %c88 = arith.constant 88 : index
    %55 = vector.load %arg1[%c0_43, %c0_44, %c88] : memref<8x8x192xf32, #tpu.memory_space<vmem>>, vector<8x8x8xf32>
    %c0_45 = arith.constant 0 : index
    %c0_46 = arith.constant 0 : index
    %c152 = arith.constant 152 : index
    %56 = vector.load %arg1[%c0_45, %c0_46, %c152] : memref<8x8x192xf32, #tpu.memory_space<vmem>>, vector<8x8x8xf32>
    "tpu.trace_start"() <{level = 10 : i32, message = "bqd,bkd->bqk"}> : () -> ()
    %cst_47 = arith.constant dense<0.000000e+00> : vector<8x8x8xf32>
    %57 = tpu.matmul %54, %55, %cst_47 {dimension_numbers = #tpu.dot_dimension_numbers<[2], [2], [1], [1], [0, 0, 0, 1, 1, 1], [0], [0]>} : vector<8x8x8xf32>, vector<8x8x8xf32>, vector<8x8x8xf32> -> vector<8x8x8xf32>
    "tpu.trace_stop"() : () -> ()
    %cst_48 = arith.constant 0.353553385 : f32
    %58 = vector.broadcast %cst_48 : f32 to vector<8x8x8xf32>
    %59 = arith.mulf %57, %58 : vector<8x8x8xf32>
    %cst_49 = arith.constant dense<0xFF800000> : vector<8x8xf32>
    %60 = vector.multi_reduction <maximumf>, %59, %cst_49 [2] : vector<8x8x8xf32> to vector<8x8xf32>
    %61 = vector.shape_cast %60 : vector<8x8xf32> to vector<8x8x1xf32>
    %62 = vector.broadcast %61 : vector<8x8x1xf32> to vector<8x8x8xf32>
    %63 = arith.subf %59, %62 : vector<8x8x8xf32>
    %64 = math.exp %63 : vector<8x8x8xf32>
    %cst_50 = arith.constant dense<0.000000e+00> : vector<8x8xf32>
    %65 = vector.multi_reduction <add>, %64, %cst_50 [2] : vector<8x8x8xf32> to vector<8x8xf32>
    %66 = vector.shape_cast %65 : vector<8x8xf32> to vector<8x8x1xf32>
    "tpu.trace_start"() <{level = 10 : i32, message = "bqk,bkd->bqd"}> : () -> ()
    %cst_51 = arith.constant dense<0.000000e+00> : vector<8x8x8xf32>
    %67 = tpu.matmul %64, %56, %cst_51 {dimension_numbers = #tpu.dot_dimension_numbers<[2], [1], [1], [2], [0, 0, 0, 1, 1, 2], [0], [0]>} : vector<8x8x8xf32>, vector<8x8x8xf32>, vector<8x8x8xf32> -> vector<8x8x8xf32>
    "tpu.trace_stop"() : () -> ()
    %68 = tpu.reciprocal %66 {approx = true} : vector<8x8x1xf32> -> vector<8x8x1xf32>
    %69 = vector.broadcast %68 : vector<8x8x1xf32> to vector<8x8x8xf32>
    %70 = arith.mulf %67, %69 : vector<8x8x8xf32>
    %c0_52 = arith.constant 0 : index
    %c0_53 = arith.constant 0 : index
    %c24_54 = arith.constant 24 : index
    %71 = vector.load %arg2[%c0_52, %c0_53, %c24_54] : memref<8x8x64xf32, #tpu.memory_space<vmem>>, vector<8x8x8xf32>
    tpu.vector_store %arg2[%c0_52, %c0_53, %c24_54], %70 {strides = array<i32>} : memref<8x8x64xf32, #tpu.memory_space<vmem>>, vector<8x8x8xf32>,
    %c0_55 = arith.constant 0 : index
    %c0_56 = arith.constant 0 : index
    %c32 = arith.constant 32 : index
    %72 = vector.load %arg1[%c0_55, %c0_56, %c32] : memref<8x8x192xf32, #tpu.memory_space<vmem>>, vector<8x8x8xf32>
    %c0_57 = arith.constant 0 : index
    %c0_58 = arith.constant 0 : index
    %c96 = arith.constant 96 : index
    %73 = vector.load %arg1[%c0_57, %c0_58, %c96] : memref<8x8x192xf32, #tpu.memory_space<vmem>>, vector<8x8x8xf32>
    %c0_59 = arith.constant 0 : index
    %c0_60 = arith.constant 0 : index
    %c160 = arith.constant 160 : index
    %74 = vector.load %arg1[%c0_59, %c0_60, %c160] : memref<8x8x192xf32, #tpu.memory_space<vmem>>, vector<8x8x8xf32>
    "tpu.trace_start"() <{level = 10 : i32, message = "bqd,bkd->bqk"}> : () -> ()
    %cst_61 = arith.constant dense<0.000000e+00> : vector<8x8x8xf32>
    %75 = tpu.matmul %72, %73, %cst_61 {dimension_numbers = #tpu.dot_dimension_numbers<[2], [2], [1], [1], [0, 0, 0, 1, 1, 1], [0], [0]>} : vector<8x8x8xf32>, vector<8x8x8xf32>, vector<8x8x8xf32> -> vector<8x8x8xf32>
    "tpu.trace_stop"() : () -> ()
    %cst_62 = arith.constant 0.353553385 : f32
    %76 = vector.broadcast %cst_62 : f32 to vector<8x8x8xf32>
    %77 = arith.mulf %75, %76 : vector<8x8x8xf32>
    %cst_63 = arith.constant dense<0xFF800000> : vector<8x8xf32>
    %78 = vector.multi_reduction <maximumf>, %77, %cst_63 [2] : vector<8x8x8xf32> to vector<8x8xf32>
    %79 = vector.shape_cast %78 : vector<8x8xf32> to vector<8x8x1xf32>
    %80 = vector.broadcast %79 : vector<8x8x1xf32> to vector<8x8x8xf32>
    %81 = arith.subf %77, %80 : vector<8x8x8xf32>
    %82 = math.exp %81 : vector<8x8x8xf32>
    %cst_64 = arith.constant dense<0.000000e+00> : vector<8x8xf32>
    %83 = vector.multi_reduction <add>, %82, %cst_64 [2] : vector<8x8x8xf32> to vector<8x8xf32>
    %84 = vector.shape_cast %83 : vector<8x8xf32> to vector<8x8x1xf32>
    "tpu.trace_start"() <{level = 10 : i32, message = "bqk,bkd->bqd"}> : () -> ()
    %cst_65 = arith.constant dense<0.000000e+00> : vector<8x8x8xf32>
    %85 = tpu.matmul %82, %74, %cst_65 {dimension_numbers = #tpu.dot_dimension_numbers<[2], [1], [1], [2], [0, 0, 0, 1, 1, 2], [0], [0]>} : vector<8x8x8xf32>, vector<8x8x8xf32>, vector<8x8x8xf32> -> vector<8x8x8xf32>
    "tpu.trace_stop"() : () -> ()
    %86 = tpu.reciprocal %84 {approx = true} : vector<8x8x1xf32> -> vector<8x8x1xf32>
    %87 = vector.broadcast %86 : vector<8x8x1xf32> to vector<8x8x8xf32>
    %88 = arith.mulf %85, %87 : vector<8x8x8xf32>
    %c0_66 = arith.constant 0 : index
    %c0_67 = arith.constant 0 : index
    %c32_68 = arith.constant 32 : index
    %89 = vector.load %arg2[%c0_66, %c0_67, %c32_68] : memref<8x8x64xf32, #tpu.memory_space<vmem>>, vector<8x8x8xf32>
    tpu.vector_store %arg2[%c0_66, %c0_67, %c32_68], %88 {strides = array<i32>} : memref<8x8x64xf32, #tpu.memory_space<vmem>>, vector<8x8x8xf32>,
    %c0_69 = arith.constant 0 : index
    %c0_70 = arith.constant 0 : index
    %c40 = arith.constant 40 : index
    %90 = vector.load %arg1[%c0_69, %c0_70, %c40] : memref<8x8x192xf32, #tpu.memory_space<vmem>>, vector<8x8x8xf32>
    %c0_71 = arith.constant 0 : index
    %c0_72 = arith.constant 0 : index
    %c104 = arith.constant 104 : index
    %91 = vector.load %arg1[%c0_71, %c0_72, %c104] : memref<8x8x192xf32, #tpu.memory_space<vmem>>, vector<8x8x8xf32>
    %c0_73 = arith.constant 0 : index
    %c0_74 = arith.constant 0 : index
    %c168 = arith.constant 168 : index
    %92 = vector.load %arg1[%c0_73, %c0_74, %c168] : memref<8x8x192xf32, #tpu.memory_space<vmem>>, vector<8x8x8xf32>
    "tpu.trace_start"() <{level = 10 : i32, message = "bqd,bkd->bqk"}> : () -> ()
    %cst_75 = arith.constant dense<0.000000e+00> : vector<8x8x8xf32>
    %93 = tpu.matmul %90, %91, %cst_75 {dimension_numbers = #tpu.dot_dimension_numbers<[2], [2], [1], [1], [0, 0, 0, 1, 1, 1], [0], [0]>} : vector<8x8x8xf32>, vector<8x8x8xf32>, vector<8x8x8xf32> -> vector<8x8x8xf32>
    "tpu.trace_stop"() : () -> ()
    %cst_76 = arith.constant 0.353553385 : f32
    %94 = vector.broadcast %cst_76 : f32 to vector<8x8x8xf32>
    %95 = arith.mulf %93, %94 : vector<8x8x8xf32>
    %cst_77 = arith.constant dense<0xFF800000> : vector<8x8xf32>
    %96 = vector.multi_reduction <maximumf>, %95, %cst_77 [2] : vector<8x8x8xf32> to vector<8x8xf32>
    %97 = vector.shape_cast %96 : vector<8x8xf32> to vector<8x8x1xf32>
    %98 = vector.broadcast %97 : vector<8x8x1xf32> to vector<8x8x8xf32>
    %99 = arith.subf %95, %98 : vector<8x8x8xf32>
    %100 = math.exp %99 : vector<8x8x8xf32>
    %cst_78 = arith.constant dense<0.000000e+00> : vector<8x8xf32>
    %101 = vector.multi_reduction <add>, %100, %cst_78 [2] : vector<8x8x8xf32> to vector<8x8xf32>
    %102 = vector.shape_cast %101 : vector<8x8xf32> to vector<8x8x1xf32>
    "tpu.trace_start"() <{level = 10 : i32, message = "bqk,bkd->bqd"}> : () -> ()
    %cst_79 = arith.constant dense<0.000000e+00> : vector<8x8x8xf32>
    %103 = tpu.matmul %100, %92, %cst_79 {dimension_numbers = #tpu.dot_dimension_numbers<[2], [1], [1], [2], [0, 0, 0, 1, 1, 2], [0], [0]>} : vector<8x8x8xf32>, vector<8x8x8xf32>, vector<8x8x8xf32> -> vector<8x8x8xf32>
    "tpu.trace_stop"() : () -> ()
    %104 = tpu.reciprocal %102 {approx = true} : vector<8x8x1xf32> -> vector<8x8x1xf32>
    %105 = vector.broadcast %104 : vector<8x8x1xf32> to vector<8x8x8xf32>
    %106 = arith.mulf %103, %105 : vector<8x8x8xf32>
    %c0_80 = arith.constant 0 : index
    %c0_81 = arith.constant 0 : index
    %c40_82 = arith.constant 40 : index
    %107 = vector.load %arg2[%c0_80, %c0_81, %c40_82] : memref<8x8x64xf32, #tpu.memory_space<vmem>>, vector<8x8x8xf32>
    tpu.vector_store %arg2[%c0_80, %c0_81, %c40_82], %106 {strides = array<i32>} : memref<8x8x64xf32, #tpu.memory_space<vmem>>, vector<8x8x8xf32>,
    %c0_83 = arith.constant 0 : index
    %c0_84 = arith.constant 0 : index
    %c48 = arith.constant 48 : index
    %108 = vector.load %arg1[%c0_83, %c0_84, %c48] : memref<8x8x192xf32, #tpu.memory_space<vmem>>, vector<8x8x8xf32>
    %c0_85 = arith.constant 0 : index
    %c0_86 = arith.constant 0 : index
    %c112 = arith.constant 112 : index
    %109 = vector.load %arg1[%c0_85, %c0_86, %c112] : memref<8x8x192xf32, #tpu.memory_space<vmem>>, vector<8x8x8xf32>
    %c0_87 = arith.constant 0 : index
    %c0_88 = arith.constant 0 : index
    %c176 = arith.constant 176 : index
    %110 = vector.load %arg1[%c0_87, %c0_88, %c176] : memref<8x8x192xf32, #tpu.memory_space<vmem>>, vector<8x8x8xf32>
    "tpu.trace_start"() <{level = 10 : i32, message = "bqd,bkd->bqk"}> : () -> ()
    %cst_89 = arith.constant dense<0.000000e+00> : vector<8x8x8xf32>
    %111 = tpu.matmul %108, %109, %cst_89 {dimension_numbers = #tpu.dot_dimension_numbers<[2], [2], [1], [1], [0, 0, 0, 1, 1, 1], [0], [0]>} : vector<8x8x8xf32>, vector<8x8x8xf32>, vector<8x8x8xf32> -> vector<8x8x8xf32>
    "tpu.trace_stop"() : () -> ()
    %cst_90 = arith.constant 0.353553385 : f32
    %112 = vector.broadcast %cst_90 : f32 to vector<8x8x8xf32>
    %113 = arith.mulf %111, %112 : vector<8x8x8xf32>
    %cst_91 = arith.constant dense<0xFF800000> : vector<8x8xf32>
    %114 = vector.multi_reduction <maximumf>, %113, %cst_91 [2] : vector<8x8x8xf32> to vector<8x8xf32>
    %115 = vector.shape_cast %114 : vector<8x8xf32> to vector<8x8x1xf32>
    %116 = vector.broadcast %115 : vector<8x8x1xf32> to vector<8x8x8xf32>
    %117 = arith.subf %113, %116 : vector<8x8x8xf32>
    %118 = math.exp %117 : vector<8x8x8xf32>
    %cst_92 = arith.constant dense<0.000000e+00> : vector<8x8xf32>
    %119 = vector.multi_reduction <add>, %118, %cst_92 [2] : vector<8x8x8xf32> to vector<8x8xf32>
    %120 = vector.shape_cast %119 : vector<8x8xf32> to vector<8x8x1xf32>
    "tpu.trace_start"() <{level = 10 : i32, message = "bqk,bkd->bqd"}> : () -> ()
    %cst_93 = arith.constant dense<0.000000e+00> : vector<8x8x8xf32>
    %121 = tpu.matmul %118, %110, %cst_93 {dimension_numbers = #tpu.dot_dimension_numbers<[2], [1], [1], [2], [0, 0, 0, 1, 1, 2], [0], [0]>} : vector<8x8x8xf32>, vector<8x8x8xf32>, vector<8x8x8xf32> -> vector<8x8x8xf32>
    "tpu.trace_stop"() : () -> ()
    %122 = tpu.reciprocal %120 {approx = true} : vector<8x8x1xf32> -> vector<8x8x1xf32>
    %123 = vector.broadcast %122 : vector<8x8x1xf32> to vector<8x8x8xf32>
    %124 = arith.mulf %121, %123 : vector<8x8x8xf32>
    %c0_94 = arith.constant 0 : index
    %c0_95 = arith.constant 0 : index
    %c48_96 = arith.constant 48 : index
    %125 = vector.load %arg2[%c0_94, %c0_95, %c48_96] : memref<8x8x64xf32, #tpu.memory_space<vmem>>, vector<8x8x8xf32>
    tpu.vector_store %arg2[%c0_94, %c0_95, %c48_96], %124 {strides = array<i32>} : memref<8x8x64xf32, #tpu.memory_space<vmem>>, vector<8x8x8xf32>,
    %c0_97 = arith.constant 0 : index
    %c0_98 = arith.constant 0 : index
    %c56 = arith.constant 56 : index
    %126 = vector.load %arg1[%c0_97, %c0_98, %c56] : memref<8x8x192xf32, #tpu.memory_space<vmem>>, vector<8x8x8xf32>
    %c0_99 = arith.constant 0 : index
    %c0_100 = arith.constant 0 : index
    %c120 = arith.constant 120 : index
    %127 = vector.load %arg1[%c0_99, %c0_100, %c120] : memref<8x8x192xf32, #tpu.memory_space<vmem>>, vector<8x8x8xf32>
    %c0_101 = arith.constant 0 : index
    %c0_102 = arith.constant 0 : index
    %c184 = arith.constant 184 : index
    %128 = vector.load %arg1[%c0_101, %c0_102, %c184] : memref<8x8x192xf32, #tpu.memory_space<vmem>>, vector<8x8x8xf32>
    "tpu.trace_start"() <{level = 10 : i32, message = "bqd,bkd->bqk"}> : () -> ()
    %cst_103 = arith.constant dense<0.000000e+00> : vector<8x8x8xf32>
    %129 = tpu.matmul %126, %127, %cst_103 {dimension_numbers = #tpu.dot_dimension_numbers<[2], [2], [1], [1], [0, 0, 0, 1, 1, 1], [0], [0]>} : vector<8x8x8xf32>, vector<8x8x8xf32>, vector<8x8x8xf32> -> vector<8x8x8xf32>
    "tpu.trace_stop"() : () -> ()
    %cst_104 = arith.constant 0.353553385 : f32
    %130 = vector.broadcast %cst_104 : f32 to vector<8x8x8xf32>
    %131 = arith.mulf %129, %130 : vector<8x8x8xf32>
    %cst_105 = arith.constant dense<0xFF800000> : vector<8x8xf32>
    %132 = vector.multi_reduction <maximumf>, %131, %cst_105 [2] : vector<8x8x8xf32> to vector<8x8xf32>
    %133 = vector.shape_cast %132 : vector<8x8xf32> to vector<8x8x1xf32>
    %134 = vector.broadcast %133 : vector<8x8x1xf32> to vector<8x8x8xf32>
    %135 = arith.subf %131, %134 : vector<8x8x8xf32>
    %136 = math.exp %135 : vector<8x8x8xf32>
    %cst_106 = arith.constant dense<0.000000e+00> : vector<8x8xf32>
    %137 = vector.multi_reduction <add>, %136, %cst_106 [2] : vector<8x8x8xf32> to vector<8x8xf32>
    %138 = vector.shape_cast %137 : vector<8x8xf32> to vector<8x8x1xf32>
    "tpu.trace_start"() <{level = 10 : i32, message = "bqk,bkd->bqd"}> : () -> ()
    %cst_107 = arith.constant dense<0.000000e+00> : vector<8x8x8xf32>
    %139 = tpu.matmul %136, %128, %cst_107 {dimension_numbers = #tpu.dot_dimension_numbers<[2], [1], [1], [2], [0, 0, 0, 1, 1, 2], [0], [0]>} : vector<8x8x8xf32>, vector<8x8x8xf32>, vector<8x8x8xf32> -> vector<8x8x8xf32>
    "tpu.trace_stop"() : () -> ()
    %140 = tpu.reciprocal %138 {approx = true} : vector<8x8x1xf32> -> vector<8x8x1xf32>
    %141 = vector.broadcast %140 : vector<8x8x1xf32> to vector<8x8x8xf32>
    %142 = arith.mulf %139, %141 : vector<8x8x8xf32>
    %c0_108 = arith.constant 0 : index
    %c0_109 = arith.constant 0 : index
    %c56_110 = arith.constant 56 : index
    %143 = vector.load %arg2[%c0_108, %c0_109, %c56_110] : memref<8x8x64xf32, #tpu.memory_space<vmem>>, vector<8x8x8xf32>
    tpu.vector_store %arg2[%c0_108, %c0_109, %c56_110], %142 {strides = array<i32>} : memref<8x8x64xf32, #tpu.memory_space<vmem>>, vector<8x8x8xf32>,
    return
  }
  func.func @transform_0(%arg0: i32) -> (i32, i32, i32) {
    %c0_i32 = arith.constant 0 : i32
    %c0_i32_0 = arith.constant 0 : i32
    %c0_i32_1 = arith.constant 0 : i32
    %c0_i32_2 = arith.constant 0 : i32
    return %c0_i32, %c0_i32_0, %c0_i32_1 : i32, i32, i32
  }
  func.func @transform_1(%arg0: i32) -> (i32, i32, i32) {
    %c0_i32 = arith.constant 0 : i32
    %c0_i32_0 = arith.constant 0 : i32
    %c0_i32_1 = arith.constant 0 : i32
    %c0_i32_2 = arith.constant 0 : i32
    return %c0_i32, %c0_i32_0, %c0_i32_1 : i32, i32, i32
  }
}

module attributes {stable_mosaic.version = 11 : i64} {
  func.func @_outproj_fusion_kernel(%arg0: i32, %arg1: memref<16x256xf32, #tpu.memory_space<vmem>>, %arg2: memref<64x64xf32, #tpu.memory_space<vmem>>, %arg3: memref<1x64xf32, #tpu.memory_space<vmem>>, %arg4: memref<256x128xf32, #tpu.memory_space<vmem>>, %arg5: memref<1x128xf32, #tpu.memory_space<vmem>>, %arg6: memref<128x64xf32, #tpu.memory_space<vmem>>, %arg7: memref<1x64xf32, #tpu.memory_space<vmem>>, %arg8: memref<16x64xf32, #tpu.memory_space<vmem>>) attributes {dimension_semantics = [#tpu.dimension_semantics<arbitrary>], iteration_bounds = array<i64: 1>, scalar_prefetch = 0 : i64, scratch_operands = 0 : i64, tpu.core_type = #tpu.core_type<tc>, window_params = [{pipeline_mode = #tpu.pipeline_mode<synchronous>, transform_indices = @transform_0, window_bounds = array<i64: 16, 256>}, {pipeline_mode = #tpu.pipeline_mode<synchronous>, transform_indices = @transform_1, window_bounds = array<i64: 64, 64>}, {pipeline_mode = #tpu.pipeline_mode<synchronous>, transform_indices = @transform_2, window_bounds = array<i64: 1, 64>}, {pipeline_mode = #tpu.pipeline_mode<synchronous>, transform_indices = @transform_3, window_bounds = array<i64: 256, 128>}, {pipeline_mode = #tpu.pipeline_mode<synchronous>, transform_indices = @transform_4, window_bounds = array<i64: 1, 128>}, {pipeline_mode = #tpu.pipeline_mode<synchronous>, transform_indices = @transform_5, window_bounds = array<i64: 128, 64>}, {pipeline_mode = #tpu.pipeline_mode<synchronous>, transform_indices = @transform_6, window_bounds = array<i64: 1, 64>}, {pipeline_mode = #tpu.pipeline_mode<synchronous>, transform_indices = @transform_7, window_bounds = array<i64: 16, 64>}]} {
    %c0 = arith.constant 0 : index
    %c0_0 = arith.constant 0 : index
    %0 = vector.load %arg2[%c0, %c0_0] : memref<64x64xf32, #tpu.memory_space<vmem>>, vector<64x64xf32>
    %c0_1 = arith.constant 0 : index
    %c0_2 = arith.constant 0 : index
    %1 = vector.load %arg3[%c0_1, %c0_2] : memref<1x64xf32, #tpu.memory_space<vmem>>, vector<1x64xf32>
    %c0_3 = arith.constant 0 : index
    %c0_4 = arith.constant 0 : index
    %2 = vector.load %arg1[%c0_3, %c0_4] : memref<16x256xf32, #tpu.memory_space<vmem>>, vector<16x64xf32>
    %cst = arith.constant dense<0.000000e+00> : vector<16x64xf32>
    %3 = tpu.matmul %2, %0, %cst {dimension_numbers = #tpu.dot_dimension_numbers<[1], [0], [0], [1], [0, 0, 1, 1], [], []>} : vector<16x64xf32>, vector<64x64xf32>, vector<16x64xf32> -> vector<16x64xf32>
    %4 = vector.broadcast %1 : vector<1x64xf32> to vector<16x64xf32>
    %5 = arith.addf %3, %4 : vector<16x64xf32>
    %c0_5 = arith.constant 0 : index
    %c0_6 = arith.constant 0 : index
    %6 = vector.load %arg4[%c0_5, %c0_6] : memref<256x128xf32, #tpu.memory_space<vmem>>, vector<64x128xf32>
    %cst_7 = arith.constant dense<0.000000e+00> : vector<16x128xf32>
    %7 = tpu.matmul %5, %6, %cst_7 {dimension_numbers = #tpu.dot_dimension_numbers<[1], [0], [0], [1], [0, 0, 1, 1], [], []>} : vector<16x64xf32>, vector<64x128xf32>, vector<16x128xf32> -> vector<16x128xf32>
    %c0_8 = arith.constant 0 : index
    %c64 = arith.constant 64 : index
    %8 = vector.load %arg1[%c0_8, %c64] : memref<16x256xf32, #tpu.memory_space<vmem>>, vector<16x64xf32>
    %cst_9 = arith.constant dense<0.000000e+00> : vector<16x64xf32>
    %9 = tpu.matmul %8, %0, %cst_9 {dimension_numbers = #tpu.dot_dimension_numbers<[1], [0], [0], [1], [0, 0, 1, 1], [], []>} : vector<16x64xf32>, vector<64x64xf32>, vector<16x64xf32> -> vector<16x64xf32>
    %10 = vector.broadcast %1 : vector<1x64xf32> to vector<16x64xf32>
    %11 = arith.addf %9, %10 : vector<16x64xf32>
    %c64_10 = arith.constant 64 : index
    %c0_11 = arith.constant 0 : index
    %12 = vector.load %arg4[%c64_10, %c0_11] : memref<256x128xf32, #tpu.memory_space<vmem>>, vector<64x128xf32>
    %cst_12 = arith.constant dense<0.000000e+00> : vector<16x128xf32>
    %13 = tpu.matmul %11, %12, %cst_12 {dimension_numbers = #tpu.dot_dimension_numbers<[1], [0], [0], [1], [0, 0, 1, 1], [], []>} : vector<16x64xf32>, vector<64x128xf32>, vector<16x128xf32> -> vector<16x128xf32>
    %14 = arith.addf %7, %13 : vector<16x128xf32>
    %c0_13 = arith.constant 0 : index
    %c128 = arith.constant 128 : index
    %15 = vector.load %arg1[%c0_13, %c128] : memref<16x256xf32, #tpu.memory_space<vmem>>, vector<16x64xf32>
    %cst_14 = arith.constant dense<0.000000e+00> : vector<16x64xf32>
    %16 = tpu.matmul %15, %0, %cst_14 {dimension_numbers = #tpu.dot_dimension_numbers<[1], [0], [0], [1], [0, 0, 1, 1], [], []>} : vector<16x64xf32>, vector<64x64xf32>, vector<16x64xf32> -> vector<16x64xf32>
    %17 = vector.broadcast %1 : vector<1x64xf32> to vector<16x64xf32>
    %18 = arith.addf %16, %17 : vector<16x64xf32>
    %c128_15 = arith.constant 128 : index
    %c0_16 = arith.constant 0 : index
    %19 = vector.load %arg4[%c128_15, %c0_16] : memref<256x128xf32, #tpu.memory_space<vmem>>, vector<64x128xf32>
    %cst_17 = arith.constant dense<0.000000e+00> : vector<16x128xf32>
    %20 = tpu.matmul %18, %19, %cst_17 {dimension_numbers = #tpu.dot_dimension_numbers<[1], [0], [0], [1], [0, 0, 1, 1], [], []>} : vector<16x64xf32>, vector<64x128xf32>, vector<16x128xf32> -> vector<16x128xf32>
    %21 = arith.addf %14, %20 : vector<16x128xf32>
    %c0_18 = arith.constant 0 : index
    %c192 = arith.constant 192 : index
    %22 = vector.load %arg1[%c0_18, %c192] : memref<16x256xf32, #tpu.memory_space<vmem>>, vector<16x64xf32>
    %cst_19 = arith.constant dense<0.000000e+00> : vector<16x64xf32>
    %23 = tpu.matmul %22, %0, %cst_19 {dimension_numbers = #tpu.dot_dimension_numbers<[1], [0], [0], [1], [0, 0, 1, 1], [], []>} : vector<16x64xf32>, vector<64x64xf32>, vector<16x64xf32> -> vector<16x64xf32>
    %24 = vector.broadcast %1 : vector<1x64xf32> to vector<16x64xf32>
    %25 = arith.addf %23, %24 : vector<16x64xf32>
    %c192_20 = arith.constant 192 : index
    %c0_21 = arith.constant 0 : index
    %26 = vector.load %arg4[%c192_20, %c0_21] : memref<256x128xf32, #tpu.memory_space<vmem>>, vector<64x128xf32>
    %cst_22 = arith.constant dense<0.000000e+00> : vector<16x128xf32>
    %27 = tpu.matmul %25, %26, %cst_22 {dimension_numbers = #tpu.dot_dimension_numbers<[1], [0], [0], [1], [0, 0, 1, 1], [], []>} : vector<16x64xf32>, vector<64x128xf32>, vector<16x128xf32> -> vector<16x128xf32>
    %28 = arith.addf %21, %27 : vector<16x128xf32>
    %c0_23 = arith.constant 0 : index
    %c0_24 = arith.constant 0 : index
    %29 = vector.load %arg5[%c0_23, %c0_24] : memref<1x128xf32, #tpu.memory_space<vmem>>, vector<1x128xf32>
    %30 = vector.broadcast %29 : vector<1x128xf32> to vector<16x128xf32>
    %31 = arith.addf %28, %30 : vector<16x128xf32>
    %cst_25 = arith.constant 5.000000e-01 : f32
    %32 = vector.broadcast %cst_25 : f32 to vector<16x128xf32>
    %33 = arith.mulf %32, %31 : vector<16x128xf32>
    %cst_26 = arith.constant 0.707106769 : f32
    %34 = vector.broadcast %cst_26 : f32 to vector<16x128xf32>
    %35 = arith.mulf %31, %34 : vector<16x128xf32>
    %36 = math.erf %35 : vector<16x128xf32>
    %cst_27 = arith.constant 1.000000e+00 : f32
    %37 = vector.broadcast %cst_27 : f32 to vector<16x128xf32>
    %38 = arith.addf %37, %36 : vector<16x128xf32>
    %39 = arith.mulf %33, %38 : vector<16x128xf32>
    %c0_28 = arith.constant 0 : index
    %c0_29 = arith.constant 0 : index
    %40 = vector.load %arg6[%c0_28, %c0_29] : memref<128x64xf32, #tpu.memory_space<vmem>>, vector<128x64xf32>
    %cst_30 = arith.constant dense<0.000000e+00> : vector<16x64xf32>
    %41 = tpu.matmul %39, %40, %cst_30 {dimension_numbers = #tpu.dot_dimension_numbers<[1], [0], [0], [1], [0, 0, 1, 1], [], []>} : vector<16x128xf32>, vector<128x64xf32>, vector<16x64xf32> -> vector<16x64xf32>
    %c0_31 = arith.constant 0 : index
    %c0_32 = arith.constant 0 : index
    %42 = vector.load %arg7[%c0_31, %c0_32] : memref<1x64xf32, #tpu.memory_space<vmem>>, vector<1x64xf32>
    %43 = vector.broadcast %42 : vector<1x64xf32> to vector<16x64xf32>
    %44 = arith.addf %41, %43 : vector<16x64xf32>
    %c0_33 = arith.constant 0 : index
    %c0_34 = arith.constant 0 : index
    %45 = vector.load %arg8[%c0_33, %c0_34] : memref<16x64xf32, #tpu.memory_space<vmem>>, vector<16x64xf32>
    tpu.vector_store %arg8[%c0_33, %c0_34], %44 {strides = array<i32>} : memref<16x64xf32, #tpu.memory_space<vmem>>, vector<16x64xf32>,
    return
  }
  func.func @transform_0(%arg0: i32) -> (i32, i32) {
    %c0_i32 = arith.constant 0 : i32
    %c0_i32_0 = arith.constant 0 : i32
    %c0_i32_1 = arith.constant 0 : i32
    return %c0_i32, %c0_i32_0 : i32, i32
  }
  func.func @transform_1(%arg0: i32) -> (i32, i32) {
    %c0_i32 = arith.constant 0 : i32
    %c0_i32_0 = arith.constant 0 : i32
    %c0_i32_1 = arith.constant 0 : i32
    return %c0_i32, %c0_i32_0 : i32, i32
  }
  func.func @transform_2(%arg0: i32) -> (i32, i32) {
    %c0_i32 = arith.constant 0 : i32
    %c0_i32_0 = arith.constant 0 : i32
    %c0_i32_1 = arith.constant 0 : i32
    return %c0_i32, %c0_i32_0 : i32, i32
  }
  func.func @transform_3(%arg0: i32) -> (i32, i32) {
    %c0_i32 = arith.constant 0 : i32
    %c0_i32_0 = arith.constant 0 : i32
    %c0_i32_1 = arith.constant 0 : i32
    return %c0_i32, %c0_i32_0 : i32, i32
  }
  func.func @transform_4(%arg0: i32) -> (i32, i32) {
    %c0_i32 = arith.constant 0 : i32
    %c0_i32_0 = arith.constant 0 : i32
    %c0_i32_1 = arith.constant 0 : i32
    return %c0_i32, %c0_i32_0 : i32, i32
  }
  func.func @transform_5(%arg0: i32) -> (i32, i32) {
    %c0_i32 = arith.constant 0 : i32
    %c0_i32_0 = arith.constant 0 : i32
    %c0_i32_1 = arith.constant 0 : i32
    return %c0_i32, %c0_i32_0 : i32, i32
  }
  func.func @transform_6(%arg0: i32) -> (i32, i32) {
    %c0_i32 = arith.constant 0 : i32
    %c0_i32_0 = arith.constant 0 : i32
    %c0_i32_1 = arith.constant 0 : i32
    return %c0_i32, %c0_i32_0 : i32, i32
  }
  func.func @transform_7(%arg0: i32) -> (i32, i32) {
    %c0_i32 = arith.constant 0 : i32
    %c0_i32_0 = arith.constant 0 : i32
    %c0_i32_1 = arith.constant 0 : i32
    return %c0_i32, %c0_i32_0 : i32, i32
  }
}

</mosaic_0001>

<llo_original>
// kernel: _forward.3
$region0: #{_forward.3}
  #allocation0 [shape = 'u32[]', space=smem, size = 0x4, offset = 0x4, fixed_abs, tag = 'smem constant byte address 0x4 - core index']
  #allocation1 [shape = 'u32[144,128]{1,0:T(1,128)}', space=vmem, size = 0x12000, scoped, tag = 'internal scratch']
  %s0 = inlined_call_operand.hbm [shape: f32[16,64], index: 0, kind: input, shape index: {}]
  %s1 = inlined_call_operand.hbm [shape: f32[64,768], index: 1, kind: input, shape index: {}]
  %s2 = inlined_call_operand.vmem [shape: f32[1,768], index: 2, kind: input, shape index: {}]
  %s3 = inlined_call_operand.vmem [shape: f32[16,768], index: 3, kind: output, shape index: {}]
  %s4 = sld [smem:[#allocation0]]
  $region30: #{_forward.3} parent=0
    _
  %s6 = ssub.s32 1, %s4
  %s7 = scalar_select 0, %s6, %s4
  $region1: #{_forward.3} parent=0
    #allocation2 [shape = 'u8[8192]{0}', space=vmem, size = 0x2000, scoped, tag = 'input window, operand 0, single buffered']
    #allocation3 [shape = 's32[1]{0}', space=sflag, size = 0x4, scoped, tag = 'scoped memory for _forward.3']
    #allocation4 [shape = 'u8[196608]{0}', space=vmem, size = 0x30000, scoped, tag = 'input window, operand 1, single buffered']
    #allocation5 [shape = 's32[1]{0}', space=sflag, size = 0x4, scoped, tag = 'scoped memory for _forward.3']
    %8 = vsyncpa [#allocation3], 0
    %9 = vsyncpa [#allocation5], 0
    // Predicated region
    $region2: #{_forward.3} parent=1 // pred_check
      _
    $region3: #{_forward.3} parent=1 // pred_check_branch
      %11 = sbr.rel (0) target = $region5
    $region4: #{_forward.3} parent=1 // pred_region
      %s13 = ssub.s32 256, 256
      %14 = vsyncadd [#allocation3], %s13
      %s15 = sshll.u32 [#allocation2], 4
      %s16 = int_to_ptr.vmem [resolvable:$true] %s15
      %21 = dma.hbm_to_vmem [thread:$0]  %s0, 256, %s16, [#allocation3], 128, 128, 8
    $region5: #{_forward.3} parent=1 // pred_fallthru
      _
    // Predicated region
    $region6: #{_forward.3} parent=1 // pred_check
      _
    $region7: #{_forward.3} parent=1 // pred_check_branch
      %23 = sbr.rel (0) target = $region9
    $region8: #{_forward.3} parent=1 // pred_region
      %s25 = ssub.s32 6144, 6144
      %26 = vsyncadd [#allocation5], %s25
      %s27 = sshll.u32 [#allocation4], 4
      %s28 = int_to_ptr.vmem [resolvable:$true] %s27
      %33 = dma.hbm_to_vmem [thread:$0]  %s1, 6144, %s28, [#allocation5], 768, 768, 48
    $region9: #{_forward.3} parent=1 // pred_fallthru
      _
    // Predicated region
    $region10: #{_forward.3} parent=1 // pred_check
      _
    $region11: #{_forward.3} parent=1 // pred_check_branch
      %35 = sbr.rel (0) target = $region13
    $region12: #{_forward.3} parent=1 // pred_region
      _
    $region13: #{_forward.3} parent=1 // pred_fallthru
      _
    // Predicated region
    $region14: #{_forward.3} parent=1 // pred_check
      _
    $region15: #{_forward.3} parent=1 // pred_check_branch
      %37 = sbr.rel (0) target = $region17
    $region16: #{_forward.3} parent=1 // pred_region
      %38 = dma.done [#allocation3], 256
    $region17: #{_forward.3} parent=1 // pred_fallthru
      _
    // Predicated region
    $region18: #{_forward.3} parent=1 // pred_check
      _
    $region19: #{_forward.3} parent=1 // pred_check_branch
      %40 = sbr.rel (0) target = $region21
    $region20: #{_forward.3} parent=1 // pred_region
      %41 = dma.done [#allocation5], 6144
    $region21: #{_forward.3} parent=1 // pred_fallthru
      _
    %v42 = vld [vmem:[#allocation2] sm:$0xff]
    %v43 = vld [vmem:[#allocation2 + $0x8] sm:$0xff]
    %v44 = vld [vmem:[#allocation4] sm:$0xff]
    %v45 = vld [vmem:[#allocation4 + $0x8] sm:$0xff]
    %v46 = vld [vmem:[#allocation4 + $0x10] sm:$0xff]
    %v47 = vld [vmem:[#allocation4 + $0x18] sm:$0xff]
    %v48 = vld [vmem:[#allocation4 + $0x20] sm:$0xff]
    %v49 = vld [vmem:[#allocation4 + $0x28] sm:$0xff]
    %v50 = vld [vmem:[#allocation4 + $0x30] sm:$0xff]
    %v51 = vld [vmem:[#allocation4 + $0x38] sm:$0xff]
    %v52 = vld [vmem:[#allocation4 + $0x40] sm:$0xff]
    %v53 = vld [vmem:[#allocation4 + $0x48] sm:$0xff]
    %v54 = vld [vmem:[#allocation4 + $0x50] sm:$0xff]
    %v55 = vld [vmem:[#allocation4 + $0x58] sm:$0xff]
    %v56 = vld [vmem:[#allocation4 + $0x60] sm:$0xff]
    %v57 = vld [vmem:[#allocation4 + $0x68] sm:$0xff]
    %v58 = vld [vmem:[#allocation4 + $0x70] sm:$0xff]
    %v59 = vld [vmem:[#allocation4 + $0x78] sm:$0xff]
    %v60 = vld [vmem:[#allocation4 + $0x80] sm:$0xff]
    %v61 = vld [vmem:[#allocation4 + $0x88] sm:$0xff]
    %v62 = vld [vmem:[#allocation4 + $0x90] sm:$0xff]
    %v63 = vld [vmem:[#allocation4 + $0x98] sm:$0xff]
    %v64 = vld [vmem:[#allocation4 + $0xa0] sm:$0xff]
    %v65 = vld [vmem:[#allocation4 + $0xa8] sm:$0xff]
    %v66 = vld [vmem:[#allocation4 + $0xb0] sm:$0xff]
    %v67 = vld [vmem:[#allocation4 + $0xb8] sm:$0xff]
    %v68 = vld [vmem:[#allocation4 + $0xc0] sm:$0xff]
    %v69 = vld [vmem:[#allocation4 + $0xc8] sm:$0xff]
    %v70 = vld [vmem:[#allocation4 + $0xd0] sm:$0xff]
    %v71 = vld [vmem:[#allocation4 + $0xd8] sm:$0xff]
    %v72 = vld [vmem:[#allocation4 + $0xe0] sm:$0xff]
    %v73 = vld [vmem:[#allocation4 + $0xe8] sm:$0xff]
    %v74 = vld [vmem:[#allocation4 + $0xf0] sm:$0xff]
    %v75 = vld [vmem:[#allocation4 + $0xf8] sm:$0xff]
    %v76 = vld [vmem:[#allocation4 + $0x100] sm:$0xff]
    %v77 = vld [vmem:[#allocation4 + $0x108] sm:$0xff]
    %v78 = vld [vmem:[#allocation4 + $0x110] sm:$0xff]
    %v79 = vld [vmem:[#allocation4 + $0x118] sm:$0xff]
    %v80 = vld [vmem:[#allocation4 + $0x120] sm:$0xff]
    %v81 = vld [vmem:[#allocation4 + $0x128] sm:$0xff]
    %v82 = vld [vmem:[#allocation4 + $0x130] sm:$0xff]
    %v83 = vld [vmem:[#allocation4 + $0x138] sm:$0xff]
    %v84 = vld [vmem:[#allocation4 + $0x140] sm:$0xff]
    %v85 = vld [vmem:[#allocation4 + $0x148] sm:$0xff]
    %v86 = vld [vmem:[#allocation4 + $0x150] sm:$0xff]
    %v87 = vld [vmem:[#allocation4 + $0x158] sm:$0xff]
    %v88 = vld [vmem:[#allocation4 + $0x160] sm:$0xff]
    %v89 = vld [vmem:[#allocation4 + $0x168] sm:$0xff]
    %v90 = vld [vmem:[#allocation4 + $0x170] sm:$0xff]
    %v91 = vld [vmem:[#allocation4 + $0x178] sm:$0xff]
    %v92 = vld [vmem:[%s2] sm:$0x3f]
    %v94 = vlaneseq
    %v95 = vshrl.u32 %v94, 7
    %v96 = vsub.s32 0, %v95
    %v97 = vrot.slane %v92, %v96
    %v98 = vlaneseq
    %v99 = vshrl.u32 %v98, 7
    %v100 = vsub.s32 1, %v99
    %v101 = vrot.slane %v92, %v100
    %v102 = vlaneseq
    %v103 = vshrl.u32 %v102, 7
    %v104 = vsub.s32 2, %v103
    %v105 = vrot.slane %v92, %v104
    %v106 = vlaneseq
    %v107 = vshrl.u32 %v106, 7
    %v108 = vsub.s32 3, %v107
    %v109 = vrot.slane %v92, %v108
    %v110 = vlaneseq
    %v111 = vshrl.u32 %v110, 7
    %v112 = vsub.s32 4, %v111
    %v113 = vrot.slane %v92, %v112
    %v114 = vlaneseq
    %v115 = vshrl.u32 %v114, 7
    %v116 = vsub.s32 5, %v115
    %v117 = vrot.slane %v92, %v116
    %vm124 = vcmask 523264
    %v126 = vsel %vm124, %v42, 0
    %v129 = vsel %vm124, %v43, 0
    %131 = vmatprep.subr.mxu0 %v45
    %132 = vmatpush1.msra.mxu0 %v44
    %133 = vmatprep.subr.mxu0 %v51
    %134 = vmatpush1.msra.mxu0 %v50
    %135 = vmatprep.subr.mxu0 %v57
    %136 = vmatpush1.msra.mxu0 %v56
    %137 = vmatprep.subr.mxu0 %v63
    %138 = vmatpush1.msra.mxu0 %v62
    %139 = vmatprep.subr.mxu0 %v69
    %140 = vmatpush1.msra.mxu0 %v68
    %141 = vmatprep.subr.mxu0 %v75
    %142 = vmatpush1.msra.mxu0 %v74
    %143 = vmatprep.subr.mxu0 %v81
    %144 = vmatpush1.msra.mxu0 %v80
    %145 = vmatprep.subr.mxu0 %v87
    %146 = vmatpush1.msra.mxu0 %v86
    %147 = vmatprep.subr.mxu0 0.0
    %148 = vmatpush1.msra.mxu0 0.0
    %149 = vmatprep.subr.mxu0 0.0
    %150 = vmatpush1.msra.mxu0 0.0
    %151 = vmatprep.subr.mxu0 0.0
    %152 = vmatpush1.msra.mxu0 0.0
    %153 = vmatprep.subr.mxu0 0.0
    %154 = vmatpush1.msra.mxu0 0.0
    %155 = vmatprep.subr.mxu0 0.0
    %156 = vmatpush1.msra.mxu0 0.0
    %157 = vmatprep.subr.mxu0 0.0
    %158 = vmatpush1.msra.mxu0 0.0
    %159 = vmatprep.subr.mxu0 0.0
    %160 = vmatpush1.msra.mxu0 0.0
    %161 = vmatprep.subr.mxu0 0.0
    %162 = vmatpush1.msra.mxu0 0.0
    %163 = vmatprep.subr.mxu0 0.0
    %164 = vmatpush1.msra.mxu0 0.0
    %165 = vmatprep.subr.mxu0 0.0
    %166 = vmatpush1.msra.mxu0 0.0
    %167 = vmatprep.subr.mxu0 0.0
    %168 = vmatpush1.msra.mxu0 0.0
    %169 = vmatprep.subr.mxu0 0.0
    %170 = vmatpush1.msra.mxu0 0.0
    %171 = vmatprep.subr.mxu0 0.0
    %172 = vmatpush1.msra.mxu0 0.0
    %173 = vmatprep.subr.mxu0 0.0
    %174 = vmatpush1.msra.mxu0 0.0
    %175 = vmatprep.subr.mxu0 0.0
    %176 = vmatpush1.msra.mxu0 0.0
    %177 = vmatprep.subr.mxu0 0.0
    %178 = vmatpush1.msra.mxu0 0.0
    %179 = vmatprep.subr.mxu0 0.0
    %180 = vmatpush1.msra.mxu0 0.0
    %181 = vmatprep.subr.mxu0 0.0
    %182 = vmatpush1.msra.mxu0 0.0
    %183 = vmatprep.subr.mxu0 0.0
    %184 = vmatpush1.msra.mxu0 0.0
    %185 = vmatprep.subr.mxu0 0.0
    %186 = vmatpush1.msra.mxu0 0.0
    %187 = vmatprep.subr.mxu0 0.0
    %188 = vmatpush1.msra.mxu0 0.0
    %189 = vmatprep.subr.mxu0 0.0
    %190 = vmatpush1.msra.mxu0 0.0
    %191 = vmatprep.subr.mxu0 0.0
    %192 = vmatpush1.msra.mxu0 0.0
    %193 = vmatprep.subr.mxu0 0.0
    %194 = vmatpush1.msra.mxu0 0.0
    %195 = vmatprep.mubr.f32.mxu0 0.0
    %196 = vmatmul.mubr.f32.gmra.mrb[0].mxu0 %v126
    %v197 = vpop.f32.mrb[0].mxu0
    %v198 = vadd.f32 %v97, %v197
    %v199 = vpop.f32.mrb[0].mxu0
    %v200 = vadd.f32 %v101, %v199
    %201 = vmatprep.mubr.f32.mxu0 0.0
    %202 = vmatmul.mubr.f32.gmra.mrb[0].mxu0 %v129
    %v203 = vpop.f32.mrb[0].mxu0
    %v204 = vadd.f32 %v97, %v203
    %v205 = vpop.f32.mrb[0].mxu0
    %v206 = vadd.f32 %v101, %v205
    %207 = vdwg.mxu0
    %208 = vmatprep.subr.mxu0 %v47
    %209 = vmatpush1.msra.mxu0 %v46
    %210 = vmatprep.subr.mxu0 %v53
    %211 = vmatpush1.msra.mxu0 %v52
    %212 = vmatprep.subr.mxu0 %v59
    %213 = vmatpush1.msra.mxu0 %v58
    %214 = vmatprep.subr.mxu0 %v65
    %215 = vmatpush1.msra.mxu0 %v64
    %216 = vmatprep.subr.mxu0 %v71
    %217 = vmatpush1.msra.mxu0 %v70
    %218 = vmatprep.subr.mxu0 %v77
    %219 = vmatpush1.msra.mxu0 %v76
    %220 = vmatprep.subr.mxu0 %v83
    %221 = vmatpush1.msra.mxu0 %v82
    %222 = vmatprep.subr.mxu0 %v89
    %223 = vmatpush1.msra.mxu0 %v88
    %224 = vmatprep.subr.mxu0 0.0
    %225 = vmatpush1.msra.mxu0 0.0
    %226 = vmatprep.subr.mxu0 0.0
    %227 = vmatpush1.msra.mxu0 0.0
    %228 = vmatprep.subr.mxu0 0.0
    %229 = vmatpush1.msra.mxu0 0.0
    %230 = vmatprep.subr.mxu0 0.0
    %231 = vmatpush1.msra.mxu0 0.0
    %232 = vmatprep.subr.mxu0 0.0
    %233 = vmatpush1.msra.mxu0 0.0
    %234 = vmatprep.subr.mxu0 0.0
    %235 = vmatpush1.msra.mxu0 0.0
    %236 = vmatprep.subr.mxu0 0.0
    %237 = vmatpush1.msra.mxu0 0.0
    %238 = vmatprep.subr.mxu0 0.0
    %239 = vmatpush1.msra.mxu0 0.0
    %240 = vmatprep.subr.mxu0 0.0
    %241 = vmatpush1.msra.mxu0 0.0
    %242 = vmatprep.subr.mxu0 0.0
    %243 = vmatpush1.msra.mxu0 0.0
    %244 = vmatprep.subr.mxu0 0.0
    %245 = vmatpush1.msra.mxu0 0.0
    %246 = vmatprep.subr.mxu0 0.0
    %247 = vmatpush1.msra.mxu0 0.0
    %248 = vmatprep.subr.mxu0 0.0
    %249 = vmatpush1.msra.mxu0 0.0
    %250 = vmatprep.subr.mxu0 0.0
    %251 = vmatpush1.msra.mxu0 0.0
    %252 = vmatprep.subr.mxu0 0.0
    %253 = vmatpush1.msra.mxu0 0.0
    %254 = vmatprep.subr.mxu0 0.0
    %255 = vmatpush1.msra.mxu0 0.0
    %256 = vmatprep.subr.mxu0 0.0
    %257 = vmatpush1.msra.mxu0 0.0
    %258 = vmatprep.subr.mxu0 0.0
    %259 = vmatpush1.msra.mxu0 0.0
    %260 = vmatprep.subr.mxu0 0.0
    %261 = vmatpush1.msra.mxu0 0.0
    %262 = vmatprep.subr.mxu0 0.0
    %263 = vmatpush1.msra.mxu0 0.0
    %264 = vmatprep.subr.mxu0 0.0
    %265 = vmatpush1.msra.mxu0 0.0
    %266 = vmatprep.subr.mxu0 0.0
    %267 = vmatpush1.msra.mxu0 0.0
    %268 = vmatprep.subr.mxu0 0.0
    %269 = vmatpush1.msra.mxu0 0.0
    %270 = vmatprep.subr.mxu0 0.0
    %271 = vmatpush1.msra.mxu0 0.0
    %272 = vmatprep.mubr.f32.mxu0 0.0
    %273 = vmatmul.mubr.f32.gmra.mrb[0].mxu0 %v126
    %v274 = vpop.f32.mrb[0].mxu0
    %v275 = vadd.f32 %v105, %v274
    %v276 = vpop.f32.mrb[0].mxu0
    %v277 = vadd.f32 %v109, %v276
    %278 = vmatprep.mubr.f32.mxu0 0.0
    %279 = vmatmul.mubr.f32.gmra.mrb[0].mxu0 %v129
    %v280 = vpop.f32.mrb[0].mxu0
    %v281 = vadd.f32 %v105, %v280
    %v282 = vpop.f32.mrb[0].mxu0
    %v283 = vadd.f32 %v109, %v282
    %284 = vdwg.mxu0
    %285 = vmatprep.subr.mxu0 %v49
    %286 = vmatpush1.msra.mxu0 %v48
    %287 = vmatprep.subr.mxu0 %v55
    %288 = vmatpush1.msra.mxu0 %v54
    %289 = vmatprep.subr.mxu0 %v61
    %290 = vmatpush1.msra.mxu0 %v60
    %291 = vmatprep.subr.mxu0 %v67
    %292 = vmatpush1.msra.mxu0 %v66
    %293 = vmatprep.subr.mxu0 %v73
    %294 = vmatpush1.msra.mxu0 %v72
    %295 = vmatprep.subr.mxu0 %v79
    %296 = vmatpush1.msra.mxu0 %v78
    %297 = vmatprep.subr.mxu0 %v85
    %298 = vmatpush1.msra.mxu0 %v84
    %299 = vmatprep.subr.mxu0 %v91
    %300 = vmatpush1.msra.mxu0 %v90
    %301 = vmatprep.subr.mxu0 0.0
    %302 = vmatpush1.msra.mxu0 0.0
    %303 = vmatprep.subr.mxu0 0.0
    %304 = vmatpush1.msra.mxu0 0.0
    %305 = vmatprep.subr.mxu0 0.0
    %306 = vmatpush1.msra.mxu0 0.0
    %307 = vmatprep.subr.mxu0 0.0
    %308 = vmatpush1.msra.mxu0 0.0
    %309 = vmatprep.subr.mxu0 0.0
    %310 = vmatpush1.msra.mxu0 0.0
    %311 = vmatprep.subr.mxu0 0.0
    %312 = vmatpush1.msra.mxu0 0.0
    %313 = vmatprep.subr.mxu0 0.0
    %314 = vmatpush1.msra.mxu0 0.0
    %315 = vmatprep.subr.mxu0 0.0
    %316 = vmatpush1.msra.mxu0 0.0
    %317 = vmatprep.subr.mxu0 0.0
    %318 = vmatpush1.msra.mxu0 0.0
    %319 = vmatprep.subr.mxu0 0.0
    %320 = vmatpush1.msra.mxu0 0.0
    %321 = vmatprep.subr.mxu0 0.0
    %322 = vmatpush1.msra.mxu0 0.0
    %323 = vmatprep.subr.mxu0 0.0
    %324 = vmatpush1.msra.mxu0 0.0
    %325 = vmatprep.subr.mxu0 0.0
    %326 = vmatpush1.msra.mxu0 0.0
    %327 = vmatprep.subr.mxu0 0.0
    %328 = vmatpush1.msra.mxu0 0.0
    %329 = vmatprep.subr.mxu0 0.0
    %330 = vmatpush1.msra.mxu0 0.0
    %331 = vmatprep.subr.mxu0 0.0
    %332 = vmatpush1.msra.mxu0 0.0
    %333 = vmatprep.subr.mxu0 0.0
    %334 = vmatpush1.msra.mxu0 0.0
    %335 = vmatprep.subr.mxu0 0.0
    %336 = vmatpush1.msra.mxu0 0.0
    %337 = vmatprep.subr.mxu0 0.0
    %338 = vmatpush1.msra.mxu0 0.0
    %339 = vmatprep.subr.mxu0 0.0
    %340 = vmatpush1.msra.mxu0 0.0
    %341 = vmatprep.subr.mxu0 0.0
    %342 = vmatpush1.msra.mxu0 0.0
    %343 = vmatprep.subr.mxu0 0.0
    %344 = vmatpush1.msra.mxu0 0.0
    %345 = vmatprep.subr.mxu0 0.0
    %346 = vmatpush1.msra.mxu0 0.0
    %347 = vmatprep.subr.mxu0 0.0
    %348 = vmatpush1.msra.mxu0 0.0
    %349 = vmatprep.mubr.f32.mxu0 0.0
    %350 = vmatmul.mubr.f32.gmra.mrb[0].mxu0 %v126
    %v351 = vpop.f32.mrb[0].mxu0
    %v352 = vadd.f32 %v113, %v351
    %v353 = vpop.f32.mrb[0].mxu0
    %v354 = vadd.f32 %v117, %v353
    %355 = vmatprep.mubr.f32.mxu0 0.0
    %356 = vmatmul.mubr.f32.gmra.mrb[0].mxu0 %v129
    %v357 = vpop.f32.mrb[0].mxu0
    %v358 = vadd.f32 %v113, %v357
    %v359 = vpop.f32.mrb[0].mxu0
    %v360 = vadd.f32 %v117, %v359
    %361 = vdwg.mxu0
    %362 = vst [vmem:[%s3] sm:$0xff] %v198
    %363 = vst [vmem:[%s3 + $0x8] sm:$0xff] %v200
    %364 = vst [vmem:[%s3 + $0x10] sm:$0xff] %v275
    %365 = vst [vmem:[%s3 + $0x18] sm:$0xff] %v277
    %366 = vst [vmem:[%s3 + $0x20] sm:$0xff] %v352
    %367 = vst [vmem:[%s3 + $0x28] sm:$0xff] %v354
    %368 = vst [vmem:[%s3 + $0x30] sm:$0xff] %v204
    %369 = vst [vmem:[%s3 + $0x38] sm:$0xff] %v206
    %370 = vst [vmem:[%s3 + $0x40] sm:$0xff] %v281
    %371 = vst [vmem:[%s3 + $0x48] sm:$0xff] %v283
    %372 = vst [vmem:[%s3 + $0x50] sm:$0xff] %v358
    %373 = vst [vmem:[%s3 + $0x58] sm:$0xff] %v360
    // Predicated region
    $region22: #{_forward.3} parent=1 // pred_check
      _
    $region23: #{_forward.3} parent=1 // pred_check_branch
      %375 = sbr.rel (0) target = $region25
    $region24: #{_forward.3} parent=1 // pred_region
      _
    $region25: #{_forward.3} parent=1 // pred_fallthru
      _
    // Predicated region
    $region26: #{_forward.3} parent=1 // pred_check
      _
    $region27: #{_forward.3} parent=1 // pred_check_branch
      %377 = sbr.rel (0) target = $region29
    $region28: #{_forward.3} parent=1 // pred_region
      _
    $region29: #{_forward.3} parent=1 // pred_fallthru
      _
    %378 = vsyncpa [#allocation3], 1
    %379 = vsyncpa [#allocation5], 1

// kernel: _forward.5
$region0: #{_forward.5}
  #allocation0 [shape = 'u32[]', space=smem, size = 0x4, offset = 0x4, fixed_abs, tag = 'smem constant byte address 0x4 - core index']
  #allocation1 [shape = 'u32[144,128]{1,0:T(1,128)}', space=vmem, size = 0x12000, scoped, tag = 'internal scratch']
  %s0 = inlined_call_operand.vmem [shape: f32[16,256], index: 0, kind: input, shape index: {}]
  %s1 = inlined_call_operand.vmem [shape: f32[64,64], index: 1, kind: input, shape index: {}]
  %s2 = inlined_call_operand.vmem [shape: f32[1,64], index: 2, kind: input, shape index: {}]
  %s3 = inlined_call_operand.vmem [shape: f32[256,128], index: 3, kind: input, shape index: {}]
  %s4 = inlined_call_operand.vmem [shape: f32[1,128], index: 4, kind: input, shape index: {}]
  %s5 = inlined_call_operand.vmem [shape: f32[128,64], index: 5, kind: input, shape index: {}]
  %s6 = inlined_call_operand.vmem [shape: f32[1,64], index: 6, kind: input, shape index: {}]
  %s7 = inlined_call_operand.hbm [shape: f32[16,64], index: 7, kind: output, shape index: {}]
  %s8 = sld [smem:[#allocation0]]
  $region38: #{_forward.5} parent=0
    _
  %s10 = ssub.s32 1, %s8
  %s11 = scalar_select 0, %s10, %s8
  $region1: #{_forward.5} parent=0
    #allocation2 [shape = 'u8[8192]{0}', space=vmem, size = 0x2000, scoped, tag = 'output window, operand 0, single buffered']
    #allocation3 [shape = 's32[1]{0}', space=sflag, size = 0x4, scoped, tag = 'scoped memory for _forward.5']
    %12 = vsyncpa [#allocation3], 0
    // Predicated region
    $region2: #{_forward.5} parent=1 // pred_check
      _
    $region3: #{_forward.5} parent=1 // pred_check_branch
      %14 = sbr.rel (0) target = $region5
    $region4: #{_forward.5} parent=1 // pred_region
      _
    $region5: #{_forward.5} parent=1 // pred_fallthru
      _
    // Predicated region
    $region6: #{_forward.5} parent=1 // pred_check
      _
    $region7: #{_forward.5} parent=1 // pred_check_branch
      %16 = sbr.rel (0) target = $region9
    $region8: #{_forward.5} parent=1 // pred_region
      _
    $region9: #{_forward.5} parent=1 // pred_fallthru
      _
    // Predicated region
    $region10: #{_forward.5} parent=1 // pred_check
      _
    $region11: #{_forward.5} parent=1 // pred_check_branch
      %18 = sbr.rel (0) target = $region13
    $region12: #{_forward.5} parent=1 // pred_region
      _
    $region13: #{_forward.5} parent=1 // pred_fallthru
      _
    // Predicated region
    $region14: #{_forward.5} parent=1 // pred_check
      _
    $region15: #{_forward.5} parent=1 // pred_check_branch
      %20 = sbr.rel (0) target = $region17
    $region16: #{_forward.5} parent=1 // pred_region
      _
    $region17: #{_forward.5} parent=1 // pred_fallthru
      _
    // Predicated region
    $region18: #{_forward.5} parent=1 // pred_check
      _
    $region19: #{_forward.5} parent=1 // pred_check_branch
      %22 = sbr.rel (0) target = $region21
    $region20: #{_forward.5} parent=1 // pred_region
      _
    $region21: #{_forward.5} parent=1 // pred_fallthru
      _
    // Predicated region
    $region22: #{_forward.5} parent=1 // pred_check
      _
    $region23: #{_forward.5} parent=1 // pred_check_branch
      %24 = sbr.rel (0) target = $region25
    $region24: #{_forward.5} parent=1 // pred_region
      _
    $region25: #{_forward.5} parent=1 // pred_fallthru
      _
    // Predicated region
    $region26: #{_forward.5} parent=1 // pred_check
      _
    $region27: #{_forward.5} parent=1 // pred_check_branch
      %26 = sbr.rel (0) target = $region29
    $region28: #{_forward.5} parent=1 // pred_region
      _
    $region29: #{_forward.5} parent=1 // pred_fallthru
      _
    %v27 = vld [vmem:[%s1] sm:$0xff]
    %v28 = vld [vmem:[%s1 + $0x8] sm:$0xff]
    %v29 = vld [vmem:[%s1 + $0x10] sm:$0xff]
    %v30 = vld [vmem:[%s1 + $0x18] sm:$0xff]
    %v31 = vld [vmem:[%s1 + $0x20] sm:$0xff]
    %v32 = vld [vmem:[%s1 + $0x28] sm:$0xff]
    %v33 = vld [vmem:[%s1 + $0x30] sm:$0xff]
    %v34 = vld [vmem:[%s1 + $0x38] sm:$0xff]
    %v35 = vld [vmem:[%s2] sm:$0x1]
    %v36 = vld [vmem:[%s0] sm:$0xff]
    %v37 = vld [vmem:[%s0 + $0x10] sm:$0xff]
    %v39 = vlaneseq
    %v40 = vshrl.u32 %v39, 7
    %v41 = vsub.s32 0, %v40
    %v42 = vrot.slane %v35, %v41
    %vm44 = vcmask 523264
    %v46 = vsel %vm44, %v36, 0
    %v49 = vsel %vm44, %v37, 0
    %51 = vmatprep.subr.mxu0 0.0
    %52 = vmatpush1.msra.mxu0 %v27
    %53 = vmatprep.subr.mxu0 0.0
    %54 = vmatpush1.msra.mxu0 %v28
    %55 = vmatprep.subr.mxu0 0.0
    %56 = vmatpush1.msra.mxu0 %v29
    %57 = vmatprep.subr.mxu0 0.0
    %58 = vmatpush1.msra.mxu0 %v30
    %59 = vmatprep.subr.mxu0 0.0
    %60 = vmatpush1.msra.mxu0 %v31
    %61 = vmatprep.subr.mxu0 0.0
    %62 = vmatpush1.msra.mxu0 %v32
    %63 = vmatprep.subr.mxu0 0.0
    %64 = vmatpush1.msra.mxu0 %v33
    %65 = vmatprep.subr.mxu0 0.0
    %66 = vmatpush1.msra.mxu0 %v34
    %67 = vmatprep.subr.mxu0 0.0
    %68 = vmatpush1.msra.mxu0 0.0
    %69 = vmatprep.subr.mxu0 0.0
    %70 = vmatpush1.msra.mxu0 0.0
    %71 = vmatprep.subr.mxu0 0.0
    %72 = vmatpush1.msra.mxu0 0.0
    %73 = vmatprep.subr.mxu0 0.0
    %74 = vmatpush1.msra.mxu0 0.0
    %75 = vmatprep.subr.mxu0 0.0
    %76 = vmatpush1.msra.mxu0 0.0
    %77 = vmatprep.subr.mxu0 0.0
    %78 = vmatpush1.msra.mxu0 0.0
    %79 = vmatprep.subr.mxu0 0.0
    %80 = vmatpush1.msra.mxu0 0.0
    %81 = vmatprep.subr.mxu0 0.0
    %82 = vmatpush1.msra.mxu0 0.0
    %83 = vmatprep.subr.mxu0 0.0
    %84 = vmatpush1.msra.mxu0 0.0
    %85 = vmatprep.subr.mxu0 0.0
    %86 = vmatpush1.msra.mxu0 0.0
    %87 = vmatprep.subr.mxu0 0.0
    %88 = vmatpush1.msra.mxu0 0.0
    %89 = vmatprep.subr.mxu0 0.0
    %90 = vmatpush1.msra.mxu0 0.0
    %91 = vmatprep.subr.mxu0 0.0
    %92 = vmatpush1.msra.mxu0 0.0
    %93 = vmatprep.subr.mxu0 0.0
    %94 = vmatpush1.msra.mxu0 0.0
    %95 = vmatprep.subr.mxu0 0.0
    %96 = vmatpush1.msra.mxu0 0.0
    %97 = vmatprep.subr.mxu0 0.0
    %98 = vmatpush1.msra.mxu0 0.0
    %99 = vmatprep.subr.mxu0 0.0
    %100 = vmatpush1.msra.mxu0 0.0
    %101 = vmatprep.subr.mxu0 0.0
    %102 = vmatpush1.msra.mxu0 0.0
    %103 = vmatprep.subr.mxu0 0.0
    %104 = vmatpush1.msra.mxu0 0.0
    %105 = vmatprep.subr.mxu0 0.0
    %106 = vmatpush1.msra.mxu0 0.0
    %107 = vmatprep.subr.mxu0 0.0
    %108 = vmatpush1.msra.mxu0 0.0
    %109 = vmatprep.subr.mxu0 0.0
    %110 = vmatpush1.msra.mxu0 0.0
    %111 = vmatprep.subr.mxu0 0.0
    %112 = vmatpush1.msra.mxu0 0.0
    %113 = vmatprep.subr.mxu0 0.0
    %114 = vmatpush1.msra.mxu0 0.0
    %115 = vmatprep.mubr.f32.mxu0 0.0
    %116 = vmatmul.mubr.f32.gmra.mrb[0].mxu0 %v46
    %v117 = vpop.f32.mrb[0].mxu0
    %v118 = vadd.f32 %v42, %v117
    %v119 = vpop.f32.mrb[0].mxu0
    %120 = vmatprep.mubr.f32.mxu0 0.0
    %121 = vmatmul.mubr.f32.gmra.mrb[0].mxu0 %v49
    %v122 = vpop.f32.mrb[0].mxu0
    %v123 = vadd.f32 %v42, %v122
    %v124 = vpop.f32.mrb[0].mxu0
    %125 = vdwg.mxu0
    %v126 = vld [vmem:[%s3] sm:$0xff]
    %v127 = vld [vmem:[%s3 + $0x8] sm:$0xff]
    %v128 = vld [vmem:[%s3 + $0x10] sm:$0xff]
    %v129 = vld [vmem:[%s3 + $0x18] sm:$0xff]
    %v130 = vld [vmem:[%s3 + $0x20] sm:$0xff]
    %v131 = vld [vmem:[%s3 + $0x28] sm:$0xff]
    %v132 = vld [vmem:[%s3 + $0x30] sm:$0xff]
    %v133 = vld [vmem:[%s3 + $0x38] sm:$0xff]
    %134 = vrot.lane.b32.xlu0 %v36, 64
    %v135 = vpop.permute.xlu0 %134
    %136 = vrot.lane.b32.xlu0 %v37, 64
    %v137 = vpop.permute.xlu0 %136
    %v138 = vsel %vm44, %v135, 0
    %v140 = vsel %vm44, %v137, 0
    %142 = vmatprep.subr.mxu0 0.0
    %143 = vmatpush1.msra.mxu0 %v27
    %144 = vmatprep.subr.mxu0 0.0
    %145 = vmatpush1.msra.mxu0 %v28
    %146 = vmatprep.subr.mxu0 0.0
    %147 = vmatpush1.msra.mxu0 %v29
    %148 = vmatprep.subr.mxu0 0.0
    %149 = vmatpush1.msra.mxu0 %v30
    %150 = vmatprep.subr.mxu0 0.0
    %151 = vmatpush1.msra.mxu0 %v31
    %152 = vmatprep.subr.mxu0 0.0
    %153 = vmatpush1.msra.mxu0 %v32
    %154 = vmatprep.subr.mxu0 0.0
    %155 = vmatpush1.msra.mxu0 %v33
    %156 = vmatprep.subr.mxu0 0.0
    %157 = vmatpush1.msra.mxu0 %v34
    %158 = vmatprep.subr.mxu0 0.0
    %159 = vmatpush1.msra.mxu0 0.0
    %160 = vmatprep.subr.mxu0 0.0
    %161 = vmatpush1.msra.mxu0 0.0
    %162 = vmatprep.subr.mxu0 0.0
    %163 = vmatpush1.msra.mxu0 0.0
    %164 = vmatprep.subr.mxu0 0.0
    %165 = vmatpush1.msra.mxu0 0.0
    %166 = vmatprep.subr.mxu0 0.0
    %167 = vmatpush1.msra.mxu0 0.0
    %168 = vmatprep.subr.mxu0 0.0
    %169 = vmatpush1.msra.mxu0 0.0
    %170 = vmatprep.subr.mxu0 0.0
    %171 = vmatpush1.msra.mxu0 0.0
    %172 = vmatprep.subr.mxu0 0.0
    %173 = vmatpush1.msra.mxu0 0.0
    %174 = vmatprep.subr.mxu0 0.0
    %175 = vmatpush1.msra.mxu0 0.0
    %176 = vmatprep.subr.mxu0 0.0
    %177 = vmatpush1.msra.mxu0 0.0
    %178 = vmatprep.subr.mxu0 0.0
    %179 = vmatpush1.msra.mxu0 0.0
    %180 = vmatprep.subr.mxu0 0.0
    %181 = vmatpush1.msra.mxu0 0.0
    %182 = vmatprep.subr.mxu0 0.0
    %183 = vmatpush1.msra.mxu0 0.0
    %184 = vmatprep.subr.mxu0 0.0
    %185 = vmatpush1.msra.mxu0 0.0
    %186 = vmatprep.subr.mxu0 0.0
    %187 = vmatpush1.msra.mxu0 0.0
    %188 = vmatprep.subr.mxu0 0.0
    %189 = vmatpush1.msra.mxu0 0.0
    %190 = vmatprep.subr.mxu0 0.0
    %191 = vmatpush1.msra.mxu0 0.0
    %192 = vmatprep.subr.mxu0 0.0
    %193 = vmatpush1.msra.mxu0 0.0
    %194 = vmatprep.subr.mxu0 0.0
    %195 = vmatpush1.msra.mxu0 0.0
    %196 = vmatprep.subr.mxu0 0.0
    %197 = vmatpush1.msra.mxu0 0.0
    %198 = vmatprep.subr.mxu0 0.0
    %199 = vmatpush1.msra.mxu0 0.0
    %200 = vmatprep.subr.mxu0 0.0
    %201 = vmatpush1.msra.mxu0 0.0
    %202 = vmatprep.subr.mxu0 0.0
    %203 = vmatpush1.msra.mxu0 0.0
    %204 = vmatprep.subr.mxu0 0.0
    %205 = vmatpush1.msra.mxu0 0.0
    %206 = vmatprep.mubr.f32.mxu0 0.0
    %207 = vmatmul.mubr.f32.gmra.mrb[0].mxu0 %v138
    %v208 = vpop.f32.mrb[0].mxu0
    %v209 = vadd.f32 %v42, %v208
    %v210 = vpop.f32.mrb[0].mxu0
    %211 = vmatprep.mubr.f32.mxu0 0.0
    %212 = vmatmul.mubr.f32.gmra.mrb[0].mxu0 %v140
    %v213 = vpop.f32.mrb[0].mxu0
    %v214 = vadd.f32 %v42, %v213
    %v215 = vpop.f32.mrb[0].mxu0
    %216 = vdwg.mxu0
    %v217 = vld [vmem:[%s3 + $0x40] sm:$0xff]
    %v218 = vld [vmem:[%s3 + $0x48] sm:$0xff]
    %v219 = vld [vmem:[%s3 + $0x50] sm:$0xff]
    %v220 = vld [vmem:[%s3 + $0x58] sm:$0xff]
    %v221 = vld [vmem:[%s3 + $0x60] sm:$0xff]
    %v222 = vld [vmem:[%s3 + $0x68] sm:$0xff]
    %v223 = vld [vmem:[%s3 + $0x70] sm:$0xff]
    %v224 = vld [vmem:[%s3 + $0x78] sm:$0xff]
    %v226 = vsel %vm44, %v209, 0
    %v229 = vsel %vm44, %v214, 0
    %231 = vmatprep.subr.mxu0 0.0
    %232 = vmatpush1.msra.mxu0 %v217
    %233 = vmatprep.subr.mxu0 0.0
    %234 = vmatpush1.msra.mxu0 %v218
    %235 = vmatprep.subr.mxu0 0.0
    %236 = vmatpush1.msra.mxu0 %v219
    %237 = vmatprep.subr.mxu0 0.0
    %238 = vmatpush1.msra.mxu0 %v220
    %239 = vmatprep.subr.mxu0 0.0
    %240 = vmatpush1.msra.mxu0 %v221
    %241 = vmatprep.subr.mxu0 0.0
    %242 = vmatpush1.msra.mxu0 %v222
    %243 = vmatprep.subr.mxu0 0.0
    %244 = vmatpush1.msra.mxu0 %v223
    %245 = vmatprep.subr.mxu0 0.0
    %246 = vmatpush1.msra.mxu0 %v224
    %247 = vmatprep.subr.mxu0 0.0
    %248 = vmatpush1.msra.mxu0 0.0
    %249 = vmatprep.subr.mxu0 0.0
    %250 = vmatpush1.msra.mxu0 0.0
    %251 = vmatprep.subr.mxu0 0.0
    %252 = vmatpush1.msra.mxu0 0.0
    %253 = vmatprep.subr.mxu0 0.0
    %254 = vmatpush1.msra.mxu0 0.0
    %255 = vmatprep.subr.mxu0 0.0
    %256 = vmatpush1.msra.mxu0 0.0
    %257 = vmatprep.subr.mxu0 0.0
    %258 = vmatpush1.msra.mxu0 0.0
    %259 = vmatprep.subr.mxu0 0.0
    %260 = vmatpush1.msra.mxu0 0.0
    %261 = vmatprep.subr.mxu0 0.0
    %262 = vmatpush1.msra.mxu0 0.0
    %263 = vmatprep.subr.mxu0 0.0
    %264 = vmatpush1.msra.mxu0 0.0
    %265 = vmatprep.subr.mxu0 0.0
    %266 = vmatpush1.msra.mxu0 0.0
    %267 = vmatprep.subr.mxu0 0.0
    %268 = vmatpush1.msra.mxu0 0.0
    %269 = vmatprep.subr.mxu0 0.0
    %270 = vmatpush1.msra.mxu0 0.0
    %271 = vmatprep.subr.mxu0 0.0
    %272 = vmatpush1.msra.mxu0 0.0
    %273 = vmatprep.subr.mxu0 0.0
    %274 = vmatpush1.msra.mxu0 0.0
    %275 = vmatprep.subr.mxu0 0.0
    %276 = vmatpush1.msra.mxu0 0.0
    %277 = vmatprep.subr.mxu0 0.0
    %278 = vmatpush1.msra.mxu0 0.0
    %279 = vmatprep.subr.mxu0 0.0
    %280 = vmatpush1.msra.mxu0 0.0
    %281 = vmatprep.subr.mxu0 0.0
    %282 = vmatpush1.msra.mxu0 0.0
    %283 = vmatprep.subr.mxu0 0.0
    %284 = vmatpush1.msra.mxu0 0.0
    %285 = vmatprep.subr.mxu0 0.0
    %286 = vmatpush1.msra.mxu0 0.0
    %287 = vmatprep.subr.mxu0 0.0
    %288 = vmatpush1.msra.mxu0 0.0
    %289 = vmatprep.subr.mxu0 0.0
    %290 = vmatpush1.msra.mxu0 0.0
    %291 = vmatprep.subr.mxu0 0.0
    %292 = vmatpush1.msra.mxu0 0.0
    %293 = vmatprep.subr.mxu0 0.0
    %294 = vmatpush1.msra.mxu0 0.0
    %295 = vmatprep.mubr.f32.mxu0 0.0
    %296 = vmatmul.mubr.f32.gmra.mrb[0].mxu0 %v226
    %v297 = vpop.f32.mrb[0].mxu0
    %v298 = vadd.f32 0.0, %v297
    %v299 = vpop.f32.mrb[0].mxu0
    %300 = vmatprep.mubr.f32.mxu0 0.0
    %301 = vmatmul.mubr.f32.gmra.mrb[0].mxu0 %v229
    %v302 = vpop.f32.mrb[0].mxu0
    %v303 = vadd.f32 0.0, %v302
    %v304 = vpop.f32.mrb[0].mxu0
    %305 = vdwg.mxu0
    %v307 = vsel %vm44, %v118, 0
    %v310 = vsel %vm44, %v123, 0
    %312 = vmatprep.subr.mxu0 0.0
    %313 = vmatpush1.msra.mxu0 %v126
    %314 = vmatprep.subr.mxu0 0.0
    %315 = vmatpush1.msra.mxu0 %v127
    %316 = vmatprep.subr.mxu0 0.0
    %317 = vmatpush1.msra.mxu0 %v128
    %318 = vmatprep.subr.mxu0 0.0
    %319 = vmatpush1.msra.mxu0 %v129
    %320 = vmatprep.subr.mxu0 0.0
    %321 = vmatpush1.msra.mxu0 %v130
    %322 = vmatprep.subr.mxu0 0.0
    %323 = vmatpush1.msra.mxu0 %v131
    %324 = vmatprep.subr.mxu0 0.0
    %325 = vmatpush1.msra.mxu0 %v132
    %326 = vmatprep.subr.mxu0 0.0
    %327 = vmatpush1.msra.mxu0 %v133
    %328 = vmatprep.subr.mxu0 0.0
    %329 = vmatpush1.msra.mxu0 0.0
    %330 = vmatprep.subr.mxu0 0.0
    %331 = vmatpush1.msra.mxu0 0.0
    %332 = vmatprep.subr.mxu0 0.0
    %333 = vmatpush1.msra.mxu0 0.0
    %334 = vmatprep.subr.mxu0 0.0
    %335 = vmatpush1.msra.mxu0 0.0
    %336 = vmatprep.subr.mxu0 0.0
    %337 = vmatpush1.msra.mxu0 0.0
    %338 = vmatprep.subr.mxu0 0.0
    %339 = vmatpush1.msra.mxu0 0.0
    %340 = vmatprep.subr.mxu0 0.0
    %341 = vmatpush1.msra.mxu0 0.0
    %342 = vmatprep.subr.mxu0 0.0
    %343 = vmatpush1.msra.mxu0 0.0
    %344 = vmatprep.subr.mxu0 0.0
    %345 = vmatpush1.msra.mxu0 0.0
    %346 = vmatprep.subr.mxu0 0.0
    %347 = vmatpush1.msra.mxu0 0.0
    %348 = vmatprep.subr.mxu0 0.0
    %349 = vmatpush1.msra.mxu0 0.0
    %350 = vmatprep.subr.mxu0 0.0
    %351 = vmatpush1.msra.mxu0 0.0
    %352 = vmatprep.subr.mxu0 0.0
    %353 = vmatpush1.msra.mxu0 0.0
    %354 = vmatprep.subr.mxu0 0.0
    %355 = vmatpush1.msra.mxu0 0.0
    %356 = vmatprep.subr.mxu0 0.0
    %357 = vmatpush1.msra.mxu0 0.0
    %358 = vmatprep.subr.mxu0 0.0
    %359 = vmatpush1.msra.mxu0 0.0
    %360 = vmatprep.subr.mxu0 0.0
    %361 = vmatpush1.msra.mxu0 0.0
    %362 = vmatprep.subr.mxu0 0.0
    %363 = vmatpush1.msra.mxu0 0.0
    %364 = vmatprep.subr.mxu0 0.0
    %365 = vmatpush1.msra.mxu0 0.0
    %366 = vmatprep.subr.mxu0 0.0
    %367 = vmatpush1.msra.mxu0 0.0
    %368 = vmatprep.subr.mxu0 0.0
    %369 = vmatpush1.msra.mxu0 0.0
    %370 = vmatprep.subr.mxu0 0.0
    %371 = vmatpush1.msra.mxu0 0.0
    %372 = vmatprep.subr.mxu0 0.0
    %373 = vmatpush1.msra.mxu0 0.0
    %374 = vmatprep.subr.mxu0 0.0
    %375 = vmatpush1.msra.mxu0 0.0
    %376 = vmatprep.mubr.f32.mxu0 0.0
    %377 = vmatmul.mubr.f32.gmra.mrb[0].mxu0 %v307
    %v378 = vpop.f32.mrb[0].mxu0
    %v379 = vadd.f32 %v298, %v378
    %v380 = vpop.f32.mrb[0].mxu0
    %381 = vmatprep.mubr.f32.mxu0 0.0
    %382 = vmatmul.mubr.f32.gmra.mrb[0].mxu0 %v310
    %v383 = vpop.f32.mrb[0].mxu0
    %v384 = vadd.f32 %v303, %v383
    %v385 = vpop.f32.mrb[0].mxu0
    %386 = vdwg.mxu0
    %v387 = vld [vmem:[%s0 + $0x8] sm:$0xff]
    %v388 = vld [vmem:[%s0 + $0x18] sm:$0xff]
    %v390 = vsel %vm44, %v387, 0
    %v393 = vsel %vm44, %v388, 0
    %395 = vmatprep.subr.mxu0 0.0
    %396 = vmatpush1.msra.mxu0 %v27
    %397 = vmatprep.subr.mxu0 0.0
    %398 = vmatpush1.msra.mxu0 %v28
    %399 = vmatprep.subr.mxu0 0.0
    %400 = vmatpush1.msra.mxu0 %v29
    %401 = vmatprep.subr.mxu0 0.0
    %402 = vmatpush1.msra.mxu0 %v30
    %403 = vmatprep.subr.mxu0 0.0
    %404 = vmatpush1.msra.mxu0 %v31
    %405 = vmatprep.subr.mxu0 0.0
    %406 = vmatpush1.msra.mxu0 %v32
    %407 = vmatprep.subr.mxu0 0.0
    %408 = vmatpush1.msra.mxu0 %v33
    %409 = vmatprep.subr.mxu0 0.0
    %410 = vmatpush1.msra.mxu0 %v34
    %411 = vmatprep.subr.mxu0 0.0
    %412 = vmatpush1.msra.mxu0 0.0
    %413 = vmatprep.subr.mxu0 0.0
    %414 = vmatpush1.msra.mxu0 0.0
    %415 = vmatprep.subr.mxu0 0.0
    %416 = vmatpush1.msra.mxu0 0.0
    %417 = vmatprep.subr.mxu0 0.0
    %418 = vmatpush1.msra.mxu0 0.0
    %419 = vmatprep.subr.mxu0 0.0
    %420 = vmatpush1.msra.mxu0 0.0
    %421 = vmatprep.subr.mxu0 0.0
    %422 = vmatpush1.msra.mxu0 0.0
    %423 = vmatprep.subr.mxu0 0.0
    %424 = vmatpush1.msra.mxu0 0.0
    %425 = vmatprep.subr.mxu0 0.0
    %426 = vmatpush1.msra.mxu0 0.0
    %427 = vmatprep.subr.mxu0 0.0
    %428 = vmatpush1.msra.mxu0 0.0
    %429 = vmatprep.subr.mxu0 0.0
    %430 = vmatpush1.msra.mxu0 0.0
    %431 = vmatprep.subr.mxu0 0.0
    %432 = vmatpush1.msra.mxu0 0.0
    %433 = vmatprep.subr.mxu0 0.0
    %434 = vmatpush1.msra.mxu0 0.0
    %435 = vmatprep.subr.mxu0 0.0
    %436 = vmatpush1.msra.mxu0 0.0
    %437 = vmatprep.subr.mxu0 0.0
    %438 = vmatpush1.msra.mxu0 0.0
    %439 = vmatprep.subr.mxu0 0.0
    %440 = vmatpush1.msra.mxu0 0.0
    %441 = vmatprep.subr.mxu0 0.0
    %442 = vmatpush1.msra.mxu0 0.0
    %443 = vmatprep.subr.mxu0 0.0
    %444 = vmatpush1.msra.mxu0 0.0
    %445 = vmatprep.subr.mxu0 0.0
    %446 = vmatpush1.msra.mxu0 0.0
    %447 = vmatprep.subr.mxu0 0.0
    %448 = vmatpush1.msra.mxu0 0.0
    %449 = vmatprep.subr.mxu0 0.0
    %450 = vmatpush1.msra.mxu0 0.0
    %451 = vmatprep.subr.mxu0 0.0
    %452 = vmatpush1.msra.mxu0 0.0
    %453 = vmatprep.subr.mxu0 0.0
    %454 = vmatpush1.msra.mxu0 0.0
    %455 = vmatprep.subr.mxu0 0.0
    %456 = vmatpush1.msra.mxu0 0.0
    %457 = vmatprep.subr.mxu0 0.0
    %458 = vmatpush1.msra.mxu0 0.0
    %459 = vmatprep.mubr.f32.mxu0 0.0
    %460 = vmatmul.mubr.f32.gmra.mrb[0].mxu0 %v390
    %v461 = vpop.f32.mrb[0].mxu0
    %v462 = vadd.f32 %v42, %v461
    %v463 = vpop.f32.mrb[0].mxu0
    %464 = vmatprep.mubr.f32.mxu0 0.0
    %465 = vmatmul.mubr.f32.gmra.mrb[0].mxu0 %v393
    %v466 = vpop.f32.mrb[0].mxu0
    %v467 = vadd.f32 %v42, %v466
    %v468 = vpop.f32.mrb[0].mxu0
    %469 = vdwg.mxu0
    %v470 = vld [vmem:[%s3 + $0x80] sm:$0xff]
    %v471 = vld [vmem:[%s3 + $0x88] sm:$0xff]
    %v472 = vld [vmem:[%s3 + $0x90] sm:$0xff]
    %v473 = vld [vmem:[%s3 + $0x98] sm:$0xff]
    %v474 = vld [vmem:[%s3 + $0xa0] sm:$0xff]
    %v475 = vld [vmem:[%s3 + $0xa8] sm:$0xff]
    %v476 = vld [vmem:[%s3 + $0xb0] sm:$0xff]
    %v477 = vld [vmem:[%s3 + $0xb8] sm:$0xff]
    %v479 = vsel %vm44, %v462, 0
    %v482 = vsel %vm44, %v467, 0
    %484 = vmatprep.subr.mxu0 0.0
    %485 = vmatpush1.msra.mxu0 %v470
    %486 = vmatprep.subr.mxu0 0.0
    %487 = vmatpush1.msra.mxu0 %v471
    %488 = vmatprep.subr.mxu0 0.0
    %489 = vmatpush1.msra.mxu0 %v472
    %490 = vmatprep.subr.mxu0 0.0
    %491 = vmatpush1.msra.mxu0 %v473
    %492 = vmatprep.subr.mxu0 0.0
    %493 = vmatpush1.msra.mxu0 %v474
    %494 = vmatprep.subr.mxu0 0.0
    %495 = vmatpush1.msra.mxu0 %v475
    %496 = vmatprep.subr.mxu0 0.0
    %497 = vmatpush1.msra.mxu0 %v476
    %498 = vmatprep.subr.mxu0 0.0
    %499 = vmatpush1.msra.mxu0 %v477
    %500 = vmatprep.subr.mxu0 0.0
    %501 = vmatpush1.msra.mxu0 0.0
    %502 = vmatprep.subr.mxu0 0.0
    %503 = vmatpush1.msra.mxu0 0.0
    %504 = vmatprep.subr.mxu0 0.0
    %505 = vmatpush1.msra.mxu0 0.0
    %506 = vmatprep.subr.mxu0 0.0
    %507 = vmatpush1.msra.mxu0 0.0
    %508 = vmatprep.subr.mxu0 0.0
    %509 = vmatpush1.msra.mxu0 0.0
    %510 = vmatprep.subr.mxu0 0.0
    %511 = vmatpush1.msra.mxu0 0.0
    %512 = vmatprep.subr.mxu0 0.0
    %513 = vmatpush1.msra.mxu0 0.0
    %514 = vmatprep.subr.mxu0 0.0
    %515 = vmatpush1.msra.mxu0 0.0
    %516 = vmatprep.subr.mxu0 0.0
    %517 = vmatpush1.msra.mxu0 0.0
    %518 = vmatprep.subr.mxu0 0.0
    %519 = vmatpush1.msra.mxu0 0.0
    %520 = vmatprep.subr.mxu0 0.0
    %521 = vmatpush1.msra.mxu0 0.0
    %522 = vmatprep.subr.mxu0 0.0
    %523 = vmatpush1.msra.mxu0 0.0
    %524 = vmatprep.subr.mxu0 0.0
    %525 = vmatpush1.msra.mxu0 0.0
    %526 = vmatprep.subr.mxu0 0.0
    %527 = vmatpush1.msra.mxu0 0.0
    %528 = vmatprep.subr.mxu0 0.0
    %529 = vmatpush1.msra.mxu0 0.0
    %530 = vmatprep.subr.mxu0 0.0
    %531 = vmatpush1.msra.mxu0 0.0
    %532 = vmatprep.subr.mxu0 0.0
    %533 = vmatpush1.msra.mxu0 0.0
    %534 = vmatprep.subr.mxu0 0.0
    %535 = vmatpush1.msra.mxu0 0.0
    %536 = vmatprep.subr.mxu0 0.0
    %537 = vmatpush1.msra.mxu0 0.0
    %538 = vmatprep.subr.mxu0 0.0
    %539 = vmatpush1.msra.mxu0 0.0
    %540 = vmatprep.subr.mxu0 0.0
    %541 = vmatpush1.msra.mxu0 0.0
    %542 = vmatprep.subr.mxu0 0.0
    %543 = vmatpush1.msra.mxu0 0.0
    %544 = vmatprep.subr.mxu0 0.0
    %545 = vmatpush1.msra.mxu0 0.0
    %546 = vmatprep.subr.mxu0 0.0
    %547 = vmatpush1.msra.mxu0 0.0
    %548 = vmatprep.mubr.f32.mxu0 0.0
    %549 = vmatmul.mubr.f32.gmra.mrb[0].mxu0 %v479
    %v550 = vpop.f32.mrb[0].mxu0
    %v551 = vadd.f32 0.0, %v550
    %v552 = vpop.f32.mrb[0].mxu0
    %553 = vmatprep.mubr.f32.mxu0 0.0
    %554 = vmatmul.mubr.f32.gmra.mrb[0].mxu0 %v482
    %v555 = vpop.f32.mrb[0].mxu0
    %v556 = vadd.f32 0.0, %v555
    %v557 = vpop.f32.mrb[0].mxu0
    %558 = vdwg.mxu0
    %v559 = vadd.f32 %v379, %v551
    %v560 = vadd.f32 %v384, %v556
    %561 = vrot.lane.b32.xlu0 %v387, 64
    %v562 = vpop.permute.xlu0 %561
    %563 = vrot.lane.b32.xlu0 %v388, 64
    %v564 = vpop.permute.xlu0 %563
    %v565 = vsel %vm44, %v562, 0
    %v567 = vsel %vm44, %v564, 0
    %569 = vmatprep.subr.mxu0 0.0
    %570 = vmatpush1.msra.mxu0 %v27
    %571 = vmatprep.subr.mxu0 0.0
    %572 = vmatpush1.msra.mxu0 %v28
    %573 = vmatprep.subr.mxu0 0.0
    %574 = vmatpush1.msra.mxu0 %v29
    %575 = vmatprep.subr.mxu0 0.0
    %576 = vmatpush1.msra.mxu0 %v30
    %577 = vmatprep.subr.mxu0 0.0
    %578 = vmatpush1.msra.mxu0 %v31
    %579 = vmatprep.subr.mxu0 0.0
    %580 = vmatpush1.msra.mxu0 %v32
    %581 = vmatprep.subr.mxu0 0.0
    %582 = vmatpush1.msra.mxu0 %v33
    %583 = vmatprep.subr.mxu0 0.0
    %584 = vmatpush1.msra.mxu0 %v34
    %585 = vmatprep.subr.mxu0 0.0
    %586 = vmatpush1.msra.mxu0 0.0
    %587 = vmatprep.subr.mxu0 0.0
    %588 = vmatpush1.msra.mxu0 0.0
    %589 = vmatprep.subr.mxu0 0.0
    %590 = vmatpush1.msra.mxu0 0.0
    %591 = vmatprep.subr.mxu0 0.0
    %592 = vmatpush1.msra.mxu0 0.0
    %593 = vmatprep.subr.mxu0 0.0
    %594 = vmatpush1.msra.mxu0 0.0
    %595 = vmatprep.subr.mxu0 0.0
    %596 = vmatpush1.msra.mxu0 0.0
    %597 = vmatprep.subr.mxu0 0.0
    %598 = vmatpush1.msra.mxu0 0.0
    %599 = vmatprep.subr.mxu0 0.0
    %600 = vmatpush1.msra.mxu0 0.0
    %601 = vmatprep.subr.mxu0 0.0
    %602 = vmatpush1.msra.mxu0 0.0
    %603 = vmatprep.subr.mxu0 0.0
    %604 = vmatpush1.msra.mxu0 0.0
    %605 = vmatprep.subr.mxu0 0.0
    %606 = vmatpush1.msra.mxu0 0.0
    %607 = vmatprep.subr.mxu0 0.0
    %608 = vmatpush1.msra.mxu0 0.0
    %609 = vmatprep.subr.mxu0 0.0
    %610 = vmatpush1.msra.mxu0 0.0
    %611 = vmatprep.subr.mxu0 0.0
    %612 = vmatpush1.msra.mxu0 0.0
    %613 = vmatprep.subr.mxu0 0.0
    %614 = vmatpush1.msra.mxu0 0.0
    %615 = vmatprep.subr.mxu0 0.0
    %616 = vmatpush1.msra.mxu0 0.0
    %617 = vmatprep.subr.mxu0 0.0
    %618 = vmatpush1.msra.mxu0 0.0
    %619 = vmatprep.subr.mxu0 0.0
    %620 = vmatpush1.msra.mxu0 0.0
    %621 = vmatprep.subr.mxu0 0.0
    %622 = vmatpush1.msra.mxu0 0.0
    %623 = vmatprep.subr.mxu0 0.0
    %624 = vmatpush1.msra.mxu0 0.0
    %625 = vmatprep.subr.mxu0 0.0
    %626 = vmatpush1.msra.mxu0 0.0
    %627 = vmatprep.subr.mxu0 0.0
    %628 = vmatpush1.msra.mxu0 0.0
    %629 = vmatprep.subr.mxu0 0.0
    %630 = vmatpush1.msra.mxu0 0.0
    %631 = vmatprep.subr.mxu0 0.0
    %632 = vmatpush1.msra.mxu0 0.0
    %633 = vmatprep.mubr.f32.mxu0 0.0
    %634 = vmatmul.mubr.f32.gmra.mrb[0].mxu0 %v565
    %v635 = vpop.f32.mrb[0].mxu0
    %v636 = vadd.f32 %v42, %v635
    %v637 = vpop.f32.mrb[0].mxu0
    %638 = vmatprep.mubr.f32.mxu0 0.0
    %639 = vmatmul.mubr.f32.gmra.mrb[0].mxu0 %v567
    %v640 = vpop.f32.mrb[0].mxu0
    %v641 = vadd.f32 %v42, %v640
    %v642 = vpop.f32.mrb[0].mxu0
    %643 = vdwg.mxu0
    %v644 = vld [vmem:[%s3 + $0xc0] sm:$0xff]
    %v645 = vld [vmem:[%s3 + $0xc8] sm:$0xff]
    %v646 = vld [vmem:[%s3 + $0xd0] sm:$0xff]
    %v647 = vld [vmem:[%s3 + $0xd8] sm:$0xff]
    %v648 = vld [vmem:[%s3 + $0xe0] sm:$0xff]
    %v649 = vld [vmem:[%s3 + $0xe8] sm:$0xff]
    %v650 = vld [vmem:[%s3 + $0xf0] sm:$0xff]
    %v651 = vld [vmem:[%s3 + $0xf8] sm:$0xff]
    %v653 = vsel %vm44, %v636, 0
    %v656 = vsel %vm44, %v641, 0
    %658 = vmatprep.subr.mxu0 0.0
    %659 = vmatpush1.msra.mxu0 %v644
    %660 = vmatprep.subr.mxu0 0.0
    %661 = vmatpush1.msra.mxu0 %v645
    %662 = vmatprep.subr.mxu0 0.0
    %663 = vmatpush1.msra.mxu0 %v646
    %664 = vmatprep.subr.mxu0 0.0
    %665 = vmatpush1.msra.mxu0 %v647
    %666 = vmatprep.subr.mxu0 0.0
    %667 = vmatpush1.msra.mxu0 %v648
    %668 = vmatprep.subr.mxu0 0.0
    %669 = vmatpush1.msra.mxu0 %v649
    %670 = vmatprep.subr.mxu0 0.0
    %671 = vmatpush1.msra.mxu0 %v650
    %672 = vmatprep.subr.mxu0 0.0
    %673 = vmatpush1.msra.mxu0 %v651
    %674 = vmatprep.subr.mxu0 0.0
    %675 = vmatpush1.msra.mxu0 0.0
    %676 = vmatprep.subr.mxu0 0.0
    %677 = vmatpush1.msra.mxu0 0.0
    %678 = vmatprep.subr.mxu0 0.0
    %679 = vmatpush1.msra.mxu0 0.0
    %680 = vmatprep.subr.mxu0 0.0
    %681 = vmatpush1.msra.mxu0 0.0
    %682 = vmatprep.subr.mxu0 0.0
    %683 = vmatpush1.msra.mxu0 0.0
    %684 = vmatprep.subr.mxu0 0.0
    %685 = vmatpush1.msra.mxu0 0.0
    %686 = vmatprep.subr.mxu0 0.0
    %687 = vmatpush1.msra.mxu0 0.0
    %688 = vmatprep.subr.mxu0 0.0
    %689 = vmatpush1.msra.mxu0 0.0
    %690 = vmatprep.subr.mxu0 0.0
    %691 = vmatpush1.msra.mxu0 0.0
    %692 = vmatprep.subr.mxu0 0.0
    %693 = vmatpush1.msra.mxu0 0.0
    %694 = vmatprep.subr.mxu0 0.0
    %695 = vmatpush1.msra.mxu0 0.0
    %696 = vmatprep.subr.mxu0 0.0
    %697 = vmatpush1.msra.mxu0 0.0
    %698 = vmatprep.subr.mxu0 0.0
    %699 = vmatpush1.msra.mxu0 0.0
    %700 = vmatprep.subr.mxu0 0.0
    %701 = vmatpush1.msra.mxu0 0.0
    %702 = vmatprep.subr.mxu0 0.0
    %703 = vmatpush1.msra.mxu0 0.0
    %704 = vmatprep.subr.mxu0 0.0
    %705 = vmatpush1.msra.mxu0 0.0
    %706 = vmatprep.subr.mxu0 0.0
    %707 = vmatpush1.msra.mxu0 0.0
    %708 = vmatprep.subr.mxu0 0.0
    %709 = vmatpush1.msra.mxu0 0.0
    %710 = vmatprep.subr.mxu0 0.0
    %711 = vmatpush1.msra.mxu0 0.0
    %712 = vmatprep.subr.mxu0 0.0
    %713 = vmatpush1.msra.mxu0 0.0
    %714 = vmatprep.subr.mxu0 0.0
    %715 = vmatpush1.msra.mxu0 0.0
    %716 = vmatprep.subr.mxu0 0.0
    %717 = vmatpush1.msra.mxu0 0.0
    %718 = vmatprep.subr.mxu0 0.0
    %719 = vmatpush1.msra.mxu0 0.0
    %720 = vmatprep.subr.mxu0 0.0
    %721 = vmatpush1.msra.mxu0 0.0
    %722 = vmatprep.mubr.f32.mxu0 0.0
    %723 = vmatmul.mubr.f32.gmra.mrb[0].mxu0 %v653
    %v724 = vpop.f32.mrb[0].mxu0
    %v725 = vadd.f32 0.0, %v724
    %v726 = vpop.f32.mrb[0].mxu0
    %727 = vmatprep.mubr.f32.mxu0 0.0
    %728 = vmatmul.mubr.f32.gmra.mrb[0].mxu0 %v656
    %v729 = vpop.f32.mrb[0].mxu0
    %v730 = vadd.f32 0.0, %v729
    %v731 = vpop.f32.mrb[0].mxu0
    %732 = vdwg.mxu0
    %v733 = vadd.f32 %v559, %v725
    %v734 = vadd.f32 %v560, %v730
    %v735 = vld [vmem:[%s4] sm:$0x1]
    %v737 = vlaneseq
    %v738 = vshrl.u32 %v737, 7
    %v739 = vsub.s32 0, %v738
    %v740 = vrot.slane %v735, %v739
    %v742 = vadd.f32 %v733, %v740
    %v743 = vadd.f32 %v734, %v740
    %v744 = vmul.f32 %v742, 0.5
    %v745 = vmul.f32 %v743, 0.5
    %v746 = vmul.f32 %v742, 0.70710677
    %v747 = vmul.f32 %v743, 0.70710677
    %v748 = verf.f32.pop %v746
    %v749 = verf.f32.pop %v747
    %v750 = vadd.f32 %v748, 1.0
    %v751 = vadd.f32 %v749, 1.0
    %v752 = vmul.f32 %v744, %v750
    %v753 = vmul.f32 %v745, %v751
    %v754 = vld [vmem:[%s5] sm:$0xff]
    %v755 = vld [vmem:[%s5 + $0x8] sm:$0xff]
    %v756 = vld [vmem:[%s5 + $0x10] sm:$0xff]
    %v757 = vld [vmem:[%s5 + $0x18] sm:$0xff]
    %v758 = vld [vmem:[%s5 + $0x20] sm:$0xff]
    %v759 = vld [vmem:[%s5 + $0x28] sm:$0xff]
    %v760 = vld [vmem:[%s5 + $0x30] sm:$0xff]
    %v761 = vld [vmem:[%s5 + $0x38] sm:$0xff]
    %v762 = vld [vmem:[%s5 + $0x40] sm:$0xff]
    %v763 = vld [vmem:[%s5 + $0x48] sm:$0xff]
    %v764 = vld [vmem:[%s5 + $0x50] sm:$0xff]
    %v765 = vld [vmem:[%s5 + $0x58] sm:$0xff]
    %v766 = vld [vmem:[%s5 + $0x60] sm:$0xff]
    %v767 = vld [vmem:[%s5 + $0x68] sm:$0xff]
    %v768 = vld [vmem:[%s5 + $0x70] sm:$0xff]
    %v769 = vld [vmem:[%s5 + $0x78] sm:$0xff]
    %v770 = vld [vmem:[%s6] sm:$0x1]
    %v772 = vlaneseq
    %v773 = vshrl.u32 %v772, 7
    %v774 = vsub.s32 0, %v773
    %v775 = vrot.slane %v770, %v774
    %777 = vmatprep.subr.mxu0 0.0
    %778 = vmatpush1.msra.mxu0 %v754
    %779 = vmatprep.subr.mxu0 0.0
    %780 = vmatpush1.msra.mxu0 %v755
    %781 = vmatprep.subr.mxu0 0.0
    %782 = vmatpush1.msra.mxu0 %v756
    %783 = vmatprep.subr.mxu0 0.0
    %784 = vmatpush1.msra.mxu0 %v757
    %785 = vmatprep.subr.mxu0 0.0
    %786 = vmatpush1.msra.mxu0 %v758
    %787 = vmatprep.subr.mxu0 0.0
    %788 = vmatpush1.msra.mxu0 %v759
    %789 = vmatprep.subr.mxu0 0.0
    %790 = vmatpush1.msra.mxu0 %v760
    %791 = vmatprep.subr.mxu0 0.0
    %792 = vmatpush1.msra.mxu0 %v761
    %793 = vmatprep.subr.mxu0 0.0
    %794 = vmatpush1.msra.mxu0 %v762
    %795 = vmatprep.subr.mxu0 0.0
    %796 = vmatpush1.msra.mxu0 %v763
    %797 = vmatprep.subr.mxu0 0.0
    %798 = vmatpush1.msra.mxu0 %v764
    %799 = vmatprep.subr.mxu0 0.0
    %800 = vmatpush1.msra.mxu0 %v765
    %801 = vmatprep.subr.mxu0 0.0
    %802 = vmatpush1.msra.mxu0 %v766
    %803 = vmatprep.subr.mxu0 0.0
    %804 = vmatpush1.msra.mxu0 %v767
    %805 = vmatprep.subr.mxu0 0.0
    %806 = vmatpush1.msra.mxu0 %v768
    %807 = vmatprep.subr.mxu0 0.0
    %808 = vmatpush1.msra.mxu0 %v769
    %809 = vmatprep.subr.mxu0 0.0
    %810 = vmatpush1.msra.mxu0 0.0
    %811 = vmatprep.subr.mxu0 0.0
    %812 = vmatpush1.msra.mxu0 0.0
    %813 = vmatprep.subr.mxu0 0.0
    %814 = vmatpush1.msra.mxu0 0.0
    %815 = vmatprep.subr.mxu0 0.0
    %816 = vmatpush1.msra.mxu0 0.0
    %817 = vmatprep.subr.mxu0 0.0
    %818 = vmatpush1.msra.mxu0 0.0
    %819 = vmatprep.subr.mxu0 0.0
    %820 = vmatpush1.msra.mxu0 0.0
    %821 = vmatprep.subr.mxu0 0.0
    %822 = vmatpush1.msra.mxu0 0.0
    %823 = vmatprep.subr.mxu0 0.0
    %824 = vmatpush1.msra.mxu0 0.0
    %825 = vmatprep.subr.mxu0 0.0
    %826 = vmatpush1.msra.mxu0 0.0
    %827 = vmatprep.subr.mxu0 0.0
    %828 = vmatpush1.msra.mxu0 0.0
    %829 = vmatprep.subr.mxu0 0.0
    %830 = vmatpush1.msra.mxu0 0.0
    %831 = vmatprep.subr.mxu0 0.0
    %832 = vmatpush1.msra.mxu0 0.0
    %833 = vmatprep.subr.mxu0 0.0
    %834 = vmatpush1.msra.mxu0 0.0
    %835 = vmatprep.subr.mxu0 0.0
    %836 = vmatpush1.msra.mxu0 0.0
    %837 = vmatprep.subr.mxu0 0.0
    %838 = vmatpush1.msra.mxu0 0.0
    %839 = vmatprep.subr.mxu0 0.0
    %840 = vmatpush1.msra.mxu0 0.0
    %841 = vmatprep.mubr.f32.mxu0 0.0
    %842 = vmatmul.mubr.f32.gmra.mrb[0].mxu0 %v752
    %v843 = vpop.f32.mrb[0].mxu0
    %v844 = vadd.f32 %v775, %v843
    %v845 = vpop.f32.mrb[0].mxu0
    %846 = vmatprep.mubr.f32.mxu0 0.0
    %847 = vmatmul.mubr.f32.gmra.mrb[0].mxu0 %v753
    %v848 = vpop.f32.mrb[0].mxu0
    %v849 = vadd.f32 %v775, %v848
    %v850 = vpop.f32.mrb[0].mxu0
    %851 = vdwg.mxu0
    %852 = vst.msk [vmem:[#allocation2] sm:$0xff] %vm44, %v844
    %853 = vst.msk [vmem:[#allocation2 + $0x8] sm:$0xff] %vm44, %v849
    // Predicated region
    $region30: #{_forward.5} parent=1 // pred_check
      _
    $region31: #{_forward.5} parent=1 // pred_check_branch
      %855 = sbr.rel (0) target = $region33
    $region32: #{_forward.5} parent=1 // pred_region
      %s857 = ssub.s32 256, 256
      %858 = vsyncadd [#allocation3], %s857
      %s859 = sshll.u32 [#allocation2], 4
      %s860 = int_to_ptr.vmem [resolvable:$true] %s859
      %865 = dma.vmem_to_hbm [thread:$0]  %s860, 256, %s7, [#allocation3], 128, 128, 8
    $region33: #{_forward.5} parent=1 // pred_fallthru
      _
    // Predicated region
    $region34: #{_forward.5} parent=1 // pred_check
      _
    $region35: #{_forward.5} parent=1 // pred_check_branch
      %867 = sbr.rel (0) target = $region37
    $region36: #{_forward.5} parent=1 // pred_region
      %868 = dma.done [#allocation3], 256
    $region37: #{_forward.5} parent=1 // pred_fallthru
      _
    %869 = vsyncpa [#allocation3], 1

// kernel: _forward.4
$region0: #{_forward.4}
  #allocation0 [shape = 'u32[]', space=smem, size = 0x4, offset = 0x4, fixed_abs, tag = 'smem constant byte address 0x4 - core index']
  #allocation1 [shape = 'u32[144,128]{1,0:T(1,128)}', space=vmem, size = 0x12000, scoped, tag = 'internal scratch']
  %s0 = inlined_call_operand.vmem [shape: f32[8,8,192], index: 0, kind: input, shape index: {}]
  %s1 = inlined_call_operand.vmem [shape: f32[8,8,64], index: 1, kind: output, shape index: {}]
  %s2 = sld [smem:[#allocation0]]
  $region14: #{_forward.4} parent=0
    _
  %s4 = ssub.s32 1, %s2
  %s5 = scalar_select 0, %s4, %s2
  // Predicated region
  $region2: #{_forward.4} parent=0 // pred_check
    _
  $region3: #{_forward.4} parent=0 // pred_check_branch
    %7 = sbr.rel (0) target = $region5
  $region4: #{_forward.4} parent=0 // pred_region
    _
  $region5: #{_forward.4} parent=0 // pred_fallthru
    _
  %v8 = vld [vmem:[%s0] sm:$0xff]
  %v9 = vld [vmem:[%s0 + $0x10] sm:$0xff]
  %v10 = vld [vmem:[%s0 + $0x20] sm:$0xff]
  %v11 = vld [vmem:[%s0 + $0x30] sm:$0xff]
  %v12 = vld [vmem:[%s0 + $0x40] sm:$0xff]
  %v13 = vld [vmem:[%s0 + $0x50] sm:$0xff]
  %v14 = vld [vmem:[%s0 + $0x60] sm:$0xff]
  %v15 = vld [vmem:[%s0 + $0x70] sm:$0xff]
  %v16 = vld [vmem:[%s0 + $0x8] sm:$0xff]
  %v17 = vld [vmem:[%s0 + $0x18] sm:$0xff]
  %v18 = vld [vmem:[%s0 + $0x28] sm:$0xff]
  %v19 = vld [vmem:[%s0 + $0x38] sm:$0xff]
  %v20 = vld [vmem:[%s0 + $0x48] sm:$0xff]
  %v21 = vld [vmem:[%s0 + $0x58] sm:$0xff]
  %v22 = vld [vmem:[%s0 + $0x68] sm:$0xff]
  %v23 = vld [vmem:[%s0 + $0x78] sm:$0xff]
  %25 = vrot.lane.b32.xlu0 %v8, 64
  %v26 = vpop.permute.xlu0 %25
  %vm27 = vcmask 64512
  %v28 = vsel %vm27, %v8, 0
  %v30 = vsel %vm27, %v26, 0
  %32 = vmatprep.subr.mxu0 0.0
  %33 = vmatpush1.xpose.msra.mxu0 %v30
  %34 = vmatprep.subr.mxu0 0.0
  %35 = vmatpush1.xpose.msra.mxu0 0.0
  %36 = vmatprep.subr.mxu0 0.0
  %37 = vmatpush1.xpose.msra.mxu0 0.0
  %38 = vmatprep.subr.mxu0 0.0
  %39 = vmatpush1.xpose.msra.mxu0 0.0
  %40 = vmatprep.subr.mxu0 0.0
  %41 = vmatpush1.xpose.msra.mxu0 0.0
  %42 = vmatprep.subr.mxu0 0.0
  %43 = vmatpush1.xpose.msra.mxu0 0.0
  %44 = vmatprep.subr.mxu0 0.0
  %45 = vmatpush1.xpose.msra.mxu0 0.0
  %46 = vmatprep.subr.mxu0 0.0
  %47 = vmatpush1.xpose.msra.mxu0 0.0
  %48 = vmatprep.subr.mxu0 0.0
  %49 = vmatpush1.xpose.msra.mxu0 0.0
  %50 = vmatprep.subr.mxu0 0.0
  %51 = vmatpush1.xpose.msra.mxu0 0.0
  %52 = vmatprep.subr.mxu0 0.0
  %53 = vmatpush1.xpose.msra.mxu0 0.0
  %54 = vmatprep.subr.mxu0 0.0
  %55 = vmatpush1.xpose.msra.mxu0 0.0
  %56 = vmatprep.subr.mxu0 0.0
  %57 = vmatpush1.xpose.msra.mxu0 0.0
  %58 = vmatprep.subr.mxu0 0.0
  %59 = vmatpush1.xpose.msra.mxu0 0.0
  %60 = vmatprep.subr.mxu0 0.0
  %61 = vmatpush1.xpose.msra.mxu0 0.0
  %62 = vmatprep.subr.mxu0 0.0
  %63 = vmatpush1.xpose.msra.mxu0 0.0
  %64 = vmatprep.subr.mxu0 0.0
  %65 = vmatpush1.xpose.msra.mxu0 0.0
  %66 = vmatprep.subr.mxu0 0.0
  %67 = vmatpush1.xpose.msra.mxu0 0.0
  %68 = vmatprep.subr.mxu0 0.0
  %69 = vmatpush1.xpose.msra.mxu0 0.0
  %70 = vmatprep.subr.mxu0 0.0
  %71 = vmatpush1.xpose.msra.mxu0 0.0
  %72 = vmatprep.subr.mxu0 0.0
  %73 = vmatpush1.xpose.msra.mxu0 0.0
  %74 = vmatprep.subr.mxu0 0.0
  %75 = vmatpush1.xpose.msra.mxu0 0.0
  %76 = vmatprep.subr.mxu0 0.0
  %77 = vmatpush1.xpose.msra.mxu0 0.0
  %78 = vmatprep.subr.mxu0 0.0
  %79 = vmatpush1.xpose.msra.mxu0 0.0
  %80 = vmatprep.subr.mxu0 0.0
  %81 = vmatpush1.xpose.msra.mxu0 0.0
  %82 = vmatprep.subr.mxu0 0.0
  %83 = vmatpush1.xpose.msra.mxu0 0.0
  %84 = vmatprep.subr.mxu0 0.0
  %85 = vmatpush1.xpose.msra.mxu0 0.0
  %86 = vmatprep.subr.mxu0 0.0
  %87 = vmatpush1.xpose.msra.mxu0 0.0
  %88 = vmatprep.subr.mxu0 0.0
  %89 = vmatpush1.xpose.msra.mxu0 0.0
  %90 = vmatprep.subr.mxu0 0.0
  %91 = vmatpush1.xpose.msra.mxu0 0.0
  %92 = vmatprep.subr.mxu0 0.0
  %93 = vmatpush1.xpose.msra.mxu0 0.0
  %94 = vmatprep.subr.mxu0 0.0
  %95 = vmatpush1.xpose.msra.mxu0 0.0
  %96 = vmatprep.mubr.f32.mxu0 0.0
  %97 = vmatmul.mubr.f32.gmra.mrb[0].mxu0 %v28
  %v98 = vpop.f32.mrb[0].mxu0
  %v99 = vadd.f32 0.0, %v98
  %v100 = vpop.f32.mrb[0].mxu0
  %101 = vdwg.mxu0
  %103 = vrot.lane.b32.xlu0 %v9, 64
  %v104 = vpop.permute.xlu0 %103
  %v105 = vsel %vm27, %v9, 0
  %v107 = vsel %vm27, %v104, 0
  %109 = vmatprep.subr.mxu0 0.0
  %110 = vmatpush1.xpose.msra.mxu0 %v107
  %111 = vmatprep.subr.mxu0 0.0
  %112 = vmatpush1.xpose.msra.mxu0 0.0
  %113 = vmatprep.subr.mxu0 0.0
  %114 = vmatpush1.xpose.msra.mxu0 0.0
  %115 = vmatprep.subr.mxu0 0.0
  %116 = vmatpush1.xpose.msra.mxu0 0.0
  %117 = vmatprep.subr.mxu0 0.0
  %118 = vmatpush1.xpose.msra.mxu0 0.0
  %119 = vmatprep.subr.mxu0 0.0
  %120 = vmatpush1.xpose.msra.mxu0 0.0
  %121 = vmatprep.subr.mxu0 0.0
  %122 = vmatpush1.xpose.msra.mxu0 0.0
  %123 = vmatprep.subr.mxu0 0.0
  %124 = vmatpush1.xpose.msra.mxu0 0.0
  %125 = vmatprep.subr.mxu0 0.0
  %126 = vmatpush1.xpose.msra.mxu0 0.0
  %127 = vmatprep.subr.mxu0 0.0
  %128 = vmatpush1.xpose.msra.mxu0 0.0
  %129 = vmatprep.subr.mxu0 0.0
  %130 = vmatpush1.xpose.msra.mxu0 0.0
  %131 = vmatprep.subr.mxu0 0.0
  %132 = vmatpush1.xpose.msra.mxu0 0.0
  %133 = vmatprep.subr.mxu0 0.0
  %134 = vmatpush1.xpose.msra.mxu0 0.0
  %135 = vmatprep.subr.mxu0 0.0
  %136 = vmatpush1.xpose.msra.mxu0 0.0
  %137 = vmatprep.subr.mxu0 0.0
  %138 = vmatpush1.xpose.msra.mxu0 0.0
  %139 = vmatprep.subr.mxu0 0.0
  %140 = vmatpush1.xpose.msra.mxu0 0.0
  %141 = vmatprep.subr.mxu0 0.0
  %142 = vmatpush1.xpose.msra.mxu0 0.0
  %143 = vmatprep.subr.mxu0 0.0
  %144 = vmatpush1.xpose.msra.mxu0 0.0
  %145 = vmatprep.subr.mxu0 0.0
  %146 = vmatpush1.xpose.msra.mxu0 0.0
  %147 = vmatprep.subr.mxu0 0.0
  %148 = vmatpush1.xpose.msra.mxu0 0.0
  %149 = vmatprep.subr.mxu0 0.0
  %150 = vmatpush1.xpose.msra.mxu0 0.0
  %151 = vmatprep.subr.mxu0 0.0
  %152 = vmatpush1.xpose.msra.mxu0 0.0
  %153 = vmatprep.subr.mxu0 0.0
  %154 = vmatpush1.xpose.msra.mxu0 0.0
  %155 = vmatprep.subr.mxu0 0.0
  %156 = vmatpush1.xpose.msra.mxu0 0.0
  %157 = vmatprep.subr.mxu0 0.0
  %158 = vmatpush1.xpose.msra.mxu0 0.0
  %159 = vmatprep.subr.mxu0 0.0
  %160 = vmatpush1.xpose.msra.mxu0 0.0
  %161 = vmatprep.subr.mxu0 0.0
  %162 = vmatpush1.xpose.msra.mxu0 0.0
  %163 = vmatprep.subr.mxu0 0.0
  %164 = vmatpush1.xpose.msra.mxu0 0.0
  %165 = vmatprep.subr.mxu0 0.0
  %166 = vmatpush1.xpose.msra.mxu0 0.0
  %167 = vmatprep.subr.mxu0 0.0
  %168 = vmatpush1.xpose.msra.mxu0 0.0
  %169 = vmatprep.subr.mxu0 0.0
  %170 = vmatpush1.xpose.msra.mxu0 0.0
  %171 = vmatprep.subr.mxu0 0.0
  %172 = vmatpush1.xpose.msra.mxu0 0.0
  %173 = vmatprep.mubr.f32.mxu0 0.0
  %174 = vmatmul.mubr.f32.gmra.mrb[0].mxu0 %v105
  %v175 = vpop.f32.mrb[0].mxu0
  %v176 = vadd.f32 0.0, %v175
  %v177 = vpop.f32.mrb[0].mxu0
  %178 = vdwg.mxu0
  %180 = vrot.lane.b32.xlu0 %v10, 64
  %v181 = vpop.permute.xlu0 %180
  %v182 = vsel %vm27, %v10, 0
  %v184 = vsel %vm27, %v181, 0
  %186 = vmatprep.subr.mxu0 0.0
  %187 = vmatpush1.xpose.msra.mxu0 %v184
  %188 = vmatprep.subr.mxu0 0.0
  %189 = vmatpush1.xpose.msra.mxu0 0.0
  %190 = vmatprep.subr.mxu0 0.0
  %191 = vmatpush1.xpose.msra.mxu0 0.0
  %192 = vmatprep.subr.mxu0 0.0
  %193 = vmatpush1.xpose.msra.mxu0 0.0
  %194 = vmatprep.subr.mxu0 0.0
  %195 = vmatpush1.xpose.msra.mxu0 0.0
  %196 = vmatprep.subr.mxu0 0.0
  %197 = vmatpush1.xpose.msra.mxu0 0.0
  %198 = vmatprep.subr.mxu0 0.0
  %199 = vmatpush1.xpose.msra.mxu0 0.0
  %200 = vmatprep.subr.mxu0 0.0
  %201 = vmatpush1.xpose.msra.mxu0 0.0
  %202 = vmatprep.subr.mxu0 0.0
  %203 = vmatpush1.xpose.msra.mxu0 0.0
  %204 = vmatprep.subr.mxu0 0.0
  %205 = vmatpush1.xpose.msra.mxu0 0.0
  %206 = vmatprep.subr.mxu0 0.0
  %207 = vmatpush1.xpose.msra.mxu0 0.0
  %208 = vmatprep.subr.mxu0 0.0
  %209 = vmatpush1.xpose.msra.mxu0 0.0
  %210 = vmatprep.subr.mxu0 0.0
  %211 = vmatpush1.xpose.msra.mxu0 0.0
  %212 = vmatprep.subr.mxu0 0.0
  %213 = vmatpush1.xpose.msra.mxu0 0.0
  %214 = vmatprep.subr.mxu0 0.0
  %215 = vmatpush1.xpose.msra.mxu0 0.0
  %216 = vmatprep.subr.mxu0 0.0
  %217 = vmatpush1.xpose.msra.mxu0 0.0
  %218 = vmatprep.subr.mxu0 0.0
  %219 = vmatpush1.xpose.msra.mxu0 0.0
  %220 = vmatprep.subr.mxu0 0.0
  %221 = vmatpush1.xpose.msra.mxu0 0.0
  %222 = vmatprep.subr.mxu0 0.0
  %223 = vmatpush1.xpose.msra.mxu0 0.0
  %224 = vmatprep.subr.mxu0 0.0
  %225 = vmatpush1.xpose.msra.mxu0 0.0
  %226 = vmatprep.subr.mxu0 0.0
  %227 = vmatpush1.xpose.msra.mxu0 0.0
  %228 = vmatprep.subr.mxu0 0.0
  %229 = vmatpush1.xpose.msra.mxu0 0.0
  %230 = vmatprep.subr.mxu0 0.0
  %231 = vmatpush1.xpose.msra.mxu0 0.0
  %232 = vmatprep.subr.mxu0 0.0
  %233 = vmatpush1.xpose.msra.mxu0 0.0
  %234 = vmatprep.subr.mxu0 0.0
  %235 = vmatpush1.xpose.msra.mxu0 0.0
  %236 = vmatprep.subr.mxu0 0.0
  %237 = vmatpush1.xpose.msra.mxu0 0.0
  %238 = vmatprep.subr.mxu0 0.0
  %239 = vmatpush1.xpose.msra.mxu0 0.0
  %240 = vmatprep.subr.mxu0 0.0
  %241 = vmatpush1.xpose.msra.mxu0 0.0
  %242 = vmatprep.subr.mxu0 0.0
  %243 = vmatpush1.xpose.msra.mxu0 0.0
  %244 = vmatprep.subr.mxu0 0.0
  %245 = vmatpush1.xpose.msra.mxu0 0.0
  %246 = vmatprep.subr.mxu0 0.0
  %247 = vmatpush1.xpose.msra.mxu0 0.0
  %248 = vmatprep.subr.mxu0 0.0
  %249 = vmatpush1.xpose.msra.mxu0 0.0
  %250 = vmatprep.mubr.f32.mxu0 0.0
  %251 = vmatmul.mubr.f32.gmra.mrb[0].mxu0 %v182
  %v252 = vpop.f32.mrb[0].mxu0
  %v253 = vadd.f32 0.0, %v252
  %v254 = vpop.f32.mrb[0].mxu0
  %255 = vdwg.mxu0
  %257 = vrot.lane.b32.xlu0 %v11, 64
  %v258 = vpop.permute.xlu0 %257
  %v259 = vsel %vm27, %v11, 0
  %v261 = vsel %vm27, %v258, 0
  %263 = vmatprep.subr.mxu0 0.0
  %264 = vmatpush1.xpose.msra.mxu0 %v261
  %265 = vmatprep.subr.mxu0 0.0
  %266 = vmatpush1.xpose.msra.mxu0 0.0
  %267 = vmatprep.subr.mxu0 0.0
  %268 = vmatpush1.xpose.msra.mxu0 0.0
  %269 = vmatprep.subr.mxu0 0.0
  %270 = vmatpush1.xpose.msra.mxu0 0.0
  %271 = vmatprep.subr.mxu0 0.0
  %272 = vmatpush1.xpose.msra.mxu0 0.0
  %273 = vmatprep.subr.mxu0 0.0
  %274 = vmatpush1.xpose.msra.mxu0 0.0
  %275 = vmatprep.subr.mxu0 0.0
  %276 = vmatpush1.xpose.msra.mxu0 0.0
  %277 = vmatprep.subr.mxu0 0.0
  %278 = vmatpush1.xpose.msra.mxu0 0.0
  %279 = vmatprep.subr.mxu0 0.0
  %280 = vmatpush1.xpose.msra.mxu0 0.0
  %281 = vmatprep.subr.mxu0 0.0
  %282 = vmatpush1.xpose.msra.mxu0 0.0
  %283 = vmatprep.subr.mxu0 0.0
  %284 = vmatpush1.xpose.msra.mxu0 0.0
  %285 = vmatprep.subr.mxu0 0.0
  %286 = vmatpush1.xpose.msra.mxu0 0.0
  %287 = vmatprep.subr.mxu0 0.0
  %288 = vmatpush1.xpose.msra.mxu0 0.0
  %289 = vmatprep.subr.mxu0 0.0
  %290 = vmatpush1.xpose.msra.mxu0 0.0
  %291 = vmatprep.subr.mxu0 0.0
  %292 = vmatpush1.xpose.msra.mxu0 0.0
  %293 = vmatprep.subr.mxu0 0.0
  %294 = vmatpush1.xpose.msra.mxu0 0.0
  %295 = vmatprep.subr.mxu0 0.0
  %296 = vmatpush1.xpose.msra.mxu0 0.0
  %297 = vmatprep.subr.mxu0 0.0
  %298 = vmatpush1.xpose.msra.mxu0 0.0
  %299 = vmatprep.subr.mxu0 0.0
  %300 = vmatpush1.xpose.msra.mxu0 0.0
  %301 = vmatprep.subr.mxu0 0.0
  %302 = vmatpush1.xpose.msra.mxu0 0.0
  %303 = vmatprep.subr.mxu0 0.0
  %304 = vmatpush1.xpose.msra.mxu0 0.0
  %305 = vmatprep.subr.mxu0 0.0
  %306 = vmatpush1.xpose.msra.mxu0 0.0
  %307 = vmatprep.subr.mxu0 0.0
  %308 = vmatpush1.xpose.msra.mxu0 0.0
  %309 = vmatprep.subr.mxu0 0.0
  %310 = vmatpush1.xpose.msra.mxu0 0.0
  %311 = vmatprep.subr.mxu0 0.0
  %312 = vmatpush1.xpose.msra.mxu0 0.0
  %313 = vmatprep.subr.mxu0 0.0
  %314 = vmatpush1.xpose.msra.mxu0 0.0
  %315 = vmatprep.subr.mxu0 0.0
  %316 = vmatpush1.xpose.msra.mxu0 0.0
  %317 = vmatprep.subr.mxu0 0.0
  %318 = vmatpush1.xpose.msra.mxu0 0.0
  %319 = vmatprep.subr.mxu0 0.0
  %320 = vmatpush1.xpose.msra.mxu0 0.0
  %321 = vmatprep.subr.mxu0 0.0
  %322 = vmatpush1.xpose.msra.mxu0 0.0
  %323 = vmatprep.subr.mxu0 0.0
  %324 = vmatpush1.xpose.msra.mxu0 0.0
  %325 = vmatprep.subr.mxu0 0.0
  %326 = vmatpush1.xpose.msra.mxu0 0.0
  %327 = vmatprep.mubr.f32.mxu0 0.0
  %328 = vmatmul.mubr.f32.gmra.mrb[0].mxu0 %v259
  %v329 = vpop.f32.mrb[0].mxu0
  %v330 = vadd.f32 0.0, %v329
  %v331 = vpop.f32.mrb[0].mxu0
  %332 = vdwg.mxu0
  %334 = vrot.lane.b32.xlu0 %v12, 64
  %v335 = vpop.permute.xlu0 %334
  %v336 = vsel %vm27, %v12, 0
  %v338 = vsel %vm27, %v335, 0
  %340 = vmatprep.subr.mxu0 0.0
  %341 = vmatpush1.xpose.msra.mxu0 %v338
  %342 = vmatprep.subr.mxu0 0.0
  %343 = vmatpush1.xpose.msra.mxu0 0.0
  %344 = vmatprep.subr.mxu0 0.0
  %345 = vmatpush1.xpose.msra.mxu0 0.0
  %346 = vmatprep.subr.mxu0 0.0
  %347 = vmatpush1.xpose.msra.mxu0 0.0
  %348 = vmatprep.subr.mxu0 0.0
  %349 = vmatpush1.xpose.msra.mxu0 0.0
  %350 = vmatprep.subr.mxu0 0.0
  %351 = vmatpush1.xpose.msra.mxu0 0.0
  %352 = vmatprep.subr.mxu0 0.0
  %353 = vmatpush1.xpose.msra.mxu0 0.0
  %354 = vmatprep.subr.mxu0 0.0
  %355 = vmatpush1.xpose.msra.mxu0 0.0
  %356 = vmatprep.subr.mxu0 0.0
  %357 = vmatpush1.xpose.msra.mxu0 0.0
  %358 = vmatprep.subr.mxu0 0.0
  %359 = vmatpush1.xpose.msra.mxu0 0.0
  %360 = vmatprep.subr.mxu0 0.0
  %361 = vmatpush1.xpose.msra.mxu0 0.0
  %362 = vmatprep.subr.mxu0 0.0
  %363 = vmatpush1.xpose.msra.mxu0 0.0
  %364 = vmatprep.subr.mxu0 0.0
  %365 = vmatpush1.xpose.msra.mxu0 0.0
  %366 = vmatprep.subr.mxu0 0.0
  %367 = vmatpush1.xpose.msra.mxu0 0.0
  %368 = vmatprep.subr.mxu0 0.0
  %369 = vmatpush1.xpose.msra.mxu0 0.0
  %370 = vmatprep.subr.mxu0 0.0
  %371 = vmatpush1.xpose.msra.mxu0 0.0
  %372 = vmatprep.subr.mxu0 0.0
  %373 = vmatpush1.xpose.msra.mxu0 0.0
  %374 = vmatprep.subr.mxu0 0.0
  %375 = vmatpush1.xpose.msra.mxu0 0.0
  %376 = vmatprep.subr.mxu0 0.0
  %377 = vmatpush1.xpose.msra.mxu0 0.0
  %378 = vmatprep.subr.mxu0 0.0
  %379 = vmatpush1.xpose.msra.mxu0 0.0
  %380 = vmatprep.subr.mxu0 0.0
  %381 = vmatpush1.xpose.msra.mxu0 0.0
  %382 = vmatprep.subr.mxu0 0.0
  %383 = vmatpush1.xpose.msra.mxu0 0.0
  %384 = vmatprep.subr.mxu0 0.0
  %385 = vmatpush1.xpose.msra.mxu0 0.0
  %386 = vmatprep.subr.mxu0 0.0
  %387 = vmatpush1.xpose.msra.mxu0 0.0
  %388 = vmatprep.subr.mxu0 0.0
  %389 = vmatpush1.xpose.msra.mxu0 0.0
  %390 = vmatprep.subr.mxu0 0.0
  %391 = vmatpush1.xpose.msra.mxu0 0.0
  %392 = vmatprep.subr.mxu0 0.0
  %393 = vmatpush1.xpose.msra.mxu0 0.0
  %394 = vmatprep.subr.mxu0 0.0
  %395 = vmatpush1.xpose.msra.mxu0 0.0
  %396 = vmatprep.subr.mxu0 0.0
  %397 = vmatpush1.xpose.msra.mxu0 0.0
  %398 = vmatprep.subr.mxu0 0.0
  %399 = vmatpush1.xpose.msra.mxu0 0.0
  %400 = vmatprep.subr.mxu0 0.0
  %401 = vmatpush1.xpose.msra.mxu0 0.0
  %402 = vmatprep.subr.mxu0 0.0
  %403 = vmatpush1.xpose.msra.mxu0 0.0
  %404 = vmatprep.mubr.f32.mxu0 0.0
  %405 = vmatmul.mubr.f32.gmra.mrb[0].mxu0 %v336
  %v406 = vpop.f32.mrb[0].mxu0
  %v407 = vadd.f32 0.0, %v406
  %v408 = vpop.f32.mrb[0].mxu0
  %409 = vdwg.mxu0
  %411 = vrot.lane.b32.xlu0 %v13, 64
  %v412 = vpop.permute.xlu0 %411
  %v413 = vsel %vm27, %v13, 0
  %v415 = vsel %vm27, %v412, 0
  %417 = vmatprep.subr.mxu0 0.0
  %418 = vmatpush1.xpose.msra.mxu0 %v415
  %419 = vmatprep.subr.mxu0 0.0
  %420 = vmatpush1.xpose.msra.mxu0 0.0
  %421 = vmatprep.subr.mxu0 0.0
  %422 = vmatpush1.xpose.msra.mxu0 0.0
  %423 = vmatprep.subr.mxu0 0.0
  %424 = vmatpush1.xpose.msra.mxu0 0.0
  %425 = vmatprep.subr.mxu0 0.0
  %426 = vmatpush1.xpose.msra.mxu0 0.0
  %427 = vmatprep.subr.mxu0 0.0
  %428 = vmatpush1.xpose.msra.mxu0 0.0
  %429 = vmatprep.subr.mxu0 0.0
  %430 = vmatpush1.xpose.msra.mxu0 0.0
  %431 = vmatprep.subr.mxu0 0.0
  %432 = vmatpush1.xpose.msra.mxu0 0.0
  %433 = vmatprep.subr.mxu0 0.0
  %434 = vmatpush1.xpose.msra.mxu0 0.0
  %435 = vmatprep.subr.mxu0 0.0
  %436 = vmatpush1.xpose.msra.mxu0 0.0
  %437 = vmatprep.subr.mxu0 0.0
  %438 = vmatpush1.xpose.msra.mxu0 0.0
  %439 = vmatprep.subr.mxu0 0.0
  %440 = vmatpush1.xpose.msra.mxu0 0.0
  %441 = vmatprep.subr.mxu0 0.0
  %442 = vmatpush1.xpose.msra.mxu0 0.0
  %443 = vmatprep.subr.mxu0 0.0
  %444 = vmatpush1.xpose.msra.mxu0 0.0
  %445 = vmatprep.subr.mxu0 0.0
  %446 = vmatpush1.xpose.msra.mxu0 0.0
  %447 = vmatprep.subr.mxu0 0.0
  %448 = vmatpush1.xpose.msra.mxu0 0.0
  %449 = vmatprep.subr.mxu0 0.0
  %450 = vmatpush1.xpose.msra.mxu0 0.0
  %451 = vmatprep.subr.mxu0 0.0
  %452 = vmatpush1.xpose.msra.mxu0 0.0
  %453 = vmatprep.subr.mxu0 0.0
  %454 = vmatpush1.xpose.msra.mxu0 0.0
  %455 = vmatprep.subr.mxu0 0.0
  %456 = vmatpush1.xpose.msra.mxu0 0.0
  %457 = vmatprep.subr.mxu0 0.0
  %458 = vmatpush1.xpose.msra.mxu0 0.0
  %459 = vmatprep.subr.mxu0 0.0
  %460 = vmatpush1.xpose.msra.mxu0 0.0
  %461 = vmatprep.subr.mxu0 0.0
  %462 = vmatpush1.xpose.msra.mxu0 0.0
  %463 = vmatprep.subr.mxu0 0.0
  %464 = vmatpush1.xpose.msra.mxu0 0.0
  %465 = vmatprep.subr.mxu0 0.0
  %466 = vmatpush1.xpose.msra.mxu0 0.0
  %467 = vmatprep.subr.mxu0 0.0
  %468 = vmatpush1.xpose.msra.mxu0 0.0
  %469 = vmatprep.subr.mxu0 0.0
  %470 = vmatpush1.xpose.msra.mxu0 0.0
  %471 = vmatprep.subr.mxu0 0.0
  %472 = vmatpush1.xpose.msra.mxu0 0.0
  %473 = vmatprep.subr.mxu0 0.0
  %474 = vmatpush1.xpose.msra.mxu0 0.0
  %475 = vmatprep.subr.mxu0 0.0
  %476 = vmatpush1.xpose.msra.mxu0 0.0
  %477 = vmatprep.subr.mxu0 0.0
  %478 = vmatpush1.xpose.msra.mxu0 0.0
  %479 = vmatprep.subr.mxu0 0.0
  %480 = vmatpush1.xpose.msra.mxu0 0.0
  %481 = vmatprep.mubr.f32.mxu0 0.0
  %482 = vmatmul.mubr.f32.gmra.mrb[0].mxu0 %v413
  %v483 = vpop.f32.mrb[0].mxu0
  %v484 = vadd.f32 0.0, %v483
  %v485 = vpop.f32.mrb[0].mxu0
  %486 = vdwg.mxu0
  %488 = vrot.lane.b32.xlu0 %v14, 64
  %v489 = vpop.permute.xlu0 %488
  %v490 = vsel %vm27, %v14, 0
  %v492 = vsel %vm27, %v489, 0
  %494 = vmatprep.subr.mxu0 0.0
  %495 = vmatpush1.xpose.msra.mxu0 %v492
  %496 = vmatprep.subr.mxu0 0.0
  %497 = vmatpush1.xpose.msra.mxu0 0.0
  %498 = vmatprep.subr.mxu0 0.0
  %499 = vmatpush1.xpose.msra.mxu0 0.0
  %500 = vmatprep.subr.mxu0 0.0
  %501 = vmatpush1.xpose.msra.mxu0 0.0
  %502 = vmatprep.subr.mxu0 0.0
  %503 = vmatpush1.xpose.msra.mxu0 0.0
  %504 = vmatprep.subr.mxu0 0.0
  %505 = vmatpush1.xpose.msra.mxu0 0.0
  %506 = vmatprep.subr.mxu0 0.0
  %507 = vmatpush1.xpose.msra.mxu0 0.0
  %508 = vmatprep.subr.mxu0 0.0
  %509 = vmatpush1.xpose.msra.mxu0 0.0
  %510 = vmatprep.subr.mxu0 0.0
  %511 = vmatpush1.xpose.msra.mxu0 0.0
  %512 = vmatprep.subr.mxu0 0.0
  %513 = vmatpush1.xpose.msra.mxu0 0.0
  %514 = vmatprep.subr.mxu0 0.0
  %515 = vmatpush1.xpose.msra.mxu0 0.0
  %516 = vmatprep.subr.mxu0 0.0
  %517 = vmatpush1.xpose.msra.mxu0 0.0
  %518 = vmatprep.subr.mxu0 0.0
  %519 = vmatpush1.xpose.msra.mxu0 0.0
  %520 = vmatprep.subr.mxu0 0.0
  %521 = vmatpush1.xpose.msra.mxu0 0.0
  %522 = vmatprep.subr.mxu0 0.0
  %523 = vmatpush1.xpose.msra.mxu0 0.0
  %524 = vmatprep.subr.mxu0 0.0
  %525 = vmatpush1.xpose.msra.mxu0 0.0
  %526 = vmatprep.subr.mxu0 0.0
  %527 = vmatpush1.xpose.msra.mxu0 0.0
  %528 = vmatprep.subr.mxu0 0.0
  %529 = vmatpush1.xpose.msra.mxu0 0.0
  %530 = vmatprep.subr.mxu0 0.0
  %531 = vmatpush1.xpose.msra.mxu0 0.0
  %532 = vmatprep.subr.mxu0 0.0
  %533 = vmatpush1.xpose.msra.mxu0 0.0
  %534 = vmatprep.subr.mxu0 0.0
  %535 = vmatpush1.xpose.msra.mxu0 0.0
  %536 = vmatprep.subr.mxu0 0.0
  %537 = vmatpush1.xpose.msra.mxu0 0.0
  %538 = vmatprep.subr.mxu0 0.0
  %539 = vmatpush1.xpose.msra.mxu0 0.0
  %540 = vmatprep.subr.mxu0 0.0
  %541 = vmatpush1.xpose.msra.mxu0 0.0
  %542 = vmatprep.subr.mxu0 0.0
  %543 = vmatpush1.xpose.msra.mxu0 0.0
  %544 = vmatprep.subr.mxu0 0.0
  %545 = vmatpush1.xpose.msra.mxu0 0.0
  %546 = vmatprep.subr.mxu0 0.0
  %547 = vmatpush1.xpose.msra.mxu0 0.0
  %548 = vmatprep.subr.mxu0 0.0
  %549 = vmatpush1.xpose.msra.mxu0 0.0
  %550 = vmatprep.subr.mxu0 0.0
  %551 = vmatpush1.xpose.msra.mxu0 0.0
  %552 = vmatprep.subr.mxu0 0.0
  %553 = vmatpush1.xpose.msra.mxu0 0.0
  %554 = vmatprep.subr.mxu0 0.0
  %555 = vmatpush1.xpose.msra.mxu0 0.0
  %556 = vmatprep.subr.mxu0 0.0
  %557 = vmatpush1.xpose.msra.mxu0 0.0
  %558 = vmatprep.mubr.f32.mxu0 0.0
  %559 = vmatmul.mubr.f32.gmra.mrb[0].mxu0 %v490
  %v560 = vpop.f32.mrb[0].mxu0
  %v561 = vadd.f32 0.0, %v560
  %v562 = vpop.f32.mrb[0].mxu0
  %563 = vdwg.mxu0
  %565 = vrot.lane.b32.xlu0 %v15, 64
  %v566 = vpop.permute.xlu0 %565
  %v567 = vsel %vm27, %v15, 0
  %v569 = vsel %vm27, %v566, 0
  %571 = vmatprep.subr.mxu0 0.0
  %572 = vmatpush1.xpose.msra.mxu0 %v569
  %573 = vmatprep.subr.mxu0 0.0
  %574 = vmatpush1.xpose.msra.mxu0 0.0
  %575 = vmatprep.subr.mxu0 0.0
  %576 = vmatpush1.xpose.msra.mxu0 0.0
  %577 = vmatprep.subr.mxu0 0.0
  %578 = vmatpush1.xpose.msra.mxu0 0.0
  %579 = vmatprep.subr.mxu0 0.0
  %580 = vmatpush1.xpose.msra.mxu0 0.0
  %581 = vmatprep.subr.mxu0 0.0
  %582 = vmatpush1.xpose.msra.mxu0 0.0
  %583 = vmatprep.subr.mxu0 0.0
  %584 = vmatpush1.xpose.msra.mxu0 0.0
  %585 = vmatprep.subr.mxu0 0.0
  %586 = vmatpush1.xpose.msra.mxu0 0.0
  %587 = vmatprep.subr.mxu0 0.0
  %588 = vmatpush1.xpose.msra.mxu0 0.0
  %589 = vmatprep.subr.mxu0 0.0
  %590 = vmatpush1.xpose.msra.mxu0 0.0
  %591 = vmatprep.subr.mxu0 0.0
  %592 = vmatpush1.xpose.msra.mxu0 0.0
  %593 = vmatprep.subr.mxu0 0.0
  %594 = vmatpush1.xpose.msra.mxu0 0.0
  %595 = vmatprep.subr.mxu0 0.0
  %596 = vmatpush1.xpose.msra.mxu0 0.0
  %597 = vmatprep.subr.mxu0 0.0
  %598 = vmatpush1.xpose.msra.mxu0 0.0
  %599 = vmatprep.subr.mxu0 0.0
  %600 = vmatpush1.xpose.msra.mxu0 0.0
  %601 = vmatprep.subr.mxu0 0.0
  %602 = vmatpush1.xpose.msra.mxu0 0.0
  %603 = vmatprep.subr.mxu0 0.0
  %604 = vmatpush1.xpose.msra.mxu0 0.0
  %605 = vmatprep.subr.mxu0 0.0
  %606 = vmatpush1.xpose.msra.mxu0 0.0
  %607 = vmatprep.subr.mxu0 0.0
  %608 = vmatpush1.xpose.msra.mxu0 0.0
  %609 = vmatprep.subr.mxu0 0.0
  %610 = vmatpush1.xpose.msra.mxu0 0.0
  %611 = vmatprep.subr.mxu0 0.0
  %612 = vmatpush1.xpose.msra.mxu0 0.0
  %613 = vmatprep.subr.mxu0 0.0
  %614 = vmatpush1.xpose.msra.mxu0 0.0
  %615 = vmatprep.subr.mxu0 0.0
  %616 = vmatpush1.xpose.msra.mxu0 0.0
  %617 = vmatprep.subr.mxu0 0.0
  %618 = vmatpush1.xpose.msra.mxu0 0.0
  %619 = vmatprep.subr.mxu0 0.0
  %620 = vmatpush1.xpose.msra.mxu0 0.0
  %621 = vmatprep.subr.mxu0 0.0
  %622 = vmatpush1.xpose.msra.mxu0 0.0
  %623 = vmatprep.subr.mxu0 0.0
  %624 = vmatpush1.xpose.msra.mxu0 0.0
  %625 = vmatprep.subr.mxu0 0.0
  %626 = vmatpush1.xpose.msra.mxu0 0.0
  %627 = vmatprep.subr.mxu0 0.0
  %628 = vmatpush1.xpose.msra.mxu0 0.0
  %629 = vmatprep.subr.mxu0 0.0
  %630 = vmatpush1.xpose.msra.mxu0 0.0
  %631 = vmatprep.subr.mxu0 0.0
  %632 = vmatpush1.xpose.msra.mxu0 0.0
  %633 = vmatprep.subr.mxu0 0.0
  %634 = vmatpush1.xpose.msra.mxu0 0.0
  %635 = vmatprep.mubr.f32.mxu0 0.0
  %636 = vmatmul.mubr.f32.gmra.mrb[0].mxu0 %v567
  %v637 = vpop.f32.mrb[0].mxu0
  %v638 = vadd.f32 0.0, %v637
  %v639 = vpop.f32.mrb[0].mxu0
  %640 = vdwg.mxu0
  %v641 = vmul.f32 %v99, 0.35355338
  %v642 = vmul.f32 %v176, 0.35355338
  %v643 = vmul.f32 %v253, 0.35355338
  %v644 = vmul.f32 %v330, 0.35355338
  %v645 = vmul.f32 %v407, 0.35355338
  %v646 = vmul.f32 %v484, 0.35355338
  %v647 = vmul.f32 %v561, 0.35355338
  %v648 = vmul.f32 %v638, 0.35355338
  %v649 = vsel %vm27, %v641, -inf
  %650 = vmax.xlane.f32.xlu0 %v649
  %v651 = vpop.xlane.xlu0 %650
  %v652 = vsel %vm27, %v642, -inf
  %653 = vmax.xlane.f32.xlu0 %v652
  %v654 = vpop.xlane.xlu0 %653
  %v655 = vsel %vm27, %v643, -inf
  %656 = vmax.xlane.f32.xlu0 %v655
  %v657 = vpop.xlane.xlu0 %656
  %v658 = vsel %vm27, %v644, -inf
  %659 = vmax.xlane.f32.xlu0 %v658
  %v660 = vpop.xlane.xlu0 %659
  %v661 = vsel %vm27, %v645, -inf
  %662 = vmax.xlane.f32.xlu0 %v661
  %v663 = vpop.xlane.xlu0 %662
  %v664 = vsel %vm27, %v646, -inf
  %665 = vmax.xlane.f32.xlu0 %v664
  %v666 = vpop.xlane.xlu0 %665
  %v667 = vsel %vm27, %v647, -inf
  %668 = vmax.xlane.f32.xlu0 %v667
  %v669 = vpop.xlane.xlu0 %668
  %v670 = vsel %vm27, %v648, -inf
  %671 = vmax.xlane.f32.xlu0 %v670
  %v672 = vpop.xlane.xlu0 %671
  %v673 = vsub.f32 %v641, %v651
  %v674 = vsub.f32 %v642, %v654
  %v675 = vsub.f32 %v643, %v657
  %v676 = vsub.f32 %v644, %v660
  %v677 = vsub.f32 %v645, %v663
  %v678 = vsub.f32 %v646, %v666
  %v679 = vsub.f32 %v647, %v669
  %v680 = vsub.f32 %v648, %v672
  %v681 = vmul.f32 %v673, 1.442695
  %v682 = vpow.pop %v681
  %v683 = vmul.f32 %v674, 1.442695
  %v684 = vpow.pop %v683
  %v685 = vmul.f32 %v675, 1.442695
  %v686 = vpow.pop %v685
  %v687 = vmul.f32 %v676, 1.442695
  %v688 = vpow.pop %v687
  %v689 = vmul.f32 %v677, 1.442695
  %v690 = vpow.pop %v689
  %v691 = vmul.f32 %v678, 1.442695
  %v692 = vpow.pop %v691
  %v693 = vmul.f32 %v679, 1.442695
  %v694 = vpow.pop %v693
  %v695 = vmul.f32 %v680, 1.442695
  %v696 = vpow.pop %v695
  %v697 = vsel %vm27, %v682, 0.0
  %698 = vadd.xlane.f32.xlu0 %v697
  %v699 = vpop.xlane.xlu0 %698
  %v700 = vsel %vm27, %v684, 0.0
  %701 = vadd.xlane.f32.xlu0 %v700
  %v702 = vpop.xlane.xlu0 %701
  %v703 = vsel %vm27, %v686, 0.0
  %704 = vadd.xlane.f32.xlu0 %v703
  %v705 = vpop.xlane.xlu0 %704
  %v706 = vsel %vm27, %v688, 0.0
  %707 = vadd.xlane.f32.xlu0 %v706
  %v708 = vpop.xlane.xlu0 %707
  %v709 = vsel %vm27, %v690, 0.0
  %710 = vadd.xlane.f32.xlu0 %v709
  %v711 = vpop.xlane.xlu0 %710
  %v712 = vsel %vm27, %v692, 0.0
  %713 = vadd.xlane.f32.xlu0 %v712
  %v714 = vpop.xlane.xlu0 %713
  %v715 = vsel %vm27, %v694, 0.0
  %716 = vadd.xlane.f32.xlu0 %v715
  %v717 = vpop.xlane.xlu0 %716
  %v718 = vsel %vm27, %v696, 0.0
  %719 = vadd.xlane.f32.xlu0 %v718
  %v720 = vpop.xlane.xlu0 %719
  %v722 = vsel %vm27, %v682, 0
  %724 = vmatprep.subr.mxu0 0.0
  %725 = vmatpush1.msra.mxu0 %v16
  %726 = vmatprep.subr.mxu0 0.0
  %727 = vmatpush1.msra.mxu0 0.0
  %728 = vmatprep.subr.mxu0 0.0
  %729 = vmatpush1.msra.mxu0 0.0
  %730 = vmatprep.subr.mxu0 0.0
  %731 = vmatpush1.msra.mxu0 0.0
  %732 = vmatprep.subr.mxu0 0.0
  %733 = vmatpush1.msra.mxu0 0.0
  %734 = vmatprep.subr.mxu0 0.0
  %735 = vmatpush1.msra.mxu0 0.0
  %736 = vmatprep.subr.mxu0 0.0
  %737 = vmatpush1.msra.mxu0 0.0
  %738 = vmatprep.subr.mxu0 0.0
  %739 = vmatpush1.msra.mxu0 0.0
  %740 = vmatprep.subr.mxu0 0.0
  %741 = vmatpush1.msra.mxu0 0.0
  %742 = vmatprep.subr.mxu0 0.0
  %743 = vmatpush1.msra.mxu0 0.0
  %744 = vmatprep.subr.mxu0 0.0
  %745 = vmatpush1.msra.mxu0 0.0
  %746 = vmatprep.subr.mxu0 0.0
  %747 = vmatpush1.msra.mxu0 0.0
  %748 = vmatprep.subr.mxu0 0.0
  %749 = vmatpush1.msra.mxu0 0.0
  %750 = vmatprep.subr.mxu0 0.0
  %751 = vmatpush1.msra.mxu0 0.0
  %752 = vmatprep.subr.mxu0 0.0
  %753 = vmatpush1.msra.mxu0 0.0
  %754 = vmatprep.subr.mxu0 0.0
  %755 = vmatpush1.msra.mxu0 0.0
  %756 = vmatprep.subr.mxu0 0.0
  %757 = vmatpush1.msra.mxu0 0.0
  %758 = vmatprep.subr.mxu0 0.0
  %759 = vmatpush1.msra.mxu0 0.0
  %760 = vmatprep.subr.mxu0 0.0
  %761 = vmatpush1.msra.mxu0 0.0
  %762 = vmatprep.subr.mxu0 0.0
  %763 = vmatpush1.msra.mxu0 0.0
  %764 = vmatprep.subr.mxu0 0.0
  %765 = vmatpush1.msra.mxu0 0.0
  %766 = vmatprep.subr.mxu0 0.0
  %767 = vmatpush1.msra.mxu0 0.0
  %768 = vmatprep.subr.mxu0 0.0
  %769 = vmatpush1.msra.mxu0 0.0
  %770 = vmatprep.subr.mxu0 0.0
  %771 = vmatpush1.msra.mxu0 0.0
  %772 = vmatprep.subr.mxu0 0.0
  %773 = vmatpush1.msra.mxu0 0.0
  %774 = vmatprep.subr.mxu0 0.0
  %775 = vmatpush1.msra.mxu0 0.0
  %776 = vmatprep.subr.mxu0 0.0
  %777 = vmatpush1.msra.mxu0 0.0
  %778 = vmatprep.subr.mxu0 0.0
  %779 = vmatpush1.msra.mxu0 0.0
  %780 = vmatprep.subr.mxu0 0.0
  %781 = vmatpush1.msra.mxu0 0.0
  %782 = vmatprep.subr.mxu0 0.0
  %783 = vmatpush1.msra.mxu0 0.0
  %784 = vmatprep.subr.mxu0 0.0
  %785 = vmatpush1.msra.mxu0 0.0
  %786 = vmatprep.subr.mxu0 0.0
  %787 = vmatpush1.msra.mxu0 0.0
  %788 = vmatprep.mubr.f32.mxu0 0.0
  %789 = vmatmul.mubr.f32.gmra.mrb[0].mxu0 %v722
  %v790 = vpop.f32.mrb[0].mxu0
  %v791 = vadd.f32 0.0, %v790
  %v792 = vpop.f32.mrb[0].mxu0
  %793 = vdwg.mxu0
  %v795 = vsel %vm27, %v684, 0
  %797 = vmatprep.subr.mxu0 0.0
  %798 = vmatpush1.msra.mxu0 %v17
  %799 = vmatprep.subr.mxu0 0.0
  %800 = vmatpush1.msra.mxu0 0.0
  %801 = vmatprep.subr.mxu0 0.0
  %802 = vmatpush1.msra.mxu0 0.0
  %803 = vmatprep.subr.mxu0 0.0
  %804 = vmatpush1.msra.mxu0 0.0
  %805 = vmatprep.subr.mxu0 0.0
  %806 = vmatpush1.msra.mxu0 0.0
  %807 = vmatprep.subr.mxu0 0.0
  %808 = vmatpush1.msra.mxu0 0.0
  %809 = vmatprep.subr.mxu0 0.0
  %810 = vmatpush1.msra.mxu0 0.0
  %811 = vmatprep.subr.mxu0 0.0
  %812 = vmatpush1.msra.mxu0 0.0
  %813 = vmatprep.subr.mxu0 0.0
  %814 = vmatpush1.msra.mxu0 0.0
  %815 = vmatprep.subr.mxu0 0.0
  %816 = vmatpush1.msra.mxu0 0.0
  %817 = vmatprep.subr.mxu0 0.0
  %818 = vmatpush1.msra.mxu0 0.0
  %819 = vmatprep.subr.mxu0 0.0
  %820 = vmatpush1.msra.mxu0 0.0
  %821 = vmatprep.subr.mxu0 0.0
  %822 = vmatpush1.msra.mxu0 0.0
  %823 = vmatprep.subr.mxu0 0.0
  %824 = vmatpush1.msra.mxu0 0.0
  %825 = vmatprep.subr.mxu0 0.0
  %826 = vmatpush1.msra.mxu0 0.0
  %827 = vmatprep.subr.mxu0 0.0
  %828 = vmatpush1.msra.mxu0 0.0
  %829 = vmatprep.subr.mxu0 0.0
  %830 = vmatpush1.msra.mxu0 0.0
  %831 = vmatprep.subr.mxu0 0.0
  %832 = vmatpush1.msra.mxu0 0.0
  %833 = vmatprep.subr.mxu0 0.0
  %834 = vmatpush1.msra.mxu0 0.0
  %835 = vmatprep.subr.mxu0 0.0
  %836 = vmatpush1.msra.mxu0 0.0
  %837 = vmatprep.subr.mxu0 0.0
  %838 = vmatpush1.msra.mxu0 0.0
  %839 = vmatprep.subr.mxu0 0.0
  %840 = vmatpush1.msra.mxu0 0.0
  %841 = vmatprep.subr.mxu0 0.0
  %842 = vmatpush1.msra.mxu0 0.0
  %843 = vmatprep.subr.mxu0 0.0
  %844 = vmatpush1.msra.mxu0 0.0
  %845 = vmatprep.subr.mxu0 0.0
  %846 = vmatpush1.msra.mxu0 0.0
  %847 = vmatprep.subr.mxu0 0.0
  %848 = vmatpush1.msra.mxu0 0.0
  %849 = vmatprep.subr.mxu0 0.0
  %850 = vmatpush1.msra.mxu0 0.0
  %851 = vmatprep.subr.mxu0 0.0
  %852 = vmatpush1.msra.mxu0 0.0
  %853 = vmatprep.subr.mxu0 0.0
  %854 = vmatpush1.msra.mxu0 0.0
  %855 = vmatprep.subr.mxu0 0.0
  %856 = vmatpush1.msra.mxu0 0.0
  %857 = vmatprep.subr.mxu0 0.0
  %858 = vmatpush1.msra.mxu0 0.0
  %859 = vmatprep.subr.mxu0 0.0
  %860 = vmatpush1.msra.mxu0 0.0
  %861 = vmatprep.mubr.f32.mxu0 0.0
  %862 = vmatmul.mubr.f32.gmra.mrb[0].mxu0 %v795
  %v863 = vpop.f32.mrb[0].mxu0
  %v864 = vadd.f32 0.0, %v863
  %v865 = vpop.f32.mrb[0].mxu0
  %866 = vdwg.mxu0
  %v868 = vsel %vm27, %v686, 0
  %870 = vmatprep.subr.mxu0 0.0
  %871 = vmatpush1.msra.mxu0 %v18
  %872 = vmatprep.subr.mxu0 0.0
  %873 = vmatpush1.msra.mxu0 0.0
  %874 = vmatprep.subr.mxu0 0.0
  %875 = vmatpush1.msra.mxu0 0.0
  %876 = vmatprep.subr.mxu0 0.0
  %877 = vmatpush1.msra.mxu0 0.0
  %878 = vmatprep.subr.mxu0 0.0
  %879 = vmatpush1.msra.mxu0 0.0
  %880 = vmatprep.subr.mxu0 0.0
  %881 = vmatpush1.msra.mxu0 0.0
  %882 = vmatprep.subr.mxu0 0.0
  %883 = vmatpush1.msra.mxu0 0.0
  %884 = vmatprep.subr.mxu0 0.0
  %885 = vmatpush1.msra.mxu0 0.0
  %886 = vmatprep.subr.mxu0 0.0
  %887 = vmatpush1.msra.mxu0 0.0
  %888 = vmatprep.subr.mxu0 0.0
  %889 = vmatpush1.msra.mxu0 0.0
  %890 = vmatprep.subr.mxu0 0.0
  %891 = vmatpush1.msra.mxu0 0.0
  %892 = vmatprep.subr.mxu0 0.0
  %893 = vmatpush1.msra.mxu0 0.0
  %894 = vmatprep.subr.mxu0 0.0
  %895 = vmatpush1.msra.mxu0 0.0
  %896 = vmatprep.subr.mxu0 0.0
  %897 = vmatpush1.msra.mxu0 0.0
  %898 = vmatprep.subr.mxu0 0.0
  %899 = vmatpush1.msra.mxu0 0.0
  %900 = vmatprep.subr.mxu0 0.0
  %901 = vmatpush1.msra.mxu0 0.0
  %902 = vmatprep.subr.mxu0 0.0
  %903 = vmatpush1.msra.mxu0 0.0
  %904 = vmatprep.subr.mxu0 0.0
  %905 = vmatpush1.msra.mxu0 0.0
  %906 = vmatprep.subr.mxu0 0.0
  %907 = vmatpush1.msra.mxu0 0.0
  %908 = vmatprep.subr.mxu0 0.0
  %909 = vmatpush1.msra.mxu0 0.0
  %910 = vmatprep.subr.mxu0 0.0
  %911 = vmatpush1.msra.mxu0 0.0
  %912 = vmatprep.subr.mxu0 0.0
  %913 = vmatpush1.msra.mxu0 0.0
  %914 = vmatprep.subr.mxu0 0.0
  %915 = vmatpush1.msra.mxu0 0.0
  %916 = vmatprep.subr.mxu0 0.0
  %917 = vmatpush1.msra.mxu0 0.0
  %918 = vmatprep.subr.mxu0 0.0
  %919 = vmatpush1.msra.mxu0 0.0
  %920 = vmatprep.subr.mxu0 0.0
  %921 = vmatpush1.msra.mxu0 0.0
  %922 = vmatprep.subr.mxu0 0.0
  %923 = vmatpush1.msra.mxu0 0.0
  %924 = vmatprep.subr.mxu0 0.0
  %925 = vmatpush1.msra.mxu0 0.0
  %926 = vmatprep.subr.mxu0 0.0
  %927 = vmatpush1.msra.mxu0 0.0
  %928 = vmatprep.subr.mxu0 0.0
  %929 = vmatpush1.msra.mxu0 0.0
  %930 = vmatprep.subr.mxu0 0.0
  %931 = vmatpush1.msra.mxu0 0.0
  %932 = vmatprep.subr.mxu0 0.0
  %933 = vmatpush1.msra.mxu0 0.0
  %934 = vmatprep.mubr.f32.mxu0 0.0
  %935 = vmatmul.mubr.f32.gmra.mrb[0].mxu0 %v868
  %v936 = vpop.f32.mrb[0].mxu0
  %v937 = vadd.f32 0.0, %v936
  %v938 = vpop.f32.mrb[0].mxu0
  %939 = vdwg.mxu0
  %v941 = vsel %vm27, %v688, 0
  %943 = vmatprep.subr.mxu0 0.0
  %944 = vmatpush1.msra.mxu0 %v19
  %945 = vmatprep.subr.mxu0 0.0
  %946 = vmatpush1.msra.mxu0 0.0
  %947 = vmatprep.subr.mxu0 0.0
  %948 = vmatpush1.msra.mxu0 0.0
  %949 = vmatprep.subr.mxu0 0.0
  %950 = vmatpush1.msra.mxu0 0.0
  %951 = vmatprep.subr.mxu0 0.0
  %952 = vmatpush1.msra.mxu0 0.0
  %953 = vmatprep.subr.mxu0 0.0
  %954 = vmatpush1.msra.mxu0 0.0
  %955 = vmatprep.subr.mxu0 0.0
  %956 = vmatpush1.msra.mxu0 0.0
  %957 = vmatprep.subr.mxu0 0.0
  %958 = vmatpush1.msra.mxu0 0.0
  %959 = vmatprep.subr.mxu0 0.0
  %960 = vmatpush1.msra.mxu0 0.0
  %961 = vmatprep.subr.mxu0 0.0
  %962 = vmatpush1.msra.mxu0 0.0
  %963 = vmatprep.subr.mxu0 0.0
  %964 = vmatpush1.msra.mxu0 0.0
  %965 = vmatprep.subr.mxu0 0.0
  %966 = vmatpush1.msra.mxu0 0.0
  %967 = vmatprep.subr.mxu0 0.0
  %968 = vmatpush1.msra.mxu0 0.0
  %969 = vmatprep.subr.mxu0 0.0
  %970 = vmatpush1.msra.mxu0 0.0
  %971 = vmatprep.subr.mxu0 0.0
  %972 = vmatpush1.msra.mxu0 0.0
  %973 = vmatprep.subr.mxu0 0.0
  %974 = vmatpush1.msra.mxu0 0.0
  %975 = vmatprep.subr.mxu0 0.0
  %976 = vmatpush1.msra.mxu0 0.0
  %977 = vmatprep.subr.mxu0 0.0
  %978 = vmatpush1.msra.mxu0 0.0
  %979 = vmatprep.subr.mxu0 0.0
  %980 = vmatpush1.msra.mxu0 0.0
  %981 = vmatprep.subr.mxu0 0.0
  %982 = vmatpush1.msra.mxu0 0.0
  %983 = vmatprep.subr.mxu0 0.0
  %984 = vmatpush1.msra.mxu0 0.0
  %985 = vmatprep.subr.mxu0 0.0
  %986 = vmatpush1.msra.mxu0 0.0
  %987 = vmatprep.subr.mxu0 0.0
  %988 = vmatpush1.msra.mxu0 0.0
  %989 = vmatprep.subr.mxu0 0.0
  %990 = vmatpush1.msra.mxu0 0.0
  %991 = vmatprep.subr.mxu0 0.0
  %992 = vmatpush1.msra.mxu0 0.0
  %993 = vmatprep.subr.mxu0 0.0
  %994 = vmatpush1.msra.mxu0 0.0
  %995 = vmatprep.subr.mxu0 0.0
  %996 = vmatpush1.msra.mxu0 0.0
  %997 = vmatprep.subr.mxu0 0.0
  %998 = vmatpush1.msra.mxu0 0.0
  %999 = vmatprep.subr.mxu0 0.0
  %1000 = vmatpush1.msra.mxu0 0.0
  %1001 = vmatprep.subr.mxu0 0.0
  %1002 = vmatpush1.msra.mxu0 0.0
  %1003 = vmatprep.subr.mxu0 0.0
  %1004 = vmatpush1.msra.mxu0 0.0
  %1005 = vmatprep.subr.mxu0 0.0
  %1006 = vmatpush1.msra.mxu0 0.0
  %1007 = vmatprep.mubr.f32.mxu0 0.0
  %1008 = vmatmul.mubr.f32.gmra.mrb[0].mxu0 %v941
  %v1009 = vpop.f32.mrb[0].mxu0
  %v1010 = vadd.f32 0.0, %v1009
  %v1011 = vpop.f32.mrb[0].mxu0
  %1012 = vdwg.mxu0
  %v1014 = vsel %vm27, %v690, 0
  %1016 = vmatprep.subr.mxu0 0.0
  %1017 = vmatpush1.msra.mxu0 %v20
  %1018 = vmatprep.subr.mxu0 0.0
  %1019 = vmatpush1.msra.mxu0 0.0
  %1020 = vmatprep.subr.mxu0 0.0
  %1021 = vmatpush1.msra.mxu0 0.0
  %1022 = vmatprep.subr.mxu0 0.0
  %1023 = vmatpush1.msra.mxu0 0.0
  %1024 = vmatprep.subr.mxu0 0.0
  %1025 = vmatpush1.msra.mxu0 0.0
  %1026 = vmatprep.subr.mxu0 0.0
  %1027 = vmatpush1.msra.mxu0 0.0
  %1028 = vmatprep.subr.mxu0 0.0
  %1029 = vmatpush1.msra.mxu0 0.0
  %1030 = vmatprep.subr.mxu0 0.0
  %1031 = vmatpush1.msra.mxu0 0.0
  %1032 = vmatprep.subr.mxu0 0.0
  %1033 = vmatpush1.msra.mxu0 0.0
  %1034 = vmatprep.subr.mxu0 0.0
  %1035 = vmatpush1.msra.mxu0 0.0
  %1036 = vmatprep.subr.mxu0 0.0
  %1037 = vmatpush1.msra.mxu0 0.0
  %1038 = vmatprep.subr.mxu0 0.0
  %1039 = vmatpush1.msra.mxu0 0.0
  %1040 = vmatprep.subr.mxu0 0.0
  %1041 = vmatpush1.msra.mxu0 0.0
  %1042 = vmatprep.subr.mxu0 0.0
  %1043 = vmatpush1.msra.mxu0 0.0
  %1044 = vmatprep.subr.mxu0 0.0
  %1045 = vmatpush1.msra.mxu0 0.0
  %1046 = vmatprep.subr.mxu0 0.0
  %1047 = vmatpush1.msra.mxu0 0.0
  %1048 = vmatprep.subr.mxu0 0.0
  %1049 = vmatpush1.msra.mxu0 0.0
  %1050 = vmatprep.subr.mxu0 0.0
  %1051 = vmatpush1.msra.mxu0 0.0
  %1052 = vmatprep.subr.mxu0 0.0
  %1053 = vmatpush1.msra.mxu0 0.0
  %1054 = vmatprep.subr.mxu0 0.0
  %1055 = vmatpush1.msra.mxu0 0.0
  %1056 = vmatprep.subr.mxu0 0.0
  %1057 = vmatpush1.msra.mxu0 0.0
  %1058 = vmatprep.subr.mxu0 0.0
  %1059 = vmatpush1.msra.mxu0 0.0
  %1060 = vmatprep.subr.mxu0 0.0
  %1061 = vmatpush1.msra.mxu0 0.0
  %1062 = vmatprep.subr.mxu0 0.0
  %1063 = vmatpush1.msra.mxu0 0.0
  %1064 = vmatprep.subr.mxu0 0.0
  %1065 = vmatpush1.msra.mxu0 0.0
  %1066 = vmatprep.subr.mxu0 0.0
  %1067 = vmatpush1.msra.mxu0 0.0
  %1068 = vmatprep.subr.mxu0 0.0
  %1069 = vmatpush1.msra.mxu0 0.0
  %1070 = vmatprep.subr.mxu0 0.0
  %1071 = vmatpush1.msra.mxu0 0.0
  %1072 = vmatprep.subr.mxu0 0.0
  %1073 = vmatpush1.msra.mxu0 0.0
  %1074 = vmatprep.subr.mxu0 0.0
  %1075 = vmatpush1.msra.mxu0 0.0
  %1076 = vmatprep.subr.mxu0 0.0
  %1077 = vmatpush1.msra.mxu0 0.0
  %1078 = vmatprep.subr.mxu0 0.0
  %1079 = vmatpush1.msra.mxu0 0.0
  %1080 = vmatprep.mubr.f32.mxu0 0.0
  %1081 = vmatmul.mubr.f32.gmra.mrb[0].mxu0 %v1014
  %v1082 = vpop.f32.mrb[0].mxu0
  %v1083 = vadd.f32 0.0, %v1082
  %v1084 = vpop.f32.mrb[0].mxu0
  %1085 = vdwg.mxu0
  %v1087 = vsel %vm27, %v692, 0
  %1089 = vmatprep.subr.mxu0 0.0
  %1090 = vmatpush1.msra.mxu0 %v21
  %1091 = vmatprep.subr.mxu0 0.0
  %1092 = vmatpush1.msra.mxu0 0.0
  %1093 = vmatprep.subr.mxu0 0.0
  %1094 = vmatpush1.msra.mxu0 0.0
  %1095 = vmatprep.subr.mxu0 0.0
  %1096 = vmatpush1.msra.mxu0 0.0
  %1097 = vmatprep.subr.mxu0 0.0
  %1098 = vmatpush1.msra.mxu0 0.0
  %1099 = vmatprep.subr.mxu0 0.0
  %1100 = vmatpush1.msra.mxu0 0.0
  %1101 = vmatprep.subr.mxu0 0.0
  %1102 = vmatpush1.msra.mxu0 0.0
  %1103 = vmatprep.subr.mxu0 0.0
  %1104 = vmatpush1.msra.mxu0 0.0
  %1105 = vmatprep.subr.mxu0 0.0
  %1106 = vmatpush1.msra.mxu0 0.0
  %1107 = vmatprep.subr.mxu0 0.0
  %1108 = vmatpush1.msra.mxu0 0.0
  %1109 = vmatprep.subr.mxu0 0.0
  %1110 = vmatpush1.msra.mxu0 0.0
  %1111 = vmatprep.subr.mxu0 0.0
  %1112 = vmatpush1.msra.mxu0 0.0
  %1113 = vmatprep.subr.mxu0 0.0
  %1114 = vmatpush1.msra.mxu0 0.0
  %1115 = vmatprep.subr.mxu0 0.0
  %1116 = vmatpush1.msra.mxu0 0.0
  %1117 = vmatprep.subr.mxu0 0.0
  %1118 = vmatpush1.msra.mxu0 0.0
  %1119 = vmatprep.subr.mxu0 0.0
  %1120 = vmatpush1.msra.mxu0 0.0
  %1121 = vmatprep.subr.mxu0 0.0
  %1122 = vmatpush1.msra.mxu0 0.0
  %1123 = vmatprep.subr.mxu0 0.0
  %1124 = vmatpush1.msra.mxu0 0.0
  %1125 = vmatprep.subr.mxu0 0.0
  %1126 = vmatpush1.msra.mxu0 0.0
  %1127 = vmatprep.subr.mxu0 0.0
  %1128 = vmatpush1.msra.mxu0 0.0
  %1129 = vmatprep.subr.mxu0 0.0
  %1130 = vmatpush1.msra.mxu0 0.0
  %1131 = vmatprep.subr.mxu0 0.0
  %1132 = vmatpush1.msra.mxu0 0.0
  %1133 = vmatprep.subr.mxu0 0.0
  %1134 = vmatpush1.msra.mxu0 0.0
  %1135 = vmatprep.subr.mxu0 0.0
  %1136 = vmatpush1.msra.mxu0 0.0
  %1137 = vmatprep.subr.mxu0 0.0
  %1138 = vmatpush1.msra.mxu0 0.0
  %1139 = vmatprep.subr.mxu0 0.0
  %1140 = vmatpush1.msra.mxu0 0.0
  %1141 = vmatprep.subr.mxu0 0.0
  %1142 = vmatpush1.msra.mxu0 0.0
  %1143 = vmatprep.subr.mxu0 0.0
  %1144 = vmatpush1.msra.mxu0 0.0
  %1145 = vmatprep.subr.mxu0 0.0
  %1146 = vmatpush1.msra.mxu0 0.0
  %1147 = vmatprep.subr.mxu0 0.0
  %1148 = vmatpush1.msra.mxu0 0.0
  %1149 = vmatprep.subr.mxu0 0.0
  %1150 = vmatpush1.msra.mxu0 0.0
  %1151 = vmatprep.subr.mxu0 0.0
  %1152 = vmatpush1.msra.mxu0 0.0
  %1153 = vmatprep.mubr.f32.mxu0 0.0
  %1154 = vmatmul.mubr.f32.gmra.mrb[0].mxu0 %v1087
  %v1155 = vpop.f32.mrb[0].mxu0
  %v1156 = vadd.f32 0.0, %v1155
  %v1157 = vpop.f32.mrb[0].mxu0
  %1158 = vdwg.mxu0
  %v1160 = vsel %vm27, %v694, 0
  %1162 = vmatprep.subr.mxu0 0.0
  %1163 = vmatpush1.msra.mxu0 %v22
  %1164 = vmatprep.subr.mxu0 0.0
  %1165 = vmatpush1.msra.mxu0 0.0
  %1166 = vmatprep.subr.mxu0 0.0
  %1167 = vmatpush1.msra.mxu0 0.0
  %1168 = vmatprep.subr.mxu0 0.0
  %1169 = vmatpush1.msra.mxu0 0.0
  %1170 = vmatprep.subr.mxu0 0.0
  %1171 = vmatpush1.msra.mxu0 0.0
  %1172 = vmatprep.subr.mxu0 0.0
  %1173 = vmatpush1.msra.mxu0 0.0
  %1174 = vmatprep.subr.mxu0 0.0
  %1175 = vmatpush1.msra.mxu0 0.0
  %1176 = vmatprep.subr.mxu0 0.0
  %1177 = vmatpush1.msra.mxu0 0.0
  %1178 = vmatprep.subr.mxu0 0.0
  %1179 = vmatpush1.msra.mxu0 0.0
  %1180 = vmatprep.subr.mxu0 0.0
  %1181 = vmatpush1.msra.mxu0 0.0
  %1182 = vmatprep.subr.mxu0 0.0
  %1183 = vmatpush1.msra.mxu0 0.0
  %1184 = vmatprep.subr.mxu0 0.0
  %1185 = vmatpush1.msra.mxu0 0.0
  %1186 = vmatprep.subr.mxu0 0.0
  %1187 = vmatpush1.msra.mxu0 0.0
  %1188 = vmatprep.subr.mxu0 0.0
  %1189 = vmatpush1.msra.mxu0 0.0
  %1190 = vmatprep.subr.mxu0 0.0
  %1191 = vmatpush1.msra.mxu0 0.0
  %1192 = vmatprep.subr.mxu0 0.0
  %1193 = vmatpush1.msra.mxu0 0.0
  %1194 = vmatprep.subr.mxu0 0.0
  %1195 = vmatpush1.msra.mxu0 0.0
  %1196 = vmatprep.subr.mxu0 0.0
  %1197 = vmatpush1.msra.mxu0 0.0
  %1198 = vmatprep.subr.mxu0 0.0
  %1199 = vmatpush1.msra.mxu0 0.0
  %1200 = vmatprep.subr.mxu0 0.0
  %1201 = vmatpush1.msra.mxu0 0.0
  %1202 = vmatprep.subr.mxu0 0.0
  %1203 = vmatpush1.msra.mxu0 0.0
  %1204 = vmatprep.subr.mxu0 0.0
  %1205 = vmatpush1.msra.mxu0 0.0
  %1206 = vmatprep.subr.mxu0 0.0
  %1207 = vmatpush1.msra.mxu0 0.0
  %1208 = vmatprep.subr.mxu0 0.0
  %1209 = vmatpush1.msra.mxu0 0.0
  %1210 = vmatprep.subr.mxu0 0.0
  %1211 = vmatpush1.msra.mxu0 0.0
  %1212 = vmatprep.subr.mxu0 0.0
  %1213 = vmatpush1.msra.mxu0 0.0
  %1214 = vmatprep.subr.mxu0 0.0
  %1215 = vmatpush1.msra.mxu0 0.0
  %1216 = vmatprep.subr.mxu0 0.0
  %1217 = vmatpush1.msra.mxu0 0.0
  %1218 = vmatprep.subr.mxu0 0.0
  %1219 = vmatpush1.msra.mxu0 0.0
  %1220 = vmatprep.subr.mxu0 0.0
  %1221 = vmatpush1.msra.mxu0 0.0
  %1222 = vmatprep.subr.mxu0 0.0
  %1223 = vmatpush1.msra.mxu0 0.0
  %1224 = vmatprep.subr.mxu0 0.0
  %1225 = vmatpush1.msra.mxu0 0.0
  %1226 = vmatprep.mubr.f32.mxu0 0.0
  %1227 = vmatmul.mubr.f32.gmra.mrb[0].mxu0 %v1160
  %v1228 = vpop.f32.mrb[0].mxu0
  %v1229 = vadd.f32 0.0, %v1228
  %v1230 = vpop.f32.mrb[0].mxu0
  %1231 = vdwg.mxu0
  %v1233 = vsel %vm27, %v696, 0
  %1235 = vmatprep.subr.mxu0 0.0
  %1236 = vmatpush1.msra.mxu0 %v23
  %1237 = vmatprep.subr.mxu0 0.0
  %1238 = vmatpush1.msra.mxu0 0.0
  %1239 = vmatprep.subr.mxu0 0.0
  %1240 = vmatpush1.msra.mxu0 0.0
  %1241 = vmatprep.subr.mxu0 0.0
  %1242 = vmatpush1.msra.mxu0 0.0
  %1243 = vmatprep.subr.mxu0 0.0
  %1244 = vmatpush1.msra.mxu0 0.0
  %1245 = vmatprep.subr.mxu0 0.0
  %1246 = vmatpush1.msra.mxu0 0.0
  %1247 = vmatprep.subr.mxu0 0.0
  %1248 = vmatpush1.msra.mxu0 0.0
  %1249 = vmatprep.subr.mxu0 0.0
  %1250 = vmatpush1.msra.mxu0 0.0
  %1251 = vmatprep.subr.mxu0 0.0
  %1252 = vmatpush1.msra.mxu0 0.0
  %1253 = vmatprep.subr.mxu0 0.0
  %1254 = vmatpush1.msra.mxu0 0.0
  %1255 = vmatprep.subr.mxu0 0.0
  %1256 = vmatpush1.msra.mxu0 0.0
  %1257 = vmatprep.subr.mxu0 0.0
  %1258 = vmatpush1.msra.mxu0 0.0
  %1259 = vmatprep.subr.mxu0 0.0
  %1260 = vmatpush1.msra.mxu0 0.0
  %1261 = vmatprep.subr.mxu0 0.0
  %1262 = vmatpush1.msra.mxu0 0.0
  %1263 = vmatprep.subr.mxu0 0.0
  %1264 = vmatpush1.msra.mxu0 0.0
  %1265 = vmatprep.subr.mxu0 0.0
  %1266 = vmatpush1.msra.mxu0 0.0
  %1267 = vmatprep.subr.mxu0 0.0
  %1268 = vmatpush1.msra.mxu0 0.0
  %1269 = vmatprep.subr.mxu0 0.0
  %1270 = vmatpush1.msra.mxu0 0.0
  %1271 = vmatprep.subr.mxu0 0.0
  %1272 = vmatpush1.msra.mxu0 0.0
  %1273 = vmatprep.subr.mxu0 0.0
  %1274 = vmatpush1.msra.mxu0 0.0
  %1275 = vmatprep.subr.mxu0 0.0
  %1276 = vmatpush1.msra.mxu0 0.0
  %1277 = vmatprep.subr.mxu0 0.0
  %1278 = vmatpush1.msra.mxu0 0.0
  %1279 = vmatprep.subr.mxu0 0.0
  %1280 = vmatpush1.msra.mxu0 0.0
  %1281 = vmatprep.subr.mxu0 0.0
  %1282 = vmatpush1.msra.mxu0 0.0
  %1283 = vmatprep.subr.mxu0 0.0
  %1284 = vmatpush1.msra.mxu0 0.0
  %1285 = vmatprep.subr.mxu0 0.0
  %1286 = vmatpush1.msra.mxu0 0.0
  %1287 = vmatprep.subr.mxu0 0.0
  %1288 = vmatpush1.msra.mxu0 0.0
  %1289 = vmatprep.subr.mxu0 0.0
  %1290 = vmatpush1.msra.mxu0 0.0
  %1291 = vmatprep.subr.mxu0 0.0
  %1292 = vmatpush1.msra.mxu0 0.0
  %1293 = vmatprep.subr.mxu0 0.0
  %1294 = vmatpush1.msra.mxu0 0.0
  %1295 = vmatprep.subr.mxu0 0.0
  %1296 = vmatpush1.msra.mxu0 0.0
  %1297 = vmatprep.subr.mxu0 0.0
  %1298 = vmatpush1.msra.mxu0 0.0
  %1299 = vmatprep.mubr.f32.mxu0 0.0
  %1300 = vmatmul.mubr.f32.gmra.mrb[0].mxu0 %v1233
  %v1301 = vpop.f32.mrb[0].mxu0
  %v1302 = vadd.f32 0.0, %v1301
  %v1303 = vpop.f32.mrb[0].mxu0
  %1304 = vdwg.mxu0
  %v1305 = vrcp.pop %v699
  %v1306 = vrcp.pop %v702
  %v1307 = vrcp.pop %v705
  %v1308 = vrcp.pop %v708
  %v1309 = vrcp.pop %v711
  %v1310 = vrcp.pop %v714
  %v1311 = vrcp.pop %v717
  %v1312 = vrcp.pop %v720
  %v1313 = vmul.f32 %v791, %v1305
  %v1314 = vmul.f32 %v864, %v1306
  %v1315 = vmul.f32 %v937, %v1307
  %v1316 = vmul.f32 %v1010, %v1308
  %v1317 = vmul.f32 %v1083, %v1309
  %v1318 = vmul.f32 %v1156, %v1310
  %v1319 = vmul.f32 %v1229, %v1311
  %v1320 = vmul.f32 %v1302, %v1312
  %1321 = vst.msk [vmem:[%s1] sm:$0xff] %vm27, %v1313
  %1322 = vst.msk [vmem:[%s1 + $0x8] sm:$0xff] %vm27, %v1314
  %1323 = vst.msk [vmem:[%s1 + $0x10] sm:$0xff] %vm27, %v1315
  %1324 = vst.msk [vmem:[%s1 + $0x18] sm:$0xff] %vm27, %v1316
  %1325 = vst.msk [vmem:[%s1 + $0x20] sm:$0xff] %vm27, %v1317
  %1326 = vst.msk [vmem:[%s1 + $0x28] sm:$0xff] %vm27, %v1318
  %1327 = vst.msk [vmem:[%s1 + $0x30] sm:$0xff] %vm27, %v1319
  %1328 = vst.msk [vmem:[%s1 + $0x38] sm:$0xff] %vm27, %v1320
  %v1329 = vld [vmem:[%s0] sm:$0xff]
  %v1330 = vld [vmem:[%s0 + $0x10] sm:$0xff]
  %v1331 = vld [vmem:[%s0 + $0x20] sm:$0xff]
  %v1332 = vld [vmem:[%s0 + $0x30] sm:$0xff]
  %v1333 = vld [vmem:[%s0 + $0x40] sm:$0xff]
  %v1334 = vld [vmem:[%s0 + $0x50] sm:$0xff]
  %v1335 = vld [vmem:[%s0 + $0x60] sm:$0xff]
  %v1336 = vld [vmem:[%s0 + $0x70] sm:$0xff]
  %v1337 = vld [vmem:[%s0 + $0x8] sm:$0xff]
  %v1338 = vld [vmem:[%s0 + $0x18] sm:$0xff]
  %v1339 = vld [vmem:[%s0 + $0x28] sm:$0xff]
  %v1340 = vld [vmem:[%s0 + $0x38] sm:$0xff]
  %v1341 = vld [vmem:[%s0 + $0x48] sm:$0xff]
  %v1342 = vld [vmem:[%s0 + $0x58] sm:$0xff]
  %v1343 = vld [vmem:[%s0 + $0x68] sm:$0xff]
  %v1344 = vld [vmem:[%s0 + $0x78] sm:$0xff]
  %1346 = vrot.lane.b32.xlu0 %v1329, 120
  %v1347 = vpop.permute.xlu0 %1346
  %1348 = vrot.lane.b32.xlu0 %v1329, 56
  %v1349 = vpop.permute.xlu0 %1348
  %v1350 = vsel %vm27, %v1347, 0
  %v1352 = vsel %vm27, %v1349, 0
  %1354 = vmatprep.subr.mxu0 0.0
  %1355 = vmatpush1.xpose.msra.mxu0 %v1352
  %1356 = vmatprep.subr.mxu0 0.0
  %1357 = vmatpush1.xpose.msra.mxu0 0.0
  %1358 = vmatprep.subr.mxu0 0.0
  %1359 = vmatpush1.xpose.msra.mxu0 0.0
  %1360 = vmatprep.subr.mxu0 0.0
  %1361 = vmatpush1.xpose.msra.mxu0 0.0
  %1362 = vmatprep.subr.mxu0 0.0
  %1363 = vmatpush1.xpose.msra.mxu0 0.0
  %1364 = vmatprep.subr.mxu0 0.0
  %1365 = vmatpush1.xpose.msra.mxu0 0.0
  %1366 = vmatprep.subr.mxu0 0.0
  %1367 = vmatpush1.xpose.msra.mxu0 0.0
  %1368 = vmatprep.subr.mxu0 0.0
  %1369 = vmatpush1.xpose.msra.mxu0 0.0
  %1370 = vmatprep.subr.mxu0 0.0
  %1371 = vmatpush1.xpose.msra.mxu0 0.0
  %1372 = vmatprep.subr.mxu0 0.0
  %1373 = vmatpush1.xpose.msra.mxu0 0.0
  %1374 = vmatprep.subr.mxu0 0.0
  %1375 = vmatpush1.xpose.msra.mxu0 0.0
  %1376 = vmatprep.subr.mxu0 0.0
  %1377 = vmatpush1.xpose.msra.mxu0 0.0
  %1378 = vmatprep.subr.mxu0 0.0
  %1379 = vmatpush1.xpose.msra.mxu0 0.0
  %1380 = vmatprep.subr.mxu0 0.0
  %1381 = vmatpush1.xpose.msra.mxu0 0.0
  %1382 = vmatprep.subr.mxu0 0.0
  %1383 = vmatpush1.xpose.msra.mxu0 0.0
  %1384 = vmatprep.subr.mxu0 0.0
  %1385 = vmatpush1.xpose.msra.mxu0 0.0
  %1386 = vmatprep.subr.mxu0 0.0
  %1387 = vmatpush1.xpose.msra.mxu0 0.0
  %1388 = vmatprep.subr.mxu0 0.0
  %1389 = vmatpush1.xpose.msra.mxu0 0.0
  %1390 = vmatprep.subr.mxu0 0.0
  %1391 = vmatpush1.xpose.msra.mxu0 0.0
  %1392 = vmatprep.subr.mxu0 0.0
  %1393 = vmatpush1.xpose.msra.mxu0 0.0
  %1394 = vmatprep.subr.mxu0 0.0
  %1395 = vmatpush1.xpose.msra.mxu0 0.0
  %1396 = vmatprep.subr.mxu0 0.0
  %1397 = vmatpush1.xpose.msra.mxu0 0.0
  %1398 = vmatprep.subr.mxu0 0.0
  %1399 = vmatpush1.xpose.msra.mxu0 0.0
  %1400 = vmatprep.subr.mxu0 0.0
  %1401 = vmatpush1.xpose.msra.mxu0 0.0
  %1402 = vmatprep.subr.mxu0 0.0
  %1403 = vmatpush1.xpose.msra.mxu0 0.0
  %1404 = vmatprep.subr.mxu0 0.0
  %1405 = vmatpush1.xpose.msra.mxu0 0.0
  %1406 = vmatprep.subr.mxu0 0.0
  %1407 = vmatpush1.xpose.msra.mxu0 0.0
  %1408 = vmatprep.subr.mxu0 0.0
  %1409 = vmatpush1.xpose.msra.mxu0 0.0
  %1410 = vmatprep.subr.mxu0 0.0
  %1411 = vmatpush1.xpose.msra.mxu0 0.0
  %1412 = vmatprep.subr.mxu0 0.0
  %1413 = vmatpush1.xpose.msra.mxu0 0.0
  %1414 = vmatprep.subr.mxu0 0.0
  %1415 = vmatpush1.xpose.msra.mxu0 0.0
  %1416 = vmatprep.subr.mxu0 0.0
  %1417 = vmatpush1.xpose.msra.mxu0 0.0
  %1418 = vmatprep.mubr.f32.mxu0 0.0
  %1419 = vmatmul.mubr.f32.gmra.mrb[0].mxu0 %v1350
  %v1420 = vpop.f32.mrb[0].mxu0
  %v1421 = vadd.f32 0.0, %v1420
  %v1422 = vpop.f32.mrb[0].mxu0
  %1423 = vdwg.mxu0
  %1425 = vrot.lane.b32.xlu0 %v1330, 120
  %v1426 = vpop.permute.xlu0 %1425
  %1427 = vrot.lane.b32.xlu0 %v1330, 56
  %v1428 = vpop.permute.xlu0 %1427
  %v1429 = vsel %vm27, %v1426, 0
  %v1431 = vsel %vm27, %v1428, 0
  %1433 = vmatprep.subr.mxu0 0.0
  %1434 = vmatpush1.xpose.msra.mxu0 %v1431
  %1435 = vmatprep.subr.mxu0 0.0
  %1436 = vmatpush1.xpose.msra.mxu0 0.0
  %1437 = vmatprep.subr.mxu0 0.0
  %1438 = vmatpush1.xpose.msra.mxu0 0.0
  %1439 = vmatprep.subr.mxu0 0.0
  %1440 = vmatpush1.xpose.msra.mxu0 0.0
  %1441 = vmatprep.subr.mxu0 0.0
  %1442 = vmatpush1.xpose.msra.mxu0 0.0
  %1443 = vmatprep.subr.mxu0 0.0
  %1444 = vmatpush1.xpose.msra.mxu0 0.0
  %1445 = vmatprep.subr.mxu0 0.0
  %1446 = vmatpush1.xpose.msra.mxu0 0.0
  %1447 = vmatprep.subr.mxu0 0.0
  %1448 = vmatpush1.xpose.msra.mxu0 0.0
  %1449 = vmatprep.subr.mxu0 0.0
  %1450 = vmatpush1.xpose.msra.mxu0 0.0
  %1451 = vmatprep.subr.mxu0 0.0
  %1452 = vmatpush1.xpose.msra.mxu0 0.0
  %1453 = vmatprep.subr.mxu0 0.0
  %1454 = vmatpush1.xpose.msra.mxu0 0.0
  %1455 = vmatprep.subr.mxu0 0.0
  %1456 = vmatpush1.xpose.msra.mxu0 0.0
  %1457 = vmatprep.subr.mxu0 0.0
  %1458 = vmatpush1.xpose.msra.mxu0 0.0
  %1459 = vmatprep.subr.mxu0 0.0
  %1460 = vmatpush1.xpose.msra.mxu0 0.0
  %1461 = vmatprep.subr.mxu0 0.0
  %1462 = vmatpush1.xpose.msra.mxu0 0.0
  %1463 = vmatprep.subr.mxu0 0.0
  %1464 = vmatpush1.xpose.msra.mxu0 0.0
  %1465 = vmatprep.subr.mxu0 0.0
  %1466 = vmatpush1.xpose.msra.mxu0 0.0
  %1467 = vmatprep.subr.mxu0 0.0
  %1468 = vmatpush1.xpose.msra.mxu0 0.0
  %1469 = vmatprep.subr.mxu0 0.0
  %1470 = vmatpush1.xpose.msra.mxu0 0.0
  %1471 = vmatprep.subr.mxu0 0.0
  %1472 = vmatpush1.xpose.msra.mxu0 0.0
  %1473 = vmatprep.subr.mxu0 0.0
  %1474 = vmatpush1.xpose.msra.mxu0 0.0
  %1475 = vmatprep.subr.mxu0 0.0
  %1476 = vmatpush1.xpose.msra.mxu0 0.0
  %1477 = vmatprep.subr.mxu0 0.0
  %1478 = vmatpush1.xpose.msra.mxu0 0.0
  %1479 = vmatprep.subr.mxu0 0.0
  %1480 = vmatpush1.xpose.msra.mxu0 0.0
  %1481 = vmatprep.subr.mxu0 0.0
  %1482 = vmatpush1.xpose.msra.mxu0 0.0
  %1483 = vmatprep.subr.mxu0 0.0
  %1484 = vmatpush1.xpose.msra.mxu0 0.0
  %1485 = vmatprep.subr.mxu0 0.0
  %1486 = vmatpush1.xpose.msra.mxu0 0.0
  %1487 = vmatprep.subr.mxu0 0.0
  %1488 = vmatpush1.xpose.msra.mxu0 0.0
  %1489 = vmatprep.subr.mxu0 0.0
  %1490 = vmatpush1.xpose.msra.mxu0 0.0
  %1491 = vmatprep.subr.mxu0 0.0
  %1492 = vmatpush1.xpose.msra.mxu0 0.0
  %1493 = vmatprep.subr.mxu0 0.0
  %1494 = vmatpush1.xpose.msra.mxu0 0.0
  %1495 = vmatprep.subr.mxu0 0.0
  %1496 = vmatpush1.xpose.msra.mxu0 0.0
  %1497 = vmatprep.mubr.f32.mxu0 0.0
  %1498 = vmatmul.mubr.f32.gmra.mrb[0].mxu0 %v1429
  %v1499 = vpop.f32.mrb[0].mxu0
  %v1500 = vadd.f32 0.0, %v1499
  %v1501 = vpop.f32.mrb[0].mxu0
  %1502 = vdwg.mxu0
  %1504 = vrot.lane.b32.xlu0 %v1331, 120
  %v1505 = vpop.permute.xlu0 %1504
  %1506 = vrot.lane.b32.xlu0 %v1331, 56
  %v1507 = vpop.permute.xlu0 %1506
  %v1508 = vsel %vm27, %v1505, 0
  %v1510 = vsel %vm27, %v1507, 0
  %1512 = vmatprep.subr.mxu0 0.0
  %1513 = vmatpush1.xpose.msra.mxu0 %v1510
  %1514 = vmatprep.subr.mxu0 0.0
  %1515 = vmatpush1.xpose.msra.mxu0 0.0
  %1516 = vmatprep.subr.mxu0 0.0
  %1517 = vmatpush1.xpose.msra.mxu0 0.0
  %1518 = vmatprep.subr.mxu0 0.0
  %1519 = vmatpush1.xpose.msra.mxu0 0.0
  %1520 = vmatprep.subr.mxu0 0.0
  %1521 = vmatpush1.xpose.msra.mxu0 0.0
  %1522 = vmatprep.subr.mxu0 0.0
  %1523 = vmatpush1.xpose.msra.mxu0 0.0
  %1524 = vmatprep.subr.mxu0 0.0
  %1525 = vmatpush1.xpose.msra.mxu0 0.0
  %1526 = vmatprep.subr.mxu0 0.0
  %1527 = vmatpush1.xpose.msra.mxu0 0.0
  %1528 = vmatprep.subr.mxu0 0.0
  %1529 = vmatpush1.xpose.msra.mxu0 0.0
  %1530 = vmatprep.subr.mxu0 0.0
  %1531 = vmatpush1.xpose.msra.mxu0 0.0
  %1532 = vmatprep.subr.mxu0 0.0
  %1533 = vmatpush1.xpose.msra.mxu0 0.0
  %1534 = vmatprep.subr.mxu0 0.0
  %1535 = vmatpush1.xpose.msra.mxu0 0.0
  %1536 = vmatprep.subr.mxu0 0.0
  %1537 = vmatpush1.xpose.msra.mxu0 0.0
  %1538 = vmatprep.subr.mxu0 0.0
  %1539 = vmatpush1.xpose.msra.mxu0 0.0
  %1540 = vmatprep.subr.mxu0 0.0
  %1541 = vmatpush1.xpose.msra.mxu0 0.0
  %1542 = vmatprep.subr.mxu0 0.0
  %1543 = vmatpush1.xpose.msra.mxu0 0.0
  %1544 = vmatprep.subr.mxu0 0.0
  %1545 = vmatpush1.xpose.msra.mxu0 0.0
  %1546 = vmatprep.subr.mxu0 0.0
  %1547 = vmatpush1.xpose.msra.mxu0 0.0
  %1548 = vmatprep.subr.mxu0 0.0
  %1549 = vmatpush1.xpose.msra.mxu0 0.0
  %1550 = vmatprep.subr.mxu0 0.0
  %1551 = vmatpush1.xpose.msra.mxu0 0.0
  %1552 = vmatprep.subr.mxu0 0.0
  %1553 = vmatpush1.xpose.msra.mxu0 0.0
  %1554 = vmatprep.subr.mxu0 0.0
  %1555 = vmatpush1.xpose.msra.mxu0 0.0
  %1556 = vmatprep.subr.mxu0 0.0
  %1557 = vmatpush1.xpose.msra.mxu0 0.0
  %1558 = vmatprep.subr.mxu0 0.0
  %1559 = vmatpush1.xpose.msra.mxu0 0.0
  %1560 = vmatprep.subr.mxu0 0.0
  %1561 = vmatpush1.xpose.msra.mxu0 0.0
  %1562 = vmatprep.subr.mxu0 0.0
  %1563 = vmatpush1.xpose.msra.mxu0 0.0
  %1564 = vmatprep.subr.mxu0 0.0
  %1565 = vmatpush1.xpose.msra.mxu0 0.0
  %1566 = vmatprep.subr.mxu0 0.0
  %1567 = vmatpush1.xpose.msra.mxu0 0.0
  %1568 = vmatprep.subr.mxu0 0.0
  %1569 = vmatpush1.xpose.msra.mxu0 0.0
  %1570 = vmatprep.subr.mxu0 0.0
  %1571 = vmatpush1.xpose.msra.mxu0 0.0
  %1572 = vmatprep.subr.mxu0 0.0
  %1573 = vmatpush1.xpose.msra.mxu0 0.0
  %1574 = vmatprep.subr.mxu0 0.0
  %1575 = vmatpush1.xpose.msra.mxu0 0.0
  %1576 = vmatprep.mubr.f32.mxu0 0.0
  %1577 = vmatmul.mubr.f32.gmra.mrb[0].mxu0 %v1508
  %v1578 = vpop.f32.mrb[0].mxu0
  %v1579 = vadd.f32 0.0, %v1578
  %v1580 = vpop.f32.mrb[0].mxu0
  %1581 = vdwg.mxu0
  %1583 = vrot.lane.b32.xlu0 %v1332, 120
  %v1584 = vpop.permute.xlu0 %1583
  %1585 = vrot.lane.b32.xlu0 %v1332, 56
  %v1586 = vpop.permute.xlu0 %1585
  %v1587 = vsel %vm27, %v1584, 0
  %v1589 = vsel %vm27, %v1586, 0
  %1591 = vmatprep.subr.mxu0 0.0
  %1592 = vmatpush1.xpose.msra.mxu0 %v1589
  %1593 = vmatprep.subr.mxu0 0.0
  %1594 = vmatpush1.xpose.msra.mxu0 0.0
  %1595 = vmatprep.subr.mxu0 0.0
  %1596 = vmatpush1.xpose.msra.mxu0 0.0
  %1597 = vmatprep.subr.mxu0 0.0
  %1598 = vmatpush1.xpose.msra.mxu0 0.0
  %1599 = vmatprep.subr.mxu0 0.0
  %1600 = vmatpush1.xpose.msra.mxu0 0.0
  %1601 = vmatprep.subr.mxu0 0.0
  %1602 = vmatpush1.xpose.msra.mxu0 0.0
  %1603 = vmatprep.subr.mxu0 0.0
  %1604 = vmatpush1.xpose.msra.mxu0 0.0
  %1605 = vmatprep.subr.mxu0 0.0
  %1606 = vmatpush1.xpose.msra.mxu0 0.0
  %1607 = vmatprep.subr.mxu0 0.0
  %1608 = vmatpush1.xpose.msra.mxu0 0.0
  %1609 = vmatprep.subr.mxu0 0.0
  %1610 = vmatpush1.xpose.msra.mxu0 0.0
  %1611 = vmatprep.subr.mxu0 0.0
  %1612 = vmatpush1.xpose.msra.mxu0 0.0
  %1613 = vmatprep.subr.mxu0 0.0
  %1614 = vmatpush1.xpose.msra.mxu0 0.0
  %1615 = vmatprep.subr.mxu0 0.0
  %1616 = vmatpush1.xpose.msra.mxu0 0.0
  %1617 = vmatprep.subr.mxu0 0.0
  %1618 = vmatpush1.xpose.msra.mxu0 0.0
  %1619 = vmatprep.subr.mxu0 0.0
  %1620 = vmatpush1.xpose.msra.mxu0 0.0
  %1621 = vmatprep.subr.mxu0 0.0
  %1622 = vmatpush1.xpose.msra.mxu0 0.0
  %1623 = vmatprep.subr.mxu0 0.0
  %1624 = vmatpush1.xpose.msra.mxu0 0.0
  %1625 = vmatprep.subr.mxu0 0.0
  %1626 = vmatpush1.xpose.msra.mxu0 0.0
  %1627 = vmatprep.subr.mxu0 0.0
  %1628 = vmatpush1.xpose.msra.mxu0 0.0
  %1629 = vmatprep.subr.mxu0 0.0
  %1630 = vmatpush1.xpose.msra.mxu0 0.0
  %1631 = vmatprep.subr.mxu0 0.0
  %1632 = vmatpush1.xpose.msra.mxu0 0.0
  %1633 = vmatprep.subr.mxu0 0.0
  %1634 = vmatpush1.xpose.msra.mxu0 0.0
  %1635 = vmatprep.subr.mxu0 0.0
  %1636 = vmatpush1.xpose.msra.mxu0 0.0
  %1637 = vmatprep.subr.mxu0 0.0
  %1638 = vmatpush1.xpose.msra.mxu0 0.0
  %1639 = vmatprep.subr.mxu0 0.0
  %1640 = vmatpush1.xpose.msra.mxu0 0.0
  %1641 = vmatprep.subr.mxu0 0.0
  %1642 = vmatpush1.xpose.msra.mxu0 0.0
  %1643 = vmatprep.subr.mxu0 0.0
  %1644 = vmatpush1.xpose.msra.mxu0 0.0
  %1645 = vmatprep.subr.mxu0 0.0
  %1646 = vmatpush1.xpose.msra.mxu0 0.0
  %1647 = vmatprep.subr.mxu0 0.0
  %1648 = vmatpush1.xpose.msra.mxu0 0.0
  %1649 = vmatprep.subr.mxu0 0.0
  %1650 = vmatpush1.xpose.msra.mxu0 0.0
  %1651 = vmatprep.subr.mxu0 0.0
  %1652 = vmatpush1.xpose.msra.mxu0 0.0
  %1653 = vmatprep.subr.mxu0 0.0
  %1654 = vmatpush1.xpose.msra.mxu0 0.0
  %1655 = vmatprep.mubr.f32.mxu0 0.0
  %1656 = vmatmul.mubr.f32.gmra.mrb[0].mxu0 %v1587
  %v1657 = vpop.f32.mrb[0].mxu0
  %v1658 = vadd.f32 0.0, %v1657
  %v1659 = vpop.f32.mrb[0].mxu0
  %1660 = vdwg.mxu0
  %1662 = vrot.lane.b32.xlu0 %v1333, 120
  %v1663 = vpop.permute.xlu0 %1662
  %1664 = vrot.lane.b32.xlu0 %v1333, 56
  %v1665 = vpop.permute.xlu0 %1664
  %v1666 = vsel %vm27, %v1663, 0
  %v1668 = vsel %vm27, %v1665, 0
  %1670 = vmatprep.subr.mxu0 0.0
  %1671 = vmatpush1.xpose.msra.mxu0 %v1668
  %1672 = vmatprep.subr.mxu0 0.0
  %1673 = vmatpush1.xpose.msra.mxu0 0.0
  %1674 = vmatprep.subr.mxu0 0.0
  %1675 = vmatpush1.xpose.msra.mxu0 0.0
  %1676 = vmatprep.subr.mxu0 0.0
  %1677 = vmatpush1.xpose.msra.mxu0 0.0
  %1678 = vmatprep.subr.mxu0 0.0
  %1679 = vmatpush1.xpose.msra.mxu0 0.0
  %1680 = vmatprep.subr.mxu0 0.0
  %1681 = vmatpush1.xpose.msra.mxu0 0.0
  %1682 = vmatprep.subr.mxu0 0.0
  %1683 = vmatpush1.xpose.msra.mxu0 0.0
  %1684 = vmatprep.subr.mxu0 0.0
  %1685 = vmatpush1.xpose.msra.mxu0 0.0
  %1686 = vmatprep.subr.mxu0 0.0
  %1687 = vmatpush1.xpose.msra.mxu0 0.0
  %1688 = vmatprep.subr.mxu0 0.0
  %1689 = vmatpush1.xpose.msra.mxu0 0.0
  %1690 = vmatprep.subr.mxu0 0.0
  %1691 = vmatpush1.xpose.msra.mxu0 0.0
  %1692 = vmatprep.subr.mxu0 0.0
  %1693 = vmatpush1.xpose.msra.mxu0 0.0
  %1694 = vmatprep.subr.mxu0 0.0
  %1695 = vmatpush1.xpose.msra.mxu0 0.0
  %1696 = vmatprep.subr.mxu0 0.0
  %1697 = vmatpush1.xpose.msra.mxu0 0.0
  %1698 = vmatprep.subr.mxu0 0.0
  %1699 = vmatpush1.xpose.msra.mxu0 0.0
  %1700 = vmatprep.subr.mxu0 0.0
  %1701 = vmatpush1.xpose.msra.mxu0 0.0
  %1702 = vmatprep.subr.mxu0 0.0
  %1703 = vmatpush1.xpose.msra.mxu0 0.0
  %1704 = vmatprep.subr.mxu0 0.0
  %1705 = vmatpush1.xpose.msra.mxu0 0.0
  %1706 = vmatprep.subr.mxu0 0.0
  %1707 = vmatpush1.xpose.msra.mxu0 0.0
  %1708 = vmatprep.subr.mxu0 0.0
  %1709 = vmatpush1.xpose.msra.mxu0 0.0
  %1710 = vmatprep.subr.mxu0 0.0
  %1711 = vmatpush1.xpose.msra.mxu0 0.0
  %1712 = vmatprep.subr.mxu0 0.0
  %1713 = vmatpush1.xpose.msra.mxu0 0.0
  %1714 = vmatprep.subr.mxu0 0.0
  %1715 = vmatpush1.xpose.msra.mxu0 0.0
  %1716 = vmatprep.subr.mxu0 0.0
  %1717 = vmatpush1.xpose.msra.mxu0 0.0
  %1718 = vmatprep.subr.mxu0 0.0
  %1719 = vmatpush1.xpose.msra.mxu0 0.0
  %1720 = vmatprep.subr.mxu0 0.0
  %1721 = vmatpush1.xpose.msra.mxu0 0.0
  %1722 = vmatprep.subr.mxu0 0.0
  %1723 = vmatpush1.xpose.msra.mxu0 0.0
  %1724 = vmatprep.subr.mxu0 0.0
  %1725 = vmatpush1.xpose.msra.mxu0 0.0
  %1726 = vmatprep.subr.mxu0 0.0
  %1727 = vmatpush1.xpose.msra.mxu0 0.0
  %1728 = vmatprep.subr.mxu0 0.0
  %1729 = vmatpush1.xpose.msra.mxu0 0.0
  %1730 = vmatprep.subr.mxu0 0.0
  %1731 = vmatpush1.xpose.msra.mxu0 0.0
  %1732 = vmatprep.subr.mxu0 0.0
  %1733 = vmatpush1.xpose.msra.mxu0 0.0
  %1734 = vmatprep.mubr.f32.mxu0 0.0
  %1735 = vmatmul.mubr.f32.gmra.mrb[0].mxu0 %v1666
  %v1736 = vpop.f32.mrb[0].mxu0
  %v1737 = vadd.f32 0.0, %v1736
  %v1738 = vpop.f32.mrb[0].mxu0
  %1739 = vdwg.mxu0
  %1741 = vrot.lane.b32.xlu0 %v1334, 120
  %v1742 = vpop.permute.xlu0 %1741
  %1743 = vrot.lane.b32.xlu0 %v1334, 56
  %v1744 = vpop.permute.xlu0 %1743
  %v1745 = vsel %vm27, %v1742, 0
  %v1747 = vsel %vm27, %v1744, 0
  %1749 = vmatprep.subr.mxu0 0.0
  %1750 = vmatpush1.xpose.msra.mxu0 %v1747
  %1751 = vmatprep.subr.mxu0 0.0
  %1752 = vmatpush1.xpose.msra.mxu0 0.0
  %1753 = vmatprep.subr.mxu0 0.0
  %1754 = vmatpush1.xpose.msra.mxu0 0.0
  %1755 = vmatprep.subr.mxu0 0.0
  %1756 = vmatpush1.xpose.msra.mxu0 0.0
  %1757 = vmatprep.subr.mxu0 0.0
  %1758 = vmatpush1.xpose.msra.mxu0 0.0
  %1759 = vmatprep.subr.mxu0 0.0
  %1760 = vmatpush1.xpose.msra.mxu0 0.0
  %1761 = vmatprep.subr.mxu0 0.0
  %1762 = vmatpush1.xpose.msra.mxu0 0.0
  %1763 = vmatprep.subr.mxu0 0.0
  %1764 = vmatpush1.xpose.msra.mxu0 0.0
  %1765 = vmatprep.subr.mxu0 0.0
  %1766 = vmatpush1.xpose.msra.mxu0 0.0
  %1767 = vmatprep.subr.mxu0 0.0
  %1768 = vmatpush1.xpose.msra.mxu0 0.0
  %1769 = vmatprep.subr.mxu0 0.0
  %1770 = vmatpush1.xpose.msra.mxu0 0.0
  %1771 = vmatprep.subr.mxu0 0.0
  %1772 = vmatpush1.xpose.msra.mxu0 0.0
  %1773 = vmatprep.subr.mxu0 0.0
  %1774 = vmatpush1.xpose.msra.mxu0 0.0
  %1775 = vmatprep.subr.mxu0 0.0
  %1776 = vmatpush1.xpose.msra.mxu0 0.0
  %1777 = vmatprep.subr.mxu0 0.0
  %1778 = vmatpush1.xpose.msra.mxu0 0.0
  %1779 = vmatprep.subr.mxu0 0.0
  %1780 = vmatpush1.xpose.msra.mxu0 0.0
  %1781 = vmatprep.subr.mxu0 0.0
  %1782 = vmatpush1.xpose.msra.mxu0 0.0
  %1783 = vmatprep.subr.mxu0 0.0
  %1784 = vmatpush1.xpose.msra.mxu0 0.0
  %1785 = vmatprep.subr.mxu0 0.0
  %1786 = vmatpush1.xpose.msra.mxu0 0.0
  %1787 = vmatprep.subr.mxu0 0.0
  %1788 = vmatpush1.xpose.msra.mxu0 0.0
  %1789 = vmatprep.subr.mxu0 0.0
  %1790 = vmatpush1.xpose.msra.mxu0 0.0
  %1791 = vmatprep.subr.mxu0 0.0
  %1792 = vmatpush1.xpose.msra.mxu0 0.0
  %1793 = vmatprep.subr.mxu0 0.0
  %1794 = vmatpush1.xpose.msra.mxu0 0.0
  %1795 = vmatprep.subr.mxu0 0.0
  %1796 = vmatpush1.xpose.msra.mxu0 0.0
  %1797 = vmatprep.subr.mxu0 0.0
  %1798 = vmatpush1.xpose.msra.mxu0 0.0
  %1799 = vmatprep.subr.mxu0 0.0
  %1800 = vmatpush1.xpose.msra.mxu0 0.0
  %1801 = vmatprep.subr.mxu0 0.0
  %1802 = vmatpush1.xpose.msra.mxu0 0.0
  %1803 = vmatprep.subr.mxu0 0.0
  %1804 = vmatpush1.xpose.msra.mxu0 0.0
  %1805 = vmatprep.subr.mxu0 0.0
  %1806 = vmatpush1.xpose.msra.mxu0 0.0
  %1807 = vmatprep.subr.mxu0 0.0
  %1808 = vmatpush1.xpose.msra.mxu0 0.0
  %1809 = vmatprep.subr.mxu0 0.0
  %1810 = vmatpush1.xpose.msra.mxu0 0.0
  %1811 = vmatprep.subr.mxu0 0.0
  %1812 = vmatpush1.xpose.msra.mxu0 0.0
  %1813 = vmatprep.mubr.f32.mxu0 0.0
  %1814 = vmatmul.mubr.f32.gmra.mrb[0].mxu0 %v1745
  %v1815 = vpop.f32.mrb[0].mxu0
  %v1816 = vadd.f32 0.0, %v1815
  %v1817 = vpop.f32.mrb[0].mxu0
  %1818 = vdwg.mxu0
  %1820 = vrot.lane.b32.xlu0 %v1335, 120
  %v1821 = vpop.permute.xlu0 %1820
  %1822 = vrot.lane.b32.xlu0 %v1335, 56
  %v1823 = vpop.permute.xlu0 %1822
  %v1824 = vsel %vm27, %v1821, 0
  %v1826 = vsel %vm27, %v1823, 0
  %1828 = vmatprep.subr.mxu0 0.0
  %1829 = vmatpush1.xpose.msra.mxu0 %v1826
  %1830 = vmatprep.subr.mxu0 0.0
  %1831 = vmatpush1.xpose.msra.mxu0 0.0
  %1832 = vmatprep.subr.mxu0 0.0
  %1833 = vmatpush1.xpose.msra.mxu0 0.0
  %1834 = vmatprep.subr.mxu0 0.0
  %1835 = vmatpush1.xpose.msra.mxu0 0.0
  %1836 = vmatprep.subr.mxu0 0.0
  %1837 = vmatpush1.xpose.msra.mxu0 0.0
  %1838 = vmatprep.subr.mxu0 0.0
  %1839 = vmatpush1.xpose.msra.mxu0 0.0
  %1840 = vmatprep.subr.mxu0 0.0
  %1841 = vmatpush1.xpose.msra.mxu0 0.0
  %1842 = vmatprep.subr.mxu0 0.0
  %1843 = vmatpush1.xpose.msra.mxu0 0.0
  %1844 = vmatprep.subr.mxu0 0.0
  %1845 = vmatpush1.xpose.msra.mxu0 0.0
  %1846 = vmatprep.subr.mxu0 0.0
  %1847 = vmatpush1.xpose.msra.mxu0 0.0
  %1848 = vmatprep.subr.mxu0 0.0
  %1849 = vmatpush1.xpose.msra.mxu0 0.0
  %1850 = vmatprep.subr.mxu0 0.0
  %1851 = vmatpush1.xpose.msra.mxu0 0.0
  %1852 = vmatprep.subr.mxu0 0.0
  %1853 = vmatpush1.xpose.msra.mxu0 0.0
  %1854 = vmatprep.subr.mxu0 0.0
  %1855 = vmatpush1.xpose.msra.mxu0 0.0
  %1856 = vmatprep.subr.mxu0 0.0
  %1857 = vmatpush1.xpose.msra.mxu0 0.0
  %1858 = vmatprep.subr.mxu0 0.0
  %1859 = vmatpush1.xpose.msra.mxu0 0.0
  %1860 = vmatprep.subr.mxu0 0.0
  %1861 = vmatpush1.xpose.msra.mxu0 0.0
  %1862 = vmatprep.subr.mxu0 0.0
  %1863 = vmatpush1.xpose.msra.mxu0 0.0
  %1864 = vmatprep.subr.mxu0 0.0
  %1865 = vmatpush1.xpose.msra.mxu0 0.0
  %1866 = vmatprep.subr.mxu0 0.0
  %1867 = vmatpush1.xpose.msra.mxu0 0.0
  %1868 = vmatprep.subr.mxu0 0.0
  %1869 = vmatpush1.xpose.msra.mxu0 0.0
  %1870 = vmatprep.subr.mxu0 0.0
  %1871 = vmatpush1.xpose.msra.mxu0 0.0
  %1872 = vmatprep.subr.mxu0 0.0
  %1873 = vmatpush1.xpose.msra.mxu0 0.0
  %1874 = vmatprep.subr.mxu0 0.0
  %1875 = vmatpush1.xpose.msra.mxu0 0.0
  %1876 = vmatprep.subr.mxu0 0.0
  %1877 = vmatpush1.xpose.msra.mxu0 0.0
  %1878 = vmatprep.subr.mxu0 0.0
  %1879 = vmatpush1.xpose.msra.mxu0 0.0
  %1880 = vmatprep.subr.mxu0 0.0
  %1881 = vmatpush1.xpose.msra.mxu0 0.0
  %1882 = vmatprep.subr.mxu0 0.0
  %1883 = vmatpush1.xpose.msra.mxu0 0.0
  %1884 = vmatprep.subr.mxu0 0.0
  %1885 = vmatpush1.xpose.msra.mxu0 0.0
  %1886 = vmatprep.subr.mxu0 0.0
  %1887 = vmatpush1.xpose.msra.mxu0 0.0
  %1888 = vmatprep.subr.mxu0 0.0
  %1889 = vmatpush1.xpose.msra.mxu0 0.0
  %1890 = vmatprep.subr.mxu0 0.0
  %1891 = vmatpush1.xpose.msra.mxu0 0.0
  %1892 = vmatprep.mubr.f32.mxu0 0.0
  %1893 = vmatmul.mubr.f32.gmra.mrb[0].mxu0 %v1824
  %v1894 = vpop.f32.mrb[0].mxu0
  %v1895 = vadd.f32 0.0, %v1894
  %v1896 = vpop.f32.mrb[0].mxu0
  %1897 = vdwg.mxu0
  %1899 = vrot.lane.b32.xlu0 %v1336, 120
  %v1900 = vpop.permute.xlu0 %1899
  %1901 = vrot.lane.b32.xlu0 %v1336, 56
  %v1902 = vpop.permute.xlu0 %1901
  %v1903 = vsel %vm27, %v1900, 0
  %v1905 = vsel %vm27, %v1902, 0
  %1907 = vmatprep.subr.mxu0 0.0
  %1908 = vmatpush1.xpose.msra.mxu0 %v1905
  %1909 = vmatprep.subr.mxu0 0.0
  %1910 = vmatpush1.xpose.msra.mxu0 0.0
  %1911 = vmatprep.subr.mxu0 0.0
  %1912 = vmatpush1.xpose.msra.mxu0 0.0
  %1913 = vmatprep.subr.mxu0 0.0
  %1914 = vmatpush1.xpose.msra.mxu0 0.0
  %1915 = vmatprep.subr.mxu0 0.0
  %1916 = vmatpush1.xpose.msra.mxu0 0.0
  %1917 = vmatprep.subr.mxu0 0.0
  %1918 = vmatpush1.xpose.msra.mxu0 0.0
  %1919 = vmatprep.subr.mxu0 0.0
  %1920 = vmatpush1.xpose.msra.mxu0 0.0
  %1921 = vmatprep.subr.mxu0 0.0
  %1922 = vmatpush1.xpose.msra.mxu0 0.0
  %1923 = vmatprep.subr.mxu0 0.0
  %1924 = vmatpush1.xpose.msra.mxu0 0.0
  %1925 = vmatprep.subr.mxu0 0.0
  %1926 = vmatpush1.xpose.msra.mxu0 0.0
  %1927 = vmatprep.subr.mxu0 0.0
  %1928 = vmatpush1.xpose.msra.mxu0 0.0
  %1929 = vmatprep.subr.mxu0 0.0
  %1930 = vmatpush1.xpose.msra.mxu0 0.0
  %1931 = vmatprep.subr.mxu0 0.0
  %1932 = vmatpush1.xpose.msra.mxu0 0.0
  %1933 = vmatprep.subr.mxu0 0.0
  %1934 = vmatpush1.xpose.msra.mxu0 0.0
  %1935 = vmatprep.subr.mxu0 0.0
  %1936 = vmatpush1.xpose.msra.mxu0 0.0
  %1937 = vmatprep.subr.mxu0 0.0
  %1938 = vmatpush1.xpose.msra.mxu0 0.0
  %1939 = vmatprep.subr.mxu0 0.0
  %1940 = vmatpush1.xpose.msra.mxu0 0.0
  %1941 = vmatprep.subr.mxu0 0.0
  %1942 = vmatpush1.xpose.msra.mxu0 0.0
  %1943 = vmatprep.subr.mxu0 0.0
  %1944 = vmatpush1.xpose.msra.mxu0 0.0
  %1945 = vmatprep.subr.mxu0 0.0
  %1946 = vmatpush1.xpose.msra.mxu0 0.0
  %1947 = vmatprep.subr.mxu0 0.0
  %1948 = vmatpush1.xpose.msra.mxu0 0.0
  %1949 = vmatprep.subr.mxu0 0.0
  %1950 = vmatpush1.xpose.msra.mxu0 0.0
  %1951 = vmatprep.subr.mxu0 0.0
  %1952 = vmatpush1.xpose.msra.mxu0 0.0
  %1953 = vmatprep.subr.mxu0 0.0
  %1954 = vmatpush1.xpose.msra.mxu0 0.0
  %1955 = vmatprep.subr.mxu0 0.0
  %1956 = vmatpush1.xpose.msra.mxu0 0.0
  %1957 = vmatprep.subr.mxu0 0.0
  %1958 = vmatpush1.xpose.msra.mxu0 0.0
  %1959 = vmatprep.subr.mxu0 0.0
  %1960 = vmatpush1.xpose.msra.mxu0 0.0
  %1961 = vmatprep.subr.mxu0 0.0
  %1962 = vmatpush1.xpose.msra.mxu0 0.0
  %1963 = vmatprep.subr.mxu0 0.0
  %1964 = vmatpush1.xpose.msra.mxu0 0.0
  %1965 = vmatprep.subr.mxu0 0.0
  %1966 = vmatpush1.xpose.msra.mxu0 0.0
  %1967 = vmatprep.subr.mxu0 0.0
  %1968 = vmatpush1.xpose.msra.mxu0 0.0
  %1969 = vmatprep.subr.mxu0 0.0
  %1970 = vmatpush1.xpose.msra.mxu0 0.0
  %1971 = vmatprep.mubr.f32.mxu0 0.0
  %1972 = vmatmul.mubr.f32.gmra.mrb[0].mxu0 %v1903
  %v1973 = vpop.f32.mrb[0].mxu0
  %v1974 = vadd.f32 0.0, %v1973
  %v1975 = vpop.f32.mrb[0].mxu0
  %1976 = vdwg.mxu0
  %v1977 = vmul.f32 %v1421, 0.35355338
  %v1978 = vmul.f32 %v1500, 0.35355338
  %v1979 = vmul.f32 %v1579, 0.35355338
  %v1980 = vmul.f32 %v1658, 0.35355338
  %v1981 = vmul.f32 %v1737, 0.35355338
  %v1982 = vmul.f32 %v1816, 0.35355338
  %v1983 = vmul.f32 %v1895, 0.35355338
  %v1984 = vmul.f32 %v1974, 0.35355338
  %v1985 = vsel %vm27, %v1977, -inf
  %1986 = vmax.xlane.f32.xlu0 %v1985
  %v1987 = vpop.xlane.xlu0 %1986
  %v1988 = vsel %vm27, %v1978, -inf
  %1989 = vmax.xlane.f32.xlu0 %v1988
  %v1990 = vpop.xlane.xlu0 %1989
  %v1991 = vsel %vm27, %v1979, -inf
  %1992 = vmax.xlane.f32.xlu0 %v1991
  %v1993 = vpop.xlane.xlu0 %1992
  %v1994 = vsel %vm27, %v1980, -inf
  %1995 = vmax.xlane.f32.xlu0 %v1994
  %v1996 = vpop.xlane.xlu0 %1995
  %v1997 = vsel %vm27, %v1981, -inf
  %1998 = vmax.xlane.f32.xlu0 %v1997
  %v1999 = vpop.xlane.xlu0 %1998
  %v2000 = vsel %vm27, %v1982, -inf
  %2001 = vmax.xlane.f32.xlu0 %v2000
  %v2002 = vpop.xlane.xlu0 %2001
  %v2003 = vsel %vm27, %v1983, -inf
  %2004 = vmax.xlane.f32.xlu0 %v2003
  %v2005 = vpop.xlane.xlu0 %2004
  %v2006 = vsel %vm27, %v1984, -inf
  %2007 = vmax.xlane.f32.xlu0 %v2006
  %v2008 = vpop.xlane.xlu0 %2007
  %v2009 = vsub.f32 %v1977, %v1987
  %v2010 = vsub.f32 %v1978, %v1990
  %v2011 = vsub.f32 %v1979, %v1993
  %v2012 = vsub.f32 %v1980, %v1996
  %v2013 = vsub.f32 %v1981, %v1999
  %v2014 = vsub.f32 %v1982, %v2002
  %v2015 = vsub.f32 %v1983, %v2005
  %v2016 = vsub.f32 %v1984, %v2008
  %v2017 = vmul.f32 %v2009, 1.442695
  %v2018 = vpow.pop %v2017
  %v2019 = vmul.f32 %v2010, 1.442695
  %v2020 = vpow.pop %v2019
  %v2021 = vmul.f32 %v2011, 1.442695
  %v2022 = vpow.pop %v2021
  %v2023 = vmul.f32 %v2012, 1.442695
  %v2024 = vpow.pop %v2023
  %v2025 = vmul.f32 %v2013, 1.442695
  %v2026 = vpow.pop %v2025
  %v2027 = vmul.f32 %v2014, 1.442695
  %v2028 = vpow.pop %v2027
  %v2029 = vmul.f32 %v2015, 1.442695
  %v2030 = vpow.pop %v2029
  %v2031 = vmul.f32 %v2016, 1.442695
  %v2032 = vpow.pop %v2031
  %v2033 = vsel %vm27, %v2018, 0.0
  %2034 = vadd.xlane.f32.xlu0 %v2033
  %v2035 = vpop.xlane.xlu0 %2034
  %v2036 = vsel %vm27, %v2020, 0.0
  %2037 = vadd.xlane.f32.xlu0 %v2036
  %v2038 = vpop.xlane.xlu0 %2037
  %v2039 = vsel %vm27, %v2022, 0.0
  %2040 = vadd.xlane.f32.xlu0 %v2039
  %v2041 = vpop.xlane.xlu0 %2040
  %v2042 = vsel %vm27, %v2024, 0.0
  %2043 = vadd.xlane.f32.xlu0 %v2042
  %v2044 = vpop.xlane.xlu0 %2043
  %v2045 = vsel %vm27, %v2026, 0.0
  %2046 = vadd.xlane.f32.xlu0 %v2045
  %v2047 = vpop.xlane.xlu0 %2046
  %v2048 = vsel %vm27, %v2028, 0.0
  %2049 = vadd.xlane.f32.xlu0 %v2048
  %v2050 = vpop.xlane.xlu0 %2049
  %v2051 = vsel %vm27, %v2030, 0.0
  %2052 = vadd.xlane.f32.xlu0 %v2051
  %v2053 = vpop.xlane.xlu0 %2052
  %v2054 = vsel %vm27, %v2032, 0.0
  %2055 = vadd.xlane.f32.xlu0 %v2054
  %v2056 = vpop.xlane.xlu0 %2055
  %2058 = vrot.lane.b32.xlu0 %v1337, 120
  %v2059 = vpop.permute.xlu0 %2058
  %v2062 = vsel %vm27, %v2018, 0
  %2064 = vmatprep.subr.mxu0 0.0
  %2065 = vmatpush1.msra.mxu0 %v2059
  %2066 = vmatprep.subr.mxu0 0.0
  %2067 = vmatpush1.msra.mxu0 0.0
  %2068 = vmatprep.subr.mxu0 0.0
  %2069 = vmatpush1.msra.mxu0 0.0
  %2070 = vmatprep.subr.mxu0 0.0
  %2071 = vmatpush1.msra.mxu0 0.0
  %2072 = vmatprep.subr.mxu0 0.0
  %2073 = vmatpush1.msra.mxu0 0.0
  %2074 = vmatprep.subr.mxu0 0.0
  %2075 = vmatpush1.msra.mxu0 0.0
  %2076 = vmatprep.subr.mxu0 0.0
  %2077 = vmatpush1.msra.mxu0 0.0
  %2078 = vmatprep.subr.mxu0 0.0
  %2079 = vmatpush1.msra.mxu0 0.0
  %2080 = vmatprep.subr.mxu0 0.0
  %2081 = vmatpush1.msra.mxu0 0.0
  %2082 = vmatprep.subr.mxu0 0.0
  %2083 = vmatpush1.msra.mxu0 0.0
  %2084 = vmatprep.subr.mxu0 0.0
  %2085 = vmatpush1.msra.mxu0 0.0
  %2086 = vmatprep.subr.mxu0 0.0
  %2087 = vmatpush1.msra.mxu0 0.0
  %2088 = vmatprep.subr.mxu0 0.0
  %2089 = vmatpush1.msra.mxu0 0.0
  %2090 = vmatprep.subr.mxu0 0.0
  %2091 = vmatpush1.msra.mxu0 0.0
  %2092 = vmatprep.subr.mxu0 0.0
  %2093 = vmatpush1.msra.mxu0 0.0
  %2094 = vmatprep.subr.mxu0 0.0
  %2095 = vmatpush1.msra.mxu0 0.0
  %2096 = vmatprep.subr.mxu0 0.0
  %2097 = vmatpush1.msra.mxu0 0.0
  %2098 = vmatprep.subr.mxu0 0.0
  %2099 = vmatpush1.msra.mxu0 0.0
  %2100 = vmatprep.subr.mxu0 0.0
  %2101 = vmatpush1.msra.mxu0 0.0
  %2102 = vmatprep.subr.mxu0 0.0
  %2103 = vmatpush1.msra.mxu0 0.0
  %2104 = vmatprep.subr.mxu0 0.0
  %2105 = vmatpush1.msra.mxu0 0.0
  %2106 = vmatprep.subr.mxu0 0.0
  %2107 = vmatpush1.msra.mxu0 0.0
  %2108 = vmatprep.subr.mxu0 0.0
  %2109 = vmatpush1.msra.mxu0 0.0
  %2110 = vmatprep.subr.mxu0 0.0
  %2111 = vmatpush1.msra.mxu0 0.0
  %2112 = vmatprep.subr.mxu0 0.0
  %2113 = vmatpush1.msra.mxu0 0.0
  %2114 = vmatprep.subr.mxu0 0.0
  %2115 = vmatpush1.msra.mxu0 0.0
  %2116 = vmatprep.subr.mxu0 0.0
  %2117 = vmatpush1.msra.mxu0 0.0
  %2118 = vmatprep.subr.mxu0 0.0
  %2119 = vmatpush1.msra.mxu0 0.0
  %2120 = vmatprep.subr.mxu0 0.0
  %2121 = vmatpush1.msra.mxu0 0.0
  %2122 = vmatprep.subr.mxu0 0.0
  %2123 = vmatpush1.msra.mxu0 0.0
  %2124 = vmatprep.subr.mxu0 0.0
  %2125 = vmatpush1.msra.mxu0 0.0
  %2126 = vmatprep.subr.mxu0 0.0
  %2127 = vmatpush1.msra.mxu0 0.0
  %2128 = vmatprep.mubr.f32.mxu0 0.0
  %2129 = vmatmul.mubr.f32.gmra.mrb[0].mxu0 %v2062
  %v2130 = vpop.f32.mrb[0].mxu0
  %v2131 = vadd.f32 0.0, %v2130
  %v2132 = vpop.f32.mrb[0].mxu0
  %2133 = vdwg.mxu0
  %2135 = vrot.lane.b32.xlu0 %v1338, 120
  %v2136 = vpop.permute.xlu0 %2135
  %v2139 = vsel %vm27, %v2020, 0
  %2141 = vmatprep.subr.mxu0 0.0
  %2142 = vmatpush1.msra.mxu0 %v2136
  %2143 = vmatprep.subr.mxu0 0.0
  %2144 = vmatpush1.msra.mxu0 0.0
  %2145 = vmatprep.subr.mxu0 0.0
  %2146 = vmatpush1.msra.mxu0 0.0
  %2147 = vmatprep.subr.mxu0 0.0
  %2148 = vmatpush1.msra.mxu0 0.0
  %2149 = vmatprep.subr.mxu0 0.0
  %2150 = vmatpush1.msra.mxu0 0.0
  %2151 = vmatprep.subr.mxu0 0.0
  %2152 = vmatpush1.msra.mxu0 0.0
  %2153 = vmatprep.subr.mxu0 0.0
  %2154 = vmatpush1.msra.mxu0 0.0
  %2155 = vmatprep.subr.mxu0 0.0
  %2156 = vmatpush1.msra.mxu0 0.0
  %2157 = vmatprep.subr.mxu0 0.0
  %2158 = vmatpush1.msra.mxu0 0.0
  %2159 = vmatprep.subr.mxu0 0.0
  %2160 = vmatpush1.msra.mxu0 0.0
  %2161 = vmatprep.subr.mxu0 0.0
  %2162 = vmatpush1.msra.mxu0 0.0
  %2163 = vmatprep.subr.mxu0 0.0
  %2164 = vmatpush1.msra.mxu0 0.0
  %2165 = vmatprep.subr.mxu0 0.0
  %2166 = vmatpush1.msra.mxu0 0.0
  %2167 = vmatprep.subr.mxu0 0.0
  %2168 = vmatpush1.msra.mxu0 0.0
  %2169 = vmatprep.subr.mxu0 0.0
  %2170 = vmatpush1.msra.mxu0 0.0
  %2171 = vmatprep.subr.mxu0 0.0
  %2172 = vmatpush1.msra.mxu0 0.0
  %2173 = vmatprep.subr.mxu0 0.0
  %2174 = vmatpush1.msra.mxu0 0.0
  %2175 = vmatprep.subr.mxu0 0.0
  %2176 = vmatpush1.msra.mxu0 0.0
  %2177 = vmatprep.subr.mxu0 0.0
  %2178 = vmatpush1.msra.mxu0 0.0
  %2179 = vmatprep.subr.mxu0 0.0
  %2180 = vmatpush1.msra.mxu0 0.0
  %2181 = vmatprep.subr.mxu0 0.0
  %2182 = vmatpush1.msra.mxu0 0.0
  %2183 = vmatprep.subr.mxu0 0.0
  %2184 = vmatpush1.msra.mxu0 0.0
  %2185 = vmatprep.subr.mxu0 0.0
  %2186 = vmatpush1.msra.mxu0 0.0
  %2187 = vmatprep.subr.mxu0 0.0
  %2188 = vmatpush1.msra.mxu0 0.0
  %2189 = vmatprep.subr.mxu0 0.0
  %2190 = vmatpush1.msra.mxu0 0.0
  %2191 = vmatprep.subr.mxu0 0.0
  %2192 = vmatpush1.msra.mxu0 0.0
  %2193 = vmatprep.subr.mxu0 0.0
  %2194 = vmatpush1.msra.mxu0 0.0
  %2195 = vmatprep.subr.mxu0 0.0
  %2196 = vmatpush1.msra.mxu0 0.0
  %2197 = vmatprep.subr.mxu0 0.0
  %2198 = vmatpush1.msra.mxu0 0.0
  %2199 = vmatprep.subr.mxu0 0.0
  %2200 = vmatpush1.msra.mxu0 0.0
  %2201 = vmatprep.subr.mxu0 0.0
  %2202 = vmatpush1.msra.mxu0 0.0
  %2203 = vmatprep.subr.mxu0 0.0
  %2204 = vmatpush1.msra.mxu0 0.0
  %2205 = vmatprep.mubr.f32.mxu0 0.0
  %2206 = vmatmul.mubr.f32.gmra.mrb[0].mxu0 %v2139
  %v2207 = vpop.f32.mrb[0].mxu0
  %v2208 = vadd.f32 0.0, %v2207
  %v2209 = vpop.f32.mrb[0].mxu0
  %2210 = vdwg.mxu0
  %2212 = vrot.lane.b32.xlu0 %v1339, 120
  %v2213 = vpop.permute.xlu0 %2212
  %v2216 = vsel %vm27, %v2022, 0
  %2218 = vmatprep.subr.mxu0 0.0
  %2219 = vmatpush1.msra.mxu0 %v2213
  %2220 = vmatprep.subr.mxu0 0.0
  %2221 = vmatpush1.msra.mxu0 0.0
  %2222 = vmatprep.subr.mxu0 0.0
  %2223 = vmatpush1.msra.mxu0 0.0
  %2224 = vmatprep.subr.mxu0 0.0
  %2225 = vmatpush1.msra.mxu0 0.0
  %2226 = vmatprep.subr.mxu0 0.0
  %2227 = vmatpush1.msra.mxu0 0.0
  %2228 = vmatprep.subr.mxu0 0.0
  %2229 = vmatpush1.msra.mxu0 0.0
  %2230 = vmatprep.subr.mxu0 0.0
  %2231 = vmatpush1.msra.mxu0 0.0
  %2232 = vmatprep.subr.mxu0 0.0
  %2233 = vmatpush1.msra.mxu0 0.0
  %2234 = vmatprep.subr.mxu0 0.0
  %2235 = vmatpush1.msra.mxu0 0.0
  %2236 = vmatprep.subr.mxu0 0.0
  %2237 = vmatpush1.msra.mxu0 0.0
  %2238 = vmatprep.subr.mxu0 0.0
  %2239 = vmatpush1.msra.mxu0 0.0
  %2240 = vmatprep.subr.mxu0 0.0
  %2241 = vmatpush1.msra.mxu0 0.0
  %2242 = vmatprep.subr.mxu0 0.0
  %2243 = vmatpush1.msra.mxu0 0.0
  %2244 = vmatprep.subr.mxu0 0.0
  %2245 = vmatpush1.msra.mxu0 0.0
  %2246 = vmatprep.subr.mxu0 0.0
  %2247 = vmatpush1.msra.mxu0 0.0
  %2248 = vmatprep.subr.mxu0 0.0
  %2249 = vmatpush1.msra.mxu0 0.0
  %2250 = vmatprep.subr.mxu0 0.0
  %2251 = vmatpush1.msra.mxu0 0.0
  %2252 = vmatprep.subr.mxu0 0.0
  %2253 = vmatpush1.msra.mxu0 0.0
  %2254 = vmatprep.subr.mxu0 0.0
  %2255 = vmatpush1.msra.mxu0 0.0
  %2256 = vmatprep.subr.mxu0 0.0
  %2257 = vmatpush1.msra.mxu0 0.0
  %2258 = vmatprep.subr.mxu0 0.0
  %2259 = vmatpush1.msra.mxu0 0.0
  %2260 = vmatprep.subr.mxu0 0.0
  %2261 = vmatpush1.msra.mxu0 0.0
  %2262 = vmatprep.subr.mxu0 0.0
  %2263 = vmatpush1.msra.mxu0 0.0
  %2264 = vmatprep.subr.mxu0 0.0
  %2265 = vmatpush1.msra.mxu0 0.0
  %2266 = vmatprep.subr.mxu0 0.0
  %2267 = vmatpush1.msra.mxu0 0.0
  %2268 = vmatprep.subr.mxu0 0.0
  %2269 = vmatpush1.msra.mxu0 0.0
  %2270 = vmatprep.subr.mxu0 0.0
  %2271 = vmatpush1.msra.mxu0 0.0
  %2272 = vmatprep.subr.mxu0 0.0
  %2273 = vmatpush1.msra.mxu0 0.0
  %2274 = vmatprep.subr.mxu0 0.0
  %2275 = vmatpush1.msra.mxu0 0.0
  %2276 = vmatprep.subr.mxu0 0.0
  %2277 = vmatpush1.msra.mxu0 0.0
  %2278 = vmatprep.subr.mxu0 0.0
  %2279 = vmatpush1.msra.mxu0 0.0
  %2280 = vmatprep.subr.mxu0 0.0
  %2281 = vmatpush1.msra.mxu0 0.0
  %2282 = vmatprep.mubr.f32.mxu0 0.0
  %2283 = vmatmul.mubr.f32.gmra.mrb[0].mxu0 %v2216
  %v2284 = vpop.f32.mrb[0].mxu0
  %v2285 = vadd.f32 0.0, %v2284
  %v2286 = vpop.f32.mrb[0].mxu0
  %2287 = vdwg.mxu0
  %2289 = vrot.lane.b32.xlu0 %v1340, 120
  %v2290 = vpop.permute.xlu0 %2289
  %v2293 = vsel %vm27, %v2024, 0
  %2295 = vmatprep.subr.mxu0 0.0
  %2296 = vmatpush1.msra.mxu0 %v2290
  %2297 = vmatprep.subr.mxu0 0.0
  %2298 = vmatpush1.msra.mxu0 0.0
  %2299 = vmatprep.subr.mxu0 0.0
  %2300 = vmatpush1.msra.mxu0 0.0
  %2301 = vmatprep.subr.mxu0 0.0
  %2302 = vmatpush1.msra.mxu0 0.0
  %2303 = vmatprep.subr.mxu0 0.0
  %2304 = vmatpush1.msra.mxu0 0.0
  %2305 = vmatprep.subr.mxu0 0.0
  %2306 = vmatpush1.msra.mxu0 0.0
  %2307 = vmatprep.subr.mxu0 0.0
  %2308 = vmatpush1.msra.mxu0 0.0
  %2309 = vmatprep.subr.mxu0 0.0
  %2310 = vmatpush1.msra.mxu0 0.0
  %2311 = vmatprep.subr.mxu0 0.0
  %2312 = vmatpush1.msra.mxu0 0.0
  %2313 = vmatprep.subr.mxu0 0.0
  %2314 = vmatpush1.msra.mxu0 0.0
  %2315 = vmatprep.subr.mxu0 0.0
  %2316 = vmatpush1.msra.mxu0 0.0
  %2317 = vmatprep.subr.mxu0 0.0
  %2318 = vmatpush1.msra.mxu0 0.0
  %2319 = vmatprep.subr.mxu0 0.0
  %2320 = vmatpush1.msra.mxu0 0.0
  %2321 = vmatprep.subr.mxu0 0.0
  %2322 = vmatpush1.msra.mxu0 0.0
  %2323 = vmatprep.subr.mxu0 0.0
  %2324 = vmatpush1.msra.mxu0 0.0
  %2325 = vmatprep.subr.mxu0 0.0
  %2326 = vmatpush1.msra.mxu0 0.0
  %2327 = vmatprep.subr.mxu0 0.0
  %2328 = vmatpush1.msra.mxu0 0.0
  %2329 = vmatprep.subr.mxu0 0.0
  %2330 = vmatpush1.msra.mxu0 0.0
  %2331 = vmatprep.subr.mxu0 0.0
  %2332 = vmatpush1.msra.mxu0 0.0
  %2333 = vmatprep.subr.mxu0 0.0
  %2334 = vmatpush1.msra.mxu0 0.0
  %2335 = vmatprep.subr.mxu0 0.0
  %2336 = vmatpush1.msra.mxu0 0.0
  %2337 = vmatprep.subr.mxu0 0.0
  %2338 = vmatpush1.msra.mxu0 0.0
  %2339 = vmatprep.subr.mxu0 0.0
  %2340 = vmatpush1.msra.mxu0 0.0
  %2341 = vmatprep.subr.mxu0 0.0
  %2342 = vmatpush1.msra.mxu0 0.0
  %2343 = vmatprep.subr.mxu0 0.0
  %2344 = vmatpush1.msra.mxu0 0.0
  %2345 = vmatprep.subr.mxu0 0.0
  %2346 = vmatpush1.msra.mxu0 0.0
  %2347 = vmatprep.subr.mxu0 0.0
  %2348 = vmatpush1.msra.mxu0 0.0
  %2349 = vmatprep.subr.mxu0 0.0
  %2350 = vmatpush1.msra.mxu0 0.0
  %2351 = vmatprep.subr.mxu0 0.0
  %2352 = vmatpush1.msra.mxu0 0.0
  %2353 = vmatprep.subr.mxu0 0.0
  %2354 = vmatpush1.msra.mxu0 0.0
  %2355 = vmatprep.subr.mxu0 0.0
  %2356 = vmatpush1.msra.mxu0 0.0
  %2357 = vmatprep.subr.mxu0 0.0
  %2358 = vmatpush1.msra.mxu0 0.0
  %2359 = vmatprep.mubr.f32.mxu0 0.0
  %2360 = vmatmul.mubr.f32.gmra.mrb[0].mxu0 %v2293
  %v2361 = vpop.f32.mrb[0].mxu0
  %v2362 = vadd.f32 0.0, %v2361
  %v2363 = vpop.f32.mrb[0].mxu0
  %2364 = vdwg.mxu0
  %2366 = vrot.lane.b32.xlu0 %v1341, 120
  %v2367 = vpop.permute.xlu0 %2366
  %v2370 = vsel %vm27, %v2026, 0
  %2372 = vmatprep.subr.mxu0 0.0
  %2373 = vmatpush1.msra.mxu0 %v2367
  %2374 = vmatprep.subr.mxu0 0.0
  %2375 = vmatpush1.msra.mxu0 0.0
  %2376 = vmatprep.subr.mxu0 0.0
  %2377 = vmatpush1.msra.mxu0 0.0
  %2378 = vmatprep.subr.mxu0 0.0
  %2379 = vmatpush1.msra.mxu0 0.0
  %2380 = vmatprep.subr.mxu0 0.0
  %2381 = vmatpush1.msra.mxu0 0.0
  %2382 = vmatprep.subr.mxu0 0.0
  %2383 = vmatpush1.msra.mxu0 0.0
  %2384 = vmatprep.subr.mxu0 0.0
  %2385 = vmatpush1.msra.mxu0 0.0
  %2386 = vmatprep.subr.mxu0 0.0
  %2387 = vmatpush1.msra.mxu0 0.0
  %2388 = vmatprep.subr.mxu0 0.0
  %2389 = vmatpush1.msra.mxu0 0.0
  %2390 = vmatprep.subr.mxu0 0.0
  %2391 = vmatpush1.msra.mxu0 0.0
  %2392 = vmatprep.subr.mxu0 0.0
  %2393 = vmatpush1.msra.mxu0 0.0
  %2394 = vmatprep.subr.mxu0 0.0
  %2395 = vmatpush1.msra.mxu0 0.0
  %2396 = vmatprep.subr.mxu0 0.0
  %2397 = vmatpush1.msra.mxu0 0.0
  %2398 = vmatprep.subr.mxu0 0.0
  %2399 = vmatpush1.msra.mxu0 0.0
  %2400 = vmatprep.subr.mxu0 0.0
  %2401 = vmatpush1.msra.mxu0 0.0
  %2402 = vmatprep.subr.mxu0 0.0
  %2403 = vmatpush1.msra.mxu0 0.0
  %2404 = vmatprep.subr.mxu0 0.0
  %2405 = vmatpush1.msra.mxu0 0.0
  %2406 = vmatprep.subr.mxu0 0.0
  %2407 = vmatpush1.msra.mxu0 0.0
  %2408 = vmatprep.subr.mxu0 0.0
  %2409 = vmatpush1.msra.mxu0 0.0
  %2410 = vmatprep.subr.mxu0 0.0
  %2411 = vmatpush1.msra.mxu0 0.0
  %2412 = vmatprep.subr.mxu0 0.0
  %2413 = vmatpush1.msra.mxu0 0.0
  %2414 = vmatprep.subr.mxu0 0.0
  %2415 = vmatpush1.msra.mxu0 0.0
  %2416 = vmatprep.subr.mxu0 0.0
  %2417 = vmatpush1.msra.mxu0 0.0
  %2418 = vmatprep.subr.mxu0 0.0
  %2419 = vmatpush1.msra.mxu0 0.0
  %2420 = vmatprep.subr.mxu0 0.0
  %2421 = vmatpush1.msra.mxu0 0.0
  %2422 = vmatprep.subr.mxu0 0.0
  %2423 = vmatpush1.msra.mxu0 0.0
  %2424 = vmatprep.subr.mxu0 0.0
  %2425 = vmatpush1.msra.mxu0 0.0
  %2426 = vmatprep.subr.mxu0 0.0
  %2427 = vmatpush1.msra.mxu0 0.0
  %2428 = vmatprep.subr.mxu0 0.0
  %2429 = vmatpush1.msra.mxu0 0.0
  %2430 = vmatprep.subr.mxu0 0.0
  %2431 = vmatpush1.msra.mxu0 0.0
  %2432 = vmatprep.subr.mxu0 0.0
  %2433 = vmatpush1.msra.mxu0 0.0
  %2434 = vmatprep.subr.mxu0 0.0
  %2435 = vmatpush1.msra.mxu0 0.0
  %2436 = vmatprep.mubr.f32.mxu0 0.0
  %2437 = vmatmul.mubr.f32.gmra.mrb[0].mxu0 %v2370
  %v2438 = vpop.f32.mrb[0].mxu0
  %v2439 = vadd.f32 0.0, %v2438
  %v2440 = vpop.f32.mrb[0].mxu0
  %2441 = vdwg.mxu0
  %2443 = vrot.lane.b32.xlu0 %v1342, 120
  %v2444 = vpop.permute.xlu0 %2443
  %v2447 = vsel %vm27, %v2028, 0
  %2449 = vmatprep.subr.mxu0 0.0
  %2450 = vmatpush1.msra.mxu0 %v2444
  %2451 = vmatprep.subr.mxu0 0.0
  %2452 = vmatpush1.msra.mxu0 0.0
  %2453 = vmatprep.subr.mxu0 0.0
  %2454 = vmatpush1.msra.mxu0 0.0
  %2455 = vmatprep.subr.mxu0 0.0
  %2456 = vmatpush1.msra.mxu0 0.0
  %2457 = vmatprep.subr.mxu0 0.0
  %2458 = vmatpush1.msra.mxu0 0.0
  %2459 = vmatprep.subr.mxu0 0.0
  %2460 = vmatpush1.msra.mxu0 0.0
  %2461 = vmatprep.subr.mxu0 0.0
  %2462 = vmatpush1.msra.mxu0 0.0
  %2463 = vmatprep.subr.mxu0 0.0
  %2464 = vmatpush1.msra.mxu0 0.0
  %2465 = vmatprep.subr.mxu0 0.0
  %2466 = vmatpush1.msra.mxu0 0.0
  %2467 = vmatprep.subr.mxu0 0.0
  %2468 = vmatpush1.msra.mxu0 0.0
  %2469 = vmatprep.subr.mxu0 0.0
  %2470 = vmatpush1.msra.mxu0 0.0
  %2471 = vmatprep.subr.mxu0 0.0
  %2472 = vmatpush1.msra.mxu0 0.0
  %2473 = vmatprep.subr.mxu0 0.0
  %2474 = vmatpush1.msra.mxu0 0.0
  %2475 = vmatprep.subr.mxu0 0.0
  %2476 = vmatpush1.msra.mxu0 0.0
  %2477 = vmatprep.subr.mxu0 0.0
  %2478 = vmatpush1.msra.mxu0 0.0
  %2479 = vmatprep.subr.mxu0 0.0
  %2480 = vmatpush1.msra.mxu0 0.0
  %2481 = vmatprep.subr.mxu0 0.0
  %2482 = vmatpush1.msra.mxu0 0.0
  %2483 = vmatprep.subr.mxu0 0.0
  %2484 = vmatpush1.msra.mxu0 0.0
  %2485 = vmatprep.subr.mxu0 0.0
  %2486 = vmatpush1.msra.mxu0 0.0
  %2487 = vmatprep.subr.mxu0 0.0
  %2488 = vmatpush1.msra.mxu0 0.0
  %2489 = vmatprep.subr.mxu0 0.0
  %2490 = vmatpush1.msra.mxu0 0.0
  %2491 = vmatprep.subr.mxu0 0.0
  %2492 = vmatpush1.msra.mxu0 0.0
  %2493 = vmatprep.subr.mxu0 0.0
  %2494 = vmatpush1.msra.mxu0 0.0
  %2495 = vmatprep.subr.mxu0 0.0
  %2496 = vmatpush1.msra.mxu0 0.0
  %2497 = vmatprep.subr.mxu0 0.0
  %2498 = vmatpush1.msra.mxu0 0.0
  %2499 = vmatprep.subr.mxu0 0.0
  %2500 = vmatpush1.msra.mxu0 0.0
  %2501 = vmatprep.subr.mxu0 0.0
  %2502 = vmatpush1.msra.mxu0 0.0
  %2503 = vmatprep.subr.mxu0 0.0
  %2504 = vmatpush1.msra.mxu0 0.0
  %2505 = vmatprep.subr.mxu0 0.0
  %2506 = vmatpush1.msra.mxu0 0.0
  %2507 = vmatprep.subr.mxu0 0.0
  %2508 = vmatpush1.msra.mxu0 0.0
  %2509 = vmatprep.subr.mxu0 0.0
  %2510 = vmatpush1.msra.mxu0 0.0
  %2511 = vmatprep.subr.mxu0 0.0
  %2512 = vmatpush1.msra.mxu0 0.0
  %2513 = vmatprep.mubr.f32.mxu0 0.0
  %2514 = vmatmul.mubr.f32.gmra.mrb[0].mxu0 %v2447
  %v2515 = vpop.f32.mrb[0].mxu0
  %v2516 = vadd.f32 0.0, %v2515
  %v2517 = vpop.f32.mrb[0].mxu0
  %2518 = vdwg.mxu0
  %2520 = vrot.lane.b32.xlu0 %v1343, 120
  %v2521 = vpop.permute.xlu0 %2520
  %v2524 = vsel %vm27, %v2030, 0
  %2526 = vmatprep.subr.mxu0 0.0
  %2527 = vmatpush1.msra.mxu0 %v2521
  %2528 = vmatprep.subr.mxu0 0.0
  %2529 = vmatpush1.msra.mxu0 0.0
  %2530 = vmatprep.subr.mxu0 0.0
  %2531 = vmatpush1.msra.mxu0 0.0
  %2532 = vmatprep.subr.mxu0 0.0
  %2533 = vmatpush1.msra.mxu0 0.0
  %2534 = vmatprep.subr.mxu0 0.0
  %2535 = vmatpush1.msra.mxu0 0.0
  %2536 = vmatprep.subr.mxu0 0.0
  %2537 = vmatpush1.msra.mxu0 0.0
  %2538 = vmatprep.subr.mxu0 0.0
  %2539 = vmatpush1.msra.mxu0 0.0
  %2540 = vmatprep.subr.mxu0 0.0
  %2541 = vmatpush1.msra.mxu0 0.0
  %2542 = vmatprep.subr.mxu0 0.0
  %2543 = vmatpush1.msra.mxu0 0.0
  %2544 = vmatprep.subr.mxu0 0.0
  %2545 = vmatpush1.msra.mxu0 0.0
  %2546 = vmatprep.subr.mxu0 0.0
  %2547 = vmatpush1.msra.mxu0 0.0
  %2548 = vmatprep.subr.mxu0 0.0
  %2549 = vmatpush1.msra.mxu0 0.0
  %2550 = vmatprep.subr.mxu0 0.0
  %2551 = vmatpush1.msra.mxu0 0.0
  %2552 = vmatprep.subr.mxu0 0.0
  %2553 = vmatpush1.msra.mxu0 0.0
  %2554 = vmatprep.subr.mxu0 0.0
  %2555 = vmatpush1.msra.mxu0 0.0
  %2556 = vmatprep.subr.mxu0 0.0
  %2557 = vmatpush1.msra.mxu0 0.0
  %2558 = vmatprep.subr.mxu0 0.0
  %2559 = vmatpush1.msra.mxu0 0.0
  %2560 = vmatprep.subr.mxu0 0.0
  %2561 = vmatpush1.msra.mxu0 0.0
  %2562 = vmatprep.subr.mxu0 0.0
  %2563 = vmatpush1.msra.mxu0 0.0
  %2564 = vmatprep.subr.mxu0 0.0
  %2565 = vmatpush1.msra.mxu0 0.0
  %2566 = vmatprep.subr.mxu0 0.0
  %2567 = vmatpush1.msra.mxu0 0.0
  %2568 = vmatprep.subr.mxu0 0.0
  %2569 = vmatpush1.msra.mxu0 0.0
  %2570 = vmatprep.subr.mxu0 0.0
  %2571 = vmatpush1.msra.mxu0 0.0
  %2572 = vmatprep.subr.mxu0 0.0
  %2573 = vmatpush1.msra.mxu0 0.0
  %2574 = vmatprep.subr.mxu0 0.0
  %2575 = vmatpush1.msra.mxu0 0.0
  %2576 = vmatprep.subr.mxu0 0.0
  %2577 = vmatpush1.msra.mxu0 0.0
  %2578 = vmatprep.subr.mxu0 0.0
  %2579 = vmatpush1.msra.mxu0 0.0
  %2580 = vmatprep.subr.mxu0 0.0
  %2581 = vmatpush1.msra.mxu0 0.0
  %2582 = vmatprep.subr.mxu0 0.0
  %2583 = vmatpush1.msra.mxu0 0.0
  %2584 = vmatprep.subr.mxu0 0.0
  %2585 = vmatpush1.msra.mxu0 0.0
  %2586 = vmatprep.subr.mxu0 0.0
  %2587 = vmatpush1.msra.mxu0 0.0
  %2588 = vmatprep.subr.mxu0 0.0
  %2589 = vmatpush1.msra.mxu0 0.0
  %2590 = vmatprep.mubr.f32.mxu0 0.0
  %2591 = vmatmul.mubr.f32.gmra.mrb[0].mxu0 %v2524
  %v2592 = vpop.f32.mrb[0].mxu0
  %v2593 = vadd.f32 0.0, %v2592
  %v2594 = vpop.f32.mrb[0].mxu0
  %2595 = vdwg.mxu0
  %2597 = vrot.lane.b32.xlu0 %v1344, 120
  %v2598 = vpop.permute.xlu0 %2597
  %v2601 = vsel %vm27, %v2032, 0
  %2603 = vmatprep.subr.mxu0 0.0
  %2604 = vmatpush1.msra.mxu0 %v2598
  %2605 = vmatprep.subr.mxu0 0.0
  %2606 = vmatpush1.msra.mxu0 0.0
  %2607 = vmatprep.subr.mxu0 0.0
  %2608 = vmatpush1.msra.mxu0 0.0
  %2609 = vmatprep.subr.mxu0 0.0
  %2610 = vmatpush1.msra.mxu0 0.0
  %2611 = vmatprep.subr.mxu0 0.0
  %2612 = vmatpush1.msra.mxu0 0.0
  %2613 = vmatprep.subr.mxu0 0.0
  %2614 = vmatpush1.msra.mxu0 0.0
  %2615 = vmatprep.subr.mxu0 0.0
  %2616 = vmatpush1.msra.mxu0 0.0
  %2617 = vmatprep.subr.mxu0 0.0
  %2618 = vmatpush1.msra.mxu0 0.0
  %2619 = vmatprep.subr.mxu0 0.0
  %2620 = vmatpush1.msra.mxu0 0.0
  %2621 = vmatprep.subr.mxu0 0.0
  %2622 = vmatpush1.msra.mxu0 0.0
  %2623 = vmatprep.subr.mxu0 0.0
  %2624 = vmatpush1.msra.mxu0 0.0
  %2625 = vmatprep.subr.mxu0 0.0
  %2626 = vmatpush1.msra.mxu0 0.0
  %2627 = vmatprep.subr.mxu0 0.0
  %2628 = vmatpush1.msra.mxu0 0.0
  %2629 = vmatprep.subr.mxu0 0.0
  %2630 = vmatpush1.msra.mxu0 0.0
  %2631 = vmatprep.subr.mxu0 0.0
  %2632 = vmatpush1.msra.mxu0 0.0
  %2633 = vmatprep.subr.mxu0 0.0
  %2634 = vmatpush1.msra.mxu0 0.0
  %2635 = vmatprep.subr.mxu0 0.0
  %2636 = vmatpush1.msra.mxu0 0.0
  %2637 = vmatprep.subr.mxu0 0.0
  %2638 = vmatpush1.msra.mxu0 0.0
  %2639 = vmatprep.subr.mxu0 0.0
  %2640 = vmatpush1.msra.mxu0 0.0
  %2641 = vmatprep.subr.mxu0 0.0
  %2642 = vmatpush1.msra.mxu0 0.0
  %2643 = vmatprep.subr.mxu0 0.0
  %2644 = vmatpush1.msra.mxu0 0.0
  %2645 = vmatprep.subr.mxu0 0.0
  %2646 = vmatpush1.msra.mxu0 0.0
  %2647 = vmatprep.subr.mxu0 0.0
  %2648 = vmatpush1.msra.mxu0 0.0
  %2649 = vmatprep.subr.mxu0 0.0
  %2650 = vmatpush1.msra.mxu0 0.0
  %2651 = vmatprep.subr.mxu0 0.0
  %2652 = vmatpush1.msra.mxu0 0.0
  %2653 = vmatprep.subr.mxu0 0.0
  %2654 = vmatpush1.msra.mxu0 0.0
  %2655 = vmatprep.subr.mxu0 0.0
  %2656 = vmatpush1.msra.mxu0 0.0
  %2657 = vmatprep.subr.mxu0 0.0
  %2658 = vmatpush1.msra.mxu0 0.0
  %2659 = vmatprep.subr.mxu0 0.0
  %2660 = vmatpush1.msra.mxu0 0.0
  %2661 = vmatprep.subr.mxu0 0.0
  %2662 = vmatpush1.msra.mxu0 0.0
  %2663 = vmatprep.subr.mxu0 0.0
  %2664 = vmatpush1.msra.mxu0 0.0
  %2665 = vmatprep.subr.mxu0 0.0
  %2666 = vmatpush1.msra.mxu0 0.0
  %2667 = vmatprep.mubr.f32.mxu0 0.0
  %2668 = vmatmul.mubr.f32.gmra.mrb[0].mxu0 %v2601
  %v2669 = vpop.f32.mrb[0].mxu0
  %v2670 = vadd.f32 0.0, %v2669
  %v2671 = vpop.f32.mrb[0].mxu0
  %2672 = vdwg.mxu0
  %v2673 = vrcp.pop %v2035
  %v2674 = vrcp.pop %v2038
  %v2675 = vrcp.pop %v2041
  %v2676 = vrcp.pop %v2044
  %v2677 = vrcp.pop %v2047
  %v2678 = vrcp.pop %v2050
  %v2679 = vrcp.pop %v2053
  %v2680 = vrcp.pop %v2056
  %v2681 = vmul.f32 %v2131, %v2673
  %v2682 = vmul.f32 %v2208, %v2674
  %v2683 = vmul.f32 %v2285, %v2675
  %v2684 = vmul.f32 %v2362, %v2676
  %v2685 = vmul.f32 %v2439, %v2677
  %v2686 = vmul.f32 %v2516, %v2678
  %v2687 = vmul.f32 %v2593, %v2679
  %v2688 = vmul.f32 %v2670, %v2680
  %2697 = vrot.lane.b32.xlu0 %v2681, 8
  %v2698 = vpop.permute.xlu0 %2697
  %2699 = vrot.lane.b32.xlu0 %v2682, 8
  %v2700 = vpop.permute.xlu0 %2699
  %2701 = vrot.lane.b32.xlu0 %v2683, 8
  %v2702 = vpop.permute.xlu0 %2701
  %2703 = vrot.lane.b32.xlu0 %v2684, 8
  %v2704 = vpop.permute.xlu0 %2703
  %2705 = vrot.lane.b32.xlu0 %v2685, 8
  %v2706 = vpop.permute.xlu0 %2705
  %2707 = vrot.lane.b32.xlu0 %v2686, 8
  %v2708 = vpop.permute.xlu0 %2707
  %2709 = vrot.lane.b32.xlu0 %v2687, 8
  %v2710 = vpop.permute.xlu0 %2709
  %2711 = vrot.lane.b32.xlu0 %v2688, 8
  %v2712 = vpop.permute.xlu0 %2711
  %vm2721 = vcmask 130112
  %2722 = vst.msk [vmem:[%s1] sm:$0xff] %vm2721, %v2698
  %2723 = vst.msk [vmem:[%s1 + $0x8] sm:$0xff] %vm2721, %v2700
  %2724 = vst.msk [vmem:[%s1 + $0x10] sm:$0xff] %vm2721, %v2702
  %2725 = vst.msk [vmem:[%s1 + $0x18] sm:$0xff] %vm2721, %v2704
  %2726 = vst.msk [vmem:[%s1 + $0x20] sm:$0xff] %vm2721, %v2706
  %2727 = vst.msk [vmem:[%s1 + $0x28] sm:$0xff] %vm2721, %v2708
  %2728 = vst.msk [vmem:[%s1 + $0x30] sm:$0xff] %vm2721, %v2710
  %2729 = vst.msk [vmem:[%s1 + $0x38] sm:$0xff] %vm2721, %v2712
  %v2730 = vld [vmem:[%s0] sm:$0xff]
  %v2731 = vld [vmem:[%s0 + $0x10] sm:$0xff]
  %v2732 = vld [vmem:[%s0 + $0x20] sm:$0xff]
  %v2733 = vld [vmem:[%s0 + $0x30] sm:$0xff]
  %v2734 = vld [vmem:[%s0 + $0x40] sm:$0xff]
  %v2735 = vld [vmem:[%s0 + $0x50] sm:$0xff]
  %v2736 = vld [vmem:[%s0 + $0x60] sm:$0xff]
  %v2737 = vld [vmem:[%s0 + $0x70] sm:$0xff]
  %v2738 = vld [vmem:[%s0 + $0x8] sm:$0xff]
  %v2739 = vld [vmem:[%s0 + $0x18] sm:$0xff]
  %v2740 = vld [vmem:[%s0 + $0x28] sm:$0xff]
  %v2741 = vld [vmem:[%s0 + $0x38] sm:$0xff]
  %v2742 = vld [vmem:[%s0 + $0x48] sm:$0xff]
  %v2743 = vld [vmem:[%s0 + $0x58] sm:$0xff]
  %v2744 = vld [vmem:[%s0 + $0x68] sm:$0xff]
  %v2745 = vld [vmem:[%s0 + $0x78] sm:$0xff]
  %2747 = vrot.lane.b32.xlu0 %v2730, 112
  %v2748 = vpop.permute.xlu0 %2747
  %2749 = vrot.lane.b32.xlu0 %v2730, 48
  %v2750 = vpop.permute.xlu0 %2749
  %v2751 = vsel %vm27, %v2748, 0
  %v2753 = vsel %vm27, %v2750, 0
  %2755 = vmatprep.subr.mxu0 0.0
  %2756 = vmatpush1.xpose.msra.mxu0 %v2753
  %2757 = vmatprep.subr.mxu0 0.0
  %2758 = vmatpush1.xpose.msra.mxu0 0.0
  %2759 = vmatprep.subr.mxu0 0.0
  %2760 = vmatpush1.xpose.msra.mxu0 0.0
  %2761 = vmatprep.subr.mxu0 0.0
  %2762 = vmatpush1.xpose.msra.mxu0 0.0
  %2763 = vmatprep.subr.mxu0 0.0
  %2764 = vmatpush1.xpose.msra.mxu0 0.0
  %2765 = vmatprep.subr.mxu0 0.0
  %2766 = vmatpush1.xpose.msra.mxu0 0.0
  %2767 = vmatprep.subr.mxu0 0.0
  %2768 = vmatpush1.xpose.msra.mxu0 0.0
  %2769 = vmatprep.subr.mxu0 0.0
  %2770 = vmatpush1.xpose.msra.mxu0 0.0
  %2771 = vmatprep.subr.mxu0 0.0
  %2772 = vmatpush1.xpose.msra.mxu0 0.0
  %2773 = vmatprep.subr.mxu0 0.0
  %2774 = vmatpush1.xpose.msra.mxu0 0.0
  %2775 = vmatprep.subr.mxu0 0.0
  %2776 = vmatpush1.xpose.msra.mxu0 0.0
  %2777 = vmatprep.subr.mxu0 0.0
  %2778 = vmatpush1.xpose.msra.mxu0 0.0
  %2779 = vmatprep.subr.mxu0 0.0
  %2780 = vmatpush1.xpose.msra.mxu0 0.0
  %2781 = vmatprep.subr.mxu0 0.0
  %2782 = vmatpush1.xpose.msra.mxu0 0.0
  %2783 = vmatprep.subr.mxu0 0.0
  %2784 = vmatpush1.xpose.msra.mxu0 0.0
  %2785 = vmatprep.subr.mxu0 0.0
  %2786 = vmatpush1.xpose.msra.mxu0 0.0
  %2787 = vmatprep.subr.mxu0 0.0
  %2788 = vmatpush1.xpose.msra.mxu0 0.0
  %2789 = vmatprep.subr.mxu0 0.0
  %2790 = vmatpush1.xpose.msra.mxu0 0.0
  %2791 = vmatprep.subr.mxu0 0.0
  %2792 = vmatpush1.xpose.msra.mxu0 0.0
  %2793 = vmatprep.subr.mxu0 0.0
  %2794 = vmatpush1.xpose.msra.mxu0 0.0
  %2795 = vmatprep.subr.mxu0 0.0
  %2796 = vmatpush1.xpose.msra.mxu0 0.0
  %2797 = vmatprep.subr.mxu0 0.0
  %2798 = vmatpush1.xpose.msra.mxu0 0.0
  %2799 = vmatprep.subr.mxu0 0.0
  %2800 = vmatpush1.xpose.msra.mxu0 0.0
  %2801 = vmatprep.subr.mxu0 0.0
  %2802 = vmatpush1.xpose.msra.mxu0 0.0
  %2803 = vmatprep.subr.mxu0 0.0
  %2804 = vmatpush1.xpose.msra.mxu0 0.0
  %2805 = vmatprep.subr.mxu0 0.0
  %2806 = vmatpush1.xpose.msra.mxu0 0.0
  %2807 = vmatprep.subr.mxu0 0.0
  %2808 = vmatpush1.xpose.msra.mxu0 0.0
  %2809 = vmatprep.subr.mxu0 0.0
  %2810 = vmatpush1.xpose.msra.mxu0 0.0
  %2811 = vmatprep.subr.mxu0 0.0
  %2812 = vmatpush1.xpose.msra.mxu0 0.0
  %2813 = vmatprep.subr.mxu0 0.0
  %2814 = vmatpush1.xpose.msra.mxu0 0.0
  %2815 = vmatprep.subr.mxu0 0.0
  %2816 = vmatpush1.xpose.msra.mxu0 0.0
  %2817 = vmatprep.subr.mxu0 0.0
  %2818 = vmatpush1.xpose.msra.mxu0 0.0
  %2819 = vmatprep.mubr.f32.mxu0 0.0
  %2820 = vmatmul.mubr.f32.gmra.mrb[0].mxu0 %v2751
  %v2821 = vpop.f32.mrb[0].mxu0
  %v2822 = vadd.f32 0.0, %v2821
  %v2823 = vpop.f32.mrb[0].mxu0
  %2824 = vdwg.mxu0
  %2826 = vrot.lane.b32.xlu0 %v2731, 112
  %v2827 = vpop.permute.xlu0 %2826
  %2828 = vrot.lane.b32.xlu0 %v2731, 48
  %v2829 = vpop.permute.xlu0 %2828
  %v2830 = vsel %vm27, %v2827, 0
  %v2832 = vsel %vm27, %v2829, 0
  %2834 = vmatprep.subr.mxu0 0.0
  %2835 = vmatpush1.xpose.msra.mxu0 %v2832
  %2836 = vmatprep.subr.mxu0 0.0
  %2837 = vmatpush1.xpose.msra.mxu0 0.0
  %2838 = vmatprep.subr.mxu0 0.0
  %2839 = vmatpush1.xpose.msra.mxu0 0.0
  %2840 = vmatprep.subr.mxu0 0.0
  %2841 = vmatpush1.xpose.msra.mxu0 0.0
  %2842 = vmatprep.subr.mxu0 0.0
  %2843 = vmatpush1.xpose.msra.mxu0 0.0
  %2844 = vmatprep.subr.mxu0 0.0
  %2845 = vmatpush1.xpose.msra.mxu0 0.0
  %2846 = vmatprep.subr.mxu0 0.0
  %2847 = vmatpush1.xpose.msra.mxu0 0.0
  %2848 = vmatprep.subr.mxu0 0.0
  %2849 = vmatpush1.xpose.msra.mxu0 0.0
  %2850 = vmatprep.subr.mxu0 0.0
  %2851 = vmatpush1.xpose.msra.mxu0 0.0
  %2852 = vmatprep.subr.mxu0 0.0
  %2853 = vmatpush1.xpose.msra.mxu0 0.0
  %2854 = vmatprep.subr.mxu0 0.0
  %2855 = vmatpush1.xpose.msra.mxu0 0.0
  %2856 = vmatprep.subr.mxu0 0.0
  %2857 = vmatpush1.xpose.msra.mxu0 0.0
  %2858 = vmatprep.subr.mxu0 0.0
  %2859 = vmatpush1.xpose.msra.mxu0 0.0
  %2860 = vmatprep.subr.mxu0 0.0
  %2861 = vmatpush1.xpose.msra.mxu0 0.0
  %2862 = vmatprep.subr.mxu0 0.0
  %2863 = vmatpush1.xpose.msra.mxu0 0.0
  %2864 = vmatprep.subr.mxu0 0.0
  %2865 = vmatpush1.xpose.msra.mxu0 0.0
  %2866 = vmatprep.subr.mxu0 0.0
  %2867 = vmatpush1.xpose.msra.mxu0 0.0
  %2868 = vmatprep.subr.mxu0 0.0
  %2869 = vmatpush1.xpose.msra.mxu0 0.0
  %2870 = vmatprep.subr.mxu0 0.0
  %2871 = vmatpush1.xpose.msra.mxu0 0.0
  %2872 = vmatprep.subr.mxu0 0.0
  %2873 = vmatpush1.xpose.msra.mxu0 0.0
  %2874 = vmatprep.subr.mxu0 0.0
  %2875 = vmatpush1.xpose.msra.mxu0 0.0
  %2876 = vmatprep.subr.mxu0 0.0
  %2877 = vmatpush1.xpose.msra.mxu0 0.0
  %2878 = vmatprep.subr.mxu0 0.0
  %2879 = vmatpush1.xpose.msra.mxu0 0.0
  %2880 = vmatprep.subr.mxu0 0.0
  %2881 = vmatpush1.xpose.msra.mxu0 0.0
  %2882 = vmatprep.subr.mxu0 0.0
  %2883 = vmatpush1.xpose.msra.mxu0 0.0
  %2884 = vmatprep.subr.mxu0 0.0
  %2885 = vmatpush1.xpose.msra.mxu0 0.0
  %2886 = vmatprep.subr.mxu0 0.0
  %2887 = vmatpush1.xpose.msra.mxu0 0.0
  %2888 = vmatprep.subr.mxu0 0.0
  %2889 = vmatpush1.xpose.msra.mxu0 0.0
  %2890 = vmatprep.subr.mxu0 0.0
  %2891 = vmatpush1.xpose.msra.mxu0 0.0
  %2892 = vmatprep.subr.mxu0 0.0
  %2893 = vmatpush1.xpose.msra.mxu0 0.0
  %2894 = vmatprep.subr.mxu0 0.0
  %2895 = vmatpush1.xpose.msra.mxu0 0.0
  %2896 = vmatprep.subr.mxu0 0.0
  %2897 = vmatpush1.xpose.msra.mxu0 0.0
  %2898 = vmatprep.mubr.f32.mxu0 0.0
  %2899 = vmatmul.mubr.f32.gmra.mrb[0].mxu0 %v2830
  %v2900 = vpop.f32.mrb[0].mxu0
  %v2901 = vadd.f32 0.0, %v2900
  %v2902 = vpop.f32.mrb[0].mxu0
  %2903 = vdwg.mxu0
  %2905 = vrot.lane.b32.xlu0 %v2732, 112
  %v2906 = vpop.permute.xlu0 %2905
  %2907 = vrot.lane.b32.xlu0 %v2732, 48
  %v2908 = vpop.permute.xlu0 %2907
  %v2909 = vsel %vm27, %v2906, 0
  %v2911 = vsel %vm27, %v2908, 0
  %2913 = vmatprep.subr.mxu0 0.0
  %2914 = vmatpush1.xpose.msra.mxu0 %v2911
  %2915 = vmatprep.subr.mxu0 0.0
  %2916 = vmatpush1.xpose.msra.mxu0 0.0
  %2917 = vmatprep.subr.mxu0 0.0
  %2918 = vmatpush1.xpose.msra.mxu0 0.0
  %2919 = vmatprep.subr.mxu0 0.0
  %2920 = vmatpush1.xpose.msra.mxu0 0.0
  %2921 = vmatprep.subr.mxu0 0.0
  %2922 = vmatpush1.xpose.msra.mxu0 0.0
  %2923 = vmatprep.subr.mxu0 0.0
  %2924 = vmatpush1.xpose.msra.mxu0 0.0
  %2925 = vmatprep.subr.mxu0 0.0
  %2926 = vmatpush1.xpose.msra.mxu0 0.0
  %2927 = vmatprep.subr.mxu0 0.0
  %2928 = vmatpush1.xpose.msra.mxu0 0.0
  %2929 = vmatprep.subr.mxu0 0.0
  %2930 = vmatpush1.xpose.msra.mxu0 0.0
  %2931 = vmatprep.subr.mxu0 0.0
  %2932 = vmatpush1.xpose.msra.mxu0 0.0
  %2933 = vmatprep.subr.mxu0 0.0
  %2934 = vmatpush1.xpose.msra.mxu0 0.0
  %2935 = vmatprep.subr.mxu0 0.0
  %2936 = vmatpush1.xpose.msra.mxu0 0.0
  %2937 = vmatprep.subr.mxu0 0.0
  %2938 = vmatpush1.xpose.msra.mxu0 0.0
  %2939 = vmatprep.subr.mxu0 0.0
  %2940 = vmatpush1.xpose.msra.mxu0 0.0
  %2941 = vmatprep.subr.mxu0 0.0
  %2942 = vmatpush1.xpose.msra.mxu0 0.0
  %2943 = vmatprep.subr.mxu0 0.0
  %2944 = vmatpush1.xpose.msra.mxu0 0.0
  %2945 = vmatprep.subr.mxu0 0.0
  %2946 = vmatpush1.xpose.msra.mxu0 0.0
  %2947 = vmatprep.subr.mxu0 0.0
  %2948 = vmatpush1.xpose.msra.mxu0 0.0
  %2949 = vmatprep.subr.mxu0 0.0
  %2950 = vmatpush1.xpose.msra.mxu0 0.0
  %2951 = vmatprep.subr.mxu0 0.0
  %2952 = vmatpush1.xpose.msra.mxu0 0.0
  %2953 = vmatprep.subr.mxu0 0.0
  %2954 = vmatpush1.xpose.msra.mxu0 0.0
  %2955 = vmatprep.subr.mxu0 0.0
  %2956 = vmatpush1.xpose.msra.mxu0 0.0
  %2957 = vmatprep.subr.mxu0 0.0
  %2958 = vmatpush1.xpose.msra.mxu0 0.0
  %2959 = vmatprep.subr.mxu0 0.0
  %2960 = vmatpush1.xpose.msra.mxu0 0.0
  %2961 = vmatprep.subr.mxu0 0.0
  %2962 = vmatpush1.xpose.msra.mxu0 0.0
  %2963 = vmatprep.subr.mxu0 0.0
  %2964 = vmatpush1.xpose.msra.mxu0 0.0
  %2965 = vmatprep.subr.mxu0 0.0
  %2966 = vmatpush1.xpose.msra.mxu0 0.0
  %2967 = vmatprep.subr.mxu0 0.0
  %2968 = vmatpush1.xpose.msra.mxu0 0.0
  %2969 = vmatprep.subr.mxu0 0.0
  %2970 = vmatpush1.xpose.msra.mxu0 0.0
  %2971 = vmatprep.subr.mxu0 0.0
  %2972 = vmatpush1.xpose.msra.mxu0 0.0
  %2973 = vmatprep.subr.mxu0 0.0
  %2974 = vmatpush1.xpose.msra.mxu0 0.0
  %2975 = vmatprep.subr.mxu0 0.0
  %2976 = vmatpush1.xpose.msra.mxu0 0.0
  %2977 = vmatprep.mubr.f32.mxu0 0.0
  %2978 = vmatmul.mubr.f32.gmra.mrb[0].mxu0 %v2909
  %v2979 = vpop.f32.mrb[0].mxu0
  %v2980 = vadd.f32 0.0, %v2979
  %v2981 = vpop.f32.mrb[0].mxu0
  %2982 = vdwg.mxu0
  %2984 = vrot.lane.b32.xlu0 %v2733, 112
  %v2985 = vpop.permute.xlu0 %2984
  %2986 = vrot.lane.b32.xlu0 %v2733, 48
  %v2987 = vpop.permute.xlu0 %2986
  %v2988 = vsel %vm27, %v2985, 0
  %v2990 = vsel %vm27, %v2987, 0
  %2992 = vmatprep.subr.mxu0 0.0
  %2993 = vmatpush1.xpose.msra.mxu0 %v2990
  %2994 = vmatprep.subr.mxu0 0.0
  %2995 = vmatpush1.xpose.msra.mxu0 0.0
  %2996 = vmatprep.subr.mxu0 0.0
  %2997 = vmatpush1.xpose.msra.mxu0 0.0
  %2998 = vmatprep.subr.mxu0 0.0
  %2999 = vmatpush1.xpose.msra.mxu0 0.0
  %3000 = vmatprep.subr.mxu0 0.0
  %3001 = vmatpush1.xpose.msra.mxu0 0.0
  %3002 = vmatprep.subr.mxu0 0.0
  %3003 = vmatpush1.xpose.msra.mxu0 0.0
  %3004 = vmatprep.subr.mxu0 0.0
  %3005 = vmatpush1.xpose.msra.mxu0 0.0
  %3006 = vmatprep.subr.mxu0 0.0
  %3007 = vmatpush1.xpose.msra.mxu0 0.0
  %3008 = vmatprep.subr.mxu0 0.0
  %3009 = vmatpush1.xpose.msra.mxu0 0.0
  %3010 = vmatprep.subr.mxu0 0.0
  %3011 = vmatpush1.xpose.msra.mxu0 0.0
  %3012 = vmatprep.subr.mxu0 0.0
  %3013 = vmatpush1.xpose.msra.mxu0 0.0
  %3014 = vmatprep.subr.mxu0 0.0
  %3015 = vmatpush1.xpose.msra.mxu0 0.0
  %3016 = vmatprep.subr.mxu0 0.0
  %3017 = vmatpush1.xpose.msra.mxu0 0.0
  %3018 = vmatprep.subr.mxu0 0.0
  %3019 = vmatpush1.xpose.msra.mxu0 0.0
  %3020 = vmatprep.subr.mxu0 0.0
  %3021 = vmatpush1.xpose.msra.mxu0 0.0
  %3022 = vmatprep.subr.mxu0 0.0
  %3023 = vmatpush1.xpose.msra.mxu0 0.0
  %3024 = vmatprep.subr.mxu0 0.0
  %3025 = vmatpush1.xpose.msra.mxu0 0.0
  %3026 = vmatprep.subr.mxu0 0.0
  %3027 = vmatpush1.xpose.msra.mxu0 0.0
  %3028 = vmatprep.subr.mxu0 0.0
  %3029 = vmatpush1.xpose.msra.mxu0 0.0
  %3030 = vmatprep.subr.mxu0 0.0
  %3031 = vmatpush1.xpose.msra.mxu0 0.0
  %3032 = vmatprep.subr.mxu0 0.0
  %3033 = vmatpush1.xpose.msra.mxu0 0.0
  %3034 = vmatprep.subr.mxu0 0.0
  %3035 = vmatpush1.xpose.msra.mxu0 0.0
  %3036 = vmatprep.subr.mxu0 0.0
  %3037 = vmatpush1.xpose.msra.mxu0 0.0
  %3038 = vmatprep.subr.mxu0 0.0
  %3039 = vmatpush1.xpose.msra.mxu0 0.0
  %3040 = vmatprep.subr.mxu0 0.0
  %3041 = vmatpush1.xpose.msra.mxu0 0.0
  %3042 = vmatprep.subr.mxu0 0.0
  %3043 = vmatpush1.xpose.msra.mxu0 0.0
  %3044 = vmatprep.subr.mxu0 0.0
  %3045 = vmatpush1.xpose.msra.mxu0 0.0
  %3046 = vmatprep.subr.mxu0 0.0
  %3047 = vmatpush1.xpose.msra.mxu0 0.0
  %3048 = vmatprep.subr.mxu0 0.0
  %3049 = vmatpush1.xpose.msra.mxu0 0.0
  %3050 = vmatprep.subr.mxu0 0.0
  %3051 = vmatpush1.xpose.msra.mxu0 0.0
  %3052 = vmatprep.subr.mxu0 0.0
  %3053 = vmatpush1.xpose.msra.mxu0 0.0
  %3054 = vmatprep.subr.mxu0 0.0
  %3055 = vmatpush1.xpose.msra.mxu0 0.0
  %3056 = vmatprep.mubr.f32.mxu0 0.0
  %3057 = vmatmul.mubr.f32.gmra.mrb[0].mxu0 %v2988
  %v3058 = vpop.f32.mrb[0].mxu0
  %v3059 = vadd.f32 0.0, %v3058
  %v3060 = vpop.f32.mrb[0].mxu0
  %3061 = vdwg.mxu0
  %3063 = vrot.lane.b32.xlu0 %v2734, 112
  %v3064 = vpop.permute.xlu0 %3063
  %3065 = vrot.lane.b32.xlu0 %v2734, 48
  %v3066 = vpop.permute.xlu0 %3065
  %v3067 = vsel %vm27, %v3064, 0
  %v3069 = vsel %vm27, %v3066, 0
  %3071 = vmatprep.subr.mxu0 0.0
  %3072 = vmatpush1.xpose.msra.mxu0 %v3069
  %3073 = vmatprep.subr.mxu0 0.0
  %3074 = vmatpush1.xpose.msra.mxu0 0.0
  %3075 = vmatprep.subr.mxu0 0.0
  %3076 = vmatpush1.xpose.msra.mxu0 0.0
  %3077 = vmatprep.subr.mxu0 0.0
  %3078 = vmatpush1.xpose.msra.mxu0 0.0
  %3079 = vmatprep.subr.mxu0 0.0
  %3080 = vmatpush1.xpose.msra.mxu0 0.0
  %3081 = vmatprep.subr.mxu0 0.0
  %3082 = vmatpush1.xpose.msra.mxu0 0.0
  %3083 = vmatprep.subr.mxu0 0.0
  %3084 = vmatpush1.xpose.msra.mxu0 0.0
  %3085 = vmatprep.subr.mxu0 0.0
  %3086 = vmatpush1.xpose.msra.mxu0 0.0
  %3087 = vmatprep.subr.mxu0 0.0
  %3088 = vmatpush1.xpose.msra.mxu0 0.0
  %3089 = vmatprep.subr.mxu0 0.0
  %3090 = vmatpush1.xpose.msra.mxu0 0.0
  %3091 = vmatprep.subr.mxu0 0.0
  %3092 = vmatpush1.xpose.msra.mxu0 0.0
  %3093 = vmatprep.subr.mxu0 0.0
  %3094 = vmatpush1.xpose.msra.mxu0 0.0
  %3095 = vmatprep.subr.mxu0 0.0
  %3096 = vmatpush1.xpose.msra.mxu0 0.0
  %3097 = vmatprep.subr.mxu0 0.0
  %3098 = vmatpush1.xpose.msra.mxu0 0.0
  %3099 = vmatprep.subr.mxu0 0.0
  %3100 = vmatpush1.xpose.msra.mxu0 0.0
  %3101 = vmatprep.subr.mxu0 0.0
  %3102 = vmatpush1.xpose.msra.mxu0 0.0
  %3103 = vmatprep.subr.mxu0 0.0
  %3104 = vmatpush1.xpose.msra.mxu0 0.0
  %3105 = vmatprep.subr.mxu0 0.0
  %3106 = vmatpush1.xpose.msra.mxu0 0.0
  %3107 = vmatprep.subr.mxu0 0.0
  %3108 = vmatpush1.xpose.msra.mxu0 0.0
  %3109 = vmatprep.subr.mxu0 0.0
  %3110 = vmatpush1.xpose.msra.mxu0 0.0
  %3111 = vmatprep.subr.mxu0 0.0
  %3112 = vmatpush1.xpose.msra.mxu0 0.0
  %3113 = vmatprep.subr.mxu0 0.0
  %3114 = vmatpush1.xpose.msra.mxu0 0.0
  %3115 = vmatprep.subr.mxu0 0.0
  %3116 = vmatpush1.xpose.msra.mxu0 0.0
  %3117 = vmatprep.subr.mxu0 0.0
  %3118 = vmatpush1.xpose.msra.mxu0 0.0
  %3119 = vmatprep.subr.mxu0 0.0
  %3120 = vmatpush1.xpose.msra.mxu0 0.0
  %3121 = vmatprep.subr.mxu0 0.0
  %3122 = vmatpush1.xpose.msra.mxu0 0.0
  %3123 = vmatprep.subr.mxu0 0.0
  %3124 = vmatpush1.xpose.msra.mxu0 0.0
  %3125 = vmatprep.subr.mxu0 0.0
  %3126 = vmatpush1.xpose.msra.mxu0 0.0
  %3127 = vmatprep.subr.mxu0 0.0
  %3128 = vmatpush1.xpose.msra.mxu0 0.0
  %3129 = vmatprep.subr.mxu0 0.0
  %3130 = vmatpush1.xpose.msra.mxu0 0.0
  %3131 = vmatprep.subr.mxu0 0.0
  %3132 = vmatpush1.xpose.msra.mxu0 0.0
  %3133 = vmatprep.subr.mxu0 0.0
  %3134 = vmatpush1.xpose.msra.mxu0 0.0
  %3135 = vmatprep.mubr.f32.mxu0 0.0
  %3136 = vmatmul.mubr.f32.gmra.mrb[0].mxu0 %v3067
  %v3137 = vpop.f32.mrb[0].mxu0
  %v3138 = vadd.f32 0.0, %v3137
  %v3139 = vpop.f32.mrb[0].mxu0
  %3140 = vdwg.mxu0
  %3142 = vrot.lane.b32.xlu0 %v2735, 112
  %v3143 = vpop.permute.xlu0 %3142
  %3144 = vrot.lane.b32.xlu0 %v2735, 48
  %v3145 = vpop.permute.xlu0 %3144
  %v3146 = vsel %vm27, %v3143, 0
  %v3148 = vsel %vm27, %v3145, 0
  %3150 = vmatprep.subr.mxu0 0.0
  %3151 = vmatpush1.xpose.msra.mxu0 %v3148
  %3152 = vmatprep.subr.mxu0 0.0
  %3153 = vmatpush1.xpose.msra.mxu0 0.0
  %3154 = vmatprep.subr.mxu0 0.0
  %3155 = vmatpush1.xpose.msra.mxu0 0.0
  %3156 = vmatprep.subr.mxu0 0.0
  %3157 = vmatpush1.xpose.msra.mxu0 0.0
  %3158 = vmatprep.subr.mxu0 0.0
  %3159 = vmatpush1.xpose.msra.mxu0 0.0
  %3160 = vmatprep.subr.mxu0 0.0
  %3161 = vmatpush1.xpose.msra.mxu0 0.0
  %3162 = vmatprep.subr.mxu0 0.0
  %3163 = vmatpush1.xpose.msra.mxu0 0.0
  %3164 = vmatprep.subr.mxu0 0.0
  %3165 = vmatpush1.xpose.msra.mxu0 0.0
  %3166 = vmatprep.subr.mxu0 0.0
  %3167 = vmatpush1.xpose.msra.mxu0 0.0
  %3168 = vmatprep.subr.mxu0 0.0
  %3169 = vmatpush1.xpose.msra.mxu0 0.0
  %3170 = vmatprep.subr.mxu0 0.0
  %3171 = vmatpush1.xpose.msra.mxu0 0.0
  %3172 = vmatprep.subr.mxu0 0.0
  %3173 = vmatpush1.xpose.msra.mxu0 0.0
  %3174 = vmatprep.subr.mxu0 0.0
  %3175 = vmatpush1.xpose.msra.mxu0 0.0
  %3176 = vmatprep.subr.mxu0 0.0
  %3177 = vmatpush1.xpose.msra.mxu0 0.0
  %3178 = vmatprep.subr.mxu0 0.0
  %3179 = vmatpush1.xpose.msra.mxu0 0.0
  %3180 = vmatprep.subr.mxu0 0.0
  %3181 = vmatpush1.xpose.msra.mxu0 0.0
  %3182 = vmatprep.subr.mxu0 0.0
  %3183 = vmatpush1.xpose.msra.mxu0 0.0
  %3184 = vmatprep.subr.mxu0 0.0
  %3185 = vmatpush1.xpose.msra.mxu0 0.0
  %3186 = vmatprep.subr.mxu0 0.0
  %3187 = vmatpush1.xpose.msra.mxu0 0.0
  %3188 = vmatprep.subr.mxu0 0.0
  %3189 = vmatpush1.xpose.msra.mxu0 0.0
  %3190 = vmatprep.subr.mxu0 0.0
  %3191 = vmatpush1.xpose.msra.mxu0 0.0
  %3192 = vmatprep.subr.mxu0 0.0
  %3193 = vmatpush1.xpose.msra.mxu0 0.0
  %3194 = vmatprep.subr.mxu0 0.0
  %3195 = vmatpush1.xpose.msra.mxu0 0.0
  %3196 = vmatprep.subr.mxu0 0.0
  %3197 = vmatpush1.xpose.msra.mxu0 0.0
  %3198 = vmatprep.subr.mxu0 0.0
  %3199 = vmatpush1.xpose.msra.mxu0 0.0
  %3200 = vmatprep.subr.mxu0 0.0
  %3201 = vmatpush1.xpose.msra.mxu0 0.0
  %3202 = vmatprep.subr.mxu0 0.0
  %3203 = vmatpush1.xpose.msra.mxu0 0.0
  %3204 = vmatprep.subr.mxu0 0.0
  %3205 = vmatpush1.xpose.msra.mxu0 0.0
  %3206 = vmatprep.subr.mxu0 0.0
  %3207 = vmatpush1.xpose.msra.mxu0 0.0
  %3208 = vmatprep.subr.mxu0 0.0
  %3209 = vmatpush1.xpose.msra.mxu0 0.0
  %3210 = vmatprep.subr.mxu0 0.0
  %3211 = vmatpush1.xpose.msra.mxu0 0.0
  %3212 = vmatprep.subr.mxu0 0.0
  %3213 = vmatpush1.xpose.msra.mxu0 0.0
  %3214 = vmatprep.mubr.f32.mxu0 0.0
  %3215 = vmatmul.mubr.f32.gmra.mrb[0].mxu0 %v3146
  %v3216 = vpop.f32.mrb[0].mxu0
  %v3217 = vadd.f32 0.0, %v3216
  %v3218 = vpop.f32.mrb[0].mxu0
  %3219 = vdwg.mxu0
  %3221 = vrot.lane.b32.xlu0 %v2736, 112
  %v3222 = vpop.permute.xlu0 %3221
  %3223 = vrot.lane.b32.xlu0 %v2736, 48
  %v3224 = vpop.permute.xlu0 %3223
  %v3225 = vsel %vm27, %v3222, 0
  %v3227 = vsel %vm27, %v3224, 0
  %3229 = vmatprep.subr.mxu0 0.0
  %3230 = vmatpush1.xpose.msra.mxu0 %v3227
  %3231 = vmatprep.subr.mxu0 0.0
  %3232 = vmatpush1.xpose.msra.mxu0 0.0
  %3233 = vmatprep.subr.mxu0 0.0
  %3234 = vmatpush1.xpose.msra.mxu0 0.0
  %3235 = vmatprep.subr.mxu0 0.0
  %3236 = vmatpush1.xpose.msra.mxu0 0.0
  %3237 = vmatprep.subr.mxu0 0.0
  %3238 = vmatpush1.xpose.msra.mxu0 0.0
  %3239 = vmatprep.subr.mxu0 0.0
  %3240 = vmatpush1.xpose.msra.mxu0 0.0
  %3241 = vmatprep.subr.mxu0 0.0
  %3242 = vmatpush1.xpose.msra.mxu0 0.0
  %3243 = vmatprep.subr.mxu0 0.0
  %3244 = vmatpush1.xpose.msra.mxu0 0.0
  %3245 = vmatprep.subr.mxu0 0.0
  %3246 = vmatpush1.xpose.msra.mxu0 0.0
  %3247 = vmatprep.subr.mxu0 0.0
  %3248 = vmatpush1.xpose.msra.mxu0 0.0
  %3249 = vmatprep.subr.mxu0 0.0
  %3250 = vmatpush1.xpose.msra.mxu0 0.0
  %3251 = vmatprep.subr.mxu0 0.0
  %3252 = vmatpush1.xpose.msra.mxu0 0.0
  %3253 = vmatprep.subr.mxu0 0.0
  %3254 = vmatpush1.xpose.msra.mxu0 0.0
  %3255 = vmatprep.subr.mxu0 0.0
  %3256 = vmatpush1.xpose.msra.mxu0 0.0
  %3257 = vmatprep.subr.mxu0 0.0
  %3258 = vmatpush1.xpose.msra.mxu0 0.0
  %3259 = vmatprep.subr.mxu0 0.0
  %3260 = vmatpush1.xpose.msra.mxu0 0.0
  %3261 = vmatprep.subr.mxu0 0.0
  %3262 = vmatpush1.xpose.msra.mxu0 0.0
  %3263 = vmatprep.subr.mxu0 0.0
  %3264 = vmatpush1.xpose.msra.mxu0 0.0
  %3265 = vmatprep.subr.mxu0 0.0
  %3266 = vmatpush1.xpose.msra.mxu0 0.0
  %3267 = vmatprep.subr.mxu0 0.0
  %3268 = vmatpush1.xpose.msra.mxu0 0.0
  %3269 = vmatprep.subr.mxu0 0.0
  %3270 = vmatpush1.xpose.msra.mxu0 0.0
  %3271 = vmatprep.subr.mxu0 0.0
  %3272 = vmatpush1.xpose.msra.mxu0 0.0
  %3273 = vmatprep.subr.mxu0 0.0
  %3274 = vmatpush1.xpose.msra.mxu0 0.0
  %3275 = vmatprep.subr.mxu0 0.0
  %3276 = vmatpush1.xpose.msra.mxu0 0.0
  %3277 = vmatprep.subr.mxu0 0.0
  %3278 = vmatpush1.xpose.msra.mxu0 0.0
  %3279 = vmatprep.subr.mxu0 0.0
  %3280 = vmatpush1.xpose.msra.mxu0 0.0
  %3281 = vmatprep.subr.mxu0 0.0
  %3282 = vmatpush1.xpose.msra.mxu0 0.0
  %3283 = vmatprep.subr.mxu0 0.0
  %3284 = vmatpush1.xpose.msra.mxu0 0.0
  %3285 = vmatprep.subr.mxu0 0.0
  %3286 = vmatpush1.xpose.msra.mxu0 0.0
  %3287 = vmatprep.subr.mxu0 0.0
  %3288 = vmatpush1.xpose.msra.mxu0 0.0
  %3289 = vmatprep.subr.mxu0 0.0
  %3290 = vmatpush1.xpose.msra.mxu0 0.0
  %3291 = vmatprep.subr.mxu0 0.0
  %3292 = vmatpush1.xpose.msra.mxu0 0.0
  %3293 = vmatprep.mubr.f32.mxu0 0.0
  %3294 = vmatmul.mubr.f32.gmra.mrb[0].mxu0 %v3225
  %v3295 = vpop.f32.mrb[0].mxu0
  %v3296 = vadd.f32 0.0, %v3295
  %v3297 = vpop.f32.mrb[0].mxu0
  %3298 = vdwg.mxu0
  %3300 = vrot.lane.b32.xlu0 %v2737, 112
  %v3301 = vpop.permute.xlu0 %3300
  %3302 = vrot.lane.b32.xlu0 %v2737, 48
  %v3303 = vpop.permute.xlu0 %3302
  %v3304 = vsel %vm27, %v3301, 0
  %v3306 = vsel %vm27, %v3303, 0
  %3308 = vmatprep.subr.mxu0 0.0
  %3309 = vmatpush1.xpose.msra.mxu0 %v3306
  %3310 = vmatprep.subr.mxu0 0.0
  %3311 = vmatpush1.xpose.msra.mxu0 0.0
  %3312 = vmatprep.subr.mxu0 0.0
  %3313 = vmatpush1.xpose.msra.mxu0 0.0
  %3314 = vmatprep.subr.mxu0 0.0
  %3315 = vmatpush1.xpose.msra.mxu0 0.0
  %3316 = vmatprep.subr.mxu0 0.0
  %3317 = vmatpush1.xpose.msra.mxu0 0.0
  %3318 = vmatprep.subr.mxu0 0.0
  %3319 = vmatpush1.xpose.msra.mxu0 0.0
  %3320 = vmatprep.subr.mxu0 0.0
  %3321 = vmatpush1.xpose.msra.mxu0 0.0
  %3322 = vmatprep.subr.mxu0 0.0
  %3323 = vmatpush1.xpose.msra.mxu0 0.0
  %3324 = vmatprep.subr.mxu0 0.0
  %3325 = vmatpush1.xpose.msra.mxu0 0.0
  %3326 = vmatprep.subr.mxu0 0.0
  %3327 = vmatpush1.xpose.msra.mxu0 0.0
  %3328 = vmatprep.subr.mxu0 0.0
  %3329 = vmatpush1.xpose.msra.mxu0 0.0
  %3330 = vmatprep.subr.mxu0 0.0
  %3331 = vmatpush1.xpose.msra.mxu0 0.0
  %3332 = vmatprep.subr.mxu0 0.0
  %3333 = vmatpush1.xpose.msra.mxu0 0.0
  %3334 = vmatprep.subr.mxu0 0.0
  %3335 = vmatpush1.xpose.msra.mxu0 0.0
  %3336 = vmatprep.subr.mxu0 0.0
  %3337 = vmatpush1.xpose.msra.mxu0 0.0
  %3338 = vmatprep.subr.mxu0 0.0
  %3339 = vmatpush1.xpose.msra.mxu0 0.0
  %3340 = vmatprep.subr.mxu0 0.0
  %3341 = vmatpush1.xpose.msra.mxu0 0.0
  %3342 = vmatprep.subr.mxu0 0.0
  %3343 = vmatpush1.xpose.msra.mxu0 0.0
  %3344 = vmatprep.subr.mxu0 0.0
  %3345 = vmatpush1.xpose.msra.mxu0 0.0
  %3346 = vmatprep.subr.mxu0 0.0
  %3347 = vmatpush1.xpose.msra.mxu0 0.0
  %3348 = vmatprep.subr.mxu0 0.0
  %3349 = vmatpush1.xpose.msra.mxu0 0.0
  %3350 = vmatprep.subr.mxu0 0.0
  %3351 = vmatpush1.xpose.msra.mxu0 0.0
  %3352 = vmatprep.subr.mxu0 0.0
  %3353 = vmatpush1.xpose.msra.mxu0 0.0
  %3354 = vmatprep.subr.mxu0 0.0
  %3355 = vmatpush1.xpose.msra.mxu0 0.0
  %3356 = vmatprep.subr.mxu0 0.0
  %3357 = vmatpush1.xpose.msra.mxu0 0.0
  %3358 = vmatprep.subr.mxu0 0.0
  %3359 = vmatpush1.xpose.msra.mxu0 0.0
  %3360 = vmatprep.subr.mxu0 0.0
  %3361 = vmatpush1.xpose.msra.mxu0 0.0
  %3362 = vmatprep.subr.mxu0 0.0
  %3363 = vmatpush1.xpose.msra.mxu0 0.0
  %3364 = vmatprep.subr.mxu0 0.0
  %3365 = vmatpush1.xpose.msra.mxu0 0.0
  %3366 = vmatprep.subr.mxu0 0.0
  %3367 = vmatpush1.xpose.msra.mxu0 0.0
  %3368 = vmatprep.subr.mxu0 0.0
  %3369 = vmatpush1.xpose.msra.mxu0 0.0
  %3370 = vmatprep.subr.mxu0 0.0
  %3371 = vmatpush1.xpose.msra.mxu0 0.0
  %3372 = vmatprep.mubr.f32.mxu0 0.0
  %3373 = vmatmul.mubr.f32.gmra.mrb[0].mxu0 %v3304
  %v3374 = vpop.f32.mrb[0].mxu0
  %v3375 = vadd.f32 0.0, %v3374
  %v3376 = vpop.f32.mrb[0].mxu0
  %3377 = vdwg.mxu0
  %v3378 = vmul.f32 %v2822, 0.35355338
  %v3379 = vmul.f32 %v2901, 0.35355338
  %v3380 = vmul.f32 %v2980, 0.35355338
  %v3381 = vmul.f32 %v3059, 0.35355338
  %v3382 = vmul.f32 %v3138, 0.35355338
  %v3383 = vmul.f32 %v3217, 0.35355338
  %v3384 = vmul.f32 %v3296, 0.35355338
  %v3385 = vmul.f32 %v3375, 0.35355338
  %v3386 = vsel %vm27, %v3378, -inf
  %3387 = vmax.xlane.f32.xlu0 %v3386
  %v3388 = vpop.xlane.xlu0 %3387
  %v3389 = vsel %vm27, %v3379, -inf
  %3390 = vmax.xlane.f32.xlu0 %v3389
  %v3391 = vpop.xlane.xlu0 %3390
  %v3392 = vsel %vm27, %v3380, -inf
  %3393 = vmax.xlane.f32.xlu0 %v3392
  %v3394 = vpop.xlane.xlu0 %3393
  %v3395 = vsel %vm27, %v3381, -inf
  %3396 = vmax.xlane.f32.xlu0 %v3395
  %v3397 = vpop.xlane.xlu0 %3396
  %v3398 = vsel %vm27, %v3382, -inf
  %3399 = vmax.xlane.f32.xlu0 %v3398
  %v3400 = vpop.xlane.xlu0 %3399
  %v3401 = vsel %vm27, %v3383, -inf
  %3402 = vmax.xlane.f32.xlu0 %v3401
  %v3403 = vpop.xlane.xlu0 %3402
  %v3404 = vsel %vm27, %v3384, -inf
  %3405 = vmax.xlane.f32.xlu0 %v3404
  %v3406 = vpop.xlane.xlu0 %3405
  %v3407 = vsel %vm27, %v3385, -inf
  %3408 = vmax.xlane.f32.xlu0 %v3407
  %v3409 = vpop.xlane.xlu0 %3408
  %v3410 = vsub.f32 %v3378, %v3388
  %v3411 = vsub.f32 %v3379, %v3391
  %v3412 = vsub.f32 %v3380, %v3394
  %v3413 = vsub.f32 %v3381, %v3397
  %v3414 = vsub.f32 %v3382, %v3400
  %v3415 = vsub.f32 %v3383, %v3403
  %v3416 = vsub.f32 %v3384, %v3406
  %v3417 = vsub.f32 %v3385, %v3409
  %v3418 = vmul.f32 %v3410, 1.442695
  %v3419 = vpow.pop %v3418
  %v3420 = vmul.f32 %v3411, 1.442695
  %v3421 = vpow.pop %v3420
  %v3422 = vmul.f32 %v3412, 1.442695
  %v3423 = vpow.pop %v3422
  %v3424 = vmul.f32 %v3413, 1.442695
  %v3425 = vpow.pop %v3424
  %v3426 = vmul.f32 %v3414, 1.442695
  %v3427 = vpow.pop %v3426
  %v3428 = vmul.f32 %v3415, 1.442695
  %v3429 = vpow.pop %v3428
  %v3430 = vmul.f32 %v3416, 1.442695
  %v3431 = vpow.pop %v3430
  %v3432 = vmul.f32 %v3417, 1.442695
  %v3433 = vpow.pop %v3432
  %v3434 = vsel %vm27, %v3419, 0.0
  %3435 = vadd.xlane.f32.xlu0 %v3434
  %v3436 = vpop.xlane.xlu0 %3435
  %v3437 = vsel %vm27, %v3421, 0.0
  %3438 = vadd.xlane.f32.xlu0 %v3437
  %v3439 = vpop.xlane.xlu0 %3438
  %v3440 = vsel %vm27, %v3423, 0.0
  %3441 = vadd.xlane.f32.xlu0 %v3440
  %v3442 = vpop.xlane.xlu0 %3441
  %v3443 = vsel %vm27, %v3425, 0.0
  %3444 = vadd.xlane.f32.xlu0 %v3443
  %v3445 = vpop.xlane.xlu0 %3444
  %v3446 = vsel %vm27, %v3427, 0.0
  %3447 = vadd.xlane.f32.xlu0 %v3446
  %v3448 = vpop.xlane.xlu0 %3447
  %v3449 = vsel %vm27, %v3429, 0.0
  %3450 = vadd.xlane.f32.xlu0 %v3449
  %v3451 = vpop.xlane.xlu0 %3450
  %v3452 = vsel %vm27, %v3431, 0.0
  %3453 = vadd.xlane.f32.xlu0 %v3452
  %v3454 = vpop.xlane.xlu0 %3453
  %v3455 = vsel %vm27, %v3433, 0.0
  %3456 = vadd.xlane.f32.xlu0 %v3455
  %v3457 = vpop.xlane.xlu0 %3456
  %3459 = vrot.lane.b32.xlu0 %v2738, 112
  %v3460 = vpop.permute.xlu0 %3459
  %v3463 = vsel %vm27, %v3419, 0
  %3465 = vmatprep.subr.mxu0 0.0
  %3466 = vmatpush1.msra.mxu0 %v3460
  %3467 = vmatprep.subr.mxu0 0.0
  %3468 = vmatpush1.msra.mxu0 0.0
  %3469 = vmatprep.subr.mxu0 0.0
  %3470 = vmatpush1.msra.mxu0 0.0
  %3471 = vmatprep.subr.mxu0 0.0
  %3472 = vmatpush1.msra.mxu0 0.0
  %3473 = vmatprep.subr.mxu0 0.0
  %3474 = vmatpush1.msra.mxu0 0.0
  %3475 = vmatprep.subr.mxu0 0.0
  %3476 = vmatpush1.msra.mxu0 0.0
  %3477 = vmatprep.subr.mxu0 0.0
  %3478 = vmatpush1.msra.mxu0 0.0
  %3479 = vmatprep.subr.mxu0 0.0
  %3480 = vmatpush1.msra.mxu0 0.0
  %3481 = vmatprep.subr.mxu0 0.0
  %3482 = vmatpush1.msra.mxu0 0.0
  %3483 = vmatprep.subr.mxu0 0.0
  %3484 = vmatpush1.msra.mxu0 0.0
  %3485 = vmatprep.subr.mxu0 0.0
  %3486 = vmatpush1.msra.mxu0 0.0
  %3487 = vmatprep.subr.mxu0 0.0
  %3488 = vmatpush1.msra.mxu0 0.0
  %3489 = vmatprep.subr.mxu0 0.0
  %3490 = vmatpush1.msra.mxu0 0.0
  %3491 = vmatprep.subr.mxu0 0.0
  %3492 = vmatpush1.msra.mxu0 0.0
  %3493 = vmatprep.subr.mxu0 0.0
  %3494 = vmatpush1.msra.mxu0 0.0
  %3495 = vmatprep.subr.mxu0 0.0
  %3496 = vmatpush1.msra.mxu0 0.0
  %3497 = vmatprep.subr.mxu0 0.0
  %3498 = vmatpush1.msra.mxu0 0.0
  %3499 = vmatprep.subr.mxu0 0.0
  %3500 = vmatpush1.msra.mxu0 0.0
  %3501 = vmatprep.subr.mxu0 0.0
  %3502 = vmatpush1.msra.mxu0 0.0
  %3503 = vmatprep.subr.mxu0 0.0
  %3504 = vmatpush1.msra.mxu0 0.0
  %3505 = vmatprep.subr.mxu0 0.0
  %3506 = vmatpush1.msra.mxu0 0.0
  %3507 = vmatprep.subr.mxu0 0.0
  %3508 = vmatpush1.msra.mxu0 0.0
  %3509 = vmatprep.subr.mxu0 0.0
  %3510 = vmatpush1.msra.mxu0 0.0
  %3511 = vmatprep.subr.mxu0 0.0
  %3512 = vmatpush1.msra.mxu0 0.0
  %3513 = vmatprep.subr.mxu0 0.0
  %3514 = vmatpush1.msra.mxu0 0.0
  %3515 = vmatprep.subr.mxu0 0.0
  %3516 = vmatpush1.msra.mxu0 0.0
  %3517 = vmatprep.subr.mxu0 0.0
  %3518 = vmatpush1.msra.mxu0 0.0
  %3519 = vmatprep.subr.mxu0 0.0
  %3520 = vmatpush1.msra.mxu0 0.0
  %3521 = vmatprep.subr.mxu0 0.0
  %3522 = vmatpush1.msra.mxu0 0.0
  %3523 = vmatprep.subr.mxu0 0.0
  %3524 = vmatpush1.msra.mxu0 0.0
  %3525 = vmatprep.subr.mxu0 0.0
  %3526 = vmatpush1.msra.mxu0 0.0
  %3527 = vmatprep.subr.mxu0 0.0
  %3528 = vmatpush1.msra.mxu0 0.0
  %3529 = vmatprep.mubr.f32.mxu0 0.0
  %3530 = vmatmul.mubr.f32.gmra.mrb[0].mxu0 %v3463
  %v3531 = vpop.f32.mrb[0].mxu0
  %v3532 = vadd.f32 0.0, %v3531
  %v3533 = vpop.f32.mrb[0].mxu0
  %3534 = vdwg.mxu0
  %3536 = vrot.lane.b32.xlu0 %v2739, 112
  %v3537 = vpop.permute.xlu0 %3536
  %v3540 = vsel %vm27, %v3421, 0
  %3542 = vmatprep.subr.mxu0 0.0
  %3543 = vmatpush1.msra.mxu0 %v3537
  %3544 = vmatprep.subr.mxu0 0.0
  %3545 = vmatpush1.msra.mxu0 0.0
  %3546 = vmatprep.subr.mxu0 0.0
  %3547 = vmatpush1.msra.mxu0 0.0
  %3548 = vmatprep.subr.mxu0 0.0
  %3549 = vmatpush1.msra.mxu0 0.0
  %3550 = vmatprep.subr.mxu0 0.0
  %3551 = vmatpush1.msra.mxu0 0.0
  %3552 = vmatprep.subr.mxu0 0.0
  %3553 = vmatpush1.msra.mxu0 0.0
  %3554 = vmatprep.subr.mxu0 0.0
  %3555 = vmatpush1.msra.mxu0 0.0
  %3556 = vmatprep.subr.mxu0 0.0
  %3557 = vmatpush1.msra.mxu0 0.0
  %3558 = vmatprep.subr.mxu0 0.0
  %3559 = vmatpush1.msra.mxu0 0.0
  %3560 = vmatprep.subr.mxu0 0.0
  %3561 = vmatpush1.msra.mxu0 0.0
  %3562 = vmatprep.subr.mxu0 0.0
  %3563 = vmatpush1.msra.mxu0 0.0
  %3564 = vmatprep.subr.mxu0 0.0
  %3565 = vmatpush1.msra.mxu0 0.0
  %3566 = vmatprep.subr.mxu0 0.0
  %3567 = vmatpush1.msra.mxu0 0.0
  %3568 = vmatprep.subr.mxu0 0.0
  %3569 = vmatpush1.msra.mxu0 0.0
  %3570 = vmatprep.subr.mxu0 0.0
  %3571 = vmatpush1.msra.mxu0 0.0
  %3572 = vmatprep.subr.mxu0 0.0
  %3573 = vmatpush1.msra.mxu0 0.0
  %3574 = vmatprep.subr.mxu0 0.0
  %3575 = vmatpush1.msra.mxu0 0.0
  %3576 = vmatprep.subr.mxu0 0.0
  %3577 = vmatpush1.msra.mxu0 0.0
  %3578 = vmatprep.subr.mxu0 0.0
  %3579 = vmatpush1.msra.mxu0 0.0
  %3580 = vmatprep.subr.mxu0 0.0
  %3581 = vmatpush1.msra.mxu0 0.0
  %3582 = vmatprep.subr.mxu0 0.0
  %3583 = vmatpush1.msra.mxu0 0.0
  %3584 = vmatprep.subr.mxu0 0.0
  %3585 = vmatpush1.msra.mxu0 0.0
  %3586 = vmatprep.subr.mxu0 0.0
  %3587 = vmatpush1.msra.mxu0 0.0
  %3588 = vmatprep.subr.mxu0 0.0
  %3589 = vmatpush1.msra.mxu0 0.0
  %3590 = vmatprep.subr.mxu0 0.0
  %3591 = vmatpush1.msra.mxu0 0.0
  %3592 = vmatprep.subr.mxu0 0.0
  %3593 = vmatpush1.msra.mxu0 0.0
  %3594 = vmatprep.subr.mxu0 0.0
  %3595 = vmatpush1.msra.mxu0 0.0
  %3596 = vmatprep.subr.mxu0 0.0
  %3597 = vmatpush1.msra.mxu0 0.0
  %3598 = vmatprep.subr.mxu0 0.0
  %3599 = vmatpush1.msra.mxu0 0.0
  %3600 = vmatprep.subr.mxu0 0.0
  %3601 = vmatpush1.msra.mxu0 0.0
  %3602 = vmatprep.subr.mxu0 0.0
  %3603 = vmatpush1.msra.mxu0 0.0
  %3604 = vmatprep.subr.mxu0 0.0
  %3605 = vmatpush1.msra.mxu0 0.0
  %3606 = vmatprep.mubr.f32.mxu0 0.0
  %3607 = vmatmul.mubr.f32.gmra.mrb[0].mxu0 %v3540
  %v3608 = vpop.f32.mrb[0].mxu0
  %v3609 = vadd.f32 0.0, %v3608
  %v3610 = vpop.f32.mrb[0].mxu0
  %3611 = vdwg.mxu0
  %3613 = vrot.lane.b32.xlu0 %v2740, 112
  %v3614 = vpop.permute.xlu0 %3613
  %v3617 = vsel %vm27, %v3423, 0
  %3619 = vmatprep.subr.mxu0 0.0
  %3620 = vmatpush1.msra.mxu0 %v3614
  %3621 = vmatprep.subr.mxu0 0.0
  %3622 = vmatpush1.msra.mxu0 0.0
  %3623 = vmatprep.subr.mxu0 0.0
  %3624 = vmatpush1.msra.mxu0 0.0
  %3625 = vmatprep.subr.mxu0 0.0
  %3626 = vmatpush1.msra.mxu0 0.0
  %3627 = vmatprep.subr.mxu0 0.0
  %3628 = vmatpush1.msra.mxu0 0.0
  %3629 = vmatprep.subr.mxu0 0.0
  %3630 = vmatpush1.msra.mxu0 0.0
  %3631 = vmatprep.subr.mxu0 0.0
  %3632 = vmatpush1.msra.mxu0 0.0
  %3633 = vmatprep.subr.mxu0 0.0
  %3634 = vmatpush1.msra.mxu0 0.0
  %3635 = vmatprep.subr.mxu0 0.0
  %3636 = vmatpush1.msra.mxu0 0.0
  %3637 = vmatprep.subr.mxu0 0.0
  %3638 = vmatpush1.msra.mxu0 0.0
  %3639 = vmatprep.subr.mxu0 0.0
  %3640 = vmatpush1.msra.mxu0 0.0
  %3641 = vmatprep.subr.mxu0 0.0
  %3642 = vmatpush1.msra.mxu0 0.0
  %3643 = vmatprep.subr.mxu0 0.0
  %3644 = vmatpush1.msra.mxu0 0.0
  %3645 = vmatprep.subr.mxu0 0.0
  %3646 = vmatpush1.msra.mxu0 0.0
  %3647 = vmatprep.subr.mxu0 0.0
  %3648 = vmatpush1.msra.mxu0 0.0
  %3649 = vmatprep.subr.mxu0 0.0
  %3650 = vmatpush1.msra.mxu0 0.0
  %3651 = vmatprep.subr.mxu0 0.0
  %3652 = vmatpush1.msra.mxu0 0.0
  %3653 = vmatprep.subr.mxu0 0.0
  %3654 = vmatpush1.msra.mxu0 0.0
  %3655 = vmatprep.subr.mxu0 0.0
  %3656 = vmatpush1.msra.mxu0 0.0
  %3657 = vmatprep.subr.mxu0 0.0
  %3658 = vmatpush1.msra.mxu0 0.0
  %3659 = vmatprep.subr.mxu0 0.0
  %3660 = vmatpush1.msra.mxu0 0.0
  %3661 = vmatprep.subr.mxu0 0.0
  %3662 = vmatpush1.msra.mxu0 0.0
  %3663 = vmatprep.subr.mxu0 0.0
  %3664 = vmatpush1.msra.mxu0 0.0
  %3665 = vmatprep.subr.mxu0 0.0
  %3666 = vmatpush1.msra.mxu0 0.0
  %3667 = vmatprep.subr.mxu0 0.0
  %3668 = vmatpush1.msra.mxu0 0.0
  %3669 = vmatprep.subr.mxu0 0.0
  %3670 = vmatpush1.msra.mxu0 0.0
  %3671 = vmatprep.subr.mxu0 0.0
  %3672 = vmatpush1.msra.mxu0 0.0
  %3673 = vmatprep.subr.mxu0 0.0
  %3674 = vmatpush1.msra.mxu0 0.0
  %3675 = vmatprep.subr.mxu0 0.0
  %3676 = vmatpush1.msra.mxu0 0.0
  %3677 = vmatprep.subr.mxu0 0.0
  %3678 = vmatpush1.msra.mxu0 0.0
  %3679 = vmatprep.subr.mxu0 0.0
  %3680 = vmatpush1.msra.mxu0 0.0
  %3681 = vmatprep.subr.mxu0 0.0
  %3682 = vmatpush1.msra.mxu0 0.0
  %3683 = vmatprep.mubr.f32.mxu0 0.0
  %3684 = vmatmul.mubr.f32.gmra.mrb[0].mxu0 %v3617
  %v3685 = vpop.f32.mrb[0].mxu0
  %v3686 = vadd.f32 0.0, %v3685
  %v3687 = vpop.f32.mrb[0].mxu0
  %3688 = vdwg.mxu0
  %3690 = vrot.lane.b32.xlu0 %v2741, 112
  %v3691 = vpop.permute.xlu0 %3690
  %v3694 = vsel %vm27, %v3425, 0
  %3696 = vmatprep.subr.mxu0 0.0
  %3697 = vmatpush1.msra.mxu0 %v3691
  %3698 = vmatprep.subr.mxu0 0.0
  %3699 = vmatpush1.msra.mxu0 0.0
  %3700 = vmatprep.subr.mxu0 0.0
  %3701 = vmatpush1.msra.mxu0 0.0
  %3702 = vmatprep.subr.mxu0 0.0
  %3703 = vmatpush1.msra.mxu0 0.0
  %3704 = vmatprep.subr.mxu0 0.0
  %3705 = vmatpush1.msra.mxu0 0.0
  %3706 = vmatprep.subr.mxu0 0.0
  %3707 = vmatpush1.msra.mxu0 0.0
  %3708 = vmatprep.subr.mxu0 0.0
  %3709 = vmatpush1.msra.mxu0 0.0
  %3710 = vmatprep.subr.mxu0 0.0
  %3711 = vmatpush1.msra.mxu0 0.0
  %3712 = vmatprep.subr.mxu0 0.0
  %3713 = vmatpush1.msra.mxu0 0.0
  %3714 = vmatprep.subr.mxu0 0.0
  %3715 = vmatpush1.msra.mxu0 0.0
  %3716 = vmatprep.subr.mxu0 0.0
  %3717 = vmatpush1.msra.mxu0 0.0
  %3718 = vmatprep.subr.mxu0 0.0
  %3719 = vmatpush1.msra.mxu0 0.0
  %3720 = vmatprep.subr.mxu0 0.0
  %3721 = vmatpush1.msra.mxu0 0.0
  %3722 = vmatprep.subr.mxu0 0.0
  %3723 = vmatpush1.msra.mxu0 0.0
  %3724 = vmatprep.subr.mxu0 0.0
  %3725 = vmatpush1.msra.mxu0 0.0
  %3726 = vmatprep.subr.mxu0 0.0
  %3727 = vmatpush1.msra.mxu0 0.0
  %3728 = vmatprep.subr.mxu0 0.0
  %3729 = vmatpush1.msra.mxu0 0.0
  %3730 = vmatprep.subr.mxu0 0.0
  %3731 = vmatpush1.msra.mxu0 0.0
  %3732 = vmatprep.subr.mxu0 0.0
  %3733 = vmatpush1.msra.mxu0 0.0
  %3734 = vmatprep.subr.mxu0 0.0
  %3735 = vmatpush1.msra.mxu0 0.0
  %3736 = vmatprep.subr.mxu0 0.0
  %3737 = vmatpush1.msra.mxu0 0.0
  %3738 = vmatprep.subr.mxu0 0.0
  %3739 = vmatpush1.msra.mxu0 0.0
  %3740 = vmatprep.subr.mxu0 0.0
  %3741 = vmatpush1.msra.mxu0 0.0
  %3742 = vmatprep.subr.mxu0 0.0
  %3743 = vmatpush1.msra.mxu0 0.0
  %3744 = vmatprep.subr.mxu0 0.0
  %3745 = vmatpush1.msra.mxu0 0.0
  %3746 = vmatprep.subr.mxu0 0.0
  %3747 = vmatpush1.msra.mxu0 0.0
  %3748 = vmatprep.subr.mxu0 0.0
  %3749 = vmatpush1.msra.mxu0 0.0
  %3750 = vmatprep.subr.mxu0 0.0
  %3751 = vmatpush1.msra.mxu0 0.0
  %3752 = vmatprep.subr.mxu0 0.0
  %3753 = vmatpush1.msra.mxu0 0.0
  %3754 = vmatprep.subr.mxu0 0.0
  %3755 = vmatpush1.msra.mxu0 0.0
  %3756 = vmatprep.subr.mxu0 0.0
  %3757 = vmatpush1.msra.mxu0 0.0
  %3758 = vmatprep.subr.mxu0 0.0
  %3759 = vmatpush1.msra.mxu0 0.0
  %3760 = vmatprep.mubr.f32.mxu0 0.0
  %3761 = vmatmul.mubr.f32.gmra.mrb[0].mxu0 %v3694
  %v3762 = vpop.f32.mrb[0].mxu0
  %v3763 = vadd.f32 0.0, %v3762
  %v3764 = vpop.f32.mrb[0].mxu0
  %3765 = vdwg.mxu0
  %3767 = vrot.lane.b32.xlu0 %v2742, 112
  %v3768 = vpop.permute.xlu0 %3767
  %v3771 = vsel %vm27, %v3427, 0
  %3773 = vmatprep.subr.mxu0 0.0
  %3774 = vmatpush1.msra.mxu0 %v3768
  %3775 = vmatprep.subr.mxu0 0.0
  %3776 = vmatpush1.msra.mxu0 0.0
  %3777 = vmatprep.subr.mxu0 0.0
  %3778 = vmatpush1.msra.mxu0 0.0
  %3779 = vmatprep.subr.mxu0 0.0
  %3780 = vmatpush1.msra.mxu0 0.0
  %3781 = vmatprep.subr.mxu0 0.0
  %3782 = vmatpush1.msra.mxu0 0.0
  %3783 = vmatprep.subr.mxu0 0.0
  %3784 = vmatpush1.msra.mxu0 0.0
  %3785 = vmatprep.subr.mxu0 0.0
  %3786 = vmatpush1.msra.mxu0 0.0
  %3787 = vmatprep.subr.mxu0 0.0
  %3788 = vmatpush1.msra.mxu0 0.0
  %3789 = vmatprep.subr.mxu0 0.0
  %3790 = vmatpush1.msra.mxu0 0.0
  %3791 = vmatprep.subr.mxu0 0.0
  %3792 = vmatpush1.msra.mxu0 0.0
  %3793 = vmatprep.subr.mxu0 0.0
  %3794 = vmatpush1.msra.mxu0 0.0
  %3795 = vmatprep.subr.mxu0 0.0
  %3796 = vmatpush1.msra.mxu0 0.0
  %3797 = vmatprep.subr.mxu0 0.0
  %3798 = vmatpush1.msra.mxu0 0.0
  %3799 = vmatprep.subr.mxu0 0.0
  %3800 = vmatpush1.msra.mxu0 0.0
  %3801 = vmatprep.subr.mxu0 0.0
  %3802 = vmatpush1.msra.mxu0 0.0
  %3803 = vmatprep.subr.mxu0 0.0
  %3804 = vmatpush1.msra.mxu0 0.0
  %3805 = vmatprep.subr.mxu0 0.0
  %3806 = vmatpush1.msra.mxu0 0.0
  %3807 = vmatprep.subr.mxu0 0.0
  %3808 = vmatpush1.msra.mxu0 0.0
  %3809 = vmatprep.subr.mxu0 0.0
  %3810 = vmatpush1.msra.mxu0 0.0
  %3811 = vmatprep.subr.mxu0 0.0
  %3812 = vmatpush1.msra.mxu0 0.0
  %3813 = vmatprep.subr.mxu0 0.0
  %3814 = vmatpush1.msra.mxu0 0.0
  %3815 = vmatprep.subr.mxu0 0.0
  %3816 = vmatpush1.msra.mxu0 0.0
  %3817 = vmatprep.subr.mxu0 0.0
  %3818 = vmatpush1.msra.mxu0 0.0
  %3819 = vmatprep.subr.mxu0 0.0
  %3820 = vmatpush1.msra.mxu0 0.0
  %3821 = vmatprep.subr.mxu0 0.0
  %3822 = vmatpush1.msra.mxu0 0.0
  %3823 = vmatprep.subr.mxu0 0.0
  %3824 = vmatpush1.msra.mxu0 0.0
  %3825 = vmatprep.subr.mxu0 0.0
  %3826 = vmatpush1.msra.mxu0 0.0
  %3827 = vmatprep.subr.mxu0 0.0
  %3828 = vmatpush1.msra.mxu0 0.0
  %3829 = vmatprep.subr.mxu0 0.0
  %3830 = vmatpush1.msra.mxu0 0.0
  %3831 = vmatprep.subr.mxu0 0.0
  %3832 = vmatpush1.msra.mxu0 0.0
  %3833 = vmatprep.subr.mxu0 0.0
  %3834 = vmatpush1.msra.mxu0 0.0
  %3835 = vmatprep.subr.mxu0 0.0
  %3836 = vmatpush1.msra.mxu0 0.0
  %3837 = vmatprep.mubr.f32.mxu0 0.0
  %3838 = vmatmul.mubr.f32.gmra.mrb[0].mxu0 %v3771
  %v3839 = vpop.f32.mrb[0].mxu0
  %v3840 = vadd.f32 0.0, %v3839
  %v3841 = vpop.f32.mrb[0].mxu0
  %3842 = vdwg.mxu0
  %3844 = vrot.lane.b32.xlu0 %v2743, 112
  %v3845 = vpop.permute.xlu0 %3844
  %v3848 = vsel %vm27, %v3429, 0
  %3850 = vmatprep.subr.mxu0 0.0
  %3851 = vmatpush1.msra.mxu0 %v3845
  %3852 = vmatprep.subr.mxu0 0.0
  %3853 = vmatpush1.msra.mxu0 0.0
  %3854 = vmatprep.subr.mxu0 0.0
  %3855 = vmatpush1.msra.mxu0 0.0
  %3856 = vmatprep.subr.mxu0 0.0
  %3857 = vmatpush1.msra.mxu0 0.0
  %3858 = vmatprep.subr.mxu0 0.0
  %3859 = vmatpush1.msra.mxu0 0.0
  %3860 = vmatprep.subr.mxu0 0.0
  %3861 = vmatpush1.msra.mxu0 0.0
  %3862 = vmatprep.subr.mxu0 0.0
  %3863 = vmatpush1.msra.mxu0 0.0
  %3864 = vmatprep.subr.mxu0 0.0
  %3865 = vmatpush1.msra.mxu0 0.0
  %3866 = vmatprep.subr.mxu0 0.0
  %3867 = vmatpush1.msra.mxu0 0.0
  %3868 = vmatprep.subr.mxu0 0.0
  %3869 = vmatpush1.msra.mxu0 0.0
  %3870 = vmatprep.subr.mxu0 0.0
  %3871 = vmatpush1.msra.mxu0 0.0
  %3872 = vmatprep.subr.mxu0 0.0
  %3873 = vmatpush1.msra.mxu0 0.0
  %3874 = vmatprep.subr.mxu0 0.0
  %3875 = vmatpush1.msra.mxu0 0.0
  %3876 = vmatprep.subr.mxu0 0.0
  %3877 = vmatpush1.msra.mxu0 0.0
  %3878 = vmatprep.subr.mxu0 0.0
  %3879 = vmatpush1.msra.mxu0 0.0
  %3880 = vmatprep.subr.mxu0 0.0
  %3881 = vmatpush1.msra.mxu0 0.0
  %3882 = vmatprep.subr.mxu0 0.0
  %3883 = vmatpush1.msra.mxu0 0.0
  %3884 = vmatprep.subr.mxu0 0.0
  %3885 = vmatpush1.msra.mxu0 0.0
  %3886 = vmatprep.subr.mxu0 0.0
  %3887 = vmatpush1.msra.mxu0 0.0
  %3888 = vmatprep.subr.mxu0 0.0
  %3889 = vmatpush1.msra.mxu0 0.0
  %3890 = vmatprep.subr.mxu0 0.0
  %3891 = vmatpush1.msra.mxu0 0.0
  %3892 = vmatprep.subr.mxu0 0.0
  %3893 = vmatpush1.msra.mxu0 0.0
  %3894 = vmatprep.subr.mxu0 0.0
  %3895 = vmatpush1.msra.mxu0 0.0
  %3896 = vmatprep.subr.mxu0 0.0
  %3897 = vmatpush1.msra.mxu0 0.0
  %3898 = vmatprep.subr.mxu0 0.0
  %3899 = vmatpush1.msra.mxu0 0.0
  %3900 = vmatprep.subr.mxu0 0.0
  %3901 = vmatpush1.msra.mxu0 0.0
  %3902 = vmatprep.subr.mxu0 0.0
  %3903 = vmatpush1.msra.mxu0 0.0
  %3904 = vmatprep.subr.mxu0 0.0
  %3905 = vmatpush1.msra.mxu0 0.0
  %3906 = vmatprep.subr.mxu0 0.0
  %3907 = vmatpush1.msra.mxu0 0.0
  %3908 = vmatprep.subr.mxu0 0.0
  %3909 = vmatpush1.msra.mxu0 0.0
  %3910 = vmatprep.subr.mxu0 0.0
  %3911 = vmatpush1.msra.mxu0 0.0
  %3912 = vmatprep.subr.mxu0 0.0
  %3913 = vmatpush1.msra.mxu0 0.0
  %3914 = vmatprep.mubr.f32.mxu0 0.0
  %3915 = vmatmul.mubr.f32.gmra.mrb[0].mxu0 %v3848
  %v3916 = vpop.f32.mrb[0].mxu0
  %v3917 = vadd.f32 0.0, %v3916
  %v3918 = vpop.f32.mrb[0].mxu0
  %3919 = vdwg.mxu0
  %3921 = vrot.lane.b32.xlu0 %v2744, 112
  %v3922 = vpop.permute.xlu0 %3921
  %v3925 = vsel %vm27, %v3431, 0
  %3927 = vmatprep.subr.mxu0 0.0
  %3928 = vmatpush1.msra.mxu0 %v3922
  %3929 = vmatprep.subr.mxu0 0.0
  %3930 = vmatpush1.msra.mxu0 0.0
  %3931 = vmatprep.subr.mxu0 0.0
  %3932 = vmatpush1.msra.mxu0 0.0
  %3933 = vmatprep.subr.mxu0 0.0
  %3934 = vmatpush1.msra.mxu0 0.0
  %3935 = vmatprep.subr.mxu0 0.0
  %3936 = vmatpush1.msra.mxu0 0.0
  %3937 = vmatprep.subr.mxu0 0.0
  %3938 = vmatpush1.msra.mxu0 0.0
  %3939 = vmatprep.subr.mxu0 0.0
  %3940 = vmatpush1.msra.mxu0 0.0
  %3941 = vmatprep.subr.mxu0 0.0
  %3942 = vmatpush1.msra.mxu0 0.0
  %3943 = vmatprep.subr.mxu0 0.0
  %3944 = vmatpush1.msra.mxu0 0.0
  %3945 = vmatprep.subr.mxu0 0.0
  %3946 = vmatpush1.msra.mxu0 0.0
  %3947 = vmatprep.subr.mxu0 0.0
  %3948 = vmatpush1.msra.mxu0 0.0
  %3949 = vmatprep.subr.mxu0 0.0
  %3950 = vmatpush1.msra.mxu0 0.0
  %3951 = vmatprep.subr.mxu0 0.0
  %3952 = vmatpush1.msra.mxu0 0.0
  %3953 = vmatprep.subr.mxu0 0.0
  %3954 = vmatpush1.msra.mxu0 0.0
  %3955 = vmatprep.subr.mxu0 0.0
  %3956 = vmatpush1.msra.mxu0 0.0
  %3957 = vmatprep.subr.mxu0 0.0
  %3958 = vmatpush1.msra.mxu0 0.0
  %3959 = vmatprep.subr.mxu0 0.0
  %3960 = vmatpush1.msra.mxu0 0.0
  %3961 = vmatprep.subr.mxu0 0.0
  %3962 = vmatpush1.msra.mxu0 0.0
  %3963 = vmatprep.subr.mxu0 0.0
  %3964 = vmatpush1.msra.mxu0 0.0
  %3965 = vmatprep.subr.mxu0 0.0
  %3966 = vmatpush1.msra.mxu0 0.0
  %3967 = vmatprep.subr.mxu0 0.0
  %3968 = vmatpush1.msra.mxu0 0.0
  %3969 = vmatprep.subr.mxu0 0.0
  %3970 = vmatpush1.msra.mxu0 0.0
  %3971 = vmatprep.subr.mxu0 0.0
  %3972 = vmatpush1.msra.mxu0 0.0
  %3973 = vmatprep.subr.mxu0 0.0
  %3974 = vmatpush1.msra.mxu0 0.0
  %3975 = vmatprep.subr.mxu0 0.0
  %3976 = vmatpush1.msra.mxu0 0.0
  %3977 = vmatprep.subr.mxu0 0.0
  %3978 = vmatpush1.msra.mxu0 0.0
  %3979 = vmatprep.subr.mxu0 0.0
  %3980 = vmatpush1.msra.mxu0 0.0
  %3981 = vmatprep.subr.mxu0 0.0
  %3982 = vmatpush1.msra.mxu0 0.0
  %3983 = vmatprep.subr.mxu0 0.0
  %3984 = vmatpush1.msra.mxu0 0.0
  %3985 = vmatprep.subr.mxu0 0.0
  %3986 = vmatpush1.msra.mxu0 0.0
  %3987 = vmatprep.subr.mxu0 0.0
  %3988 = vmatpush1.msra.mxu0 0.0
  %3989 = vmatprep.subr.mxu0 0.0
  %3990 = vmatpush1.msra.mxu0 0.0
  %3991 = vmatprep.mubr.f32.mxu0 0.0
  %3992 = vmatmul.mubr.f32.gmra.mrb[0].mxu0 %v3925
  %v3993 = vpop.f32.mrb[0].mxu0
  %v3994 = vadd.f32 0.0, %v3993
  %v3995 = vpop.f32.mrb[0].mxu0
  %3996 = vdwg.mxu0
  %3998 = vrot.lane.b32.xlu0 %v2745, 112
  %v3999 = vpop.permute.xlu0 %3998
  %v4002 = vsel %vm27, %v3433, 0
  %4004 = vmatprep.subr.mxu0 0.0
  %4005 = vmatpush1.msra.mxu0 %v3999
  %4006 = vmatprep.subr.mxu0 0.0
  %4007 = vmatpush1.msra.mxu0 0.0
  %4008 = vmatprep.subr.mxu0 0.0
  %4009 = vmatpush1.msra.mxu0 0.0
  %4010 = vmatprep.subr.mxu0 0.0
  %4011 = vmatpush1.msra.mxu0 0.0
  %4012 = vmatprep.subr.mxu0 0.0
  %4013 = vmatpush1.msra.mxu0 0.0
  %4014 = vmatprep.subr.mxu0 0.0
  %4015 = vmatpush1.msra.mxu0 0.0
  %4016 = vmatprep.subr.mxu0 0.0
  %4017 = vmatpush1.msra.mxu0 0.0
  %4018 = vmatprep.subr.mxu0 0.0
  %4019 = vmatpush1.msra.mxu0 0.0
  %4020 = vmatprep.subr.mxu0 0.0
  %4021 = vmatpush1.msra.mxu0 0.0
  %4022 = vmatprep.subr.mxu0 0.0
  %4023 = vmatpush1.msra.mxu0 0.0
  %4024 = vmatprep.subr.mxu0 0.0
  %4025 = vmatpush1.msra.mxu0 0.0
  %4026 = vmatprep.subr.mxu0 0.0
  %4027 = vmatpush1.msra.mxu0 0.0
  %4028 = vmatprep.subr.mxu0 0.0
  %4029 = vmatpush1.msra.mxu0 0.0
  %4030 = vmatprep.subr.mxu0 0.0
  %4031 = vmatpush1.msra.mxu0 0.0
  %4032 = vmatprep.subr.mxu0 0.0
  %4033 = vmatpush1.msra.mxu0 0.0
  %4034 = vmatprep.subr.mxu0 0.0
  %4035 = vmatpush1.msra.mxu0 0.0
  %4036 = vmatprep.subr.mxu0 0.0
  %4037 = vmatpush1.msra.mxu0 0.0
  %4038 = vmatprep.subr.mxu0 0.0
  %4039 = vmatpush1.msra.mxu0 0.0
  %4040 = vmatprep.subr.mxu0 0.0
  %4041 = vmatpush1.msra.mxu0 0.0
  %4042 = vmatprep.subr.mxu0 0.0
  %4043 = vmatpush1.msra.mxu0 0.0
  %4044 = vmatprep.subr.mxu0 0.0
  %4045 = vmatpush1.msra.mxu0 0.0
  %4046 = vmatprep.subr.mxu0 0.0
  %4047 = vmatpush1.msra.mxu0 0.0
  %4048 = vmatprep.subr.mxu0 0.0
  %4049 = vmatpush1.msra.mxu0 0.0
  %4050 = vmatprep.subr.mxu0 0.0
  %4051 = vmatpush1.msra.mxu0 0.0
  %4052 = vmatprep.subr.mxu0 0.0
  %4053 = vmatpush1.msra.mxu0 0.0
  %4054 = vmatprep.subr.mxu0 0.0
  %4055 = vmatpush1.msra.mxu0 0.0
  %4056 = vmatprep.subr.mxu0 0.0
  %4057 = vmatpush1.msra.mxu0 0.0
  %4058 = vmatprep.subr.mxu0 0.0
  %4059 = vmatpush1.msra.mxu0 0.0
  %4060 = vmatprep.subr.mxu0 0.0
  %4061 = vmatpush1.msra.mxu0 0.0
  %4062 = vmatprep.subr.mxu0 0.0
  %4063 = vmatpush1.msra.mxu0 0.0
  %4064 = vmatprep.subr.mxu0 0.0
  %4065 = vmatpush1.msra.mxu0 0.0
  %4066 = vmatprep.subr.mxu0 0.0
  %4067 = vmatpush1.msra.mxu0 0.0
  %4068 = vmatprep.mubr.f32.mxu0 0.0
  %4069 = vmatmul.mubr.f32.gmra.mrb[0].mxu0 %v4002
  %v4070 = vpop.f32.mrb[0].mxu0
  %v4071 = vadd.f32 0.0, %v4070
  %v4072 = vpop.f32.mrb[0].mxu0
  %4073 = vdwg.mxu0
  %v4074 = vrcp.pop %v3436
  %v4075 = vrcp.pop %v3439
  %v4076 = vrcp.pop %v3442
  %v4077 = vrcp.pop %v3445
  %v4078 = vrcp.pop %v3448
  %v4079 = vrcp.pop %v3451
  %v4080 = vrcp.pop %v3454
  %v4081 = vrcp.pop %v3457
  %v4082 = vmul.f32 %v3532, %v4074
  %v4083 = vmul.f32 %v3609, %v4075
  %v4084 = vmul.f32 %v3686, %v4076
  %v4085 = vmul.f32 %v3763, %v4077
  %v4086 = vmul.f32 %v3840, %v4078
  %v4087 = vmul.f32 %v3917, %v4079
  %v4088 = vmul.f32 %v3994, %v4080
  %v4089 = vmul.f32 %v4071, %v4081
  %4098 = vrot.lane.b32.xlu0 %v4082, 16
  %v4099 = vpop.permute.xlu0 %4098
  %4100 = vrot.lane.b32.xlu0 %v4083, 16
  %v4101 = vpop.permute.xlu0 %4100
  %4102 = vrot.lane.b32.xlu0 %v4084, 16
  %v4103 = vpop.permute.xlu0 %4102
  %4104 = vrot.lane.b32.xlu0 %v4085, 16
  %v4105 = vpop.permute.xlu0 %4104
  %4106 = vrot.lane.b32.xlu0 %v4086, 16
  %v4107 = vpop.permute.xlu0 %4106
  %4108 = vrot.lane.b32.xlu0 %v4087, 16
  %v4109 = vpop.permute.xlu0 %4108
  %4110 = vrot.lane.b32.xlu0 %v4088, 16
  %v4111 = vpop.permute.xlu0 %4110
  %4112 = vrot.lane.b32.xlu0 %v4089, 16
  %v4113 = vpop.permute.xlu0 %4112
  %vm4122 = vcmask 195712
  %4123 = vst.msk [vmem:[%s1] sm:$0xff] %vm4122, %v4099
  %4124 = vst.msk [vmem:[%s1 + $0x8] sm:$0xff] %vm4122, %v4101
  %4125 = vst.msk [vmem:[%s1 + $0x10] sm:$0xff] %vm4122, %v4103
  %4126 = vst.msk [vmem:[%s1 + $0x18] sm:$0xff] %vm4122, %v4105
  %4127 = vst.msk [vmem:[%s1 + $0x20] sm:$0xff] %vm4122, %v4107
  %4128 = vst.msk [vmem:[%s1 + $0x28] sm:$0xff] %vm4122, %v4109
  %4129 = vst.msk [vmem:[%s1 + $0x30] sm:$0xff] %vm4122, %v4111
  %4130 = vst.msk [vmem:[%s1 + $0x38] sm:$0xff] %vm4122, %v4113
  %v4131 = vld [vmem:[%s0] sm:$0xff]
  %v4132 = vld [vmem:[%s0 + $0x10] sm:$0xff]
  %v4133 = vld [vmem:[%s0 + $0x20] sm:$0xff]
  %v4134 = vld [vmem:[%s0 + $0x30] sm:$0xff]
  %v4135 = vld [vmem:[%s0 + $0x40] sm:$0xff]
  %v4136 = vld [vmem:[%s0 + $0x50] sm:$0xff]
  %v4137 = vld [vmem:[%s0 + $0x60] sm:$0xff]
  %v4138 = vld [vmem:[%s0 + $0x70] sm:$0xff]
  %v4139 = vld [vmem:[%s0 + $0x8] sm:$0xff]
  %v4140 = vld [vmem:[%s0 + $0x18] sm:$0xff]
  %v4141 = vld [vmem:[%s0 + $0x28] sm:$0xff]
  %v4142 = vld [vmem:[%s0 + $0x38] sm:$0xff]
  %v4143 = vld [vmem:[%s0 + $0x48] sm:$0xff]
  %v4144 = vld [vmem:[%s0 + $0x58] sm:$0xff]
  %v4145 = vld [vmem:[%s0 + $0x68] sm:$0xff]
  %v4146 = vld [vmem:[%s0 + $0x78] sm:$0xff]
  %4148 = vrot.lane.b32.xlu0 %v4131, 104
  %v4149 = vpop.permute.xlu0 %4148
  %4150 = vrot.lane.b32.xlu0 %v4131, 40
  %v4151 = vpop.permute.xlu0 %4150
  %v4152 = vsel %vm27, %v4149, 0
  %v4154 = vsel %vm27, %v4151, 0
  %4156 = vmatprep.subr.mxu0 0.0
  %4157 = vmatpush1.xpose.msra.mxu0 %v4154
  %4158 = vmatprep.subr.mxu0 0.0
  %4159 = vmatpush1.xpose.msra.mxu0 0.0
  %4160 = vmatprep.subr.mxu0 0.0
  %4161 = vmatpush1.xpose.msra.mxu0 0.0
  %4162 = vmatprep.subr.mxu0 0.0
  %4163 = vmatpush1.xpose.msra.mxu0 0.0
  %4164 = vmatprep.subr.mxu0 0.0
  %4165 = vmatpush1.xpose.msra.mxu0 0.0
  %4166 = vmatprep.subr.mxu0 0.0
  %4167 = vmatpush1.xpose.msra.mxu0 0.0
  %4168 = vmatprep.subr.mxu0 0.0
  %4169 = vmatpush1.xpose.msra.mxu0 0.0
  %4170 = vmatprep.subr.mxu0 0.0
  %4171 = vmatpush1.xpose.msra.mxu0 0.0
  %4172 = vmatprep.subr.mxu0 0.0
  %4173 = vmatpush1.xpose.msra.mxu0 0.0
  %4174 = vmatprep.subr.mxu0 0.0
  %4175 = vmatpush1.xpose.msra.mxu0 0.0
  %4176 = vmatprep.subr.mxu0 0.0
  %4177 = vmatpush1.xpose.msra.mxu0 0.0
  %4178 = vmatprep.subr.mxu0 0.0
  %4179 = vmatpush1.xpose.msra.mxu0 0.0
  %4180 = vmatprep.subr.mxu0 0.0
  %4181 = vmatpush1.xpose.msra.mxu0 0.0
  %4182 = vmatprep.subr.mxu0 0.0
  %4183 = vmatpush1.xpose.msra.mxu0 0.0
  %4184 = vmatprep.subr.mxu0 0.0
  %4185 = vmatpush1.xpose.msra.mxu0 0.0
  %4186 = vmatprep.subr.mxu0 0.0
  %4187 = vmatpush1.xpose.msra.mxu0 0.0
  %4188 = vmatprep.subr.mxu0 0.0
  %4189 = vmatpush1.xpose.msra.mxu0 0.0
  %4190 = vmatprep.subr.mxu0 0.0
  %4191 = vmatpush1.xpose.msra.mxu0 0.0
  %4192 = vmatprep.subr.mxu0 0.0
  %4193 = vmatpush1.xpose.msra.mxu0 0.0
  %4194 = vmatprep.subr.mxu0 0.0
  %4195 = vmatpush1.xpose.msra.mxu0 0.0
  %4196 = vmatprep.subr.mxu0 0.0
  %4197 = vmatpush1.xpose.msra.mxu0 0.0
  %4198 = vmatprep.subr.mxu0 0.0
  %4199 = vmatpush1.xpose.msra.mxu0 0.0
  %4200 = vmatprep.subr.mxu0 0.0
  %4201 = vmatpush1.xpose.msra.mxu0 0.0
  %4202 = vmatprep.subr.mxu0 0.0
  %4203 = vmatpush1.xpose.msra.mxu0 0.0
  %4204 = vmatprep.subr.mxu0 0.0
  %4205 = vmatpush1.xpose.msra.mxu0 0.0
  %4206 = vmatprep.subr.mxu0 0.0
  %4207 = vmatpush1.xpose.msra.mxu0 0.0
  %4208 = vmatprep.subr.mxu0 0.0
  %4209 = vmatpush1.xpose.msra.mxu0 0.0
  %4210 = vmatprep.subr.mxu0 0.0
  %4211 = vmatpush1.xpose.msra.mxu0 0.0
  %4212 = vmatprep.subr.mxu0 0.0
  %4213 = vmatpush1.xpose.msra.mxu0 0.0
  %4214 = vmatprep.subr.mxu0 0.0
  %4215 = vmatpush1.xpose.msra.mxu0 0.0
  %4216 = vmatprep.subr.mxu0 0.0
  %4217 = vmatpush1.xpose.msra.mxu0 0.0
  %4218 = vmatprep.subr.mxu0 0.0
  %4219 = vmatpush1.xpose.msra.mxu0 0.0
  %4220 = vmatprep.mubr.f32.mxu0 0.0
  %4221 = vmatmul.mubr.f32.gmra.mrb[0].mxu0 %v4152
  %v4222 = vpop.f32.mrb[0].mxu0
  %v4223 = vadd.f32 0.0, %v4222
  %v4224 = vpop.f32.mrb[0].mxu0
  %4225 = vdwg.mxu0
  %4227 = vrot.lane.b32.xlu0 %v4132, 104
  %v4228 = vpop.permute.xlu0 %4227
  %4229 = vrot.lane.b32.xlu0 %v4132, 40
  %v4230 = vpop.permute.xlu0 %4229
  %v4231 = vsel %vm27, %v4228, 0
  %v4233 = vsel %vm27, %v4230, 0
  %4235 = vmatprep.subr.mxu0 0.0
  %4236 = vmatpush1.xpose.msra.mxu0 %v4233
  %4237 = vmatprep.subr.mxu0 0.0
  %4238 = vmatpush1.xpose.msra.mxu0 0.0
  %4239 = vmatprep.subr.mxu0 0.0
  %4240 = vmatpush1.xpose.msra.mxu0 0.0
  %4241 = vmatprep.subr.mxu0 0.0
  %4242 = vmatpush1.xpose.msra.mxu0 0.0
  %4243 = vmatprep.subr.mxu0 0.0
  %4244 = vmatpush1.xpose.msra.mxu0 0.0
  %4245 = vmatprep.subr.mxu0 0.0
  %4246 = vmatpush1.xpose.msra.mxu0 0.0
  %4247 = vmatprep.subr.mxu0 0.0
  %4248 = vmatpush1.xpose.msra.mxu0 0.0
  %4249 = vmatprep.subr.mxu0 0.0
  %4250 = vmatpush1.xpose.msra.mxu0 0.0
  %4251 = vmatprep.subr.mxu0 0.0
  %4252 = vmatpush1.xpose.msra.mxu0 0.0
  %4253 = vmatprep.subr.mxu0 0.0
  %4254 = vmatpush1.xpose.msra.mxu0 0.0
  %4255 = vmatprep.subr.mxu0 0.0
  %4256 = vmatpush1.xpose.msra.mxu0 0.0
  %4257 = vmatprep.subr.mxu0 0.0
  %4258 = vmatpush1.xpose.msra.mxu0 0.0
  %4259 = vmatprep.subr.mxu0 0.0
  %4260 = vmatpush1.xpose.msra.mxu0 0.0
  %4261 = vmatprep.subr.mxu0 0.0
  %4262 = vmatpush1.xpose.msra.mxu0 0.0
  %4263 = vmatprep.subr.mxu0 0.0
  %4264 = vmatpush1.xpose.msra.mxu0 0.0
  %4265 = vmatprep.subr.mxu0 0.0
  %4266 = vmatpush1.xpose.msra.mxu0 0.0
  %4267 = vmatprep.subr.mxu0 0.0
  %4268 = vmatpush1.xpose.msra.mxu0 0.0
  %4269 = vmatprep.subr.mxu0 0.0
  %4270 = vmatpush1.xpose.msra.mxu0 0.0
  %4271 = vmatprep.subr.mxu0 0.0
  %4272 = vmatpush1.xpose.msra.mxu0 0.0
  %4273 = vmatprep.subr.mxu0 0.0
  %4274 = vmatpush1.xpose.msra.mxu0 0.0
  %4275 = vmatprep.subr.mxu0 0.0
  %4276 = vmatpush1.xpose.msra.mxu0 0.0
  %4277 = vmatprep.subr.mxu0 0.0
  %4278 = vmatpush1.xpose.msra.mxu0 0.0
  %4279 = vmatprep.subr.mxu0 0.0
  %4280 = vmatpush1.xpose.msra.mxu0 0.0
  %4281 = vmatprep.subr.mxu0 0.0
  %4282 = vmatpush1.xpose.msra.mxu0 0.0
  %4283 = vmatprep.subr.mxu0 0.0
  %4284 = vmatpush1.xpose.msra.mxu0 0.0
  %4285 = vmatprep.subr.mxu0 0.0
  %4286 = vmatpush1.xpose.msra.mxu0 0.0
  %4287 = vmatprep.subr.mxu0 0.0
  %4288 = vmatpush1.xpose.msra.mxu0 0.0
  %4289 = vmatprep.subr.mxu0 0.0
  %4290 = vmatpush1.xpose.msra.mxu0 0.0
  %4291 = vmatprep.subr.mxu0 0.0
  %4292 = vmatpush1.xpose.msra.mxu0 0.0
  %4293 = vmatprep.subr.mxu0 0.0
  %4294 = vmatpush1.xpose.msra.mxu0 0.0
  %4295 = vmatprep.subr.mxu0 0.0
  %4296 = vmatpush1.xpose.msra.mxu0 0.0
  %4297 = vmatprep.subr.mxu0 0.0
  %4298 = vmatpush1.xpose.msra.mxu0 0.0
  %4299 = vmatprep.mubr.f32.mxu0 0.0
  %4300 = vmatmul.mubr.f32.gmra.mrb[0].mxu0 %v4231
  %v4301 = vpop.f32.mrb[0].mxu0
  %v4302 = vadd.f32 0.0, %v4301
  %v4303 = vpop.f32.mrb[0].mxu0
  %4304 = vdwg.mxu0
  %4306 = vrot.lane.b32.xlu0 %v4133, 104
  %v4307 = vpop.permute.xlu0 %4306
  %4308 = vrot.lane.b32.xlu0 %v4133, 40
  %v4309 = vpop.permute.xlu0 %4308
  %v4310 = vsel %vm27, %v4307, 0
  %v4312 = vsel %vm27, %v4309, 0
  %4314 = vmatprep.subr.mxu0 0.0
  %4315 = vmatpush1.xpose.msra.mxu0 %v4312
  %4316 = vmatprep.subr.mxu0 0.0
  %4317 = vmatpush1.xpose.msra.mxu0 0.0
  %4318 = vmatprep.subr.mxu0 0.0
  %4319 = vmatpush1.xpose.msra.mxu0 0.0
  %4320 = vmatprep.subr.mxu0 0.0
  %4321 = vmatpush1.xpose.msra.mxu0 0.0
  %4322 = vmatprep.subr.mxu0 0.0
  %4323 = vmatpush1.xpose.msra.mxu0 0.0
  %4324 = vmatprep.subr.mxu0 0.0
  %4325 = vmatpush1.xpose.msra.mxu0 0.0
  %4326 = vmatprep.subr.mxu0 0.0
  %4327 = vmatpush1.xpose.msra.mxu0 0.0
  %4328 = vmatprep.subr.mxu0 0.0
  %4329 = vmatpush1.xpose.msra.mxu0 0.0
  %4330 = vmatprep.subr.mxu0 0.0
  %4331 = vmatpush1.xpose.msra.mxu0 0.0
  %4332 = vmatprep.subr.mxu0 0.0
  %4333 = vmatpush1.xpose.msra.mxu0 0.0
  %4334 = vmatprep.subr.mxu0 0.0
  %4335 = vmatpush1.xpose.msra.mxu0 0.0
  %4336 = vmatprep.subr.mxu0 0.0
  %4337 = vmatpush1.xpose.msra.mxu0 0.0
  %4338 = vmatprep.subr.mxu0 0.0
  %4339 = vmatpush1.xpose.msra.mxu0 0.0
  %4340 = vmatprep.subr.mxu0 0.0
  %4341 = vmatpush1.xpose.msra.mxu0 0.0
  %4342 = vmatprep.subr.mxu0 0.0
  %4343 = vmatpush1.xpose.msra.mxu0 0.0
  %4344 = vmatprep.subr.mxu0 0.0
  %4345 = vmatpush1.xpose.msra.mxu0 0.0
  %4346 = vmatprep.subr.mxu0 0.0
  %4347 = vmatpush1.xpose.msra.mxu0 0.0
  %4348 = vmatprep.subr.mxu0 0.0
  %4349 = vmatpush1.xpose.msra.mxu0 0.0
  %4350 = vmatprep.subr.mxu0 0.0
  %4351 = vmatpush1.xpose.msra.mxu0 0.0
  %4352 = vmatprep.subr.mxu0 0.0
  %4353 = vmatpush1.xpose.msra.mxu0 0.0
  %4354 = vmatprep.subr.mxu0 0.0
  %4355 = vmatpush1.xpose.msra.mxu0 0.0
  %4356 = vmatprep.subr.mxu0 0.0
  %4357 = vmatpush1.xpose.msra.mxu0 0.0
  %4358 = vmatprep.subr.mxu0 0.0
  %4359 = vmatpush1.xpose.msra.mxu0 0.0
  %4360 = vmatprep.subr.mxu0 0.0
  %4361 = vmatpush1.xpose.msra.mxu0 0.0
  %4362 = vmatprep.subr.mxu0 0.0
  %4363 = vmatpush1.xpose.msra.mxu0 0.0
  %4364 = vmatprep.subr.mxu0 0.0
  %4365 = vmatpush1.xpose.msra.mxu0 0.0
  %4366 = vmatprep.subr.mxu0 0.0
  %4367 = vmatpush1.xpose.msra.mxu0 0.0
  %4368 = vmatprep.subr.mxu0 0.0
  %4369 = vmatpush1.xpose.msra.mxu0 0.0
  %4370 = vmatprep.subr.mxu0 0.0
  %4371 = vmatpush1.xpose.msra.mxu0 0.0
  %4372 = vmatprep.subr.mxu0 0.0
  %4373 = vmatpush1.xpose.msra.mxu0 0.0
  %4374 = vmatprep.subr.mxu0 0.0
  %4375 = vmatpush1.xpose.msra.mxu0 0.0
  %4376 = vmatprep.subr.mxu0 0.0
  %4377 = vmatpush1.xpose.msra.mxu0 0.0
  %4378 = vmatprep.mubr.f32.mxu0 0.0
  %4379 = vmatmul.mubr.f32.gmra.mrb[0].mxu0 %v4310
  %v4380 = vpop.f32.mrb[0].mxu0
  %v4381 = vadd.f32 0.0, %v4380
  %v4382 = vpop.f32.mrb[0].mxu0
  %4383 = vdwg.mxu0
  %4385 = vrot.lane.b32.xlu0 %v4134, 104
  %v4386 = vpop.permute.xlu0 %4385
  %4387 = vrot.lane.b32.xlu0 %v4134, 40
  %v4388 = vpop.permute.xlu0 %4387
  %v4389 = vsel %vm27, %v4386, 0
  %v4391 = vsel %vm27, %v4388, 0
  %4393 = vmatprep.subr.mxu0 0.0
  %4394 = vmatpush1.xpose.msra.mxu0 %v4391
  %4395 = vmatprep.subr.mxu0 0.0
  %4396 = vmatpush1.xpose.msra.mxu0 0.0
  %4397 = vmatprep.subr.mxu0 0.0
  %4398 = vmatpush1.xpose.msra.mxu0 0.0
  %4399 = vmatprep.subr.mxu0 0.0
  %4400 = vmatpush1.xpose.msra.mxu0 0.0
  %4401 = vmatprep.subr.mxu0 0.0
  %4402 = vmatpush1.xpose.msra.mxu0 0.0
  %4403 = vmatprep.subr.mxu0 0.0
  %4404 = vmatpush1.xpose.msra.mxu0 0.0
  %4405 = vmatprep.subr.mxu0 0.0
  %4406 = vmatpush1.xpose.msra.mxu0 0.0
  %4407 = vmatprep.subr.mxu0 0.0
  %4408 = vmatpush1.xpose.msra.mxu0 0.0
  %4409 = vmatprep.subr.mxu0 0.0
  %4410 = vmatpush1.xpose.msra.mxu0 0.0
  %4411 = vmatprep.subr.mxu0 0.0
  %4412 = vmatpush1.xpose.msra.mxu0 0.0
  %4413 = vmatprep.subr.mxu0 0.0
  %4414 = vmatpush1.xpose.msra.mxu0 0.0
  %4415 = vmatprep.subr.mxu0 0.0
  %4416 = vmatpush1.xpose.msra.mxu0 0.0
  %4417 = vmatprep.subr.mxu0 0.0
  %4418 = vmatpush1.xpose.msra.mxu0 0.0
  %4419 = vmatprep.subr.mxu0 0.0
  %4420 = vmatpush1.xpose.msra.mxu0 0.0
  %4421 = vmatprep.subr.mxu0 0.0
  %4422 = vmatpush1.xpose.msra.mxu0 0.0
  %4423 = vmatprep.subr.mxu0 0.0
  %4424 = vmatpush1.xpose.msra.mxu0 0.0
  %4425 = vmatprep.subr.mxu0 0.0
  %4426 = vmatpush1.xpose.msra.mxu0 0.0
  %4427 = vmatprep.subr.mxu0 0.0
  %4428 = vmatpush1.xpose.msra.mxu0 0.0
  %4429 = vmatprep.subr.mxu0 0.0
  %4430 = vmatpush1.xpose.msra.mxu0 0.0
  %4431 = vmatprep.subr.mxu0 0.0
  %4432 = vmatpush1.xpose.msra.mxu0 0.0
  %4433 = vmatprep.subr.mxu0 0.0
  %4434 = vmatpush1.xpose.msra.mxu0 0.0
  %4435 = vmatprep.subr.mxu0 0.0
  %4436 = vmatpush1.xpose.msra.mxu0 0.0
  %4437 = vmatprep.subr.mxu0 0.0
  %4438 = vmatpush1.xpose.msra.mxu0 0.0
  %4439 = vmatprep.subr.mxu0 0.0
  %4440 = vmatpush1.xpose.msra.mxu0 0.0
  %4441 = vmatprep.subr.mxu0 0.0
  %4442 = vmatpush1.xpose.msra.mxu0 0.0
  %4443 = vmatprep.subr.mxu0 0.0
  %4444 = vmatpush1.xpose.msra.mxu0 0.0
  %4445 = vmatprep.subr.mxu0 0.0
  %4446 = vmatpush1.xpose.msra.mxu0 0.0
  %4447 = vmatprep.subr.mxu0 0.0
  %4448 = vmatpush1.xpose.msra.mxu0 0.0
  %4449 = vmatprep.subr.mxu0 0.0
  %4450 = vmatpush1.xpose.msra.mxu0 0.0
  %4451 = vmatprep.subr.mxu0 0.0
  %4452 = vmatpush1.xpose.msra.mxu0 0.0
  %4453 = vmatprep.subr.mxu0 0.0
  %4454 = vmatpush1.xpose.msra.mxu0 0.0
  %4455 = vmatprep.subr.mxu0 0.0
  %4456 = vmatpush1.xpose.msra.mxu0 0.0
  %4457 = vmatprep.mubr.f32.mxu0 0.0
  %4458 = vmatmul.mubr.f32.gmra.mrb[0].mxu0 %v4389
  %v4459 = vpop.f32.mrb[0].mxu0
  %v4460 = vadd.f32 0.0, %v4459
  %v4461 = vpop.f32.mrb[0].mxu0
  %4462 = vdwg.mxu0
  %4464 = vrot.lane.b32.xlu0 %v4135, 104
  %v4465 = vpop.permute.xlu0 %4464
  %4466 = vrot.lane.b32.xlu0 %v4135, 40
  %v4467 = vpop.permute.xlu0 %4466
  %v4468 = vsel %vm27, %v4465, 0
  %v4470 = vsel %vm27, %v4467, 0
  %4472 = vmatprep.subr.mxu0 0.0
  %4473 = vmatpush1.xpose.msra.mxu0 %v4470
  %4474 = vmatprep.subr.mxu0 0.0
  %4475 = vmatpush1.xpose.msra.mxu0 0.0
  %4476 = vmatprep.subr.mxu0 0.0
  %4477 = vmatpush1.xpose.msra.mxu0 0.0
  %4478 = vmatprep.subr.mxu0 0.0
  %4479 = vmatpush1.xpose.msra.mxu0 0.0
  %4480 = vmatprep.subr.mxu0 0.0
  %4481 = vmatpush1.xpose.msra.mxu0 0.0
  %4482 = vmatprep.subr.mxu0 0.0
  %4483 = vmatpush1.xpose.msra.mxu0 0.0
  %4484 = vmatprep.subr.mxu0 0.0
  %4485 = vmatpush1.xpose.msra.mxu0 0.0
  %4486 = vmatprep.subr.mxu0 0.0
  %4487 = vmatpush1.xpose.msra.mxu0 0.0
  %4488 = vmatprep.subr.mxu0 0.0
  %4489 = vmatpush1.xpose.msra.mxu0 0.0
  %4490 = vmatprep.subr.mxu0 0.0
  %4491 = vmatpush1.xpose.msra.mxu0 0.0
  %4492 = vmatprep.subr.mxu0 0.0
  %4493 = vmatpush1.xpose.msra.mxu0 0.0
  %4494 = vmatprep.subr.mxu0 0.0
  %4495 = vmatpush1.xpose.msra.mxu0 0.0
  %4496 = vmatprep.subr.mxu0 0.0
  %4497 = vmatpush1.xpose.msra.mxu0 0.0
  %4498 = vmatprep.subr.mxu0 0.0
  %4499 = vmatpush1.xpose.msra.mxu0 0.0
  %4500 = vmatprep.subr.mxu0 0.0
  %4501 = vmatpush1.xpose.msra.mxu0 0.0
  %4502 = vmatprep.subr.mxu0 0.0
  %4503 = vmatpush1.xpose.msra.mxu0 0.0
  %4504 = vmatprep.subr.mxu0 0.0
  %4505 = vmatpush1.xpose.msra.mxu0 0.0
  %4506 = vmatprep.subr.mxu0 0.0
  %4507 = vmatpush1.xpose.msra.mxu0 0.0
  %4508 = vmatprep.subr.mxu0 0.0
  %4509 = vmatpush1.xpose.msra.mxu0 0.0
  %4510 = vmatprep.subr.mxu0 0.0
  %4511 = vmatpush1.xpose.msra.mxu0 0.0
  %4512 = vmatprep.subr.mxu0 0.0
  %4513 = vmatpush1.xpose.msra.mxu0 0.0
  %4514 = vmatprep.subr.mxu0 0.0
  %4515 = vmatpush1.xpose.msra.mxu0 0.0
  %4516 = vmatprep.subr.mxu0 0.0
  %4517 = vmatpush1.xpose.msra.mxu0 0.0
  %4518 = vmatprep.subr.mxu0 0.0
  %4519 = vmatpush1.xpose.msra.mxu0 0.0
  %4520 = vmatprep.subr.mxu0 0.0
  %4521 = vmatpush1.xpose.msra.mxu0 0.0
  %4522 = vmatprep.subr.mxu0 0.0
  %4523 = vmatpush1.xpose.msra.mxu0 0.0
  %4524 = vmatprep.subr.mxu0 0.0
  %4525 = vmatpush1.xpose.msra.mxu0 0.0
  %4526 = vmatprep.subr.mxu0 0.0
  %4527 = vmatpush1.xpose.msra.mxu0 0.0
  %4528 = vmatprep.subr.mxu0 0.0
  %4529 = vmatpush1.xpose.msra.mxu0 0.0
  %4530 = vmatprep.subr.mxu0 0.0
  %4531 = vmatpush1.xpose.msra.mxu0 0.0
  %4532 = vmatprep.subr.mxu0 0.0
  %4533 = vmatpush1.xpose.msra.mxu0 0.0
  %4534 = vmatprep.subr.mxu0 0.0
  %4535 = vmatpush1.xpose.msra.mxu0 0.0
  %4536 = vmatprep.mubr.f32.mxu0 0.0
  %4537 = vmatmul.mubr.f32.gmra.mrb[0].mxu0 %v4468
  %v4538 = vpop.f32.mrb[0].mxu0
  %v4539 = vadd.f32 0.0, %v4538
  %v4540 = vpop.f32.mrb[0].mxu0
  %4541 = vdwg.mxu0
  %4543 = vrot.lane.b32.xlu0 %v4136, 104
  %v4544 = vpop.permute.xlu0 %4543
  %4545 = vrot.lane.b32.xlu0 %v4136, 40
  %v4546 = vpop.permute.xlu0 %4545
  %v4547 = vsel %vm27, %v4544, 0
  %v4549 = vsel %vm27, %v4546, 0
  %4551 = vmatprep.subr.mxu0 0.0
  %4552 = vmatpush1.xpose.msra.mxu0 %v4549
  %4553 = vmatprep.subr.mxu0 0.0
  %4554 = vmatpush1.xpose.msra.mxu0 0.0
  %4555 = vmatprep.subr.mxu0 0.0
  %4556 = vmatpush1.xpose.msra.mxu0 0.0
  %4557 = vmatprep.subr.mxu0 0.0
  %4558 = vmatpush1.xpose.msra.mxu0 0.0
  %4559 = vmatprep.subr.mxu0 0.0
  %4560 = vmatpush1.xpose.msra.mxu0 0.0
  %4561 = vmatprep.subr.mxu0 0.0
  %4562 = vmatpush1.xpose.msra.mxu0 0.0
  %4563 = vmatprep.subr.mxu0 0.0
  %4564 = vmatpush1.xpose.msra.mxu0 0.0
  %4565 = vmatprep.subr.mxu0 0.0
  %4566 = vmatpush1.xpose.msra.mxu0 0.0
  %4567 = vmatprep.subr.mxu0 0.0
  %4568 = vmatpush1.xpose.msra.mxu0 0.0
  %4569 = vmatprep.subr.mxu0 0.0
  %4570 = vmatpush1.xpose.msra.mxu0 0.0
  %4571 = vmatprep.subr.mxu0 0.0
  %4572 = vmatpush1.xpose.msra.mxu0 0.0
  %4573 = vmatprep.subr.mxu0 0.0
  %4574 = vmatpush1.xpose.msra.mxu0 0.0
  %4575 = vmatprep.subr.mxu0 0.0
  %4576 = vmatpush1.xpose.msra.mxu0 0.0
  %4577 = vmatprep.subr.mxu0 0.0
  %4578 = vmatpush1.xpose.msra.mxu0 0.0
  %4579 = vmatprep.subr.mxu0 0.0
  %4580 = vmatpush1.xpose.msra.mxu0 0.0
  %4581 = vmatprep.subr.mxu0 0.0
  %4582 = vmatpush1.xpose.msra.mxu0 0.0
  %4583 = vmatprep.subr.mxu0 0.0
  %4584 = vmatpush1.xpose.msra.mxu0 0.0
  %4585 = vmatprep.subr.mxu0 0.0
  %4586 = vmatpush1.xpose.msra.mxu0 0.0
  %4587 = vmatprep.subr.mxu0 0.0
  %4588 = vmatpush1.xpose.msra.mxu0 0.0
  %4589 = vmatprep.subr.mxu0 0.0
  %4590 = vmatpush1.xpose.msra.mxu0 0.0
  %4591 = vmatprep.subr.mxu0 0.0
  %4592 = vmatpush1.xpose.msra.mxu0 0.0
  %4593 = vmatprep.subr.mxu0 0.0
  %4594 = vmatpush1.xpose.msra.mxu0 0.0
  %4595 = vmatprep.subr.mxu0 0.0
  %4596 = vmatpush1.xpose.msra.mxu0 0.0
  %4597 = vmatprep.subr.mxu0 0.0
  %4598 = vmatpush1.xpose.msra.mxu0 0.0
  %4599 = vmatprep.subr.mxu0 0.0
  %4600 = vmatpush1.xpose.msra.mxu0 0.0
  %4601 = vmatprep.subr.mxu0 0.0
  %4602 = vmatpush1.xpose.msra.mxu0 0.0
  %4603 = vmatprep.subr.mxu0 0.0
  %4604 = vmatpush1.xpose.msra.mxu0 0.0
  %4605 = vmatprep.subr.mxu0 0.0
  %4606 = vmatpush1.xpose.msra.mxu0 0.0
  %4607 = vmatprep.subr.mxu0 0.0
  %4608 = vmatpush1.xpose.msra.mxu0 0.0
  %4609 = vmatprep.subr.mxu0 0.0
  %4610 = vmatpush1.xpose.msra.mxu0 0.0
  %4611 = vmatprep.subr.mxu0 0.0
  %4612 = vmatpush1.xpose.msra.mxu0 0.0
  %4613 = vmatprep.subr.mxu0 0.0
  %4614 = vmatpush1.xpose.msra.mxu0 0.0
  %4615 = vmatprep.mubr.f32.mxu0 0.0
  %4616 = vmatmul.mubr.f32.gmra.mrb[0].mxu0 %v4547
  %v4617 = vpop.f32.mrb[0].mxu0
  %v4618 = vadd.f32 0.0, %v4617
  %v4619 = vpop.f32.mrb[0].mxu0
  %4620 = vdwg.mxu0
  %4622 = vrot.lane.b32.xlu0 %v4137, 104
  %v4623 = vpop.permute.xlu0 %4622
  %4624 = vrot.lane.b32.xlu0 %v4137, 40
  %v4625 = vpop.permute.xlu0 %4624
  %v4626 = vsel %vm27, %v4623, 0
  %v4628 = vsel %vm27, %v4625, 0
  %4630 = vmatprep.subr.mxu0 0.0
  %4631 = vmatpush1.xpose.msra.mxu0 %v4628
  %4632 = vmatprep.subr.mxu0 0.0
  %4633 = vmatpush1.xpose.msra.mxu0 0.0
  %4634 = vmatprep.subr.mxu0 0.0
  %4635 = vmatpush1.xpose.msra.mxu0 0.0
  %4636 = vmatprep.subr.mxu0 0.0
  %4637 = vmatpush1.xpose.msra.mxu0 0.0
  %4638 = vmatprep.subr.mxu0 0.0
  %4639 = vmatpush1.xpose.msra.mxu0 0.0
  %4640 = vmatprep.subr.mxu0 0.0
  %4641 = vmatpush1.xpose.msra.mxu0 0.0
  %4642 = vmatprep.subr.mxu0 0.0
  %4643 = vmatpush1.xpose.msra.mxu0 0.0
  %4644 = vmatprep.subr.mxu0 0.0
  %4645 = vmatpush1.xpose.msra.mxu0 0.0
  %4646 = vmatprep.subr.mxu0 0.0
  %4647 = vmatpush1.xpose.msra.mxu0 0.0
  %4648 = vmatprep.subr.mxu0 0.0
  %4649 = vmatpush1.xpose.msra.mxu0 0.0
  %4650 = vmatprep.subr.mxu0 0.0
  %4651 = vmatpush1.xpose.msra.mxu0 0.0
  %4652 = vmatprep.subr.mxu0 0.0
  %4653 = vmatpush1.xpose.msra.mxu0 0.0
  %4654 = vmatprep.subr.mxu0 0.0
  %4655 = vmatpush1.xpose.msra.mxu0 0.0
  %4656 = vmatprep.subr.mxu0 0.0
  %4657 = vmatpush1.xpose.msra.mxu0 0.0
  %4658 = vmatprep.subr.mxu0 0.0
  %4659 = vmatpush1.xpose.msra.mxu0 0.0
  %4660 = vmatprep.subr.mxu0 0.0
  %4661 = vmatpush1.xpose.msra.mxu0 0.0
  %4662 = vmatprep.subr.mxu0 0.0
  %4663 = vmatpush1.xpose.msra.mxu0 0.0
  %4664 = vmatprep.subr.mxu0 0.0
  %4665 = vmatpush1.xpose.msra.mxu0 0.0
  %4666 = vmatprep.subr.mxu0 0.0
  %4667 = vmatpush1.xpose.msra.mxu0 0.0
  %4668 = vmatprep.subr.mxu0 0.0
  %4669 = vmatpush1.xpose.msra.mxu0 0.0
  %4670 = vmatprep.subr.mxu0 0.0
  %4671 = vmatpush1.xpose.msra.mxu0 0.0
  %4672 = vmatprep.subr.mxu0 0.0
  %4673 = vmatpush1.xpose.msra.mxu0 0.0
  %4674 = vmatprep.subr.mxu0 0.0
  %4675 = vmatpush1.xpose.msra.mxu0 0.0
  %4676 = vmatprep.subr.mxu0 0.0
  %4677 = vmatpush1.xpose.msra.mxu0 0.0
  %4678 = vmatprep.subr.mxu0 0.0
  %4679 = vmatpush1.xpose.msra.mxu0 0.0
  %4680 = vmatprep.subr.mxu0 0.0
  %4681 = vmatpush1.xpose.msra.mxu0 0.0
  %4682 = vmatprep.subr.mxu0 0.0
  %4683 = vmatpush1.xpose.msra.mxu0 0.0
  %4684 = vmatprep.subr.mxu0 0.0
  %4685 = vmatpush1.xpose.msra.mxu0 0.0
  %4686 = vmatprep.subr.mxu0 0.0
  %4687 = vmatpush1.xpose.msra.mxu0 0.0
  %4688 = vmatprep.subr.mxu0 0.0
  %4689 = vmatpush1.xpose.msra.mxu0 0.0
  %4690 = vmatprep.subr.mxu0 0.0
  %4691 = vmatpush1.xpose.msra.mxu0 0.0
  %4692 = vmatprep.subr.mxu0 0.0
  %4693 = vmatpush1.xpose.msra.mxu0 0.0
  %4694 = vmatprep.mubr.f32.mxu0 0.0
  %4695 = vmatmul.mubr.f32.gmra.mrb[0].mxu0 %v4626
  %v4696 = vpop.f32.mrb[0].mxu0
  %v4697 = vadd.f32 0.0, %v4696
  %v4698 = vpop.f32.mrb[0].mxu0
  %4699 = vdwg.mxu0
  %4701 = vrot.lane.b32.xlu0 %v4138, 104
  %v4702 = vpop.permute.xlu0 %4701
  %4703 = vrot.lane.b32.xlu0 %v4138, 40
  %v4704 = vpop.permute.xlu0 %4703
  %v4705 = vsel %vm27, %v4702, 0
  %v4707 = vsel %vm27, %v4704, 0
  %4709 = vmatprep.subr.mxu0 0.0
  %4710 = vmatpush1.xpose.msra.mxu0 %v4707
  %4711 = vmatprep.subr.mxu0 0.0
  %4712 = vmatpush1.xpose.msra.mxu0 0.0
  %4713 = vmatprep.subr.mxu0 0.0
  %4714 = vmatpush1.xpose.msra.mxu0 0.0
  %4715 = vmatprep.subr.mxu0 0.0
  %4716 = vmatpush1.xpose.msra.mxu0 0.0
  %4717 = vmatprep.subr.mxu0 0.0
  %4718 = vmatpush1.xpose.msra.mxu0 0.0
  %4719 = vmatprep.subr.mxu0 0.0
  %4720 = vmatpush1.xpose.msra.mxu0 0.0
  %4721 = vmatprep.subr.mxu0 0.0
  %4722 = vmatpush1.xpose.msra.mxu0 0.0
  %4723 = vmatprep.subr.mxu0 0.0
  %4724 = vmatpush1.xpose.msra.mxu0 0.0
  %4725 = vmatprep.subr.mxu0 0.0
  %4726 = vmatpush1.xpose.msra.mxu0 0.0
  %4727 = vmatprep.subr.mxu0 0.0
  %4728 = vmatpush1.xpose.msra.mxu0 0.0
  %4729 = vmatprep.subr.mxu0 0.0
  %4730 = vmatpush1.xpose.msra.mxu0 0.0
  %4731 = vmatprep.subr.mxu0 0.0
  %4732 = vmatpush1.xpose.msra.mxu0 0.0
  %4733 = vmatprep.subr.mxu0 0.0
  %4734 = vmatpush1.xpose.msra.mxu0 0.0
  %4735 = vmatprep.subr.mxu0 0.0
  %4736 = vmatpush1.xpose.msra.mxu0 0.0
  %4737 = vmatprep.subr.mxu0 0.0
  %4738 = vmatpush1.xpose.msra.mxu0 0.0
  %4739 = vmatprep.subr.mxu0 0.0
  %4740 = vmatpush1.xpose.msra.mxu0 0.0
  %4741 = vmatprep.subr.mxu0 0.0
  %4742 = vmatpush1.xpose.msra.mxu0 0.0
  %4743 = vmatprep.subr.mxu0 0.0
  %4744 = vmatpush1.xpose.msra.mxu0 0.0
  %4745 = vmatprep.subr.mxu0 0.0
  %4746 = vmatpush1.xpose.msra.mxu0 0.0
  %4747 = vmatprep.subr.mxu0 0.0
  %4748 = vmatpush1.xpose.msra.mxu0 0.0
  %4749 = vmatprep.subr.mxu0 0.0
  %4750 = vmatpush1.xpose.msra.mxu0 0.0
  %4751 = vmatprep.subr.mxu0 0.0
  %4752 = vmatpush1.xpose.msra.mxu0 0.0
  %4753 = vmatprep.subr.mxu0 0.0
  %4754 = vmatpush1.xpose.msra.mxu0 0.0
  %4755 = vmatprep.subr.mxu0 0.0
  %4756 = vmatpush1.xpose.msra.mxu0 0.0
  %4757 = vmatprep.subr.mxu0 0.0
  %4758 = vmatpush1.xpose.msra.mxu0 0.0
  %4759 = vmatprep.subr.mxu0 0.0
  %4760 = vmatpush1.xpose.msra.mxu0 0.0
  %4761 = vmatprep.subr.mxu0 0.0
  %4762 = vmatpush1.xpose.msra.mxu0 0.0
  %4763 = vmatprep.subr.mxu0 0.0
  %4764 = vmatpush1.xpose.msra.mxu0 0.0
  %4765 = vmatprep.subr.mxu0 0.0
  %4766 = vmatpush1.xpose.msra.mxu0 0.0
  %4767 = vmatprep.subr.mxu0 0.0
  %4768 = vmatpush1.xpose.msra.mxu0 0.0
  %4769 = vmatprep.subr.mxu0 0.0
  %4770 = vmatpush1.xpose.msra.mxu0 0.0
  %4771 = vmatprep.subr.mxu0 0.0
  %4772 = vmatpush1.xpose.msra.mxu0 0.0
  %4773 = vmatprep.mubr.f32.mxu0 0.0
  %4774 = vmatmul.mubr.f32.gmra.mrb[0].mxu0 %v4705
  %v4775 = vpop.f32.mrb[0].mxu0
  %v4776 = vadd.f32 0.0, %v4775
  %v4777 = vpop.f32.mrb[0].mxu0
  %4778 = vdwg.mxu0
  %v4779 = vmul.f32 %v4223, 0.35355338
  %v4780 = vmul.f32 %v4302, 0.35355338
  %v4781 = vmul.f32 %v4381, 0.35355338
  %v4782 = vmul.f32 %v4460, 0.35355338
  %v4783 = vmul.f32 %v4539, 0.35355338
  %v4784 = vmul.f32 %v4618, 0.35355338
  %v4785 = vmul.f32 %v4697, 0.35355338
  %v4786 = vmul.f32 %v4776, 0.35355338
  %v4787 = vsel %vm27, %v4779, -inf
  %4788 = vmax.xlane.f32.xlu0 %v4787
  %v4789 = vpop.xlane.xlu0 %4788
  %v4790 = vsel %vm27, %v4780, -inf
  %4791 = vmax.xlane.f32.xlu0 %v4790
  %v4792 = vpop.xlane.xlu0 %4791
  %v4793 = vsel %vm27, %v4781, -inf
  %4794 = vmax.xlane.f32.xlu0 %v4793
  %v4795 = vpop.xlane.xlu0 %4794
  %v4796 = vsel %vm27, %v4782, -inf
  %4797 = vmax.xlane.f32.xlu0 %v4796
  %v4798 = vpop.xlane.xlu0 %4797
  %v4799 = vsel %vm27, %v4783, -inf
  %4800 = vmax.xlane.f32.xlu0 %v4799
  %v4801 = vpop.xlane.xlu0 %4800
  %v4802 = vsel %vm27, %v4784, -inf
  %4803 = vmax.xlane.f32.xlu0 %v4802
  %v4804 = vpop.xlane.xlu0 %4803
  %v4805 = vsel %vm27, %v4785, -inf
  %4806 = vmax.xlane.f32.xlu0 %v4805
  %v4807 = vpop.xlane.xlu0 %4806
  %v4808 = vsel %vm27, %v4786, -inf
  %4809 = vmax.xlane.f32.xlu0 %v4808
  %v4810 = vpop.xlane.xlu0 %4809
  %v4811 = vsub.f32 %v4779, %v4789
  %v4812 = vsub.f32 %v4780, %v4792
  %v4813 = vsub.f32 %v4781, %v4795
  %v4814 = vsub.f32 %v4782, %v4798
  %v4815 = vsub.f32 %v4783, %v4801
  %v4816 = vsub.f32 %v4784, %v4804
  %v4817 = vsub.f32 %v4785, %v4807
  %v4818 = vsub.f32 %v4786, %v4810
  %v4819 = vmul.f32 %v4811, 1.442695
  %v4820 = vpow.pop %v4819
  %v4821 = vmul.f32 %v4812, 1.442695
  %v4822 = vpow.pop %v4821
  %v4823 = vmul.f32 %v4813, 1.442695
  %v4824 = vpow.pop %v4823
  %v4825 = vmul.f32 %v4814, 1.442695
  %v4826 = vpow.pop %v4825
  %v4827 = vmul.f32 %v4815, 1.442695
  %v4828 = vpow.pop %v4827
  %v4829 = vmul.f32 %v4816, 1.442695
  %v4830 = vpow.pop %v4829
  %v4831 = vmul.f32 %v4817, 1.442695
  %v4832 = vpow.pop %v4831
  %v4833 = vmul.f32 %v4818, 1.442695
  %v4834 = vpow.pop %v4833
  %v4835 = vsel %vm27, %v4820, 0.0
  %4836 = vadd.xlane.f32.xlu0 %v4835
  %v4837 = vpop.xlane.xlu0 %4836
  %v4838 = vsel %vm27, %v4822, 0.0
  %4839 = vadd.xlane.f32.xlu0 %v4838
  %v4840 = vpop.xlane.xlu0 %4839
  %v4841 = vsel %vm27, %v4824, 0.0
  %4842 = vadd.xlane.f32.xlu0 %v4841
  %v4843 = vpop.xlane.xlu0 %4842
  %v4844 = vsel %vm27, %v4826, 0.0
  %4845 = vadd.xlane.f32.xlu0 %v4844
  %v4846 = vpop.xlane.xlu0 %4845
  %v4847 = vsel %vm27, %v4828, 0.0
  %4848 = vadd.xlane.f32.xlu0 %v4847
  %v4849 = vpop.xlane.xlu0 %4848
  %v4850 = vsel %vm27, %v4830, 0.0
  %4851 = vadd.xlane.f32.xlu0 %v4850
  %v4852 = vpop.xlane.xlu0 %4851
  %v4853 = vsel %vm27, %v4832, 0.0
  %4854 = vadd.xlane.f32.xlu0 %v4853
  %v4855 = vpop.xlane.xlu0 %4854
  %v4856 = vsel %vm27, %v4834, 0.0
  %4857 = vadd.xlane.f32.xlu0 %v4856
  %v4858 = vpop.xlane.xlu0 %4857
  %4860 = vrot.lane.b32.xlu0 %v4139, 104
  %v4861 = vpop.permute.xlu0 %4860
  %v4864 = vsel %vm27, %v4820, 0
  %4866 = vmatprep.subr.mxu0 0.0
  %4867 = vmatpush1.msra.mxu0 %v4861
  %4868 = vmatprep.subr.mxu0 0.0
  %4869 = vmatpush1.msra.mxu0 0.0
  %4870 = vmatprep.subr.mxu0 0.0
  %4871 = vmatpush1.msra.mxu0 0.0
  %4872 = vmatprep.subr.mxu0 0.0
  %4873 = vmatpush1.msra.mxu0 0.0
  %4874 = vmatprep.subr.mxu0 0.0
  %4875 = vmatpush1.msra.mxu0 0.0
  %4876 = vmatprep.subr.mxu0 0.0
  %4877 = vmatpush1.msra.mxu0 0.0
  %4878 = vmatprep.subr.mxu0 0.0
  %4879 = vmatpush1.msra.mxu0 0.0
  %4880 = vmatprep.subr.mxu0 0.0
  %4881 = vmatpush1.msra.mxu0 0.0
  %4882 = vmatprep.subr.mxu0 0.0
  %4883 = vmatpush1.msra.mxu0 0.0
  %4884 = vmatprep.subr.mxu0 0.0
  %4885 = vmatpush1.msra.mxu0 0.0
  %4886 = vmatprep.subr.mxu0 0.0
  %4887 = vmatpush1.msra.mxu0 0.0
  %4888 = vmatprep.subr.mxu0 0.0
  %4889 = vmatpush1.msra.mxu0 0.0
  %4890 = vmatprep.subr.mxu0 0.0
  %4891 = vmatpush1.msra.mxu0 0.0
  %4892 = vmatprep.subr.mxu0 0.0
  %4893 = vmatpush1.msra.mxu0 0.0
  %4894 = vmatprep.subr.mxu0 0.0
  %4895 = vmatpush1.msra.mxu0 0.0
  %4896 = vmatprep.subr.mxu0 0.0
  %4897 = vmatpush1.msra.mxu0 0.0
  %4898 = vmatprep.subr.mxu0 0.0
  %4899 = vmatpush1.msra.mxu0 0.0
  %4900 = vmatprep.subr.mxu0 0.0
  %4901 = vmatpush1.msra.mxu0 0.0
  %4902 = vmatprep.subr.mxu0 0.0
  %4903 = vmatpush1.msra.mxu0 0.0
  %4904 = vmatprep.subr.mxu0 0.0
  %4905 = vmatpush1.msra.mxu0 0.0
  %4906 = vmatprep.subr.mxu0 0.0
  %4907 = vmatpush1.msra.mxu0 0.0
  %4908 = vmatprep.subr.mxu0 0.0
  %4909 = vmatpush1.msra.mxu0 0.0
  %4910 = vmatprep.subr.mxu0 0.0
  %4911 = vmatpush1.msra.mxu0 0.0
  %4912 = vmatprep.subr.mxu0 0.0
  %4913 = vmatpush1.msra.mxu0 0.0
  %4914 = vmatprep.subr.mxu0 0.0
  %4915 = vmatpush1.msra.mxu0 0.0
  %4916 = vmatprep.subr.mxu0 0.0
  %4917 = vmatpush1.msra.mxu0 0.0
  %4918 = vmatprep.subr.mxu0 0.0
  %4919 = vmatpush1.msra.mxu0 0.0
  %4920 = vmatprep.subr.mxu0 0.0
  %4921 = vmatpush1.msra.mxu0 0.0
  %4922 = vmatprep.subr.mxu0 0.0
  %4923 = vmatpush1.msra.mxu0 0.0
  %4924 = vmatprep.subr.mxu0 0.0
  %4925 = vmatpush1.msra.mxu0 0.0
  %4926 = vmatprep.subr.mxu0 0.0
  %4927 = vmatpush1.msra.mxu0 0.0
  %4928 = vmatprep.subr.mxu0 0.0
  %4929 = vmatpush1.msra.mxu0 0.0
  %4930 = vmatprep.mubr.f32.mxu0 0.0
  %4931 = vmatmul.mubr.f32.gmra.mrb[0].mxu0 %v4864
  %v4932 = vpop.f32.mrb[0].mxu0
  %v4933 = vadd.f32 0.0, %v4932
  %v4934 = vpop.f32.mrb[0].mxu0
  %4935 = vdwg.mxu0
  %4937 = vrot.lane.b32.xlu0 %v4140, 104
  %v4938 = vpop.permute.xlu0 %4937
  %v4941 = vsel %vm27, %v4822, 0
  %4943 = vmatprep.subr.mxu0 0.0
  %4944 = vmatpush1.msra.mxu0 %v4938
  %4945 = vmatprep.subr.mxu0 0.0
  %4946 = vmatpush1.msra.mxu0 0.0
  %4947 = vmatprep.subr.mxu0 0.0
  %4948 = vmatpush1.msra.mxu0 0.0
  %4949 = vmatprep.subr.mxu0 0.0
  %4950 = vmatpush1.msra.mxu0 0.0
  %4951 = vmatprep.subr.mxu0 0.0
  %4952 = vmatpush1.msra.mxu0 0.0
  %4953 = vmatprep.subr.mxu0 0.0
  %4954 = vmatpush1.msra.mxu0 0.0
  %4955 = vmatprep.subr.mxu0 0.0
  %4956 = vmatpush1.msra.mxu0 0.0
  %4957 = vmatprep.subr.mxu0 0.0
  %4958 = vmatpush1.msra.mxu0 0.0
  %4959 = vmatprep.subr.mxu0 0.0
  %4960 = vmatpush1.msra.mxu0 0.0
  %4961 = vmatprep.subr.mxu0 0.0
  %4962 = vmatpush1.msra.mxu0 0.0
  %4963 = vmatprep.subr.mxu0 0.0
  %4964 = vmatpush1.msra.mxu0 0.0
  %4965 = vmatprep.subr.mxu0 0.0
  %4966 = vmatpush1.msra.mxu0 0.0
  %4967 = vmatprep.subr.mxu0 0.0
  %4968 = vmatpush1.msra.mxu0 0.0
  %4969 = vmatprep.subr.mxu0 0.0
  %4970 = vmatpush1.msra.mxu0 0.0
  %4971 = vmatprep.subr.mxu0 0.0
  %4972 = vmatpush1.msra.mxu0 0.0
  %4973 = vmatprep.subr.mxu0 0.0
  %4974 = vmatpush1.msra.mxu0 0.0
  %4975 = vmatprep.subr.mxu0 0.0
  %4976 = vmatpush1.msra.mxu0 0.0
  %4977 = vmatprep.subr.mxu0 0.0
  %4978 = vmatpush1.msra.mxu0 0.0
  %4979 = vmatprep.subr.mxu0 0.0
  %4980 = vmatpush1.msra.mxu0 0.0
  %4981 = vmatprep.subr.mxu0 0.0
  %4982 = vmatpush1.msra.mxu0 0.0
  %4983 = vmatprep.subr.mxu0 0.0
  %4984 = vmatpush1.msra.mxu0 0.0
  %4985 = vmatprep.subr.mxu0 0.0
  %4986 = vmatpush1.msra.mxu0 0.0
  %4987 = vmatprep.subr.mxu0 0.0
  %4988 = vmatpush1.msra.mxu0 0.0
  %4989 = vmatprep.subr.mxu0 0.0
  %4990 = vmatpush1.msra.mxu0 0.0
  %4991 = vmatprep.subr.mxu0 0.0
  %4992 = vmatpush1.msra.mxu0 0.0
  %4993 = vmatprep.subr.mxu0 0.0
  %4994 = vmatpush1.msra.mxu0 0.0
  %4995 = vmatprep.subr.mxu0 0.0
  %4996 = vmatpush1.msra.mxu0 0.0
  %4997 = vmatprep.subr.mxu0 0.0
  %4998 = vmatpush1.msra.mxu0 0.0
  %4999 = vmatprep.subr.mxu0 0.0
  %5000 = vmatpush1.msra.mxu0 0.0
  %5001 = vmatprep.subr.mxu0 0.0
  %5002 = vmatpush1.msra.mxu0 0.0
  %5003 = vmatprep.subr.mxu0 0.0
  %5004 = vmatpush1.msra.mxu0 0.0
  %5005 = vmatprep.subr.mxu0 0.0
  %5006 = vmatpush1.msra.mxu0 0.0
  %5007 = vmatprep.mubr.f32.mxu0 0.0
  %5008 = vmatmul.mubr.f32.gmra.mrb[0].mxu0 %v4941
  %v5009 = vpop.f32.mrb[0].mxu0
  %v5010 = vadd.f32 0.0, %v5009
  %v5011 = vpop.f32.mrb[0].mxu0
  %5012 = vdwg.mxu0
  %5014 = vrot.lane.b32.xlu0 %v4141, 104
  %v5015 = vpop.permute.xlu0 %5014
  %v5018 = vsel %vm27, %v4824, 0
  %5020 = vmatprep.subr.mxu0 0.0
  %5021 = vmatpush1.msra.mxu0 %v5015
  %5022 = vmatprep.subr.mxu0 0.0
  %5023 = vmatpush1.msra.mxu0 0.0
  %5024 = vmatprep.subr.mxu0 0.0
  %5025 = vmatpush1.msra.mxu0 0.0
  %5026 = vmatprep.subr.mxu0 0.0
  %5027 = vmatpush1.msra.mxu0 0.0
  %5028 = vmatprep.subr.mxu0 0.0
  %5029 = vmatpush1.msra.mxu0 0.0
  %5030 = vmatprep.subr.mxu0 0.0
  %5031 = vmatpush1.msra.mxu0 0.0
  %5032 = vmatprep.subr.mxu0 0.0
  %5033 = vmatpush1.msra.mxu0 0.0
  %5034 = vmatprep.subr.mxu0 0.0
  %5035 = vmatpush1.msra.mxu0 0.0
  %5036 = vmatprep.subr.mxu0 0.0
  %5037 = vmatpush1.msra.mxu0 0.0
  %5038 = vmatprep.subr.mxu0 0.0
  %5039 = vmatpush1.msra.mxu0 0.0
  %5040 = vmatprep.subr.mxu0 0.0
  %5041 = vmatpush1.msra.mxu0 0.0
  %5042 = vmatprep.subr.mxu0 0.0
  %5043 = vmatpush1.msra.mxu0 0.0
  %5044 = vmatprep.subr.mxu0 0.0
  %5045 = vmatpush1.msra.mxu0 0.0
  %5046 = vmatprep.subr.mxu0 0.0
  %5047 = vmatpush1.msra.mxu0 0.0
  %5048 = vmatprep.subr.mxu0 0.0
  %5049 = vmatpush1.msra.mxu0 0.0
  %5050 = vmatprep.subr.mxu0 0.0
  %5051 = vmatpush1.msra.mxu0 0.0
  %5052 = vmatprep.subr.mxu0 0.0
  %5053 = vmatpush1.msra.mxu0 0.0
  %5054 = vmatprep.subr.mxu0 0.0
  %5055 = vmatpush1.msra.mxu0 0.0
  %5056 = vmatprep.subr.mxu0 0.0
  %5057 = vmatpush1.msra.mxu0 0.0
  %5058 = vmatprep.subr.mxu0 0.0
  %5059 = vmatpush1.msra.mxu0 0.0
  %5060 = vmatprep.subr.mxu0 0.0
  %5061 = vmatpush1.msra.mxu0 0.0
  %5062 = vmatprep.subr.mxu0 0.0
  %5063 = vmatpush1.msra.mxu0 0.0
  %5064 = vmatprep.subr.mxu0 0.0
  %5065 = vmatpush1.msra.mxu0 0.0
  %5066 = vmatprep.subr.mxu0 0.0
  %5067 = vmatpush1.msra.mxu0 0.0
  %5068 = vmatprep.subr.mxu0 0.0
  %5069 = vmatpush1.msra.mxu0 0.0
  %5070 = vmatprep.subr.mxu0 0.0
  %5071 = vmatpush1.msra.mxu0 0.0
  %5072 = vmatprep.subr.mxu0 0.0
  %5073 = vmatpush1.msra.mxu0 0.0
  %5074 = vmatprep.subr.mxu0 0.0
  %5075 = vmatpush1.msra.mxu0 0.0
  %5076 = vmatprep.subr.mxu0 0.0
  %5077 = vmatpush1.msra.mxu0 0.0
  %5078 = vmatprep.subr.mxu0 0.0
  %5079 = vmatpush1.msra.mxu0 0.0
  %5080 = vmatprep.subr.mxu0 0.0
  %5081 = vmatpush1.msra.mxu0 0.0
  %5082 = vmatprep.subr.mxu0 0.0
  %5083 = vmatpush1.msra.mxu0 0.0
  %5084 = vmatprep.mubr.f32.mxu0 0.0
  %5085 = vmatmul.mubr.f32.gmra.mrb[0].mxu0 %v5018
  %v5086 = vpop.f32.mrb[0].mxu0
  %v5087 = vadd.f32 0.0, %v5086
  %v5088 = vpop.f32.mrb[0].mxu0
  %5089 = vdwg.mxu0
  %5091 = vrot.lane.b32.xlu0 %v4142, 104
  %v5092 = vpop.permute.xlu0 %5091
  %v5095 = vsel %vm27, %v4826, 0
  %5097 = vmatprep.subr.mxu0 0.0
  %5098 = vmatpush1.msra.mxu0 %v5092
  %5099 = vmatprep.subr.mxu0 0.0
  %5100 = vmatpush1.msra.mxu0 0.0
  %5101 = vmatprep.subr.mxu0 0.0
  %5102 = vmatpush1.msra.mxu0 0.0
  %5103 = vmatprep.subr.mxu0 0.0
  %5104 = vmatpush1.msra.mxu0 0.0
  %5105 = vmatprep.subr.mxu0 0.0
  %5106 = vmatpush1.msra.mxu0 0.0
  %5107 = vmatprep.subr.mxu0 0.0
  %5108 = vmatpush1.msra.mxu0 0.0
  %5109 = vmatprep.subr.mxu0 0.0
  %5110 = vmatpush1.msra.mxu0 0.0
  %5111 = vmatprep.subr.mxu0 0.0
  %5112 = vmatpush1.msra.mxu0 0.0
  %5113 = vmatprep.subr.mxu0 0.0
  %5114 = vmatpush1.msra.mxu0 0.0
  %5115 = vmatprep.subr.mxu0 0.0
  %5116 = vmatpush1.msra.mxu0 0.0
  %5117 = vmatprep.subr.mxu0 0.0
  %5118 = vmatpush1.msra.mxu0 0.0
  %5119 = vmatprep.subr.mxu0 0.0
  %5120 = vmatpush1.msra.mxu0 0.0
  %5121 = vmatprep.subr.mxu0 0.0
  %5122 = vmatpush1.msra.mxu0 0.0
  %5123 = vmatprep.subr.mxu0 0.0
  %5124 = vmatpush1.msra.mxu0 0.0
  %5125 = vmatprep.subr.mxu0 0.0
  %5126 = vmatpush1.msra.mxu0 0.0
  %5127 = vmatprep.subr.mxu0 0.0
  %5128 = vmatpush1.msra.mxu0 0.0
  %5129 = vmatprep.subr.mxu0 0.0
  %5130 = vmatpush1.msra.mxu0 0.0
  %5131 = vmatprep.subr.mxu0 0.0
  %5132 = vmatpush1.msra.mxu0 0.0
  %5133 = vmatprep.subr.mxu0 0.0
  %5134 = vmatpush1.msra.mxu0 0.0
  %5135 = vmatprep.subr.mxu0 0.0
  %5136 = vmatpush1.msra.mxu0 0.0
  %5137 = vmatprep.subr.mxu0 0.0
  %5138 = vmatpush1.msra.mxu0 0.0
  %5139 = vmatprep.subr.mxu0 0.0
  %5140 = vmatpush1.msra.mxu0 0.0
  %5141 = vmatprep.subr.mxu0 0.0
  %5142 = vmatpush1.msra.mxu0 0.0
  %5143 = vmatprep.subr.mxu0 0.0
  %5144 = vmatpush1.msra.mxu0 0.0
  %5145 = vmatprep.subr.mxu0 0.0
  %5146 = vmatpush1.msra.mxu0 0.0
  %5147 = vmatprep.subr.mxu0 0.0
  %5148 = vmatpush1.msra.mxu0 0.0
  %5149 = vmatprep.subr.mxu0 0.0
  %5150 = vmatpush1.msra.mxu0 0.0
  %5151 = vmatprep.subr.mxu0 0.0
  %5152 = vmatpush1.msra.mxu0 0.0
  %5153 = vmatprep.subr.mxu0 0.0
  %5154 = vmatpush1.msra.mxu0 0.0
  %5155 = vmatprep.subr.mxu0 0.0
  %5156 = vmatpush1.msra.mxu0 0.0
  %5157 = vmatprep.subr.mxu0 0.0
  %5158 = vmatpush1.msra.mxu0 0.0
  %5159 = vmatprep.subr.mxu0 0.0
  %5160 = vmatpush1.msra.mxu0 0.0
  %5161 = vmatprep.mubr.f32.mxu0 0.0
  %5162 = vmatmul.mubr.f32.gmra.mrb[0].mxu0 %v5095
  %v5163 = vpop.f32.mrb[0].mxu0
  %v5164 = vadd.f32 0.0, %v5163
  %v5165 = vpop.f32.mrb[0].mxu0
  %5166 = vdwg.mxu0
  %5168 = vrot.lane.b32.xlu0 %v4143, 104
  %v5169 = vpop.permute.xlu0 %5168
  %v5172 = vsel %vm27, %v4828, 0
  %5174 = vmatprep.subr.mxu0 0.0
  %5175 = vmatpush1.msra.mxu0 %v5169
  %5176 = vmatprep.subr.mxu0 0.0
  %5177 = vmatpush1.msra.mxu0 0.0
  %5178 = vmatprep.subr.mxu0 0.0
  %5179 = vmatpush1.msra.mxu0 0.0
  %5180 = vmatprep.subr.mxu0 0.0
  %5181 = vmatpush1.msra.mxu0 0.0
  %5182 = vmatprep.subr.mxu0 0.0
  %5183 = vmatpush1.msra.mxu0 0.0
  %5184 = vmatprep.subr.mxu0 0.0
  %5185 = vmatpush1.msra.mxu0 0.0
  %5186 = vmatprep.subr.mxu0 0.0
  %5187 = vmatpush1.msra.mxu0 0.0
  %5188 = vmatprep.subr.mxu0 0.0
  %5189 = vmatpush1.msra.mxu0 0.0
  %5190 = vmatprep.subr.mxu0 0.0
  %5191 = vmatpush1.msra.mxu0 0.0
  %5192 = vmatprep.subr.mxu0 0.0
  %5193 = vmatpush1.msra.mxu0 0.0
  %5194 = vmatprep.subr.mxu0 0.0
  %5195 = vmatpush1.msra.mxu0 0.0
  %5196 = vmatprep.subr.mxu0 0.0
  %5197 = vmatpush1.msra.mxu0 0.0
  %5198 = vmatprep.subr.mxu0 0.0
  %5199 = vmatpush1.msra.mxu0 0.0
  %5200 = vmatprep.subr.mxu0 0.0
  %5201 = vmatpush1.msra.mxu0 0.0
  %5202 = vmatprep.subr.mxu0 0.0
  %5203 = vmatpush1.msra.mxu0 0.0
  %5204 = vmatprep.subr.mxu0 0.0
  %5205 = vmatpush1.msra.mxu0 0.0
  %5206 = vmatprep.subr.mxu0 0.0
  %5207 = vmatpush1.msra.mxu0 0.0
  %5208 = vmatprep.subr.mxu0 0.0
  %5209 = vmatpush1.msra.mxu0 0.0
  %5210 = vmatprep.subr.mxu0 0.0
  %5211 = vmatpush1.msra.mxu0 0.0
  %5212 = vmatprep.subr.mxu0 0.0
  %5213 = vmatpush1.msra.mxu0 0.0
  %5214 = vmatprep.subr.mxu0 0.0
  %5215 = vmatpush1.msra.mxu0 0.0
  %5216 = vmatprep.subr.mxu0 0.0
  %5217 = vmatpush1.msra.mxu0 0.0
  %5218 = vmatprep.subr.mxu0 0.0
  %5219 = vmatpush1.msra.mxu0 0.0
  %5220 = vmatprep.subr.mxu0 0.0
  %5221 = vmatpush1.msra.mxu0 0.0
  %5222 = vmatprep.subr.mxu0 0.0
  %5223 = vmatpush1.msra.mxu0 0.0
  %5224 = vmatprep.subr.mxu0 0.0
  %5225 = vmatpush1.msra.mxu0 0.0
  %5226 = vmatprep.subr.mxu0 0.0
  %5227 = vmatpush1.msra.mxu0 0.0
  %5228 = vmatprep.subr.mxu0 0.0
  %5229 = vmatpush1.msra.mxu0 0.0
  %5230 = vmatprep.subr.mxu0 0.0
  %5231 = vmatpush1.msra.mxu0 0.0
  %5232 = vmatprep.subr.mxu0 0.0
  %5233 = vmatpush1.msra.mxu0 0.0
  %5234 = vmatprep.subr.mxu0 0.0
  %5235 = vmatpush1.msra.mxu0 0.0
  %5236 = vmatprep.subr.mxu0 0.0
  %5237 = vmatpush1.msra.mxu0 0.0
  %5238 = vmatprep.mubr.f32.mxu0 0.0
  %5239 = vmatmul.mubr.f32.gmra.mrb[0].mxu0 %v5172
  %v5240 = vpop.f32.mrb[0].mxu0
  %v5241 = vadd.f32 0.0, %v5240
  %v5242 = vpop.f32.mrb[0].mxu0
  %5243 = vdwg.mxu0
  %5245 = vrot.lane.b32.xlu0 %v4144, 104
  %v5246 = vpop.permute.xlu0 %5245
  %v5249 = vsel %vm27, %v4830, 0
  %5251 = vmatprep.subr.mxu0 0.0
  %5252 = vmatpush1.msra.mxu0 %v5246
  %5253 = vmatprep.subr.mxu0 0.0
  %5254 = vmatpush1.msra.mxu0 0.0
  %5255 = vmatprep.subr.mxu0 0.0
  %5256 = vmatpush1.msra.mxu0 0.0
  %5257 = vmatprep.subr.mxu0 0.0
  %5258 = vmatpush1.msra.mxu0 0.0
  %5259 = vmatprep.subr.mxu0 0.0
  %5260 = vmatpush1.msra.mxu0 0.0
  %5261 = vmatprep.subr.mxu0 0.0
  %5262 = vmatpush1.msra.mxu0 0.0
  %5263 = vmatprep.subr.mxu0 0.0
  %5264 = vmatpush1.msra.mxu0 0.0
  %5265 = vmatprep.subr.mxu0 0.0
  %5266 = vmatpush1.msra.mxu0 0.0
  %5267 = vmatprep.subr.mxu0 0.0
  %5268 = vmatpush1.msra.mxu0 0.0
  %5269 = vmatprep.subr.mxu0 0.0
  %5270 = vmatpush1.msra.mxu0 0.0
  %5271 = vmatprep.subr.mxu0 0.0
  %5272 = vmatpush1.msra.mxu0 0.0
  %5273 = vmatprep.subr.mxu0 0.0
  %5274 = vmatpush1.msra.mxu0 0.0
  %5275 = vmatprep.subr.mxu0 0.0
  %5276 = vmatpush1.msra.mxu0 0.0
  %5277 = vmatprep.subr.mxu0 0.0
  %5278 = vmatpush1.msra.mxu0 0.0
  %5279 = vmatprep.subr.mxu0 0.0
  %5280 = vmatpush1.msra.mxu0 0.0
  %5281 = vmatprep.subr.mxu0 0.0
  %5282 = vmatpush1.msra.mxu0 0.0
  %5283 = vmatprep.subr.mxu0 0.0
  %5284 = vmatpush1.msra.mxu0 0.0
  %5285 = vmatprep.subr.mxu0 0.0
  %5286 = vmatpush1.msra.mxu0 0.0
  %5287 = vmatprep.subr.mxu0 0.0
  %5288 = vmatpush1.msra.mxu0 0.0
  %5289 = vmatprep.subr.mxu0 0.0
  %5290 = vmatpush1.msra.mxu0 0.0
  %5291 = vmatprep.subr.mxu0 0.0
  %5292 = vmatpush1.msra.mxu0 0.0
  %5293 = vmatprep.subr.mxu0 0.0
  %5294 = vmatpush1.msra.mxu0 0.0
  %5295 = vmatprep.subr.mxu0 0.0
  %5296 = vmatpush1.msra.mxu0 0.0
  %5297 = vmatprep.subr.mxu0 0.0
  %5298 = vmatpush1.msra.mxu0 0.0
  %5299 = vmatprep.subr.mxu0 0.0
  %5300 = vmatpush1.msra.mxu0 0.0
  %5301 = vmatprep.subr.mxu0 0.0
  %5302 = vmatpush1.msra.mxu0 0.0
  %5303 = vmatprep.subr.mxu0 0.0
  %5304 = vmatpush1.msra.mxu0 0.0
  %5305 = vmatprep.subr.mxu0 0.0
  %5306 = vmatpush1.msra.mxu0 0.0
  %5307 = vmatprep.subr.mxu0 0.0
  %5308 = vmatpush1.msra.mxu0 0.0
  %5309 = vmatprep.subr.mxu0 0.0
  %5310 = vmatpush1.msra.mxu0 0.0
  %5311 = vmatprep.subr.mxu0 0.0
  %5312 = vmatpush1.msra.mxu0 0.0
  %5313 = vmatprep.subr.mxu0 0.0
  %5314 = vmatpush1.msra.mxu0 0.0
  %5315 = vmatprep.mubr.f32.mxu0 0.0
  %5316 = vmatmul.mubr.f32.gmra.mrb[0].mxu0 %v5249
  %v5317 = vpop.f32.mrb[0].mxu0
  %v5318 = vadd.f32 0.0, %v5317
  %v5319 = vpop.f32.mrb[0].mxu0
  %5320 = vdwg.mxu0
  %5322 = vrot.lane.b32.xlu0 %v4145, 104
  %v5323 = vpop.permute.xlu0 %5322
  %v5326 = vsel %vm27, %v4832, 0
  %5328 = vmatprep.subr.mxu0 0.0
  %5329 = vmatpush1.msra.mxu0 %v5323
  %5330 = vmatprep.subr.mxu0 0.0
  %5331 = vmatpush1.msra.mxu0 0.0
  %5332 = vmatprep.subr.mxu0 0.0
  %5333 = vmatpush1.msra.mxu0 0.0
  %5334 = vmatprep.subr.mxu0 0.0
  %5335 = vmatpush1.msra.mxu0 0.0
  %5336 = vmatprep.subr.mxu0 0.0
  %5337 = vmatpush1.msra.mxu0 0.0
  %5338 = vmatprep.subr.mxu0 0.0
  %5339 = vmatpush1.msra.mxu0 0.0
  %5340 = vmatprep.subr.mxu0 0.0
  %5341 = vmatpush1.msra.mxu0 0.0
  %5342 = vmatprep.subr.mxu0 0.0
  %5343 = vmatpush1.msra.mxu0 0.0
  %5344 = vmatprep.subr.mxu0 0.0
  %5345 = vmatpush1.msra.mxu0 0.0
  %5346 = vmatprep.subr.mxu0 0.0
  %5347 = vmatpush1.msra.mxu0 0.0
  %5348 = vmatprep.subr.mxu0 0.0
  %5349 = vmatpush1.msra.mxu0 0.0
  %5350 = vmatprep.subr.mxu0 0.0
  %5351 = vmatpush1.msra.mxu0 0.0
  %5352 = vmatprep.subr.mxu0 0.0
  %5353 = vmatpush1.msra.mxu0 0.0
  %5354 = vmatprep.subr.mxu0 0.0
  %5355 = vmatpush1.msra.mxu0 0.0
  %5356 = vmatprep.subr.mxu0 0.0
  %5357 = vmatpush1.msra.mxu0 0.0
  %5358 = vmatprep.subr.mxu0 0.0
  %5359 = vmatpush1.msra.mxu0 0.0
  %5360 = vmatprep.subr.mxu0 0.0
  %5361 = vmatpush1.msra.mxu0 0.0
  %5362 = vmatprep.subr.mxu0 0.0
  %5363 = vmatpush1.msra.mxu0 0.0
  %5364 = vmatprep.subr.mxu0 0.0
  %5365 = vmatpush1.msra.mxu0 0.0
  %5366 = vmatprep.subr.mxu0 0.0
  %5367 = vmatpush1.msra.mxu0 0.0
  %5368 = vmatprep.subr.mxu0 0.0
  %5369 = vmatpush1.msra.mxu0 0.0
  %5370 = vmatprep.subr.mxu0 0.0
  %5371 = vmatpush1.msra.mxu0 0.0
  %5372 = vmatprep.subr.mxu0 0.0
  %5373 = vmatpush1.msra.mxu0 0.0
  %5374 = vmatprep.subr.mxu0 0.0
  %5375 = vmatpush1.msra.mxu0 0.0
  %5376 = vmatprep.subr.mxu0 0.0
  %5377 = vmatpush1.msra.mxu0 0.0
  %5378 = vmatprep.subr.mxu0 0.0
  %5379 = vmatpush1.msra.mxu0 0.0
  %5380 = vmatprep.subr.mxu0 0.0
  %5381 = vmatpush1.msra.mxu0 0.0
  %5382 = vmatprep.subr.mxu0 0.0
  %5383 = vmatpush1.msra.mxu0 0.0
  %5384 = vmatprep.subr.mxu0 0.0
  %5385 = vmatpush1.msra.mxu0 0.0
  %5386 = vmatprep.subr.mxu0 0.0
  %5387 = vmatpush1.msra.mxu0 0.0
  %5388 = vmatprep.subr.mxu0 0.0
  %5389 = vmatpush1.msra.mxu0 0.0
  %5390 = vmatprep.subr.mxu0 0.0
  %5391 = vmatpush1.msra.mxu0 0.0
  %5392 = vmatprep.mubr.f32.mxu0 0.0
  %5393 = vmatmul.mubr.f32.gmra.mrb[0].mxu0 %v5326
  %v5394 = vpop.f32.mrb[0].mxu0
  %v5395 = vadd.f32 0.0, %v5394
  %v5396 = vpop.f32.mrb[0].mxu0
  %5397 = vdwg.mxu0
  %5399 = vrot.lane.b32.xlu0 %v4146, 104
  %v5400 = vpop.permute.xlu0 %5399
  %v5403 = vsel %vm27, %v4834, 0
  %5405 = vmatprep.subr.mxu0 0.0
  %5406 = vmatpush1.msra.mxu0 %v5400
  %5407 = vmatprep.subr.mxu0 0.0
  %5408 = vmatpush1.msra.mxu0 0.0
  %5409 = vmatprep.subr.mxu0 0.0
  %5410 = vmatpush1.msra.mxu0 0.0
  %5411 = vmatprep.subr.mxu0 0.0
  %5412 = vmatpush1.msra.mxu0 0.0
  %5413 = vmatprep.subr.mxu0 0.0
  %5414 = vmatpush1.msra.mxu0 0.0
  %5415 = vmatprep.subr.mxu0 0.0
  %5416 = vmatpush1.msra.mxu0 0.0
  %5417 = vmatprep.subr.mxu0 0.0
  %5418 = vmatpush1.msra.mxu0 0.0
  %5419 = vmatprep.subr.mxu0 0.0
  %5420 = vmatpush1.msra.mxu0 0.0
  %5421 = vmatprep.subr.mxu0 0.0
  %5422 = vmatpush1.msra.mxu0 0.0
  %5423 = vmatprep.subr.mxu0 0.0
  %5424 = vmatpush1.msra.mxu0 0.0
  %5425 = vmatprep.subr.mxu0 0.0
  %5426 = vmatpush1.msra.mxu0 0.0
  %5427 = vmatprep.subr.mxu0 0.0
  %5428 = vmatpush1.msra.mxu0 0.0
  %5429 = vmatprep.subr.mxu0 0.0
  %5430 = vmatpush1.msra.mxu0 0.0
  %5431 = vmatprep.subr.mxu0 0.0
  %5432 = vmatpush1.msra.mxu0 0.0
  %5433 = vmatprep.subr.mxu0 0.0
  %5434 = vmatpush1.msra.mxu0 0.0
  %5435 = vmatprep.subr.mxu0 0.0
  %5436 = vmatpush1.msra.mxu0 0.0
  %5437 = vmatprep.subr.mxu0 0.0
  %5438 = vmatpush1.msra.mxu0 0.0
  %5439 = vmatprep.subr.mxu0 0.0
  %5440 = vmatpush1.msra.mxu0 0.0
  %5441 = vmatprep.subr.mxu0 0.0
  %5442 = vmatpush1.msra.mxu0 0.0
  %5443 = vmatprep.subr.mxu0 0.0
  %5444 = vmatpush1.msra.mxu0 0.0
  %5445 = vmatprep.subr.mxu0 0.0
  %5446 = vmatpush1.msra.mxu0 0.0
  %5447 = vmatprep.subr.mxu0 0.0
  %5448 = vmatpush1.msra.mxu0 0.0
  %5449 = vmatprep.subr.mxu0 0.0
  %5450 = vmatpush1.msra.mxu0 0.0
  %5451 = vmatprep.subr.mxu0 0.0
  %5452 = vmatpush1.msra.mxu0 0.0
  %5453 = vmatprep.subr.mxu0 0.0
  %5454 = vmatpush1.msra.mxu0 0.0
  %5455 = vmatprep.subr.mxu0 0.0
  %5456 = vmatpush1.msra.mxu0 0.0
  %5457 = vmatprep.subr.mxu0 0.0
  %5458 = vmatpush1.msra.mxu0 0.0
  %5459 = vmatprep.subr.mxu0 0.0
  %5460 = vmatpush1.msra.mxu0 0.0
  %5461 = vmatprep.subr.mxu0 0.0
  %5462 = vmatpush1.msra.mxu0 0.0
  %5463 = vmatprep.subr.mxu0 0.0
  %5464 = vmatpush1.msra.mxu0 0.0
  %5465 = vmatprep.subr.mxu0 0.0
  %5466 = vmatpush1.msra.mxu0 0.0
  %5467 = vmatprep.subr.mxu0 0.0
  %5468 = vmatpush1.msra.mxu0 0.0
  %5469 = vmatprep.mubr.f32.mxu0 0.0
  %5470 = vmatmul.mubr.f32.gmra.mrb[0].mxu0 %v5403
  %v5471 = vpop.f32.mrb[0].mxu0
  %v5472 = vadd.f32 0.0, %v5471
  %v5473 = vpop.f32.mrb[0].mxu0
  %5474 = vdwg.mxu0
  %v5475 = vrcp.pop %v4837
  %v5476 = vrcp.pop %v4840
  %v5477 = vrcp.pop %v4843
  %v5478 = vrcp.pop %v4846
  %v5479 = vrcp.pop %v4849
  %v5480 = vrcp.pop %v4852
  %v5481 = vrcp.pop %v4855
  %v5482 = vrcp.pop %v4858
  %v5483 = vmul.f32 %v4933, %v5475
  %v5484 = vmul.f32 %v5010, %v5476
  %v5485 = vmul.f32 %v5087, %v5477
  %v5486 = vmul.f32 %v5164, %v5478
  %v5487 = vmul.f32 %v5241, %v5479
  %v5488 = vmul.f32 %v5318, %v5480
  %v5489 = vmul.f32 %v5395, %v5481
  %v5490 = vmul.f32 %v5472, %v5482
  %5499 = vrot.lane.b32.xlu0 %v5483, 24
  %v5500 = vpop.permute.xlu0 %5499
  %5501 = vrot.lane.b32.xlu0 %v5484, 24
  %v5502 = vpop.permute.xlu0 %5501
  %5503 = vrot.lane.b32.xlu0 %v5485, 24
  %v5504 = vpop.permute.xlu0 %5503
  %5505 = vrot.lane.b32.xlu0 %v5486, 24
  %v5506 = vpop.permute.xlu0 %5505
  %5507 = vrot.lane.b32.xlu0 %v5487, 24
  %v5508 = vpop.permute.xlu0 %5507
  %5509 = vrot.lane.b32.xlu0 %v5488, 24
  %v5510 = vpop.permute.xlu0 %5509
  %5511 = vrot.lane.b32.xlu0 %v5489, 24
  %v5512 = vpop.permute.xlu0 %5511
  %5513 = vrot.lane.b32.xlu0 %v5490, 24
  %v5514 = vpop.permute.xlu0 %5513
  %vm5523 = vcmask 261312
  %5524 = vst.msk [vmem:[%s1] sm:$0xff] %vm5523, %v5500
  %5525 = vst.msk [vmem:[%s1 + $0x8] sm:$0xff] %vm5523, %v5502
  %5526 = vst.msk [vmem:[%s1 + $0x10] sm:$0xff] %vm5523, %v5504
  %5527 = vst.msk [vmem:[%s1 + $0x18] sm:$0xff] %vm5523, %v5506
  %5528 = vst.msk [vmem:[%s1 + $0x20] sm:$0xff] %vm5523, %v5508
  %5529 = vst.msk [vmem:[%s1 + $0x28] sm:$0xff] %vm5523, %v5510
  %5530 = vst.msk [vmem:[%s1 + $0x30] sm:$0xff] %vm5523, %v5512
  %5531 = vst.msk [vmem:[%s1 + $0x38] sm:$0xff] %vm5523, %v5514
  %v5532 = vld [vmem:[%s0] sm:$0xff]
  %v5533 = vld [vmem:[%s0 + $0x10] sm:$0xff]
  %v5534 = vld [vmem:[%s0 + $0x20] sm:$0xff]
  %v5535 = vld [vmem:[%s0 + $0x30] sm:$0xff]
  %v5536 = vld [vmem:[%s0 + $0x40] sm:$0xff]
  %v5537 = vld [vmem:[%s0 + $0x50] sm:$0xff]
  %v5538 = vld [vmem:[%s0 + $0x60] sm:$0xff]
  %v5539 = vld [vmem:[%s0 + $0x70] sm:$0xff]
  %v5540 = vld [vmem:[%s0 + $0x8] sm:$0xff]
  %v5541 = vld [vmem:[%s0 + $0x18] sm:$0xff]
  %v5542 = vld [vmem:[%s0 + $0x28] sm:$0xff]
  %v5543 = vld [vmem:[%s0 + $0x38] sm:$0xff]
  %v5544 = vld [vmem:[%s0 + $0x48] sm:$0xff]
  %v5545 = vld [vmem:[%s0 + $0x58] sm:$0xff]
  %v5546 = vld [vmem:[%s0 + $0x68] sm:$0xff]
  %v5547 = vld [vmem:[%s0 + $0x78] sm:$0xff]
  %5549 = vrot.lane.b32.xlu0 %v5532, 96
  %v5550 = vpop.permute.xlu0 %5549
  %5551 = vrot.lane.b32.xlu0 %v5532, 32
  %v5552 = vpop.permute.xlu0 %5551
  %v5553 = vsel %vm27, %v5550, 0
  %v5555 = vsel %vm27, %v5552, 0
  %5557 = vmatprep.subr.mxu0 0.0
  %5558 = vmatpush1.xpose.msra.mxu0 %v5555
  %5559 = vmatprep.subr.mxu0 0.0
  %5560 = vmatpush1.xpose.msra.mxu0 0.0
  %5561 = vmatprep.subr.mxu0 0.0
  %5562 = vmatpush1.xpose.msra.mxu0 0.0
  %5563 = vmatprep.subr.mxu0 0.0
  %5564 = vmatpush1.xpose.msra.mxu0 0.0
  %5565 = vmatprep.subr.mxu0 0.0
  %5566 = vmatpush1.xpose.msra.mxu0 0.0
  %5567 = vmatprep.subr.mxu0 0.0
  %5568 = vmatpush1.xpose.msra.mxu0 0.0
  %5569 = vmatprep.subr.mxu0 0.0
  %5570 = vmatpush1.xpose.msra.mxu0 0.0
  %5571 = vmatprep.subr.mxu0 0.0
  %5572 = vmatpush1.xpose.msra.mxu0 0.0
  %5573 = vmatprep.subr.mxu0 0.0
  %5574 = vmatpush1.xpose.msra.mxu0 0.0
  %5575 = vmatprep.subr.mxu0 0.0
  %5576 = vmatpush1.xpose.msra.mxu0 0.0
  %5577 = vmatprep.subr.mxu0 0.0
  %5578 = vmatpush1.xpose.msra.mxu0 0.0
  %5579 = vmatprep.subr.mxu0 0.0
  %5580 = vmatpush1.xpose.msra.mxu0 0.0
  %5581 = vmatprep.subr.mxu0 0.0
  %5582 = vmatpush1.xpose.msra.mxu0 0.0
  %5583 = vmatprep.subr.mxu0 0.0
  %5584 = vmatpush1.xpose.msra.mxu0 0.0
  %5585 = vmatprep.subr.mxu0 0.0
  %5586 = vmatpush1.xpose.msra.mxu0 0.0
  %5587 = vmatprep.subr.mxu0 0.0
  %5588 = vmatpush1.xpose.msra.mxu0 0.0
  %5589 = vmatprep.subr.mxu0 0.0
  %5590 = vmatpush1.xpose.msra.mxu0 0.0
  %5591 = vmatprep.subr.mxu0 0.0
  %5592 = vmatpush1.xpose.msra.mxu0 0.0
  %5593 = vmatprep.subr.mxu0 0.0
  %5594 = vmatpush1.xpose.msra.mxu0 0.0
  %5595 = vmatprep.subr.mxu0 0.0
  %5596 = vmatpush1.xpose.msra.mxu0 0.0
  %5597 = vmatprep.subr.mxu0 0.0
  %5598 = vmatpush1.xpose.msra.mxu0 0.0
  %5599 = vmatprep.subr.mxu0 0.0
  %5600 = vmatpush1.xpose.msra.mxu0 0.0
  %5601 = vmatprep.subr.mxu0 0.0
  %5602 = vmatpush1.xpose.msra.mxu0 0.0
  %5603 = vmatprep.subr.mxu0 0.0
  %5604 = vmatpush1.xpose.msra.mxu0 0.0
  %5605 = vmatprep.subr.mxu0 0.0
  %5606 = vmatpush1.xpose.msra.mxu0 0.0
  %5607 = vmatprep.subr.mxu0 0.0
  %5608 = vmatpush1.xpose.msra.mxu0 0.0
  %5609 = vmatprep.subr.mxu0 0.0
  %5610 = vmatpush1.xpose.msra.mxu0 0.0
  %5611 = vmatprep.subr.mxu0 0.0
  %5612 = vmatpush1.xpose.msra.mxu0 0.0
  %5613 = vmatprep.subr.mxu0 0.0
  %5614 = vmatpush1.xpose.msra.mxu0 0.0
  %5615 = vmatprep.subr.mxu0 0.0
  %5616 = vmatpush1.xpose.msra.mxu0 0.0
  %5617 = vmatprep.subr.mxu0 0.0
  %5618 = vmatpush1.xpose.msra.mxu0 0.0
  %5619 = vmatprep.subr.mxu0 0.0
  %5620 = vmatpush1.xpose.msra.mxu0 0.0
  %5621 = vmatprep.mubr.f32.mxu0 0.0
  %5622 = vmatmul.mubr.f32.gmra.mrb[0].mxu0 %v5553
  %v5623 = vpop.f32.mrb[0].mxu0
  %v5624 = vadd.f32 0.0, %v5623
  %v5625 = vpop.f32.mrb[0].mxu0
  %5626 = vdwg.mxu0
  %5628 = vrot.lane.b32.xlu0 %v5533, 96
  %v5629 = vpop.permute.xlu0 %5628
  %5630 = vrot.lane.b32.xlu0 %v5533, 32
  %v5631 = vpop.permute.xlu0 %5630
  %v5632 = vsel %vm27, %v5629, 0
  %v5634 = vsel %vm27, %v5631, 0
  %5636 = vmatprep.subr.mxu0 0.0
  %5637 = vmatpush1.xpose.msra.mxu0 %v5634
  %5638 = vmatprep.subr.mxu0 0.0
  %5639 = vmatpush1.xpose.msra.mxu0 0.0
  %5640 = vmatprep.subr.mxu0 0.0
  %5641 = vmatpush1.xpose.msra.mxu0 0.0
  %5642 = vmatprep.subr.mxu0 0.0
  %5643 = vmatpush1.xpose.msra.mxu0 0.0
  %5644 = vmatprep.subr.mxu0 0.0
  %5645 = vmatpush1.xpose.msra.mxu0 0.0
  %5646 = vmatprep.subr.mxu0 0.0
  %5647 = vmatpush1.xpose.msra.mxu0 0.0
  %5648 = vmatprep.subr.mxu0 0.0
  %5649 = vmatpush1.xpose.msra.mxu0 0.0
  %5650 = vmatprep.subr.mxu0 0.0
  %5651 = vmatpush1.xpose.msra.mxu0 0.0
  %5652 = vmatprep.subr.mxu0 0.0
  %5653 = vmatpush1.xpose.msra.mxu0 0.0
  %5654 = vmatprep.subr.mxu0 0.0
  %5655 = vmatpush1.xpose.msra.mxu0 0.0
  %5656 = vmatprep.subr.mxu0 0.0
  %5657 = vmatpush1.xpose.msra.mxu0 0.0
  %5658 = vmatprep.subr.mxu0 0.0
  %5659 = vmatpush1.xpose.msra.mxu0 0.0
  %5660 = vmatprep.subr.mxu0 0.0
  %5661 = vmatpush1.xpose.msra.mxu0 0.0
  %5662 = vmatprep.subr.mxu0 0.0
  %5663 = vmatpush1.xpose.msra.mxu0 0.0
  %5664 = vmatprep.subr.mxu0 0.0
  %5665 = vmatpush1.xpose.msra.mxu0 0.0
  %5666 = vmatprep.subr.mxu0 0.0
  %5667 = vmatpush1.xpose.msra.mxu0 0.0
  %5668 = vmatprep.subr.mxu0 0.0
  %5669 = vmatpush1.xpose.msra.mxu0 0.0
  %5670 = vmatprep.subr.mxu0 0.0
  %5671 = vmatpush1.xpose.msra.mxu0 0.0
  %5672 = vmatprep.subr.mxu0 0.0
  %5673 = vmatpush1.xpose.msra.mxu0 0.0
  %5674 = vmatprep.subr.mxu0 0.0
  %5675 = vmatpush1.xpose.msra.mxu0 0.0
  %5676 = vmatprep.subr.mxu0 0.0
  %5677 = vmatpush1.xpose.msra.mxu0 0.0
  %5678 = vmatprep.subr.mxu0 0.0
  %5679 = vmatpush1.xpose.msra.mxu0 0.0
  %5680 = vmatprep.subr.mxu0 0.0
  %5681 = vmatpush1.xpose.msra.mxu0 0.0
  %5682 = vmatprep.subr.mxu0 0.0
  %5683 = vmatpush1.xpose.msra.mxu0 0.0
  %5684 = vmatprep.subr.mxu0 0.0
  %5685 = vmatpush1.xpose.msra.mxu0 0.0
  %5686 = vmatprep.subr.mxu0 0.0
  %5687 = vmatpush1.xpose.msra.mxu0 0.0
  %5688 = vmatprep.subr.mxu0 0.0
  %5689 = vmatpush1.xpose.msra.mxu0 0.0
  %5690 = vmatprep.subr.mxu0 0.0
  %5691 = vmatpush1.xpose.msra.mxu0 0.0
  %5692 = vmatprep.subr.mxu0 0.0
  %5693 = vmatpush1.xpose.msra.mxu0 0.0
  %5694 = vmatprep.subr.mxu0 0.0
  %5695 = vmatpush1.xpose.msra.mxu0 0.0
  %5696 = vmatprep.subr.mxu0 0.0
  %5697 = vmatpush1.xpose.msra.mxu0 0.0
  %5698 = vmatprep.subr.mxu0 0.0
  %5699 = vmatpush1.xpose.msra.mxu0 0.0
  %5700 = vmatprep.mubr.f32.mxu0 0.0
  %5701 = vmatmul.mubr.f32.gmra.mrb[0].mxu0 %v5632
  %v5702 = vpop.f32.mrb[0].mxu0
  %v5703 = vadd.f32 0.0, %v5702
  %v5704 = vpop.f32.mrb[0].mxu0
  %5705 = vdwg.mxu0
  %5707 = vrot.lane.b32.xlu0 %v5534, 96
  %v5708 = vpop.permute.xlu0 %5707
  %5709 = vrot.lane.b32.xlu0 %v5534, 32
  %v5710 = vpop.permute.xlu0 %5709
  %v5711 = vsel %vm27, %v5708, 0
  %v5713 = vsel %vm27, %v5710, 0
  %5715 = vmatprep.subr.mxu0 0.0
  %5716 = vmatpush1.xpose.msra.mxu0 %v5713
  %5717 = vmatprep.subr.mxu0 0.0
  %5718 = vmatpush1.xpose.msra.mxu0 0.0
  %5719 = vmatprep.subr.mxu0 0.0
  %5720 = vmatpush1.xpose.msra.mxu0 0.0
  %5721 = vmatprep.subr.mxu0 0.0
  %5722 = vmatpush1.xpose.msra.mxu0 0.0
  %5723 = vmatprep.subr.mxu0 0.0
  %5724 = vmatpush1.xpose.msra.mxu0 0.0
  %5725 = vmatprep.subr.mxu0 0.0
  %5726 = vmatpush1.xpose.msra.mxu0 0.0
  %5727 = vmatprep.subr.mxu0 0.0
  %5728 = vmatpush1.xpose.msra.mxu0 0.0
  %5729 = vmatprep.subr.mxu0 0.0
  %5730 = vmatpush1.xpose.msra.mxu0 0.0
  %5731 = vmatprep.subr.mxu0 0.0
  %5732 = vmatpush1.xpose.msra.mxu0 0.0
  %5733 = vmatprep.subr.mxu0 0.0
  %5734 = vmatpush1.xpose.msra.mxu0 0.0
  %5735 = vmatprep.subr.mxu0 0.0
  %5736 = vmatpush1.xpose.msra.mxu0 0.0
  %5737 = vmatprep.subr.mxu0 0.0
  %5738 = vmatpush1.xpose.msra.mxu0 0.0
  %5739 = vmatprep.subr.mxu0 0.0
  %5740 = vmatpush1.xpose.msra.mxu0 0.0
  %5741 = vmatprep.subr.mxu0 0.0
  %5742 = vmatpush1.xpose.msra.mxu0 0.0
  %5743 = vmatprep.subr.mxu0 0.0
  %5744 = vmatpush1.xpose.msra.mxu0 0.0
  %5745 = vmatprep.subr.mxu0 0.0
  %5746 = vmatpush1.xpose.msra.mxu0 0.0
  %5747 = vmatprep.subr.mxu0 0.0
  %5748 = vmatpush1.xpose.msra.mxu0 0.0
  %5749 = vmatprep.subr.mxu0 0.0
  %5750 = vmatpush1.xpose.msra.mxu0 0.0
  %5751 = vmatprep.subr.mxu0 0.0
  %5752 = vmatpush1.xpose.msra.mxu0 0.0
  %5753 = vmatprep.subr.mxu0 0.0
  %5754 = vmatpush1.xpose.msra.mxu0 0.0
  %5755 = vmatprep.subr.mxu0 0.0
  %5756 = vmatpush1.xpose.msra.mxu0 0.0
  %5757 = vmatprep.subr.mxu0 0.0
  %5758 = vmatpush1.xpose.msra.mxu0 0.0
  %5759 = vmatprep.subr.mxu0 0.0
  %5760 = vmatpush1.xpose.msra.mxu0 0.0
  %5761 = vmatprep.subr.mxu0 0.0
  %5762 = vmatpush1.xpose.msra.mxu0 0.0
  %5763 = vmatprep.subr.mxu0 0.0
  %5764 = vmatpush1.xpose.msra.mxu0 0.0
  %5765 = vmatprep.subr.mxu0 0.0
  %5766 = vmatpush1.xpose.msra.mxu0 0.0
  %5767 = vmatprep.subr.mxu0 0.0
  %5768 = vmatpush1.xpose.msra.mxu0 0.0
  %5769 = vmatprep.subr.mxu0 0.0
  %5770 = vmatpush1.xpose.msra.mxu0 0.0
  %5771 = vmatprep.subr.mxu0 0.0
  %5772 = vmatpush1.xpose.msra.mxu0 0.0
  %5773 = vmatprep.subr.mxu0 0.0
  %5774 = vmatpush1.xpose.msra.mxu0 0.0
  %5775 = vmatprep.subr.mxu0 0.0
  %5776 = vmatpush1.xpose.msra.mxu0 0.0
  %5777 = vmatprep.subr.mxu0 0.0
  %5778 = vmatpush1.xpose.msra.mxu0 0.0
  %5779 = vmatprep.mubr.f32.mxu0 0.0
  %5780 = vmatmul.mubr.f32.gmra.mrb[0].mxu0 %v5711
  %v5781 = vpop.f32.mrb[0].mxu0
  %v5782 = vadd.f32 0.0, %v5781
  %v5783 = vpop.f32.mrb[0].mxu0
  %5784 = vdwg.mxu0
  %5786 = vrot.lane.b32.xlu0 %v5535, 96
  %v5787 = vpop.permute.xlu0 %5786
  %5788 = vrot.lane.b32.xlu0 %v5535, 32
  %v5789 = vpop.permute.xlu0 %5788
  %v5790 = vsel %vm27, %v5787, 0
  %v5792 = vsel %vm27, %v5789, 0
  %5794 = vmatprep.subr.mxu0 0.0
  %5795 = vmatpush1.xpose.msra.mxu0 %v5792
  %5796 = vmatprep.subr.mxu0 0.0
  %5797 = vmatpush1.xpose.msra.mxu0 0.0
  %5798 = vmatprep.subr.mxu0 0.0
  %5799 = vmatpush1.xpose.msra.mxu0 0.0
  %5800 = vmatprep.subr.mxu0 0.0
  %5801 = vmatpush1.xpose.msra.mxu0 0.0
  %5802 = vmatprep.subr.mxu0 0.0
  %5803 = vmatpush1.xpose.msra.mxu0 0.0
  %5804 = vmatprep.subr.mxu0 0.0
  %5805 = vmatpush1.xpose.msra.mxu0 0.0
  %5806 = vmatprep.subr.mxu0 0.0
  %5807 = vmatpush1.xpose.msra.mxu0 0.0
  %5808 = vmatprep.subr.mxu0 0.0
  %5809 = vmatpush1.xpose.msra.mxu0 0.0
  %5810 = vmatprep.subr.mxu0 0.0
  %5811 = vmatpush1.xpose.msra.mxu0 0.0
  %5812 = vmatprep.subr.mxu0 0.0
  %5813 = vmatpush1.xpose.msra.mxu0 0.0
  %5814 = vmatprep.subr.mxu0 0.0
  %5815 = vmatpush1.xpose.msra.mxu0 0.0
  %5816 = vmatprep.subr.mxu0 0.0
  %5817 = vmatpush1.xpose.msra.mxu0 0.0
  %5818 = vmatprep.subr.mxu0 0.0
  %5819 = vmatpush1.xpose.msra.mxu0 0.0
  %5820 = vmatprep.subr.mxu0 0.0
  %5821 = vmatpush1.xpose.msra.mxu0 0.0
  %5822 = vmatprep.subr.mxu0 0.0
  %5823 = vmatpush1.xpose.msra.mxu0 0.0
  %5824 = vmatprep.subr.mxu0 0.0
  %5825 = vmatpush1.xpose.msra.mxu0 0.0
  %5826 = vmatprep.subr.mxu0 0.0
  %5827 = vmatpush1.xpose.msra.mxu0 0.0
  %5828 = vmatprep.subr.mxu0 0.0
  %5829 = vmatpush1.xpose.msra.mxu0 0.0
  %5830 = vmatprep.subr.mxu0 0.0
  %5831 = vmatpush1.xpose.msra.mxu0 0.0
  %5832 = vmatprep.subr.mxu0 0.0
  %5833 = vmatpush1.xpose.msra.mxu0 0.0
  %5834 = vmatprep.subr.mxu0 0.0
  %5835 = vmatpush1.xpose.msra.mxu0 0.0
  %5836 = vmatprep.subr.mxu0 0.0
  %5837 = vmatpush1.xpose.msra.mxu0 0.0
  %5838 = vmatprep.subr.mxu0 0.0
  %5839 = vmatpush1.xpose.msra.mxu0 0.0
  %5840 = vmatprep.subr.mxu0 0.0
  %5841 = vmatpush1.xpose.msra.mxu0 0.0
  %5842 = vmatprep.subr.mxu0 0.0
  %5843 = vmatpush1.xpose.msra.mxu0 0.0
  %5844 = vmatprep.subr.mxu0 0.0
  %5845 = vmatpush1.xpose.msra.mxu0 0.0
  %5846 = vmatprep.subr.mxu0 0.0
  %5847 = vmatpush1.xpose.msra.mxu0 0.0
  %5848 = vmatprep.subr.mxu0 0.0
  %5849 = vmatpush1.xpose.msra.mxu0 0.0
  %5850 = vmatprep.subr.mxu0 0.0
  %5851 = vmatpush1.xpose.msra.mxu0 0.0
  %5852 = vmatprep.subr.mxu0 0.0
  %5853 = vmatpush1.xpose.msra.mxu0 0.0
  %5854 = vmatprep.subr.mxu0 0.0
  %5855 = vmatpush1.xpose.msra.mxu0 0.0
  %5856 = vmatprep.subr.mxu0 0.0
  %5857 = vmatpush1.xpose.msra.mxu0 0.0
  %5858 = vmatprep.mubr.f32.mxu0 0.0
  %5859 = vmatmul.mubr.f32.gmra.mrb[0].mxu0 %v5790
  %v5860 = vpop.f32.mrb[0].mxu0
  %v5861 = vadd.f32 0.0, %v5860
  %v5862 = vpop.f32.mrb[0].mxu0
  %5863 = vdwg.mxu0
  %5865 = vrot.lane.b32.xlu0 %v5536, 96
  %v5866 = vpop.permute.xlu0 %5865
  %5867 = vrot.lane.b32.xlu0 %v5536, 32
  %v5868 = vpop.permute.xlu0 %5867
  %v5869 = vsel %vm27, %v5866, 0
  %v5871 = vsel %vm27, %v5868, 0
  %5873 = vmatprep.subr.mxu0 0.0
  %5874 = vmatpush1.xpose.msra.mxu0 %v5871
  %5875 = vmatprep.subr.mxu0 0.0
  %5876 = vmatpush1.xpose.msra.mxu0 0.0
  %5877 = vmatprep.subr.mxu0 0.0
  %5878 = vmatpush1.xpose.msra.mxu0 0.0
  %5879 = vmatprep.subr.mxu0 0.0
  %5880 = vmatpush1.xpose.msra.mxu0 0.0
  %5881 = vmatprep.subr.mxu0 0.0
  %5882 = vmatpush1.xpose.msra.mxu0 0.0
  %5883 = vmatprep.subr.mxu0 0.0
  %5884 = vmatpush1.xpose.msra.mxu0 0.0
  %5885 = vmatprep.subr.mxu0 0.0
  %5886 = vmatpush1.xpose.msra.mxu0 0.0
  %5887 = vmatprep.subr.mxu0 0.0
  %5888 = vmatpush1.xpose.msra.mxu0 0.0
  %5889 = vmatprep.subr.mxu0 0.0
  %5890 = vmatpush1.xpose.msra.mxu0 0.0
  %5891 = vmatprep.subr.mxu0 0.0
  %5892 = vmatpush1.xpose.msra.mxu0 0.0
  %5893 = vmatprep.subr.mxu0 0.0
  %5894 = vmatpush1.xpose.msra.mxu0 0.0
  %5895 = vmatprep.subr.mxu0 0.0
  %5896 = vmatpush1.xpose.msra.mxu0 0.0
  %5897 = vmatprep.subr.mxu0 0.0
  %5898 = vmatpush1.xpose.msra.mxu0 0.0
  %5899 = vmatprep.subr.mxu0 0.0
  %5900 = vmatpush1.xpose.msra.mxu0 0.0
  %5901 = vmatprep.subr.mxu0 0.0
  %5902 = vmatpush1.xpose.msra.mxu0 0.0
  %5903 = vmatprep.subr.mxu0 0.0
  %5904 = vmatpush1.xpose.msra.mxu0 0.0
  %5905 = vmatprep.subr.mxu0 0.0
  %5906 = vmatpush1.xpose.msra.mxu0 0.0
  %5907 = vmatprep.subr.mxu0 0.0
  %5908 = vmatpush1.xpose.msra.mxu0 0.0
  %5909 = vmatprep.subr.mxu0 0.0
  %5910 = vmatpush1.xpose.msra.mxu0 0.0
  %5911 = vmatprep.subr.mxu0 0.0
  %5912 = vmatpush1.xpose.msra.mxu0 0.0
  %5913 = vmatprep.subr.mxu0 0.0
  %5914 = vmatpush1.xpose.msra.mxu0 0.0
  %5915 = vmatprep.subr.mxu0 0.0
  %5916 = vmatpush1.xpose.msra.mxu0 0.0
  %5917 = vmatprep.subr.mxu0 0.0
  %5918 = vmatpush1.xpose.msra.mxu0 0.0
  %5919 = vmatprep.subr.mxu0 0.0
  %5920 = vmatpush1.xpose.msra.mxu0 0.0
  %5921 = vmatprep.subr.mxu0 0.0
  %5922 = vmatpush1.xpose.msra.mxu0 0.0
  %5923 = vmatprep.subr.mxu0 0.0
  %5924 = vmatpush1.xpose.msra.mxu0 0.0
  %5925 = vmatprep.subr.mxu0 0.0
  %5926 = vmatpush1.xpose.msra.mxu0 0.0
  %5927 = vmatprep.subr.mxu0 0.0
  %5928 = vmatpush1.xpose.msra.mxu0 0.0
  %5929 = vmatprep.subr.mxu0 0.0
  %5930 = vmatpush1.xpose.msra.mxu0 0.0
  %5931 = vmatprep.subr.mxu0 0.0
  %5932 = vmatpush1.xpose.msra.mxu0 0.0
  %5933 = vmatprep.subr.mxu0 0.0
  %5934 = vmatpush1.xpose.msra.mxu0 0.0
  %5935 = vmatprep.subr.mxu0 0.0
  %5936 = vmatpush1.xpose.msra.mxu0 0.0
  %5937 = vmatprep.mubr.f32.mxu0 0.0
  %5938 = vmatmul.mubr.f32.gmra.mrb[0].mxu0 %v5869
  %v5939 = vpop.f32.mrb[0].mxu0
  %v5940 = vadd.f32 0.0, %v5939
  %v5941 = vpop.f32.mrb[0].mxu0
  %5942 = vdwg.mxu0
  %5944 = vrot.lane.b32.xlu0 %v5537, 96
  %v5945 = vpop.permute.xlu0 %5944
  %5946 = vrot.lane.b32.xlu0 %v5537, 32
  %v5947 = vpop.permute.xlu0 %5946
  %v5948 = vsel %vm27, %v5945, 0
  %v5950 = vsel %vm27, %v5947, 0
  %5952 = vmatprep.subr.mxu0 0.0
  %5953 = vmatpush1.xpose.msra.mxu0 %v5950
  %5954 = vmatprep.subr.mxu0 0.0
  %5955 = vmatpush1.xpose.msra.mxu0 0.0
  %5956 = vmatprep.subr.mxu0 0.0
  %5957 = vmatpush1.xpose.msra.mxu0 0.0
  %5958 = vmatprep.subr.mxu0 0.0
  %5959 = vmatpush1.xpose.msra.mxu0 0.0
  %5960 = vmatprep.subr.mxu0 0.0
  %5961 = vmatpush1.xpose.msra.mxu0 0.0
  %5962 = vmatprep.subr.mxu0 0.0
  %5963 = vmatpush1.xpose.msra.mxu0 0.0
  %5964 = vmatprep.subr.mxu0 0.0
  %5965 = vmatpush1.xpose.msra.mxu0 0.0
  %5966 = vmatprep.subr.mxu0 0.0
  %5967 = vmatpush1.xpose.msra.mxu0 0.0
  %5968 = vmatprep.subr.mxu0 0.0
  %5969 = vmatpush1.xpose.msra.mxu0 0.0
  %5970 = vmatprep.subr.mxu0 0.0
  %5971 = vmatpush1.xpose.msra.mxu0 0.0
  %5972 = vmatprep.subr.mxu0 0.0
  %5973 = vmatpush1.xpose.msra.mxu0 0.0
  %5974 = vmatprep.subr.mxu0 0.0
  %5975 = vmatpush1.xpose.msra.mxu0 0.0
  %5976 = vmatprep.subr.mxu0 0.0
  %5977 = vmatpush1.xpose.msra.mxu0 0.0
  %5978 = vmatprep.subr.mxu0 0.0
  %5979 = vmatpush1.xpose.msra.mxu0 0.0
  %5980 = vmatprep.subr.mxu0 0.0
  %5981 = vmatpush1.xpose.msra.mxu0 0.0
  %5982 = vmatprep.subr.mxu0 0.0
  %5983 = vmatpush1.xpose.msra.mxu0 0.0
  %5984 = vmatprep.subr.mxu0 0.0
  %5985 = vmatpush1.xpose.msra.mxu0 0.0
  %5986 = vmatprep.subr.mxu0 0.0
  %5987 = vmatpush1.xpose.msra.mxu0 0.0
  %5988 = vmatprep.subr.mxu0 0.0
  %5989 = vmatpush1.xpose.msra.mxu0 0.0
  %5990 = vmatprep.subr.mxu0 0.0
  %5991 = vmatpush1.xpose.msra.mxu0 0.0
  %5992 = vmatprep.subr.mxu0 0.0
  %5993 = vmatpush1.xpose.msra.mxu0 0.0
  %5994 = vmatprep.subr.mxu0 0.0
  %5995 = vmatpush1.xpose.msra.mxu0 0.0
  %5996 = vmatprep.subr.mxu0 0.0
  %5997 = vmatpush1.xpose.msra.mxu0 0.0
  %5998 = vmatprep.subr.mxu0 0.0
  %5999 = vmatpush1.xpose.msra.mxu0 0.0
  %6000 = vmatprep.subr.mxu0 0.0
  %6001 = vmatpush1.xpose.msra.mxu0 0.0
  %6002 = vmatprep.subr.mxu0 0.0
  %6003 = vmatpush1.xpose.msra.mxu0 0.0
  %6004 = vmatprep.subr.mxu0 0.0
  %6005 = vmatpush1.xpose.msra.mxu0 0.0
  %6006 = vmatprep.subr.mxu0 0.0
  %6007 = vmatpush1.xpose.msra.mxu0 0.0
  %6008 = vmatprep.subr.mxu0 0.0
  %6009 = vmatpush1.xpose.msra.mxu0 0.0
  %6010 = vmatprep.subr.mxu0 0.0
  %6011 = vmatpush1.xpose.msra.mxu0 0.0
  %6012 = vmatprep.subr.mxu0 0.0
  %6013 = vmatpush1.xpose.msra.mxu0 0.0
  %6014 = vmatprep.subr.mxu0 0.0
  %6015 = vmatpush1.xpose.msra.mxu0 0.0
  %6016 = vmatprep.mubr.f32.mxu0 0.0
  %6017 = vmatmul.mubr.f32.gmra.mrb[0].mxu0 %v5948
  %v6018 = vpop.f32.mrb[0].mxu0
  %v6019 = vadd.f32 0.0, %v6018
  %v6020 = vpop.f32.mrb[0].mxu0
  %6021 = vdwg.mxu0
  %6023 = vrot.lane.b32.xlu0 %v5538, 96
  %v6024 = vpop.permute.xlu0 %6023
  %6025 = vrot.lane.b32.xlu0 %v5538, 32
  %v6026 = vpop.permute.xlu0 %6025
  %v6027 = vsel %vm27, %v6024, 0
  %v6029 = vsel %vm27, %v6026, 0
  %6031 = vmatprep.subr.mxu0 0.0
  %6032 = vmatpush1.xpose.msra.mxu0 %v6029
  %6033 = vmatprep.subr.mxu0 0.0
  %6034 = vmatpush1.xpose.msra.mxu0 0.0
  %6035 = vmatprep.subr.mxu0 0.0
  %6036 = vmatpush1.xpose.msra.mxu0 0.0
  %6037 = vmatprep.subr.mxu0 0.0
  %6038 = vmatpush1.xpose.msra.mxu0 0.0
  %6039 = vmatprep.subr.mxu0 0.0
  %6040 = vmatpush1.xpose.msra.mxu0 0.0
  %6041 = vmatprep.subr.mxu0 0.0
  %6042 = vmatpush1.xpose.msra.mxu0 0.0
  %6043 = vmatprep.subr.mxu0 0.0
  %6044 = vmatpush1.xpose.msra.mxu0 0.0
  %6045 = vmatprep.subr.mxu0 0.0
  %6046 = vmatpush1.xpose.msra.mxu0 0.0
  %6047 = vmatprep.subr.mxu0 0.0
  %6048 = vmatpush1.xpose.msra.mxu0 0.0
  %6049 = vmatprep.subr.mxu0 0.0
  %6050 = vmatpush1.xpose.msra.mxu0 0.0
  %6051 = vmatprep.subr.mxu0 0.0
  %6052 = vmatpush1.xpose.msra.mxu0 0.0
  %6053 = vmatprep.subr.mxu0 0.0
  %6054 = vmatpush1.xpose.msra.mxu0 0.0
  %6055 = vmatprep.subr.mxu0 0.0
  %6056 = vmatpush1.xpose.msra.mxu0 0.0
  %6057 = vmatprep.subr.mxu0 0.0
  %6058 = vmatpush1.xpose.msra.mxu0 0.0
  %6059 = vmatprep.subr.mxu0 0.0
  %6060 = vmatpush1.xpose.msra.mxu0 0.0
  %6061 = vmatprep.subr.mxu0 0.0
  %6062 = vmatpush1.xpose.msra.mxu0 0.0
  %6063 = vmatprep.subr.mxu0 0.0
  %6064 = vmatpush1.xpose.msra.mxu0 0.0
  %6065 = vmatprep.subr.mxu0 0.0
  %6066 = vmatpush1.xpose.msra.mxu0 0.0
  %6067 = vmatprep.subr.mxu0 0.0
  %6068 = vmatpush1.xpose.msra.mxu0 0.0
  %6069 = vmatprep.subr.mxu0 0.0
  %6070 = vmatpush1.xpose.msra.mxu0 0.0
  %6071 = vmatprep.subr.mxu0 0.0
  %6072 = vmatpush1.xpose.msra.mxu0 0.0
  %6073 = vmatprep.subr.mxu0 0.0
  %6074 = vmatpush1.xpose.msra.mxu0 0.0
  %6075 = vmatprep.subr.mxu0 0.0
  %6076 = vmatpush1.xpose.msra.mxu0 0.0
  %6077 = vmatprep.subr.mxu0 0.0
  %6078 = vmatpush1.xpose.msra.mxu0 0.0
  %6079 = vmatprep.subr.mxu0 0.0
  %6080 = vmatpush1.xpose.msra.mxu0 0.0
  %6081 = vmatprep.subr.mxu0 0.0
  %6082 = vmatpush1.xpose.msra.mxu0 0.0
  %6083 = vmatprep.subr.mxu0 0.0
  %6084 = vmatpush1.xpose.msra.mxu0 0.0
  %6085 = vmatprep.subr.mxu0 0.0
  %6086 = vmatpush1.xpose.msra.mxu0 0.0
  %6087 = vmatprep.subr.mxu0 0.0
  %6088 = vmatpush1.xpose.msra.mxu0 0.0
  %6089 = vmatprep.subr.mxu0 0.0
  %6090 = vmatpush1.xpose.msra.mxu0 0.0
  %6091 = vmatprep.subr.mxu0 0.0
  %6092 = vmatpush1.xpose.msra.mxu0 0.0
  %6093 = vmatprep.subr.mxu0 0.0
  %6094 = vmatpush1.xpose.msra.mxu0 0.0
  %6095 = vmatprep.mubr.f32.mxu0 0.0
  %6096 = vmatmul.mubr.f32.gmra.mrb[0].mxu0 %v6027
  %v6097 = vpop.f32.mrb[0].mxu0
  %v6098 = vadd.f32 0.0, %v6097
  %v6099 = vpop.f32.mrb[0].mxu0
  %6100 = vdwg.mxu0
  %6102 = vrot.lane.b32.xlu0 %v5539, 96
  %v6103 = vpop.permute.xlu0 %6102
  %6104 = vrot.lane.b32.xlu0 %v5539, 32
  %v6105 = vpop.permute.xlu0 %6104
  %v6106 = vsel %vm27, %v6103, 0
  %v6108 = vsel %vm27, %v6105, 0
  %6110 = vmatprep.subr.mxu0 0.0
  %6111 = vmatpush1.xpose.msra.mxu0 %v6108
  %6112 = vmatprep.subr.mxu0 0.0
  %6113 = vmatpush1.xpose.msra.mxu0 0.0
  %6114 = vmatprep.subr.mxu0 0.0
  %6115 = vmatpush1.xpose.msra.mxu0 0.0
  %6116 = vmatprep.subr.mxu0 0.0
  %6117 = vmatpush1.xpose.msra.mxu0 0.0
  %6118 = vmatprep.subr.mxu0 0.0
  %6119 = vmatpush1.xpose.msra.mxu0 0.0
  %6120 = vmatprep.subr.mxu0 0.0
  %6121 = vmatpush1.xpose.msra.mxu0 0.0
  %6122 = vmatprep.subr.mxu0 0.0
  %6123 = vmatpush1.xpose.msra.mxu0 0.0
  %6124 = vmatprep.subr.mxu0 0.0
  %6125 = vmatpush1.xpose.msra.mxu0 0.0
  %6126 = vmatprep.subr.mxu0 0.0
  %6127 = vmatpush1.xpose.msra.mxu0 0.0
  %6128 = vmatprep.subr.mxu0 0.0
  %6129 = vmatpush1.xpose.msra.mxu0 0.0
  %6130 = vmatprep.subr.mxu0 0.0
  %6131 = vmatpush1.xpose.msra.mxu0 0.0
  %6132 = vmatprep.subr.mxu0 0.0
  %6133 = vmatpush1.xpose.msra.mxu0 0.0
  %6134 = vmatprep.subr.mxu0 0.0
  %6135 = vmatpush1.xpose.msra.mxu0 0.0
  %6136 = vmatprep.subr.mxu0 0.0
  %6137 = vmatpush1.xpose.msra.mxu0 0.0
  %6138 = vmatprep.subr.mxu0 0.0
  %6139 = vmatpush1.xpose.msra.mxu0 0.0
  %6140 = vmatprep.subr.mxu0 0.0
  %6141 = vmatpush1.xpose.msra.mxu0 0.0
  %6142 = vmatprep.subr.mxu0 0.0
  %6143 = vmatpush1.xpose.msra.mxu0 0.0
  %6144 = vmatprep.subr.mxu0 0.0
  %6145 = vmatpush1.xpose.msra.mxu0 0.0
  %6146 = vmatprep.subr.mxu0 0.0
  %6147 = vmatpush1.xpose.msra.mxu0 0.0
  %6148 = vmatprep.subr.mxu0 0.0
  %6149 = vmatpush1.xpose.msra.mxu0 0.0
  %6150 = vmatprep.subr.mxu0 0.0
  %6151 = vmatpush1.xpose.msra.mxu0 0.0
  %6152 = vmatprep.subr.mxu0 0.0
  %6153 = vmatpush1.xpose.msra.mxu0 0.0
  %6154 = vmatprep.subr.mxu0 0.0
  %6155 = vmatpush1.xpose.msra.mxu0 0.0
  %6156 = vmatprep.subr.mxu0 0.0
  %6157 = vmatpush1.xpose.msra.mxu0 0.0
  %6158 = vmatprep.subr.mxu0 0.0
  %6159 = vmatpush1.xpose.msra.mxu0 0.0
  %6160 = vmatprep.subr.mxu0 0.0
  %6161 = vmatpush1.xpose.msra.mxu0 0.0
  %6162 = vmatprep.subr.mxu0 0.0
  %6163 = vmatpush1.xpose.msra.mxu0 0.0
  %6164 = vmatprep.subr.mxu0 0.0
  %6165 = vmatpush1.xpose.msra.mxu0 0.0
  %6166 = vmatprep.subr.mxu0 0.0
  %6167 = vmatpush1.xpose.msra.mxu0 0.0
  %6168 = vmatprep.subr.mxu0 0.0
  %6169 = vmatpush1.xpose.msra.mxu0 0.0
  %6170 = vmatprep.subr.mxu0 0.0
  %6171 = vmatpush1.xpose.msra.mxu0 0.0
  %6172 = vmatprep.subr.mxu0 0.0
  %6173 = vmatpush1.xpose.msra.mxu0 0.0
  %6174 = vmatprep.mubr.f32.mxu0 0.0
  %6175 = vmatmul.mubr.f32.gmra.mrb[0].mxu0 %v6106
  %v6176 = vpop.f32.mrb[0].mxu0
  %v6177 = vadd.f32 0.0, %v6176
  %v6178 = vpop.f32.mrb[0].mxu0
  %6179 = vdwg.mxu0
  %v6180 = vmul.f32 %v5624, 0.35355338
  %v6181 = vmul.f32 %v5703, 0.35355338
  %v6182 = vmul.f32 %v5782, 0.35355338
  %v6183 = vmul.f32 %v5861, 0.35355338
  %v6184 = vmul.f32 %v5940, 0.35355338
  %v6185 = vmul.f32 %v6019, 0.35355338
  %v6186 = vmul.f32 %v6098, 0.35355338
  %v6187 = vmul.f32 %v6177, 0.35355338
  %v6188 = vsel %vm27, %v6180, -inf
  %6189 = vmax.xlane.f32.xlu0 %v6188
  %v6190 = vpop.xlane.xlu0 %6189
  %v6191 = vsel %vm27, %v6181, -inf
  %6192 = vmax.xlane.f32.xlu0 %v6191
  %v6193 = vpop.xlane.xlu0 %6192
  %v6194 = vsel %vm27, %v6182, -inf
  %6195 = vmax.xlane.f32.xlu0 %v6194
  %v6196 = vpop.xlane.xlu0 %6195
  %v6197 = vsel %vm27, %v6183, -inf
  %6198 = vmax.xlane.f32.xlu0 %v6197
  %v6199 = vpop.xlane.xlu0 %6198
  %v6200 = vsel %vm27, %v6184, -inf
  %6201 = vmax.xlane.f32.xlu0 %v6200
  %v6202 = vpop.xlane.xlu0 %6201
  %v6203 = vsel %vm27, %v6185, -inf
  %6204 = vmax.xlane.f32.xlu0 %v6203
  %v6205 = vpop.xlane.xlu0 %6204
  %v6206 = vsel %vm27, %v6186, -inf
  %6207 = vmax.xlane.f32.xlu0 %v6206
  %v6208 = vpop.xlane.xlu0 %6207
  %v6209 = vsel %vm27, %v6187, -inf
  %6210 = vmax.xlane.f32.xlu0 %v6209
  %v6211 = vpop.xlane.xlu0 %6210
  %v6212 = vsub.f32 %v6180, %v6190
  %v6213 = vsub.f32 %v6181, %v6193
  %v6214 = vsub.f32 %v6182, %v6196
  %v6215 = vsub.f32 %v6183, %v6199
  %v6216 = vsub.f32 %v6184, %v6202
  %v6217 = vsub.f32 %v6185, %v6205
  %v6218 = vsub.f32 %v6186, %v6208
  %v6219 = vsub.f32 %v6187, %v6211
  %v6220 = vmul.f32 %v6212, 1.442695
  %v6221 = vpow.pop %v6220
  %v6222 = vmul.f32 %v6213, 1.442695
  %v6223 = vpow.pop %v6222
  %v6224 = vmul.f32 %v6214, 1.442695
  %v6225 = vpow.pop %v6224
  %v6226 = vmul.f32 %v6215, 1.442695
  %v6227 = vpow.pop %v6226
  %v6228 = vmul.f32 %v6216, 1.442695
  %v6229 = vpow.pop %v6228
  %v6230 = vmul.f32 %v6217, 1.442695
  %v6231 = vpow.pop %v6230
  %v6232 = vmul.f32 %v6218, 1.442695
  %v6233 = vpow.pop %v6232
  %v6234 = vmul.f32 %v6219, 1.442695
  %v6235 = vpow.pop %v6234
  %v6236 = vsel %vm27, %v6221, 0.0
  %6237 = vadd.xlane.f32.xlu0 %v6236
  %v6238 = vpop.xlane.xlu0 %6237
  %v6239 = vsel %vm27, %v6223, 0.0
  %6240 = vadd.xlane.f32.xlu0 %v6239
  %v6241 = vpop.xlane.xlu0 %6240
  %v6242 = vsel %vm27, %v6225, 0.0
  %6243 = vadd.xlane.f32.xlu0 %v6242
  %v6244 = vpop.xlane.xlu0 %6243
  %v6245 = vsel %vm27, %v6227, 0.0
  %6246 = vadd.xlane.f32.xlu0 %v6245
  %v6247 = vpop.xlane.xlu0 %6246
  %v6248 = vsel %vm27, %v6229, 0.0
  %6249 = vadd.xlane.f32.xlu0 %v6248
  %v6250 = vpop.xlane.xlu0 %6249
  %v6251 = vsel %vm27, %v6231, 0.0
  %6252 = vadd.xlane.f32.xlu0 %v6251
  %v6253 = vpop.xlane.xlu0 %6252
  %v6254 = vsel %vm27, %v6233, 0.0
  %6255 = vadd.xlane.f32.xlu0 %v6254
  %v6256 = vpop.xlane.xlu0 %6255
  %v6257 = vsel %vm27, %v6235, 0.0
  %6258 = vadd.xlane.f32.xlu0 %v6257
  %v6259 = vpop.xlane.xlu0 %6258
  %6261 = vrot.lane.b32.xlu0 %v5540, 96
  %v6262 = vpop.permute.xlu0 %6261
  %v6265 = vsel %vm27, %v6221, 0
  %6267 = vmatprep.subr.mxu0 0.0
  %6268 = vmatpush1.msra.mxu0 %v6262
  %6269 = vmatprep.subr.mxu0 0.0
  %6270 = vmatpush1.msra.mxu0 0.0
  %6271 = vmatprep.subr.mxu0 0.0
  %6272 = vmatpush1.msra.mxu0 0.0
  %6273 = vmatprep.subr.mxu0 0.0
  %6274 = vmatpush1.msra.mxu0 0.0
  %6275 = vmatprep.subr.mxu0 0.0
  %6276 = vmatpush1.msra.mxu0 0.0
  %6277 = vmatprep.subr.mxu0 0.0
  %6278 = vmatpush1.msra.mxu0 0.0
  %6279 = vmatprep.subr.mxu0 0.0
  %6280 = vmatpush1.msra.mxu0 0.0
  %6281 = vmatprep.subr.mxu0 0.0
  %6282 = vmatpush1.msra.mxu0 0.0
  %6283 = vmatprep.subr.mxu0 0.0
  %6284 = vmatpush1.msra.mxu0 0.0
  %6285 = vmatprep.subr.mxu0 0.0
  %6286 = vmatpush1.msra.mxu0 0.0
  %6287 = vmatprep.subr.mxu0 0.0
  %6288 = vmatpush1.msra.mxu0 0.0
  %6289 = vmatprep.subr.mxu0 0.0
  %6290 = vmatpush1.msra.mxu0 0.0
  %6291 = vmatprep.subr.mxu0 0.0
  %6292 = vmatpush1.msra.mxu0 0.0
  %6293 = vmatprep.subr.mxu0 0.0
  %6294 = vmatpush1.msra.mxu0 0.0
  %6295 = vmatprep.subr.mxu0 0.0
  %6296 = vmatpush1.msra.mxu0 0.0
  %6297 = vmatprep.subr.mxu0 0.0
  %6298 = vmatpush1.msra.mxu0 0.0
  %6299 = vmatprep.subr.mxu0 0.0
  %6300 = vmatpush1.msra.mxu0 0.0
  %6301 = vmatprep.subr.mxu0 0.0
  %6302 = vmatpush1.msra.mxu0 0.0
  %6303 = vmatprep.subr.mxu0 0.0
  %6304 = vmatpush1.msra.mxu0 0.0
  %6305 = vmatprep.subr.mxu0 0.0
  %6306 = vmatpush1.msra.mxu0 0.0
  %6307 = vmatprep.subr.mxu0 0.0
  %6308 = vmatpush1.msra.mxu0 0.0
  %6309 = vmatprep.subr.mxu0 0.0
  %6310 = vmatpush1.msra.mxu0 0.0
  %6311 = vmatprep.subr.mxu0 0.0
  %6312 = vmatpush1.msra.mxu0 0.0
  %6313 = vmatprep.subr.mxu0 0.0
  %6314 = vmatpush1.msra.mxu0 0.0
  %6315 = vmatprep.subr.mxu0 0.0
  %6316 = vmatpush1.msra.mxu0 0.0
  %6317 = vmatprep.subr.mxu0 0.0
  %6318 = vmatpush1.msra.mxu0 0.0
  %6319 = vmatprep.subr.mxu0 0.0
  %6320 = vmatpush1.msra.mxu0 0.0
  %6321 = vmatprep.subr.mxu0 0.0
  %6322 = vmatpush1.msra.mxu0 0.0
  %6323 = vmatprep.subr.mxu0 0.0
  %6324 = vmatpush1.msra.mxu0 0.0
  %6325 = vmatprep.subr.mxu0 0.0
  %6326 = vmatpush1.msra.mxu0 0.0
  %6327 = vmatprep.subr.mxu0 0.0
  %6328 = vmatpush1.msra.mxu0 0.0
  %6329 = vmatprep.subr.mxu0 0.0
  %6330 = vmatpush1.msra.mxu0 0.0
  %6331 = vmatprep.mubr.f32.mxu0 0.0
  %6332 = vmatmul.mubr.f32.gmra.mrb[0].mxu0 %v6265
  %v6333 = vpop.f32.mrb[0].mxu0
  %v6334 = vadd.f32 0.0, %v6333
  %v6335 = vpop.f32.mrb[0].mxu0
  %6336 = vdwg.mxu0
  %6338 = vrot.lane.b32.xlu0 %v5541, 96
  %v6339 = vpop.permute.xlu0 %6338
  %v6342 = vsel %vm27, %v6223, 0
  %6344 = vmatprep.subr.mxu0 0.0
  %6345 = vmatpush1.msra.mxu0 %v6339
  %6346 = vmatprep.subr.mxu0 0.0
  %6347 = vmatpush1.msra.mxu0 0.0
  %6348 = vmatprep.subr.mxu0 0.0
  %6349 = vmatpush1.msra.mxu0 0.0
  %6350 = vmatprep.subr.mxu0 0.0
  %6351 = vmatpush1.msra.mxu0 0.0
  %6352 = vmatprep.subr.mxu0 0.0
  %6353 = vmatpush1.msra.mxu0 0.0
  %6354 = vmatprep.subr.mxu0 0.0
  %6355 = vmatpush1.msra.mxu0 0.0
  %6356 = vmatprep.subr.mxu0 0.0
  %6357 = vmatpush1.msra.mxu0 0.0
  %6358 = vmatprep.subr.mxu0 0.0
  %6359 = vmatpush1.msra.mxu0 0.0
  %6360 = vmatprep.subr.mxu0 0.0
  %6361 = vmatpush1.msra.mxu0 0.0
  %6362 = vmatprep.subr.mxu0 0.0
  %6363 = vmatpush1.msra.mxu0 0.0
  %6364 = vmatprep.subr.mxu0 0.0
  %6365 = vmatpush1.msra.mxu0 0.0
  %6366 = vmatprep.subr.mxu0 0.0
  %6367 = vmatpush1.msra.mxu0 0.0
  %6368 = vmatprep.subr.mxu0 0.0
  %6369 = vmatpush1.msra.mxu0 0.0
  %6370 = vmatprep.subr.mxu0 0.0
  %6371 = vmatpush1.msra.mxu0 0.0
  %6372 = vmatprep.subr.mxu0 0.0
  %6373 = vmatpush1.msra.mxu0 0.0
  %6374 = vmatprep.subr.mxu0 0.0
  %6375 = vmatpush1.msra.mxu0 0.0
  %6376 = vmatprep.subr.mxu0 0.0
  %6377 = vmatpush1.msra.mxu0 0.0
  %6378 = vmatprep.subr.mxu0 0.0
  %6379 = vmatpush1.msra.mxu0 0.0
  %6380 = vmatprep.subr.mxu0 0.0
  %6381 = vmatpush1.msra.mxu0 0.0
  %6382 = vmatprep.subr.mxu0 0.0
  %6383 = vmatpush1.msra.mxu0 0.0
  %6384 = vmatprep.subr.mxu0 0.0
  %6385 = vmatpush1.msra.mxu0 0.0
  %6386 = vmatprep.subr.mxu0 0.0
  %6387 = vmatpush1.msra.mxu0 0.0
  %6388 = vmatprep.subr.mxu0 0.0
  %6389 = vmatpush1.msra.mxu0 0.0
  %6390 = vmatprep.subr.mxu0 0.0
  %6391 = vmatpush1.msra.mxu0 0.0
  %6392 = vmatprep.subr.mxu0 0.0
  %6393 = vmatpush1.msra.mxu0 0.0
  %6394 = vmatprep.subr.mxu0 0.0
  %6395 = vmatpush1.msra.mxu0 0.0
  %6396 = vmatprep.subr.mxu0 0.0
  %6397 = vmatpush1.msra.mxu0 0.0
  %6398 = vmatprep.subr.mxu0 0.0
  %6399 = vmatpush1.msra.mxu0 0.0
  %6400 = vmatprep.subr.mxu0 0.0
  %6401 = vmatpush1.msra.mxu0 0.0
  %6402 = vmatprep.subr.mxu0 0.0
  %6403 = vmatpush1.msra.mxu0 0.0
  %6404 = vmatprep.subr.mxu0 0.0
  %6405 = vmatpush1.msra.mxu0 0.0
  %6406 = vmatprep.subr.mxu0 0.0
  %6407 = vmatpush1.msra.mxu0 0.0
  %6408 = vmatprep.mubr.f32.mxu0 0.0
  %6409 = vmatmul.mubr.f32.gmra.mrb[0].mxu0 %v6342
  %v6410 = vpop.f32.mrb[0].mxu0
  %v6411 = vadd.f32 0.0, %v6410
  %v6412 = vpop.f32.mrb[0].mxu0
  %6413 = vdwg.mxu0
  %6415 = vrot.lane.b32.xlu0 %v5542, 96
  %v6416 = vpop.permute.xlu0 %6415
  %v6419 = vsel %vm27, %v6225, 0
  %6421 = vmatprep.subr.mxu0 0.0
  %6422 = vmatpush1.msra.mxu0 %v6416
  %6423 = vmatprep.subr.mxu0 0.0
  %6424 = vmatpush1.msra.mxu0 0.0
  %6425 = vmatprep.subr.mxu0 0.0
  %6426 = vmatpush1.msra.mxu0 0.0
  %6427 = vmatprep.subr.mxu0 0.0
  %6428 = vmatpush1.msra.mxu0 0.0
  %6429 = vmatprep.subr.mxu0 0.0
  %6430 = vmatpush1.msra.mxu0 0.0
  %6431 = vmatprep.subr.mxu0 0.0
  %6432 = vmatpush1.msra.mxu0 0.0
  %6433 = vmatprep.subr.mxu0 0.0
  %6434 = vmatpush1.msra.mxu0 0.0
  %6435 = vmatprep.subr.mxu0 0.0
  %6436 = vmatpush1.msra.mxu0 0.0
  %6437 = vmatprep.subr.mxu0 0.0
  %6438 = vmatpush1.msra.mxu0 0.0
  %6439 = vmatprep.subr.mxu0 0.0
  %6440 = vmatpush1.msra.mxu0 0.0
  %6441 = vmatprep.subr.mxu0 0.0
  %6442 = vmatpush1.msra.mxu0 0.0
  %6443 = vmatprep.subr.mxu0 0.0
  %6444 = vmatpush1.msra.mxu0 0.0
  %6445 = vmatprep.subr.mxu0 0.0
  %6446 = vmatpush1.msra.mxu0 0.0
  %6447 = vmatprep.subr.mxu0 0.0
  %6448 = vmatpush1.msra.mxu0 0.0
  %6449 = vmatprep.subr.mxu0 0.0
  %6450 = vmatpush1.msra.mxu0 0.0
  %6451 = vmatprep.subr.mxu0 0.0
  %6452 = vmatpush1.msra.mxu0 0.0
  %6453 = vmatprep.subr.mxu0 0.0
  %6454 = vmatpush1.msra.mxu0 0.0
  %6455 = vmatprep.subr.mxu0 0.0
  %6456 = vmatpush1.msra.mxu0 0.0
  %6457 = vmatprep.subr.mxu0 0.0
  %6458 = vmatpush1.msra.mxu0 0.0
  %6459 = vmatprep.subr.mxu0 0.0
  %6460 = vmatpush1.msra.mxu0 0.0
  %6461 = vmatprep.subr.mxu0 0.0
  %6462 = vmatpush1.msra.mxu0 0.0
  %6463 = vmatprep.subr.mxu0 0.0
  %6464 = vmatpush1.msra.mxu0 0.0
  %6465 = vmatprep.subr.mxu0 0.0
  %6466 = vmatpush1.msra.mxu0 0.0
  %6467 = vmatprep.subr.mxu0 0.0
  %6468 = vmatpush1.msra.mxu0 0.0
  %6469 = vmatprep.subr.mxu0 0.0
  %6470 = vmatpush1.msra.mxu0 0.0
  %6471 = vmatprep.subr.mxu0 0.0
  %6472 = vmatpush1.msra.mxu0 0.0
  %6473 = vmatprep.subr.mxu0 0.0
  %6474 = vmatpush1.msra.mxu0 0.0
  %6475 = vmatprep.subr.mxu0 0.0
  %6476 = vmatpush1.msra.mxu0 0.0
  %6477 = vmatprep.subr.mxu0 0.0
  %6478 = vmatpush1.msra.mxu0 0.0
  %6479 = vmatprep.subr.mxu0 0.0
  %6480 = vmatpush1.msra.mxu0 0.0
  %6481 = vmatprep.subr.mxu0 0.0
  %6482 = vmatpush1.msra.mxu0 0.0
  %6483 = vmatprep.subr.mxu0 0.0
  %6484 = vmatpush1.msra.mxu0 0.0
  %6485 = vmatprep.mubr.f32.mxu0 0.0
  %6486 = vmatmul.mubr.f32.gmra.mrb[0].mxu0 %v6419
  %v6487 = vpop.f32.mrb[0].mxu0
  %v6488 = vadd.f32 0.0, %v6487
  %v6489 = vpop.f32.mrb[0].mxu0
  %6490 = vdwg.mxu0
  %6492 = vrot.lane.b32.xlu0 %v5543, 96
  %v6493 = vpop.permute.xlu0 %6492
  %v6496 = vsel %vm27, %v6227, 0
  %6498 = vmatprep.subr.mxu0 0.0
  %6499 = vmatpush1.msra.mxu0 %v6493
  %6500 = vmatprep.subr.mxu0 0.0
  %6501 = vmatpush1.msra.mxu0 0.0
  %6502 = vmatprep.subr.mxu0 0.0
  %6503 = vmatpush1.msra.mxu0 0.0
  %6504 = vmatprep.subr.mxu0 0.0
  %6505 = vmatpush1.msra.mxu0 0.0
  %6506 = vmatprep.subr.mxu0 0.0
  %6507 = vmatpush1.msra.mxu0 0.0
  %6508 = vmatprep.subr.mxu0 0.0
  %6509 = vmatpush1.msra.mxu0 0.0
  %6510 = vmatprep.subr.mxu0 0.0
  %6511 = vmatpush1.msra.mxu0 0.0
  %6512 = vmatprep.subr.mxu0 0.0
  %6513 = vmatpush1.msra.mxu0 0.0
  %6514 = vmatprep.subr.mxu0 0.0
  %6515 = vmatpush1.msra.mxu0 0.0
  %6516 = vmatprep.subr.mxu0 0.0
  %6517 = vmatpush1.msra.mxu0 0.0
  %6518 = vmatprep.subr.mxu0 0.0
  %6519 = vmatpush1.msra.mxu0 0.0
  %6520 = vmatprep.subr.mxu0 0.0
  %6521 = vmatpush1.msra.mxu0 0.0
  %6522 = vmatprep.subr.mxu0 0.0
  %6523 = vmatpush1.msra.mxu0 0.0
  %6524 = vmatprep.subr.mxu0 0.0
  %6525 = vmatpush1.msra.mxu0 0.0
  %6526 = vmatprep.subr.mxu0 0.0
  %6527 = vmatpush1.msra.mxu0 0.0
  %6528 = vmatprep.subr.mxu0 0.0
  %6529 = vmatpush1.msra.mxu0 0.0
  %6530 = vmatprep.subr.mxu0 0.0
  %6531 = vmatpush1.msra.mxu0 0.0
  %6532 = vmatprep.subr.mxu0 0.0
  %6533 = vmatpush1.msra.mxu0 0.0
  %6534 = vmatprep.subr.mxu0 0.0
  %6535 = vmatpush1.msra.mxu0 0.0
  %6536 = vmatprep.subr.mxu0 0.0
  %6537 = vmatpush1.msra.mxu0 0.0
  %6538 = vmatprep.subr.mxu0 0.0
  %6539 = vmatpush1.msra.mxu0 0.0
  %6540 = vmatprep.subr.mxu0 0.0
  %6541 = vmatpush1.msra.mxu0 0.0
  %6542 = vmatprep.subr.mxu0 0.0
  %6543 = vmatpush1.msra.mxu0 0.0
  %6544 = vmatprep.subr.mxu0 0.0
  %6545 = vmatpush1.msra.mxu0 0.0
  %6546 = vmatprep.subr.mxu0 0.0
  %6547 = vmatpush1.msra.mxu0 0.0
  %6548 = vmatprep.subr.mxu0 0.0
  %6549 = vmatpush1.msra.mxu0 0.0
  %6550 = vmatprep.subr.mxu0 0.0
  %6551 = vmatpush1.msra.mxu0 0.0
  %6552 = vmatprep.subr.mxu0 0.0
  %6553 = vmatpush1.msra.mxu0 0.0
  %6554 = vmatprep.subr.mxu0 0.0
  %6555 = vmatpush1.msra.mxu0 0.0
  %6556 = vmatprep.subr.mxu0 0.0
  %6557 = vmatpush1.msra.mxu0 0.0
  %6558 = vmatprep.subr.mxu0 0.0
  %6559 = vmatpush1.msra.mxu0 0.0
  %6560 = vmatprep.subr.mxu0 0.0
  %6561 = vmatpush1.msra.mxu0 0.0
  %6562 = vmatprep.mubr.f32.mxu0 0.0
  %6563 = vmatmul.mubr.f32.gmra.mrb[0].mxu0 %v6496
  %v6564 = vpop.f32.mrb[0].mxu0
  %v6565 = vadd.f32 0.0, %v6564
  %v6566 = vpop.f32.mrb[0].mxu0
  %6567 = vdwg.mxu0
  %6569 = vrot.lane.b32.xlu0 %v5544, 96
  %v6570 = vpop.permute.xlu0 %6569
  %v6573 = vsel %vm27, %v6229, 0
  %6575 = vmatprep.subr.mxu0 0.0
  %6576 = vmatpush1.msra.mxu0 %v6570
  %6577 = vmatprep.subr.mxu0 0.0
  %6578 = vmatpush1.msra.mxu0 0.0
  %6579 = vmatprep.subr.mxu0 0.0
  %6580 = vmatpush1.msra.mxu0 0.0
  %6581 = vmatprep.subr.mxu0 0.0
  %6582 = vmatpush1.msra.mxu0 0.0
  %6583 = vmatprep.subr.mxu0 0.0
  %6584 = vmatpush1.msra.mxu0 0.0
  %6585 = vmatprep.subr.mxu0 0.0
  %6586 = vmatpush1.msra.mxu0 0.0
  %6587 = vmatprep.subr.mxu0 0.0
  %6588 = vmatpush1.msra.mxu0 0.0
  %6589 = vmatprep.subr.mxu0 0.0
  %6590 = vmatpush1.msra.mxu0 0.0
  %6591 = vmatprep.subr.mxu0 0.0
  %6592 = vmatpush1.msra.mxu0 0.0
  %6593 = vmatprep.subr.mxu0 0.0
  %6594 = vmatpush1.msra.mxu0 0.0
  %6595 = vmatprep.subr.mxu0 0.0
  %6596 = vmatpush1.msra.mxu0 0.0
  %6597 = vmatprep.subr.mxu0 0.0
  %6598 = vmatpush1.msra.mxu0 0.0
  %6599 = vmatprep.subr.mxu0 0.0
  %6600 = vmatpush1.msra.mxu0 0.0
  %6601 = vmatprep.subr.mxu0 0.0
  %6602 = vmatpush1.msra.mxu0 0.0
  %6603 = vmatprep.subr.mxu0 0.0
  %6604 = vmatpush1.msra.mxu0 0.0
  %6605 = vmatprep.subr.mxu0 0.0
  %6606 = vmatpush1.msra.mxu0 0.0
  %6607 = vmatprep.subr.mxu0 0.0
  %6608 = vmatpush1.msra.mxu0 0.0
  %6609 = vmatprep.subr.mxu0 0.0
  %6610 = vmatpush1.msra.mxu0 0.0
  %6611 = vmatprep.subr.mxu0 0.0
  %6612 = vmatpush1.msra.mxu0 0.0
  %6613 = vmatprep.subr.mxu0 0.0
  %6614 = vmatpush1.msra.mxu0 0.0
  %6615 = vmatprep.subr.mxu0 0.0
  %6616 = vmatpush1.msra.mxu0 0.0
  %6617 = vmatprep.subr.mxu0 0.0
  %6618 = vmatpush1.msra.mxu0 0.0
  %6619 = vmatprep.subr.mxu0 0.0
  %6620 = vmatpush1.msra.mxu0 0.0
  %6621 = vmatprep.subr.mxu0 0.0
  %6622 = vmatpush1.msra.mxu0 0.0
  %6623 = vmatprep.subr.mxu0 0.0
  %6624 = vmatpush1.msra.mxu0 0.0
  %6625 = vmatprep.subr.mxu0 0.0
  %6626 = vmatpush1.msra.mxu0 0.0
  %6627 = vmatprep.subr.mxu0 0.0
  %6628 = vmatpush1.msra.mxu0 0.0
  %6629 = vmatprep.subr.mxu0 0.0
  %6630 = vmatpush1.msra.mxu0 0.0
  %6631 = vmatprep.subr.mxu0 0.0
  %6632 = vmatpush1.msra.mxu0 0.0
  %6633 = vmatprep.subr.mxu0 0.0
  %6634 = vmatpush1.msra.mxu0 0.0
  %6635 = vmatprep.subr.mxu0 0.0
  %6636 = vmatpush1.msra.mxu0 0.0
  %6637 = vmatprep.subr.mxu0 0.0
  %6638 = vmatpush1.msra.mxu0 0.0
  %6639 = vmatprep.mubr.f32.mxu0 0.0
  %6640 = vmatmul.mubr.f32.gmra.mrb[0].mxu0 %v6573
  %v6641 = vpop.f32.mrb[0].mxu0
  %v6642 = vadd.f32 0.0, %v6641
  %v6643 = vpop.f32.mrb[0].mxu0
  %6644 = vdwg.mxu0
  %6646 = vrot.lane.b32.xlu0 %v5545, 96
  %v6647 = vpop.permute.xlu0 %6646
  %v6650 = vsel %vm27, %v6231, 0
  %6652 = vmatprep.subr.mxu0 0.0
  %6653 = vmatpush1.msra.mxu0 %v6647
  %6654 = vmatprep.subr.mxu0 0.0
  %6655 = vmatpush1.msra.mxu0 0.0
  %6656 = vmatprep.subr.mxu0 0.0
  %6657 = vmatpush1.msra.mxu0 0.0
  %6658 = vmatprep.subr.mxu0 0.0
  %6659 = vmatpush1.msra.mxu0 0.0
  %6660 = vmatprep.subr.mxu0 0.0
  %6661 = vmatpush1.msra.mxu0 0.0
  %6662 = vmatprep.subr.mxu0 0.0
  %6663 = vmatpush1.msra.mxu0 0.0
  %6664 = vmatprep.subr.mxu0 0.0
  %6665 = vmatpush1.msra.mxu0 0.0
  %6666 = vmatprep.subr.mxu0 0.0
  %6667 = vmatpush1.msra.mxu0 0.0
  %6668 = vmatprep.subr.mxu0 0.0
  %6669 = vmatpush1.msra.mxu0 0.0
  %6670 = vmatprep.subr.mxu0 0.0
  %6671 = vmatpush1.msra.mxu0 0.0
  %6672 = vmatprep.subr.mxu0 0.0
  %6673 = vmatpush1.msra.mxu0 0.0
  %6674 = vmatprep.subr.mxu0 0.0
  %6675 = vmatpush1.msra.mxu0 0.0
  %6676 = vmatprep.subr.mxu0 0.0
  %6677 = vmatpush1.msra.mxu0 0.0
  %6678 = vmatprep.subr.mxu0 0.0
  %6679 = vmatpush1.msra.mxu0 0.0
  %6680 = vmatprep.subr.mxu0 0.0
  %6681 = vmatpush1.msra.mxu0 0.0
  %6682 = vmatprep.subr.mxu0 0.0
  %6683 = vmatpush1.msra.mxu0 0.0
  %6684 = vmatprep.subr.mxu0 0.0
  %6685 = vmatpush1.msra.mxu0 0.0
  %6686 = vmatprep.subr.mxu0 0.0
  %6687 = vmatpush1.msra.mxu0 0.0
  %6688 = vmatprep.subr.mxu0 0.0
  %6689 = vmatpush1.msra.mxu0 0.0
  %6690 = vmatprep.subr.mxu0 0.0
  %6691 = vmatpush1.msra.mxu0 0.0
  %6692 = vmatprep.subr.mxu0 0.0
  %6693 = vmatpush1.msra.mxu0 0.0
  %6694 = vmatprep.subr.mxu0 0.0
  %6695 = vmatpush1.msra.mxu0 0.0
  %6696 = vmatprep.subr.mxu0 0.0
  %6697 = vmatpush1.msra.mxu0 0.0
  %6698 = vmatprep.subr.mxu0 0.0
  %6699 = vmatpush1.msra.mxu0 0.0
  %6700 = vmatprep.subr.mxu0 0.0
  %6701 = vmatpush1.msra.mxu0 0.0
  %6702 = vmatprep.subr.mxu0 0.0
  %6703 = vmatpush1.msra.mxu0 0.0
  %6704 = vmatprep.subr.mxu0 0.0
  %6705 = vmatpush1.msra.mxu0 0.0
  %6706 = vmatprep.subr.mxu0 0.0
  %6707 = vmatpush1.msra.mxu0 0.0
  %6708 = vmatprep.subr.mxu0 0.0
  %6709 = vmatpush1.msra.mxu0 0.0
  %6710 = vmatprep.subr.mxu0 0.0
  %6711 = vmatpush1.msra.mxu0 0.0
  %6712 = vmatprep.subr.mxu0 0.0
  %6713 = vmatpush1.msra.mxu0 0.0
  %6714 = vmatprep.subr.mxu0 0.0
  %6715 = vmatpush1.msra.mxu0 0.0
  %6716 = vmatprep.mubr.f32.mxu0 0.0
  %6717 = vmatmul.mubr.f32.gmra.mrb[0].mxu0 %v6650
  %v6718 = vpop.f32.mrb[0].mxu0
  %v6719 = vadd.f32 0.0, %v6718
  %v6720 = vpop.f32.mrb[0].mxu0
  %6721 = vdwg.mxu0
  %6723 = vrot.lane.b32.xlu0 %v5546, 96
  %v6724 = vpop.permute.xlu0 %6723
  %v6727 = vsel %vm27, %v6233, 0
  %6729 = vmatprep.subr.mxu0 0.0
  %6730 = vmatpush1.msra.mxu0 %v6724
  %6731 = vmatprep.subr.mxu0 0.0
  %6732 = vmatpush1.msra.mxu0 0.0
  %6733 = vmatprep.subr.mxu0 0.0
  %6734 = vmatpush1.msra.mxu0 0.0
  %6735 = vmatprep.subr.mxu0 0.0
  %6736 = vmatpush1.msra.mxu0 0.0
  %6737 = vmatprep.subr.mxu0 0.0
  %6738 = vmatpush1.msra.mxu0 0.0
  %6739 = vmatprep.subr.mxu0 0.0
  %6740 = vmatpush1.msra.mxu0 0.0
  %6741 = vmatprep.subr.mxu0 0.0
  %6742 = vmatpush1.msra.mxu0 0.0
  %6743 = vmatprep.subr.mxu0 0.0
  %6744 = vmatpush1.msra.mxu0 0.0
  %6745 = vmatprep.subr.mxu0 0.0
  %6746 = vmatpush1.msra.mxu0 0.0
  %6747 = vmatprep.subr.mxu0 0.0
  %6748 = vmatpush1.msra.mxu0 0.0
  %6749 = vmatprep.subr.mxu0 0.0
  %6750 = vmatpush1.msra.mxu0 0.0
  %6751 = vmatprep.subr.mxu0 0.0
  %6752 = vmatpush1.msra.mxu0 0.0
  %6753 = vmatprep.subr.mxu0 0.0
  %6754 = vmatpush1.msra.mxu0 0.0
  %6755 = vmatprep.subr.mxu0 0.0
  %6756 = vmatpush1.msra.mxu0 0.0
  %6757 = vmatprep.subr.mxu0 0.0
  %6758 = vmatpush1.msra.mxu0 0.0
  %6759 = vmatprep.subr.mxu0 0.0
  %6760 = vmatpush1.msra.mxu0 0.0
  %6761 = vmatprep.subr.mxu0 0.0
  %6762 = vmatpush1.msra.mxu0 0.0
  %6763 = vmatprep.subr.mxu0 0.0
  %6764 = vmatpush1.msra.mxu0 0.0
  %6765 = vmatprep.subr.mxu0 0.0
  %6766 = vmatpush1.msra.mxu0 0.0
  %6767 = vmatprep.subr.mxu0 0.0
  %6768 = vmatpush1.msra.mxu0 0.0
  %6769 = vmatprep.subr.mxu0 0.0
  %6770 = vmatpush1.msra.mxu0 0.0
  %6771 = vmatprep.subr.mxu0 0.0
  %6772 = vmatpush1.msra.mxu0 0.0
  %6773 = vmatprep.subr.mxu0 0.0
  %6774 = vmatpush1.msra.mxu0 0.0
  %6775 = vmatprep.subr.mxu0 0.0
  %6776 = vmatpush1.msra.mxu0 0.0
  %6777 = vmatprep.subr.mxu0 0.0
  %6778 = vmatpush1.msra.mxu0 0.0
  %6779 = vmatprep.subr.mxu0 0.0
  %6780 = vmatpush1.msra.mxu0 0.0
  %6781 = vmatprep.subr.mxu0 0.0
  %6782 = vmatpush1.msra.mxu0 0.0
  %6783 = vmatprep.subr.mxu0 0.0
  %6784 = vmatpush1.msra.mxu0 0.0
  %6785 = vmatprep.subr.mxu0 0.0
  %6786 = vmatpush1.msra.mxu0 0.0
  %6787 = vmatprep.subr.mxu0 0.0
  %6788 = vmatpush1.msra.mxu0 0.0
  %6789 = vmatprep.subr.mxu0 0.0
  %6790 = vmatpush1.msra.mxu0 0.0
  %6791 = vmatprep.subr.mxu0 0.0
  %6792 = vmatpush1.msra.mxu0 0.0
  %6793 = vmatprep.mubr.f32.mxu0 0.0
  %6794 = vmatmul.mubr.f32.gmra.mrb[0].mxu0 %v6727
  %v6795 = vpop.f32.mrb[0].mxu0
  %v6796 = vadd.f32 0.0, %v6795
  %v6797 = vpop.f32.mrb[0].mxu0
  %6798 = vdwg.mxu0
  %6800 = vrot.lane.b32.xlu0 %v5547, 96
  %v6801 = vpop.permute.xlu0 %6800
  %v6804 = vsel %vm27, %v6235, 0
  %6806 = vmatprep.subr.mxu0 0.0
  %6807 = vmatpush1.msra.mxu0 %v6801
  %6808 = vmatprep.subr.mxu0 0.0
  %6809 = vmatpush1.msra.mxu0 0.0
  %6810 = vmatprep.subr.mxu0 0.0
  %6811 = vmatpush1.msra.mxu0 0.0
  %6812 = vmatprep.subr.mxu0 0.0
  %6813 = vmatpush1.msra.mxu0 0.0
  %6814 = vmatprep.subr.mxu0 0.0
  %6815 = vmatpush1.msra.mxu0 0.0
  %6816 = vmatprep.subr.mxu0 0.0
  %6817 = vmatpush1.msra.mxu0 0.0
  %6818 = vmatprep.subr.mxu0 0.0
  %6819 = vmatpush1.msra.mxu0 0.0
  %6820 = vmatprep.subr.mxu0 0.0
  %6821 = vmatpush1.msra.mxu0 0.0
  %6822 = vmatprep.subr.mxu0 0.0
  %6823 = vmatpush1.msra.mxu0 0.0
  %6824 = vmatprep.subr.mxu0 0.0
  %6825 = vmatpush1.msra.mxu0 0.0
  %6826 = vmatprep.subr.mxu0 0.0
  %6827 = vmatpush1.msra.mxu0 0.0
  %6828 = vmatprep.subr.mxu0 0.0
  %6829 = vmatpush1.msra.mxu0 0.0
  %6830 = vmatprep.subr.mxu0 0.0
  %6831 = vmatpush1.msra.mxu0 0.0
  %6832 = vmatprep.subr.mxu0 0.0
  %6833 = vmatpush1.msra.mxu0 0.0
  %6834 = vmatprep.subr.mxu0 0.0
  %6835 = vmatpush1.msra.mxu0 0.0
  %6836 = vmatprep.subr.mxu0 0.0
  %6837 = vmatpush1.msra.mxu0 0.0
  %6838 = vmatprep.subr.mxu0 0.0
  %6839 = vmatpush1.msra.mxu0 0.0
  %6840 = vmatprep.subr.mxu0 0.0
  %6841 = vmatpush1.msra.mxu0 0.0
  %6842 = vmatprep.subr.mxu0 0.0
  %6843 = vmatpush1.msra.mxu0 0.0
  %6844 = vmatprep.subr.mxu0 0.0
  %6845 = vmatpush1.msra.mxu0 0.0
  %6846 = vmatprep.subr.mxu0 0.0
  %6847 = vmatpush1.msra.mxu0 0.0
  %6848 = vmatprep.subr.mxu0 0.0
  %6849 = vmatpush1.msra.mxu0 0.0
  %6850 = vmatprep.subr.mxu0 0.0
  %6851 = vmatpush1.msra.mxu0 0.0
  %6852 = vmatprep.subr.mxu0 0.0
  %6853 = vmatpush1.msra.mxu0 0.0
  %6854 = vmatprep.subr.mxu0 0.0
  %6855 = vmatpush1.msra.mxu0 0.0
  %6856 = vmatprep.subr.mxu0 0.0
  %6857 = vmatpush1.msra.mxu0 0.0
  %6858 = vmatprep.subr.mxu0 0.0
  %6859 = vmatpush1.msra.mxu0 0.0
  %6860 = vmatprep.subr.mxu0 0.0
  %6861 = vmatpush1.msra.mxu0 0.0
  %6862 = vmatprep.subr.mxu0 0.0
  %6863 = vmatpush1.msra.mxu0 0.0
  %6864 = vmatprep.subr.mxu0 0.0
  %6865 = vmatpush1.msra.mxu0 0.0
  %6866 = vmatprep.subr.mxu0 0.0
  %6867 = vmatpush1.msra.mxu0 0.0
  %6868 = vmatprep.subr.mxu0 0.0
  %6869 = vmatpush1.msra.mxu0 0.0
  %6870 = vmatprep.mubr.f32.mxu0 0.0
  %6871 = vmatmul.mubr.f32.gmra.mrb[0].mxu0 %v6804
  %v6872 = vpop.f32.mrb[0].mxu0
  %v6873 = vadd.f32 0.0, %v6872
  %v6874 = vpop.f32.mrb[0].mxu0
  %6875 = vdwg.mxu0
  %v6876 = vrcp.pop %v6238
  %v6877 = vrcp.pop %v6241
  %v6878 = vrcp.pop %v6244
  %v6879 = vrcp.pop %v6247
  %v6880 = vrcp.pop %v6250
  %v6881 = vrcp.pop %v6253
  %v6882 = vrcp.pop %v6256
  %v6883 = vrcp.pop %v6259
  %v6884 = vmul.f32 %v6334, %v6876
  %v6885 = vmul.f32 %v6411, %v6877
  %v6886 = vmul.f32 %v6488, %v6878
  %v6887 = vmul.f32 %v6565, %v6879
  %v6888 = vmul.f32 %v6642, %v6880
  %v6889 = vmul.f32 %v6719, %v6881
  %v6890 = vmul.f32 %v6796, %v6882
  %v6891 = vmul.f32 %v6873, %v6883
  %6900 = vrot.lane.b32.xlu0 %v6884, 32
  %v6901 = vpop.permute.xlu0 %6900
  %6902 = vrot.lane.b32.xlu0 %v6885, 32
  %v6903 = vpop.permute.xlu0 %6902
  %6904 = vrot.lane.b32.xlu0 %v6886, 32
  %v6905 = vpop.permute.xlu0 %6904
  %6906 = vrot.lane.b32.xlu0 %v6887, 32
  %v6907 = vpop.permute.xlu0 %6906
  %6908 = vrot.lane.b32.xlu0 %v6888, 32
  %v6909 = vpop.permute.xlu0 %6908
  %6910 = vrot.lane.b32.xlu0 %v6889, 32
  %v6911 = vpop.permute.xlu0 %6910
  %6912 = vrot.lane.b32.xlu0 %v6890, 32
  %v6913 = vpop.permute.xlu0 %6912
  %6914 = vrot.lane.b32.xlu0 %v6891, 32
  %v6915 = vpop.permute.xlu0 %6914
  %vm6924 = vcmask 326912
  %6925 = vst.msk [vmem:[%s1] sm:$0xff] %vm6924, %v6901
  %6926 = vst.msk [vmem:[%s1 + $0x8] sm:$0xff] %vm6924, %v6903
  %6927 = vst.msk [vmem:[%s1 + $0x10] sm:$0xff] %vm6924, %v6905
  %6928 = vst.msk [vmem:[%s1 + $0x18] sm:$0xff] %vm6924, %v6907
  %6929 = vst.msk [vmem:[%s1 + $0x20] sm:$0xff] %vm6924, %v6909
  %6930 = vst.msk [vmem:[%s1 + $0x28] sm:$0xff] %vm6924, %v6911
  %6931 = vst.msk [vmem:[%s1 + $0x30] sm:$0xff] %vm6924, %v6913
  %6932 = vst.msk [vmem:[%s1 + $0x38] sm:$0xff] %vm6924, %v6915
  %v6933 = vld [vmem:[%s0] sm:$0xff]
  %v6934 = vld [vmem:[%s0 + $0x10] sm:$0xff]
  %v6935 = vld [vmem:[%s0 + $0x20] sm:$0xff]
  %v6936 = vld [vmem:[%s0 + $0x30] sm:$0xff]
  %v6937 = vld [vmem:[%s0 + $0x40] sm:$0xff]
  %v6938 = vld [vmem:[%s0 + $0x50] sm:$0xff]
  %v6939 = vld [vmem:[%s0 + $0x60] sm:$0xff]
  %v6940 = vld [vmem:[%s0 + $0x70] sm:$0xff]
  %v6941 = vld [vmem:[%s0 + $0x8] sm:$0xff]
  %v6942 = vld [vmem:[%s0 + $0x18] sm:$0xff]
  %v6943 = vld [vmem:[%s0 + $0x28] sm:$0xff]
  %v6944 = vld [vmem:[%s0 + $0x38] sm:$0xff]
  %v6945 = vld [vmem:[%s0 + $0x48] sm:$0xff]
  %v6946 = vld [vmem:[%s0 + $0x58] sm:$0xff]
  %v6947 = vld [vmem:[%s0 + $0x68] sm:$0xff]
  %v6948 = vld [vmem:[%s0 + $0x78] sm:$0xff]
  %6950 = vrot.lane.b32.xlu0 %v6933, 88
  %v6951 = vpop.permute.xlu0 %6950
  %6952 = vrot.lane.b32.xlu0 %v6933, 24
  %v6953 = vpop.permute.xlu0 %6952
  %v6954 = vsel %vm27, %v6951, 0
  %v6956 = vsel %vm27, %v6953, 0
  %6958 = vmatprep.subr.mxu0 0.0
  %6959 = vmatpush1.xpose.msra.mxu0 %v6956
  %6960 = vmatprep.subr.mxu0 0.0
  %6961 = vmatpush1.xpose.msra.mxu0 0.0
  %6962 = vmatprep.subr.mxu0 0.0
  %6963 = vmatpush1.xpose.msra.mxu0 0.0
  %6964 = vmatprep.subr.mxu0 0.0
  %6965 = vmatpush1.xpose.msra.mxu0 0.0
  %6966 = vmatprep.subr.mxu0 0.0
  %6967 = vmatpush1.xpose.msra.mxu0 0.0
  %6968 = vmatprep.subr.mxu0 0.0
  %6969 = vmatpush1.xpose.msra.mxu0 0.0
  %6970 = vmatprep.subr.mxu0 0.0
  %6971 = vmatpush1.xpose.msra.mxu0 0.0
  %6972 = vmatprep.subr.mxu0 0.0
  %6973 = vmatpush1.xpose.msra.mxu0 0.0
  %6974 = vmatprep.subr.mxu0 0.0
  %6975 = vmatpush1.xpose.msra.mxu0 0.0
  %6976 = vmatprep.subr.mxu0 0.0
  %6977 = vmatpush1.xpose.msra.mxu0 0.0
  %6978 = vmatprep.subr.mxu0 0.0
  %6979 = vmatpush1.xpose.msra.mxu0 0.0
  %6980 = vmatprep.subr.mxu0 0.0
  %6981 = vmatpush1.xpose.msra.mxu0 0.0
  %6982 = vmatprep.subr.mxu0 0.0
  %6983 = vmatpush1.xpose.msra.mxu0 0.0
  %6984 = vmatprep.subr.mxu0 0.0
  %6985 = vmatpush1.xpose.msra.mxu0 0.0
  %6986 = vmatprep.subr.mxu0 0.0
  %6987 = vmatpush1.xpose.msra.mxu0 0.0
  %6988 = vmatprep.subr.mxu0 0.0
  %6989 = vmatpush1.xpose.msra.mxu0 0.0
  %6990 = vmatprep.subr.mxu0 0.0
  %6991 = vmatpush1.xpose.msra.mxu0 0.0
  %6992 = vmatprep.subr.mxu0 0.0
  %6993 = vmatpush1.xpose.msra.mxu0 0.0
  %6994 = vmatprep.subr.mxu0 0.0
  %6995 = vmatpush1.xpose.msra.mxu0 0.0
  %6996 = vmatprep.subr.mxu0 0.0
  %6997 = vmatpush1.xpose.msra.mxu0 0.0
  %6998 = vmatprep.subr.mxu0 0.0
  %6999 = vmatpush1.xpose.msra.mxu0 0.0
  %7000 = vmatprep.subr.mxu0 0.0
  %7001 = vmatpush1.xpose.msra.mxu0 0.0
  %7002 = vmatprep.subr.mxu0 0.0
  %7003 = vmatpush1.xpose.msra.mxu0 0.0
  %7004 = vmatprep.subr.mxu0 0.0
  %7005 = vmatpush1.xpose.msra.mxu0 0.0
  %7006 = vmatprep.subr.mxu0 0.0
  %7007 = vmatpush1.xpose.msra.mxu0 0.0
  %7008 = vmatprep.subr.mxu0 0.0
  %7009 = vmatpush1.xpose.msra.mxu0 0.0
  %7010 = vmatprep.subr.mxu0 0.0
  %7011 = vmatpush1.xpose.msra.mxu0 0.0
  %7012 = vmatprep.subr.mxu0 0.0
  %7013 = vmatpush1.xpose.msra.mxu0 0.0
  %7014 = vmatprep.subr.mxu0 0.0
  %7015 = vmatpush1.xpose.msra.mxu0 0.0
  %7016 = vmatprep.subr.mxu0 0.0
  %7017 = vmatpush1.xpose.msra.mxu0 0.0
  %7018 = vmatprep.subr.mxu0 0.0
  %7019 = vmatpush1.xpose.msra.mxu0 0.0
  %7020 = vmatprep.subr.mxu0 0.0
  %7021 = vmatpush1.xpose.msra.mxu0 0.0
  %7022 = vmatprep.mubr.f32.mxu0 0.0
  %7023 = vmatmul.mubr.f32.gmra.mrb[0].mxu0 %v6954
  %v7024 = vpop.f32.mrb[0].mxu0
  %v7025 = vadd.f32 0.0, %v7024
  %v7026 = vpop.f32.mrb[0].mxu0
  %7027 = vdwg.mxu0
  %7029 = vrot.lane.b32.xlu0 %v6934, 88
  %v7030 = vpop.permute.xlu0 %7029
  %7031 = vrot.lane.b32.xlu0 %v6934, 24
  %v7032 = vpop.permute.xlu0 %7031
  %v7033 = vsel %vm27, %v7030, 0
  %v7035 = vsel %vm27, %v7032, 0
  %7037 = vmatprep.subr.mxu0 0.0
  %7038 = vmatpush1.xpose.msra.mxu0 %v7035
  %7039 = vmatprep.subr.mxu0 0.0
  %7040 = vmatpush1.xpose.msra.mxu0 0.0
  %7041 = vmatprep.subr.mxu0 0.0
  %7042 = vmatpush1.xpose.msra.mxu0 0.0
  %7043 = vmatprep.subr.mxu0 0.0
  %7044 = vmatpush1.xpose.msra.mxu0 0.0
  %7045 = vmatprep.subr.mxu0 0.0
  %7046 = vmatpush1.xpose.msra.mxu0 0.0
  %7047 = vmatprep.subr.mxu0 0.0
  %7048 = vmatpush1.xpose.msra.mxu0 0.0
  %7049 = vmatprep.subr.mxu0 0.0
  %7050 = vmatpush1.xpose.msra.mxu0 0.0
  %7051 = vmatprep.subr.mxu0 0.0
  %7052 = vmatpush1.xpose.msra.mxu0 0.0
  %7053 = vmatprep.subr.mxu0 0.0
  %7054 = vmatpush1.xpose.msra.mxu0 0.0
  %7055 = vmatprep.subr.mxu0 0.0
  %7056 = vmatpush1.xpose.msra.mxu0 0.0
  %7057 = vmatprep.subr.mxu0 0.0
  %7058 = vmatpush1.xpose.msra.mxu0 0.0
  %7059 = vmatprep.subr.mxu0 0.0
  %7060 = vmatpush1.xpose.msra.mxu0 0.0
  %7061 = vmatprep.subr.mxu0 0.0
  %7062 = vmatpush1.xpose.msra.mxu0 0.0
  %7063 = vmatprep.subr.mxu0 0.0
  %7064 = vmatpush1.xpose.msra.mxu0 0.0
  %7065 = vmatprep.subr.mxu0 0.0
  %7066 = vmatpush1.xpose.msra.mxu0 0.0
  %7067 = vmatprep.subr.mxu0 0.0
  %7068 = vmatpush1.xpose.msra.mxu0 0.0
  %7069 = vmatprep.subr.mxu0 0.0
  %7070 = vmatpush1.xpose.msra.mxu0 0.0
  %7071 = vmatprep.subr.mxu0 0.0
  %7072 = vmatpush1.xpose.msra.mxu0 0.0
  %7073 = vmatprep.subr.mxu0 0.0
  %7074 = vmatpush1.xpose.msra.mxu0 0.0
  %7075 = vmatprep.subr.mxu0 0.0
  %7076 = vmatpush1.xpose.msra.mxu0 0.0
  %7077 = vmatprep.subr.mxu0 0.0
  %7078 = vmatpush1.xpose.msra.mxu0 0.0
  %7079 = vmatprep.subr.mxu0 0.0
  %7080 = vmatpush1.xpose.msra.mxu0 0.0
  %7081 = vmatprep.subr.mxu0 0.0
  %7082 = vmatpush1.xpose.msra.mxu0 0.0
  %7083 = vmatprep.subr.mxu0 0.0
  %7084 = vmatpush1.xpose.msra.mxu0 0.0
  %7085 = vmatprep.subr.mxu0 0.0
  %7086 = vmatpush1.xpose.msra.mxu0 0.0
  %7087 = vmatprep.subr.mxu0 0.0
  %7088 = vmatpush1.xpose.msra.mxu0 0.0
  %7089 = vmatprep.subr.mxu0 0.0
  %7090 = vmatpush1.xpose.msra.mxu0 0.0
  %7091 = vmatprep.subr.mxu0 0.0
  %7092 = vmatpush1.xpose.msra.mxu0 0.0
  %7093 = vmatprep.subr.mxu0 0.0
  %7094 = vmatpush1.xpose.msra.mxu0 0.0
  %7095 = vmatprep.subr.mxu0 0.0
  %7096 = vmatpush1.xpose.msra.mxu0 0.0
  %7097 = vmatprep.subr.mxu0 0.0
  %7098 = vmatpush1.xpose.msra.mxu0 0.0
  %7099 = vmatprep.subr.mxu0 0.0
  %7100 = vmatpush1.xpose.msra.mxu0 0.0
  %7101 = vmatprep.mubr.f32.mxu0 0.0
  %7102 = vmatmul.mubr.f32.gmra.mrb[0].mxu0 %v7033
  %v7103 = vpop.f32.mrb[0].mxu0
  %v7104 = vadd.f32 0.0, %v7103
  %v7105 = vpop.f32.mrb[0].mxu0
  %7106 = vdwg.mxu0
  %7108 = vrot.lane.b32.xlu0 %v6935, 88
  %v7109 = vpop.permute.xlu0 %7108
  %7110 = vrot.lane.b32.xlu0 %v6935, 24
  %v7111 = vpop.permute.xlu0 %7110
  %v7112 = vsel %vm27, %v7109, 0
  %v7114 = vsel %vm27, %v7111, 0
  %7116 = vmatprep.subr.mxu0 0.0
  %7117 = vmatpush1.xpose.msra.mxu0 %v7114
  %7118 = vmatprep.subr.mxu0 0.0
  %7119 = vmatpush1.xpose.msra.mxu0 0.0
  %7120 = vmatprep.subr.mxu0 0.0
  %7121 = vmatpush1.xpose.msra.mxu0 0.0
  %7122 = vmatprep.subr.mxu0 0.0
  %7123 = vmatpush1.xpose.msra.mxu0 0.0
  %7124 = vmatprep.subr.mxu0 0.0
  %7125 = vmatpush1.xpose.msra.mxu0 0.0
  %7126 = vmatprep.subr.mxu0 0.0
  %7127 = vmatpush1.xpose.msra.mxu0 0.0
  %7128 = vmatprep.subr.mxu0 0.0
  %7129 = vmatpush1.xpose.msra.mxu0 0.0
  %7130 = vmatprep.subr.mxu0 0.0
  %7131 = vmatpush1.xpose.msra.mxu0 0.0
  %7132 = vmatprep.subr.mxu0 0.0
  %7133 = vmatpush1.xpose.msra.mxu0 0.0
  %7134 = vmatprep.subr.mxu0 0.0
  %7135 = vmatpush1.xpose.msra.mxu0 0.0
  %7136 = vmatprep.subr.mxu0 0.0
  %7137 = vmatpush1.xpose.msra.mxu0 0.0
  %7138 = vmatprep.subr.mxu0 0.0
  %7139 = vmatpush1.xpose.msra.mxu0 0.0
  %7140 = vmatprep.subr.mxu0 0.0
  %7141 = vmatpush1.xpose.msra.mxu0 0.0
  %7142 = vmatprep.subr.mxu0 0.0
  %7143 = vmatpush1.xpose.msra.mxu0 0.0
  %7144 = vmatprep.subr.mxu0 0.0
  %7145 = vmatpush1.xpose.msra.mxu0 0.0
  %7146 = vmatprep.subr.mxu0 0.0
  %7147 = vmatpush1.xpose.msra.mxu0 0.0
  %7148 = vmatprep.subr.mxu0 0.0
  %7149 = vmatpush1.xpose.msra.mxu0 0.0
  %7150 = vmatprep.subr.mxu0 0.0
  %7151 = vmatpush1.xpose.msra.mxu0 0.0
  %7152 = vmatprep.subr.mxu0 0.0
  %7153 = vmatpush1.xpose.msra.mxu0 0.0
  %7154 = vmatprep.subr.mxu0 0.0
  %7155 = vmatpush1.xpose.msra.mxu0 0.0
  %7156 = vmatprep.subr.mxu0 0.0
  %7157 = vmatpush1.xpose.msra.mxu0 0.0
  %7158 = vmatprep.subr.mxu0 0.0
  %7159 = vmatpush1.xpose.msra.mxu0 0.0
  %7160 = vmatprep.subr.mxu0 0.0
  %7161 = vmatpush1.xpose.msra.mxu0 0.0
  %7162 = vmatprep.subr.mxu0 0.0
  %7163 = vmatpush1.xpose.msra.mxu0 0.0
  %7164 = vmatprep.subr.mxu0 0.0
  %7165 = vmatpush1.xpose.msra.mxu0 0.0
  %7166 = vmatprep.subr.mxu0 0.0
  %7167 = vmatpush1.xpose.msra.mxu0 0.0
  %7168 = vmatprep.subr.mxu0 0.0
  %7169 = vmatpush1.xpose.msra.mxu0 0.0
  %7170 = vmatprep.subr.mxu0 0.0
  %7171 = vmatpush1.xpose.msra.mxu0 0.0
  %7172 = vmatprep.subr.mxu0 0.0
  %7173 = vmatpush1.xpose.msra.mxu0 0.0
  %7174 = vmatprep.subr.mxu0 0.0
  %7175 = vmatpush1.xpose.msra.mxu0 0.0
  %7176 = vmatprep.subr.mxu0 0.0
  %7177 = vmatpush1.xpose.msra.mxu0 0.0
  %7178 = vmatprep.subr.mxu0 0.0
  %7179 = vmatpush1.xpose.msra.mxu0 0.0
  %7180 = vmatprep.mubr.f32.mxu0 0.0
  %7181 = vmatmul.mubr.f32.gmra.mrb[0].mxu0 %v7112
  %v7182 = vpop.f32.mrb[0].mxu0
  %v7183 = vadd.f32 0.0, %v7182
  %v7184 = vpop.f32.mrb[0].mxu0
  %7185 = vdwg.mxu0
  %7187 = vrot.lane.b32.xlu0 %v6936, 88
  %v7188 = vpop.permute.xlu0 %7187
  %7189 = vrot.lane.b32.xlu0 %v6936, 24
  %v7190 = vpop.permute.xlu0 %7189
  %v7191 = vsel %vm27, %v7188, 0
  %v7193 = vsel %vm27, %v7190, 0
  %7195 = vmatprep.subr.mxu0 0.0
  %7196 = vmatpush1.xpose.msra.mxu0 %v7193
  %7197 = vmatprep.subr.mxu0 0.0
  %7198 = vmatpush1.xpose.msra.mxu0 0.0
  %7199 = vmatprep.subr.mxu0 0.0
  %7200 = vmatpush1.xpose.msra.mxu0 0.0
  %7201 = vmatprep.subr.mxu0 0.0
  %7202 = vmatpush1.xpose.msra.mxu0 0.0
  %7203 = vmatprep.subr.mxu0 0.0
  %7204 = vmatpush1.xpose.msra.mxu0 0.0
  %7205 = vmatprep.subr.mxu0 0.0
  %7206 = vmatpush1.xpose.msra.mxu0 0.0
  %7207 = vmatprep.subr.mxu0 0.0
  %7208 = vmatpush1.xpose.msra.mxu0 0.0
  %7209 = vmatprep.subr.mxu0 0.0
  %7210 = vmatpush1.xpose.msra.mxu0 0.0
  %7211 = vmatprep.subr.mxu0 0.0
  %7212 = vmatpush1.xpose.msra.mxu0 0.0
  %7213 = vmatprep.subr.mxu0 0.0
  %7214 = vmatpush1.xpose.msra.mxu0 0.0
  %7215 = vmatprep.subr.mxu0 0.0
  %7216 = vmatpush1.xpose.msra.mxu0 0.0
  %7217 = vmatprep.subr.mxu0 0.0
  %7218 = vmatpush1.xpose.msra.mxu0 0.0
  %7219 = vmatprep.subr.mxu0 0.0
  %7220 = vmatpush1.xpose.msra.mxu0 0.0
  %7221 = vmatprep.subr.mxu0 0.0
  %7222 = vmatpush1.xpose.msra.mxu0 0.0
  %7223 = vmatprep.subr.mxu0 0.0
  %7224 = vmatpush1.xpose.msra.mxu0 0.0
  %7225 = vmatprep.subr.mxu0 0.0
  %7226 = vmatpush1.xpose.msra.mxu0 0.0
  %7227 = vmatprep.subr.mxu0 0.0
  %7228 = vmatpush1.xpose.msra.mxu0 0.0
  %7229 = vmatprep.subr.mxu0 0.0
  %7230 = vmatpush1.xpose.msra.mxu0 0.0
  %7231 = vmatprep.subr.mxu0 0.0
  %7232 = vmatpush1.xpose.msra.mxu0 0.0
  %7233 = vmatprep.subr.mxu0 0.0
  %7234 = vmatpush1.xpose.msra.mxu0 0.0
  %7235 = vmatprep.subr.mxu0 0.0
  %7236 = vmatpush1.xpose.msra.mxu0 0.0
  %7237 = vmatprep.subr.mxu0 0.0
  %7238 = vmatpush1.xpose.msra.mxu0 0.0
  %7239 = vmatprep.subr.mxu0 0.0
  %7240 = vmatpush1.xpose.msra.mxu0 0.0
  %7241 = vmatprep.subr.mxu0 0.0
  %7242 = vmatpush1.xpose.msra.mxu0 0.0
  %7243 = vmatprep.subr.mxu0 0.0
  %7244 = vmatpush1.xpose.msra.mxu0 0.0
  %7245 = vmatprep.subr.mxu0 0.0
  %7246 = vmatpush1.xpose.msra.mxu0 0.0
  %7247 = vmatprep.subr.mxu0 0.0
  %7248 = vmatpush1.xpose.msra.mxu0 0.0
  %7249 = vmatprep.subr.mxu0 0.0
  %7250 = vmatpush1.xpose.msra.mxu0 0.0
  %7251 = vmatprep.subr.mxu0 0.0
  %7252 = vmatpush1.xpose.msra.mxu0 0.0
  %7253 = vmatprep.subr.mxu0 0.0
  %7254 = vmatpush1.xpose.msra.mxu0 0.0
  %7255 = vmatprep.subr.mxu0 0.0
  %7256 = vmatpush1.xpose.msra.mxu0 0.0
  %7257 = vmatprep.subr.mxu0 0.0
  %7258 = vmatpush1.xpose.msra.mxu0 0.0
  %7259 = vmatprep.mubr.f32.mxu0 0.0
  %7260 = vmatmul.mubr.f32.gmra.mrb[0].mxu0 %v7191
  %v7261 = vpop.f32.mrb[0].mxu0
  %v7262 = vadd.f32 0.0, %v7261
  %v7263 = vpop.f32.mrb[0].mxu0
  %7264 = vdwg.mxu0
  %7266 = vrot.lane.b32.xlu0 %v6937, 88
  %v7267 = vpop.permute.xlu0 %7266
  %7268 = vrot.lane.b32.xlu0 %v6937, 24
  %v7269 = vpop.permute.xlu0 %7268
  %v7270 = vsel %vm27, %v7267, 0
  %v7272 = vsel %vm27, %v7269, 0
  %7274 = vmatprep.subr.mxu0 0.0
  %7275 = vmatpush1.xpose.msra.mxu0 %v7272
  %7276 = vmatprep.subr.mxu0 0.0
  %7277 = vmatpush1.xpose.msra.mxu0 0.0
  %7278 = vmatprep.subr.mxu0 0.0
  %7279 = vmatpush1.xpose.msra.mxu0 0.0
  %7280 = vmatprep.subr.mxu0 0.0
  %7281 = vmatpush1.xpose.msra.mxu0 0.0
  %7282 = vmatprep.subr.mxu0 0.0
  %7283 = vmatpush1.xpose.msra.mxu0 0.0
  %7284 = vmatprep.subr.mxu0 0.0
  %7285 = vmatpush1.xpose.msra.mxu0 0.0
  %7286 = vmatprep.subr.mxu0 0.0
  %7287 = vmatpush1.xpose.msra.mxu0 0.0
  %7288 = vmatprep.subr.mxu0 0.0
  %7289 = vmatpush1.xpose.msra.mxu0 0.0
  %7290 = vmatprep.subr.mxu0 0.0
  %7291 = vmatpush1.xpose.msra.mxu0 0.0
  %7292 = vmatprep.subr.mxu0 0.0
  %7293 = vmatpush1.xpose.msra.mxu0 0.0
  %7294 = vmatprep.subr.mxu0 0.0
  %7295 = vmatpush1.xpose.msra.mxu0 0.0
  %7296 = vmatprep.subr.mxu0 0.0
  %7297 = vmatpush1.xpose.msra.mxu0 0.0
  %7298 = vmatprep.subr.mxu0 0.0
  %7299 = vmatpush1.xpose.msra.mxu0 0.0
  %7300 = vmatprep.subr.mxu0 0.0
  %7301 = vmatpush1.xpose.msra.mxu0 0.0
  %7302 = vmatprep.subr.mxu0 0.0
  %7303 = vmatpush1.xpose.msra.mxu0 0.0
  %7304 = vmatprep.subr.mxu0 0.0
  %7305 = vmatpush1.xpose.msra.mxu0 0.0
  %7306 = vmatprep.subr.mxu0 0.0
  %7307 = vmatpush1.xpose.msra.mxu0 0.0
  %7308 = vmatprep.subr.mxu0 0.0
  %7309 = vmatpush1.xpose.msra.mxu0 0.0
  %7310 = vmatprep.subr.mxu0 0.0
  %7311 = vmatpush1.xpose.msra.mxu0 0.0
  %7312 = vmatprep.subr.mxu0 0.0
  %7313 = vmatpush1.xpose.msra.mxu0 0.0
  %7314 = vmatprep.subr.mxu0 0.0
  %7315 = vmatpush1.xpose.msra.mxu0 0.0
  %7316 = vmatprep.subr.mxu0 0.0
  %7317 = vmatpush1.xpose.msra.mxu0 0.0
  %7318 = vmatprep.subr.mxu0 0.0
  %7319 = vmatpush1.xpose.msra.mxu0 0.0
  %7320 = vmatprep.subr.mxu0 0.0
  %7321 = vmatpush1.xpose.msra.mxu0 0.0
  %7322 = vmatprep.subr.mxu0 0.0
  %7323 = vmatpush1.xpose.msra.mxu0 0.0
  %7324 = vmatprep.subr.mxu0 0.0
  %7325 = vmatpush1.xpose.msra.mxu0 0.0
  %7326 = vmatprep.subr.mxu0 0.0
  %7327 = vmatpush1.xpose.msra.mxu0 0.0
  %7328 = vmatprep.subr.mxu0 0.0
  %7329 = vmatpush1.xpose.msra.mxu0 0.0
  %7330 = vmatprep.subr.mxu0 0.0
  %7331 = vmatpush1.xpose.msra.mxu0 0.0
  %7332 = vmatprep.subr.mxu0 0.0
  %7333 = vmatpush1.xpose.msra.mxu0 0.0
  %7334 = vmatprep.subr.mxu0 0.0
  %7335 = vmatpush1.xpose.msra.mxu0 0.0
  %7336 = vmatprep.subr.mxu0 0.0
  %7337 = vmatpush1.xpose.msra.mxu0 0.0
  %7338 = vmatprep.mubr.f32.mxu0 0.0
  %7339 = vmatmul.mubr.f32.gmra.mrb[0].mxu0 %v7270
  %v7340 = vpop.f32.mrb[0].mxu0
  %v7341 = vadd.f32 0.0, %v7340
  %v7342 = vpop.f32.mrb[0].mxu0
  %7343 = vdwg.mxu0
  %7345 = vrot.lane.b32.xlu0 %v6938, 88
  %v7346 = vpop.permute.xlu0 %7345
  %7347 = vrot.lane.b32.xlu0 %v6938, 24
  %v7348 = vpop.permute.xlu0 %7347
  %v7349 = vsel %vm27, %v7346, 0
  %v7351 = vsel %vm27, %v7348, 0
  %7353 = vmatprep.subr.mxu0 0.0
  %7354 = vmatpush1.xpose.msra.mxu0 %v7351
  %7355 = vmatprep.subr.mxu0 0.0
  %7356 = vmatpush1.xpose.msra.mxu0 0.0
  %7357 = vmatprep.subr.mxu0 0.0
  %7358 = vmatpush1.xpose.msra.mxu0 0.0
  %7359 = vmatprep.subr.mxu0 0.0
  %7360 = vmatpush1.xpose.msra.mxu0 0.0
  %7361 = vmatprep.subr.mxu0 0.0
  %7362 = vmatpush1.xpose.msra.mxu0 0.0
  %7363 = vmatprep.subr.mxu0 0.0
  %7364 = vmatpush1.xpose.msra.mxu0 0.0
  %7365 = vmatprep.subr.mxu0 0.0
  %7366 = vmatpush1.xpose.msra.mxu0 0.0
  %7367 = vmatprep.subr.mxu0 0.0
  %7368 = vmatpush1.xpose.msra.mxu0 0.0
  %7369 = vmatprep.subr.mxu0 0.0
  %7370 = vmatpush1.xpose.msra.mxu0 0.0
  %7371 = vmatprep.subr.mxu0 0.0
  %7372 = vmatpush1.xpose.msra.mxu0 0.0
  %7373 = vmatprep.subr.mxu0 0.0
  %7374 = vmatpush1.xpose.msra.mxu0 0.0
  %7375 = vmatprep.subr.mxu0 0.0
  %7376 = vmatpush1.xpose.msra.mxu0 0.0
  %7377 = vmatprep.subr.mxu0 0.0
  %7378 = vmatpush1.xpose.msra.mxu0 0.0
  %7379 = vmatprep.subr.mxu0 0.0
  %7380 = vmatpush1.xpose.msra.mxu0 0.0
  %7381 = vmatprep.subr.mxu0 0.0
  %7382 = vmatpush1.xpose.msra.mxu0 0.0
  %7383 = vmatprep.subr.mxu0 0.0
  %7384 = vmatpush1.xpose.msra.mxu0 0.0
  %7385 = vmatprep.subr.mxu0 0.0
  %7386 = vmatpush1.xpose.msra.mxu0 0.0
  %7387 = vmatprep.subr.mxu0 0.0
  %7388 = vmatpush1.xpose.msra.mxu0 0.0
  %7389 = vmatprep.subr.mxu0 0.0
  %7390 = vmatpush1.xpose.msra.mxu0 0.0
  %7391 = vmatprep.subr.mxu0 0.0
  %7392 = vmatpush1.xpose.msra.mxu0 0.0
  %7393 = vmatprep.subr.mxu0 0.0
  %7394 = vmatpush1.xpose.msra.mxu0 0.0
  %7395 = vmatprep.subr.mxu0 0.0
  %7396 = vmatpush1.xpose.msra.mxu0 0.0
  %7397 = vmatprep.subr.mxu0 0.0
  %7398 = vmatpush1.xpose.msra.mxu0 0.0
  %7399 = vmatprep.subr.mxu0 0.0
  %7400 = vmatpush1.xpose.msra.mxu0 0.0
  %7401 = vmatprep.subr.mxu0 0.0
  %7402 = vmatpush1.xpose.msra.mxu0 0.0
  %7403 = vmatprep.subr.mxu0 0.0
  %7404 = vmatpush1.xpose.msra.mxu0 0.0
  %7405 = vmatprep.subr.mxu0 0.0
  %7406 = vmatpush1.xpose.msra.mxu0 0.0
  %7407 = vmatprep.subr.mxu0 0.0
  %7408 = vmatpush1.xpose.msra.mxu0 0.0
  %7409 = vmatprep.subr.mxu0 0.0
  %7410 = vmatpush1.xpose.msra.mxu0 0.0
  %7411 = vmatprep.subr.mxu0 0.0
  %7412 = vmatpush1.xpose.msra.mxu0 0.0
  %7413 = vmatprep.subr.mxu0 0.0
  %7414 = vmatpush1.xpose.msra.mxu0 0.0
  %7415 = vmatprep.subr.mxu0 0.0
  %7416 = vmatpush1.xpose.msra.mxu0 0.0
  %7417 = vmatprep.mubr.f32.mxu0 0.0
  %7418 = vmatmul.mubr.f32.gmra.mrb[0].mxu0 %v7349
  %v7419 = vpop.f32.mrb[0].mxu0
  %v7420 = vadd.f32 0.0, %v7419
  %v7421 = vpop.f32.mrb[0].mxu0
  %7422 = vdwg.mxu0
  %7424 = vrot.lane.b32.xlu0 %v6939, 88
  %v7425 = vpop.permute.xlu0 %7424
  %7426 = vrot.lane.b32.xlu0 %v6939, 24
  %v7427 = vpop.permute.xlu0 %7426
  %v7428 = vsel %vm27, %v7425, 0
  %v7430 = vsel %vm27, %v7427, 0
  %7432 = vmatprep.subr.mxu0 0.0
  %7433 = vmatpush1.xpose.msra.mxu0 %v7430
  %7434 = vmatprep.subr.mxu0 0.0
  %7435 = vmatpush1.xpose.msra.mxu0 0.0
  %7436 = vmatprep.subr.mxu0 0.0
  %7437 = vmatpush1.xpose.msra.mxu0 0.0
  %7438 = vmatprep.subr.mxu0 0.0
  %7439 = vmatpush1.xpose.msra.mxu0 0.0
  %7440 = vmatprep.subr.mxu0 0.0
  %7441 = vmatpush1.xpose.msra.mxu0 0.0
  %7442 = vmatprep.subr.mxu0 0.0
  %7443 = vmatpush1.xpose.msra.mxu0 0.0
  %7444 = vmatprep.subr.mxu0 0.0
  %7445 = vmatpush1.xpose.msra.mxu0 0.0
  %7446 = vmatprep.subr.mxu0 0.0
  %7447 = vmatpush1.xpose.msra.mxu0 0.0
  %7448 = vmatprep.subr.mxu0 0.0
  %7449 = vmatpush1.xpose.msra.mxu0 0.0
  %7450 = vmatprep.subr.mxu0 0.0
  %7451 = vmatpush1.xpose.msra.mxu0 0.0
  %7452 = vmatprep.subr.mxu0 0.0
  %7453 = vmatpush1.xpose.msra.mxu0 0.0
  %7454 = vmatprep.subr.mxu0 0.0
  %7455 = vmatpush1.xpose.msra.mxu0 0.0
  %7456 = vmatprep.subr.mxu0 0.0
  %7457 = vmatpush1.xpose.msra.mxu0 0.0
  %7458 = vmatprep.subr.mxu0 0.0
  %7459 = vmatpush1.xpose.msra.mxu0 0.0
  %7460 = vmatprep.subr.mxu0 0.0
  %7461 = vmatpush1.xpose.msra.mxu0 0.0
  %7462 = vmatprep.subr.mxu0 0.0
  %7463 = vmatpush1.xpose.msra.mxu0 0.0
  %7464 = vmatprep.subr.mxu0 0.0
  %7465 = vmatpush1.xpose.msra.mxu0 0.0
  %7466 = vmatprep.subr.mxu0 0.0
  %7467 = vmatpush1.xpose.msra.mxu0 0.0
  %7468 = vmatprep.subr.mxu0 0.0
  %7469 = vmatpush1.xpose.msra.mxu0 0.0
  %7470 = vmatprep.subr.mxu0 0.0
  %7471 = vmatpush1.xpose.msra.mxu0 0.0
  %7472 = vmatprep.subr.mxu0 0.0
  %7473 = vmatpush1.xpose.msra.mxu0 0.0
  %7474 = vmatprep.subr.mxu0 0.0
  %7475 = vmatpush1.xpose.msra.mxu0 0.0
  %7476 = vmatprep.subr.mxu0 0.0
  %7477 = vmatpush1.xpose.msra.mxu0 0.0
  %7478 = vmatprep.subr.mxu0 0.0
  %7479 = vmatpush1.xpose.msra.mxu0 0.0
  %7480 = vmatprep.subr.mxu0 0.0
  %7481 = vmatpush1.xpose.msra.mxu0 0.0
  %7482 = vmatprep.subr.mxu0 0.0
  %7483 = vmatpush1.xpose.msra.mxu0 0.0
  %7484 = vmatprep.subr.mxu0 0.0
  %7485 = vmatpush1.xpose.msra.mxu0 0.0
  %7486 = vmatprep.subr.mxu0 0.0
  %7487 = vmatpush1.xpose.msra.mxu0 0.0
  %7488 = vmatprep.subr.mxu0 0.0
  %7489 = vmatpush1.xpose.msra.mxu0 0.0
  %7490 = vmatprep.subr.mxu0 0.0
  %7491 = vmatpush1.xpose.msra.mxu0 0.0
  %7492 = vmatprep.subr.mxu0 0.0
  %7493 = vmatpush1.xpose.msra.mxu0 0.0
  %7494 = vmatprep.subr.mxu0 0.0
  %7495 = vmatpush1.xpose.msra.mxu0 0.0
  %7496 = vmatprep.mubr.f32.mxu0 0.0
  %7497 = vmatmul.mubr.f32.gmra.mrb[0].mxu0 %v7428
  %v7498 = vpop.f32.mrb[0].mxu0
  %v7499 = vadd.f32 0.0, %v7498
  %v7500 = vpop.f32.mrb[0].mxu0
  %7501 = vdwg.mxu0
  %7503 = vrot.lane.b32.xlu0 %v6940, 88
  %v7504 = vpop.permute.xlu0 %7503
  %7505 = vrot.lane.b32.xlu0 %v6940, 24
  %v7506 = vpop.permute.xlu0 %7505
  %v7507 = vsel %vm27, %v7504, 0
  %v7509 = vsel %vm27, %v7506, 0
  %7511 = vmatprep.subr.mxu0 0.0
  %7512 = vmatpush1.xpose.msra.mxu0 %v7509
  %7513 = vmatprep.subr.mxu0 0.0
  %7514 = vmatpush1.xpose.msra.mxu0 0.0
  %7515 = vmatprep.subr.mxu0 0.0
  %7516 = vmatpush1.xpose.msra.mxu0 0.0
  %7517 = vmatprep.subr.mxu0 0.0
  %7518 = vmatpush1.xpose.msra.mxu0 0.0
  %7519 = vmatprep.subr.mxu0 0.0
  %7520 = vmatpush1.xpose.msra.mxu0 0.0
  %7521 = vmatprep.subr.mxu0 0.0
  %7522 = vmatpush1.xpose.msra.mxu0 0.0
  %7523 = vmatprep.subr.mxu0 0.0
  %7524 = vmatpush1.xpose.msra.mxu0 0.0
  %7525 = vmatprep.subr.mxu0 0.0
  %7526 = vmatpush1.xpose.msra.mxu0 0.0
  %7527 = vmatprep.subr.mxu0 0.0
  %7528 = vmatpush1.xpose.msra.mxu0 0.0
  %7529 = vmatprep.subr.mxu0 0.0
  %7530 = vmatpush1.xpose.msra.mxu0 0.0
  %7531 = vmatprep.subr.mxu0 0.0
  %7532 = vmatpush1.xpose.msra.mxu0 0.0
  %7533 = vmatprep.subr.mxu0 0.0
  %7534 = vmatpush1.xpose.msra.mxu0 0.0
  %7535 = vmatprep.subr.mxu0 0.0
  %7536 = vmatpush1.xpose.msra.mxu0 0.0
  %7537 = vmatprep.subr.mxu0 0.0
  %7538 = vmatpush1.xpose.msra.mxu0 0.0
  %7539 = vmatprep.subr.mxu0 0.0
  %7540 = vmatpush1.xpose.msra.mxu0 0.0
  %7541 = vmatprep.subr.mxu0 0.0
  %7542 = vmatpush1.xpose.msra.mxu0 0.0
  %7543 = vmatprep.subr.mxu0 0.0
  %7544 = vmatpush1.xpose.msra.mxu0 0.0
  %7545 = vmatprep.subr.mxu0 0.0
  %7546 = vmatpush1.xpose.msra.mxu0 0.0
  %7547 = vmatprep.subr.mxu0 0.0
  %7548 = vmatpush1.xpose.msra.mxu0 0.0
  %7549 = vmatprep.subr.mxu0 0.0
  %7550 = vmatpush1.xpose.msra.mxu0 0.0
  %7551 = vmatprep.subr.mxu0 0.0
  %7552 = vmatpush1.xpose.msra.mxu0 0.0
  %7553 = vmatprep.subr.mxu0 0.0
  %7554 = vmatpush1.xpose.msra.mxu0 0.0
  %7555 = vmatprep.subr.mxu0 0.0
  %7556 = vmatpush1.xpose.msra.mxu0 0.0
  %7557 = vmatprep.subr.mxu0 0.0
  %7558 = vmatpush1.xpose.msra.mxu0 0.0
  %7559 = vmatprep.subr.mxu0 0.0
  %7560 = vmatpush1.xpose.msra.mxu0 0.0
  %7561 = vmatprep.subr.mxu0 0.0
  %7562 = vmatpush1.xpose.msra.mxu0 0.0
  %7563 = vmatprep.subr.mxu0 0.0
  %7564 = vmatpush1.xpose.msra.mxu0 0.0
  %7565 = vmatprep.subr.mxu0 0.0
  %7566 = vmatpush1.xpose.msra.mxu0 0.0
  %7567 = vmatprep.subr.mxu0 0.0
  %7568 = vmatpush1.xpose.msra.mxu0 0.0
  %7569 = vmatprep.subr.mxu0 0.0
  %7570 = vmatpush1.xpose.msra.mxu0 0.0
  %7571 = vmatprep.subr.mxu0 0.0
  %7572 = vmatpush1.xpose.msra.mxu0 0.0
  %7573 = vmatprep.subr.mxu0 0.0
  %7574 = vmatpush1.xpose.msra.mxu0 0.0
  %7575 = vmatprep.mubr.f32.mxu0 0.0
  %7576 = vmatmul.mubr.f32.gmra.mrb[0].mxu0 %v7507
  %v7577 = vpop.f32.mrb[0].mxu0
  %v7578 = vadd.f32 0.0, %v7577
  %v7579 = vpop.f32.mrb[0].mxu0
  %7580 = vdwg.mxu0
  %v7581 = vmul.f32 %v7025, 0.35355338
  %v7582 = vmul.f32 %v7104, 0.35355338
  %v7583 = vmul.f32 %v7183, 0.35355338
  %v7584 = vmul.f32 %v7262, 0.35355338
  %v7585 = vmul.f32 %v7341, 0.35355338
  %v7586 = vmul.f32 %v7420, 0.35355338
  %v7587 = vmul.f32 %v7499, 0.35355338
  %v7588 = vmul.f32 %v7578, 0.35355338
  %v7589 = vsel %vm27, %v7581, -inf
  %7590 = vmax.xlane.f32.xlu0 %v7589
  %v7591 = vpop.xlane.xlu0 %7590
  %v7592 = vsel %vm27, %v7582, -inf
  %7593 = vmax.xlane.f32.xlu0 %v7592
  %v7594 = vpop.xlane.xlu0 %7593
  %v7595 = vsel %vm27, %v7583, -inf
  %7596 = vmax.xlane.f32.xlu0 %v7595
  %v7597 = vpop.xlane.xlu0 %7596
  %v7598 = vsel %vm27, %v7584, -inf
  %7599 = vmax.xlane.f32.xlu0 %v7598
  %v7600 = vpop.xlane.xlu0 %7599
  %v7601 = vsel %vm27, %v7585, -inf
  %7602 = vmax.xlane.f32.xlu0 %v7601
  %v7603 = vpop.xlane.xlu0 %7602
  %v7604 = vsel %vm27, %v7586, -inf
  %7605 = vmax.xlane.f32.xlu0 %v7604
  %v7606 = vpop.xlane.xlu0 %7605
  %v7607 = vsel %vm27, %v7587, -inf
  %7608 = vmax.xlane.f32.xlu0 %v7607
  %v7609 = vpop.xlane.xlu0 %7608
  %v7610 = vsel %vm27, %v7588, -inf
  %7611 = vmax.xlane.f32.xlu0 %v7610
  %v7612 = vpop.xlane.xlu0 %7611
  %v7613 = vsub.f32 %v7581, %v7591
  %v7614 = vsub.f32 %v7582, %v7594
  %v7615 = vsub.f32 %v7583, %v7597
  %v7616 = vsub.f32 %v7584, %v7600
  %v7617 = vsub.f32 %v7585, %v7603
  %v7618 = vsub.f32 %v7586, %v7606
  %v7619 = vsub.f32 %v7587, %v7609
  %v7620 = vsub.f32 %v7588, %v7612
  %v7621 = vmul.f32 %v7613, 1.442695
  %v7622 = vpow.pop %v7621
  %v7623 = vmul.f32 %v7614, 1.442695
  %v7624 = vpow.pop %v7623
  %v7625 = vmul.f32 %v7615, 1.442695
  %v7626 = vpow.pop %v7625
  %v7627 = vmul.f32 %v7616, 1.442695
  %v7628 = vpow.pop %v7627
  %v7629 = vmul.f32 %v7617, 1.442695
  %v7630 = vpow.pop %v7629
  %v7631 = vmul.f32 %v7618, 1.442695
  %v7632 = vpow.pop %v7631
  %v7633 = vmul.f32 %v7619, 1.442695
  %v7634 = vpow.pop %v7633
  %v7635 = vmul.f32 %v7620, 1.442695
  %v7636 = vpow.pop %v7635
  %v7637 = vsel %vm27, %v7622, 0.0
  %7638 = vadd.xlane.f32.xlu0 %v7637
  %v7639 = vpop.xlane.xlu0 %7638
  %v7640 = vsel %vm27, %v7624, 0.0
  %7641 = vadd.xlane.f32.xlu0 %v7640
  %v7642 = vpop.xlane.xlu0 %7641
  %v7643 = vsel %vm27, %v7626, 0.0
  %7644 = vadd.xlane.f32.xlu0 %v7643
  %v7645 = vpop.xlane.xlu0 %7644
  %v7646 = vsel %vm27, %v7628, 0.0
  %7647 = vadd.xlane.f32.xlu0 %v7646
  %v7648 = vpop.xlane.xlu0 %7647
  %v7649 = vsel %vm27, %v7630, 0.0
  %7650 = vadd.xlane.f32.xlu0 %v7649
  %v7651 = vpop.xlane.xlu0 %7650
  %v7652 = vsel %vm27, %v7632, 0.0
  %7653 = vadd.xlane.f32.xlu0 %v7652
  %v7654 = vpop.xlane.xlu0 %7653
  %v7655 = vsel %vm27, %v7634, 0.0
  %7656 = vadd.xlane.f32.xlu0 %v7655
  %v7657 = vpop.xlane.xlu0 %7656
  %v7658 = vsel %vm27, %v7636, 0.0
  %7659 = vadd.xlane.f32.xlu0 %v7658
  %v7660 = vpop.xlane.xlu0 %7659
  %7662 = vrot.lane.b32.xlu0 %v6941, 88
  %v7663 = vpop.permute.xlu0 %7662
  %v7666 = vsel %vm27, %v7622, 0
  %7668 = vmatprep.subr.mxu0 0.0
  %7669 = vmatpush1.msra.mxu0 %v7663
  %7670 = vmatprep.subr.mxu0 0.0
  %7671 = vmatpush1.msra.mxu0 0.0
  %7672 = vmatprep.subr.mxu0 0.0
  %7673 = vmatpush1.msra.mxu0 0.0
  %7674 = vmatprep.subr.mxu0 0.0
  %7675 = vmatpush1.msra.mxu0 0.0
  %7676 = vmatprep.subr.mxu0 0.0
  %7677 = vmatpush1.msra.mxu0 0.0
  %7678 = vmatprep.subr.mxu0 0.0
  %7679 = vmatpush1.msra.mxu0 0.0
  %7680 = vmatprep.subr.mxu0 0.0
  %7681 = vmatpush1.msra.mxu0 0.0
  %7682 = vmatprep.subr.mxu0 0.0
  %7683 = vmatpush1.msra.mxu0 0.0
  %7684 = vmatprep.subr.mxu0 0.0
  %7685 = vmatpush1.msra.mxu0 0.0
  %7686 = vmatprep.subr.mxu0 0.0
  %7687 = vmatpush1.msra.mxu0 0.0
  %7688 = vmatprep.subr.mxu0 0.0
  %7689 = vmatpush1.msra.mxu0 0.0
  %7690 = vmatprep.subr.mxu0 0.0
  %7691 = vmatpush1.msra.mxu0 0.0
  %7692 = vmatprep.subr.mxu0 0.0
  %7693 = vmatpush1.msra.mxu0 0.0
  %7694 = vmatprep.subr.mxu0 0.0
  %7695 = vmatpush1.msra.mxu0 0.0
  %7696 = vmatprep.subr.mxu0 0.0
  %7697 = vmatpush1.msra.mxu0 0.0
  %7698 = vmatprep.subr.mxu0 0.0
  %7699 = vmatpush1.msra.mxu0 0.0
  %7700 = vmatprep.subr.mxu0 0.0
  %7701 = vmatpush1.msra.mxu0 0.0
  %7702 = vmatprep.subr.mxu0 0.0
  %7703 = vmatpush1.msra.mxu0 0.0
  %7704 = vmatprep.subr.mxu0 0.0
  %7705 = vmatpush1.msra.mxu0 0.0
  %7706 = vmatprep.subr.mxu0 0.0
  %7707 = vmatpush1.msra.mxu0 0.0
  %7708 = vmatprep.subr.mxu0 0.0
  %7709 = vmatpush1.msra.mxu0 0.0
  %7710 = vmatprep.subr.mxu0 0.0
  %7711 = vmatpush1.msra.mxu0 0.0
  %7712 = vmatprep.subr.mxu0 0.0
  %7713 = vmatpush1.msra.mxu0 0.0
  %7714 = vmatprep.subr.mxu0 0.0
  %7715 = vmatpush1.msra.mxu0 0.0
  %7716 = vmatprep.subr.mxu0 0.0
  %7717 = vmatpush1.msra.mxu0 0.0
  %7718 = vmatprep.subr.mxu0 0.0
  %7719 = vmatpush1.msra.mxu0 0.0
  %7720 = vmatprep.subr.mxu0 0.0
  %7721 = vmatpush1.msra.mxu0 0.0
  %7722 = vmatprep.subr.mxu0 0.0
  %7723 = vmatpush1.msra.mxu0 0.0
  %7724 = vmatprep.subr.mxu0 0.0
  %7725 = vmatpush1.msra.mxu0 0.0
  %7726 = vmatprep.subr.mxu0 0.0
  %7727 = vmatpush1.msra.mxu0 0.0
  %7728 = vmatprep.subr.mxu0 0.0
  %7729 = vmatpush1.msra.mxu0 0.0
  %7730 = vmatprep.subr.mxu0 0.0
  %7731 = vmatpush1.msra.mxu0 0.0
  %7732 = vmatprep.mubr.f32.mxu0 0.0
  %7733 = vmatmul.mubr.f32.gmra.mrb[0].mxu0 %v7666
  %v7734 = vpop.f32.mrb[0].mxu0
  %v7735 = vadd.f32 0.0, %v7734
  %v7736 = vpop.f32.mrb[0].mxu0
  %7737 = vdwg.mxu0
  %7739 = vrot.lane.b32.xlu0 %v6942, 88
  %v7740 = vpop.permute.xlu0 %7739
  %v7743 = vsel %vm27, %v7624, 0
  %7745 = vmatprep.subr.mxu0 0.0
  %7746 = vmatpush1.msra.mxu0 %v7740
  %7747 = vmatprep.subr.mxu0 0.0
  %7748 = vmatpush1.msra.mxu0 0.0
  %7749 = vmatprep.subr.mxu0 0.0
  %7750 = vmatpush1.msra.mxu0 0.0
  %7751 = vmatprep.subr.mxu0 0.0
  %7752 = vmatpush1.msra.mxu0 0.0
  %7753 = vmatprep.subr.mxu0 0.0
  %7754 = vmatpush1.msra.mxu0 0.0
  %7755 = vmatprep.subr.mxu0 0.0
  %7756 = vmatpush1.msra.mxu0 0.0
  %7757 = vmatprep.subr.mxu0 0.0
  %7758 = vmatpush1.msra.mxu0 0.0
  %7759 = vmatprep.subr.mxu0 0.0
  %7760 = vmatpush1.msra.mxu0 0.0
  %7761 = vmatprep.subr.mxu0 0.0
  %7762 = vmatpush1.msra.mxu0 0.0
  %7763 = vmatprep.subr.mxu0 0.0
  %7764 = vmatpush1.msra.mxu0 0.0
  %7765 = vmatprep.subr.mxu0 0.0
  %7766 = vmatpush1.msra.mxu0 0.0
  %7767 = vmatprep.subr.mxu0 0.0
  %7768 = vmatpush1.msra.mxu0 0.0
  %7769 = vmatprep.subr.mxu0 0.0
  %7770 = vmatpush1.msra.mxu0 0.0
  %7771 = vmatprep.subr.mxu0 0.0
  %7772 = vmatpush1.msra.mxu0 0.0
  %7773 = vmatprep.subr.mxu0 0.0
  %7774 = vmatpush1.msra.mxu0 0.0
  %7775 = vmatprep.subr.mxu0 0.0
  %7776 = vmatpush1.msra.mxu0 0.0
  %7777 = vmatprep.subr.mxu0 0.0
  %7778 = vmatpush1.msra.mxu0 0.0
  %7779 = vmatprep.subr.mxu0 0.0
  %7780 = vmatpush1.msra.mxu0 0.0
  %7781 = vmatprep.subr.mxu0 0.0
  %7782 = vmatpush1.msra.mxu0 0.0
  %7783 = vmatprep.subr.mxu0 0.0
  %7784 = vmatpush1.msra.mxu0 0.0
  %7785 = vmatprep.subr.mxu0 0.0
  %7786 = vmatpush1.msra.mxu0 0.0
  %7787 = vmatprep.subr.mxu0 0.0
  %7788 = vmatpush1.msra.mxu0 0.0
  %7789 = vmatprep.subr.mxu0 0.0
  %7790 = vmatpush1.msra.mxu0 0.0
  %7791 = vmatprep.subr.mxu0 0.0
  %7792 = vmatpush1.msra.mxu0 0.0
  %7793 = vmatprep.subr.mxu0 0.0
  %7794 = vmatpush1.msra.mxu0 0.0
  %7795 = vmatprep.subr.mxu0 0.0
  %7796 = vmatpush1.msra.mxu0 0.0
  %7797 = vmatprep.subr.mxu0 0.0
  %7798 = vmatpush1.msra.mxu0 0.0
  %7799 = vmatprep.subr.mxu0 0.0
  %7800 = vmatpush1.msra.mxu0 0.0
  %7801 = vmatprep.subr.mxu0 0.0
  %7802 = vmatpush1.msra.mxu0 0.0
  %7803 = vmatprep.subr.mxu0 0.0
  %7804 = vmatpush1.msra.mxu0 0.0
  %7805 = vmatprep.subr.mxu0 0.0
  %7806 = vmatpush1.msra.mxu0 0.0
  %7807 = vmatprep.subr.mxu0 0.0
  %7808 = vmatpush1.msra.mxu0 0.0
  %7809 = vmatprep.mubr.f32.mxu0 0.0
  %7810 = vmatmul.mubr.f32.gmra.mrb[0].mxu0 %v7743
  %v7811 = vpop.f32.mrb[0].mxu0
  %v7812 = vadd.f32 0.0, %v7811
  %v7813 = vpop.f32.mrb[0].mxu0
  %7814 = vdwg.mxu0
  %7816 = vrot.lane.b32.xlu0 %v6943, 88
  %v7817 = vpop.permute.xlu0 %7816
  %v7820 = vsel %vm27, %v7626, 0
  %7822 = vmatprep.subr.mxu0 0.0
  %7823 = vmatpush1.msra.mxu0 %v7817
  %7824 = vmatprep.subr.mxu0 0.0
  %7825 = vmatpush1.msra.mxu0 0.0
  %7826 = vmatprep.subr.mxu0 0.0
  %7827 = vmatpush1.msra.mxu0 0.0
  %7828 = vmatprep.subr.mxu0 0.0
  %7829 = vmatpush1.msra.mxu0 0.0
  %7830 = vmatprep.subr.mxu0 0.0
  %7831 = vmatpush1.msra.mxu0 0.0
  %7832 = vmatprep.subr.mxu0 0.0
  %7833 = vmatpush1.msra.mxu0 0.0
  %7834 = vmatprep.subr.mxu0 0.0
  %7835 = vmatpush1.msra.mxu0 0.0
  %7836 = vmatprep.subr.mxu0 0.0
  %7837 = vmatpush1.msra.mxu0 0.0
  %7838 = vmatprep.subr.mxu0 0.0
  %7839 = vmatpush1.msra.mxu0 0.0
  %7840 = vmatprep.subr.mxu0 0.0
  %7841 = vmatpush1.msra.mxu0 0.0
  %7842 = vmatprep.subr.mxu0 0.0
  %7843 = vmatpush1.msra.mxu0 0.0
  %7844 = vmatprep.subr.mxu0 0.0
  %7845 = vmatpush1.msra.mxu0 0.0
  %7846 = vmatprep.subr.mxu0 0.0
  %7847 = vmatpush1.msra.mxu0 0.0
  %7848 = vmatprep.subr.mxu0 0.0
  %7849 = vmatpush1.msra.mxu0 0.0
  %7850 = vmatprep.subr.mxu0 0.0
  %7851 = vmatpush1.msra.mxu0 0.0
  %7852 = vmatprep.subr.mxu0 0.0
  %7853 = vmatpush1.msra.mxu0 0.0
  %7854 = vmatprep.subr.mxu0 0.0
  %7855 = vmatpush1.msra.mxu0 0.0
  %7856 = vmatprep.subr.mxu0 0.0
  %7857 = vmatpush1.msra.mxu0 0.0
  %7858 = vmatprep.subr.mxu0 0.0
  %7859 = vmatpush1.msra.mxu0 0.0
  %7860 = vmatprep.subr.mxu0 0.0
  %7861 = vmatpush1.msra.mxu0 0.0
  %7862 = vmatprep.subr.mxu0 0.0
  %7863 = vmatpush1.msra.mxu0 0.0
  %7864 = vmatprep.subr.mxu0 0.0
  %7865 = vmatpush1.msra.mxu0 0.0
  %7866 = vmatprep.subr.mxu0 0.0
  %7867 = vmatpush1.msra.mxu0 0.0
  %7868 = vmatprep.subr.mxu0 0.0
  %7869 = vmatpush1.msra.mxu0 0.0
  %7870 = vmatprep.subr.mxu0 0.0
  %7871 = vmatpush1.msra.mxu0 0.0
  %7872 = vmatprep.subr.mxu0 0.0
  %7873 = vmatpush1.msra.mxu0 0.0
  %7874 = vmatprep.subr.mxu0 0.0
  %7875 = vmatpush1.msra.mxu0 0.0
  %7876 = vmatprep.subr.mxu0 0.0
  %7877 = vmatpush1.msra.mxu0 0.0
  %7878 = vmatprep.subr.mxu0 0.0
  %7879 = vmatpush1.msra.mxu0 0.0
  %7880 = vmatprep.subr.mxu0 0.0
  %7881 = vmatpush1.msra.mxu0 0.0
  %7882 = vmatprep.subr.mxu0 0.0
  %7883 = vmatpush1.msra.mxu0 0.0
  %7884 = vmatprep.subr.mxu0 0.0
  %7885 = vmatpush1.msra.mxu0 0.0
  %7886 = vmatprep.mubr.f32.mxu0 0.0
  %7887 = vmatmul.mubr.f32.gmra.mrb[0].mxu0 %v7820
  %v7888 = vpop.f32.mrb[0].mxu0
  %v7889 = vadd.f32 0.0, %v7888
  %v7890 = vpop.f32.mrb[0].mxu0
  %7891 = vdwg.mxu0
  %7893 = vrot.lane.b32.xlu0 %v6944, 88
  %v7894 = vpop.permute.xlu0 %7893
  %v7897 = vsel %vm27, %v7628, 0
  %7899 = vmatprep.subr.mxu0 0.0
  %7900 = vmatpush1.msra.mxu0 %v7894
  %7901 = vmatprep.subr.mxu0 0.0
  %7902 = vmatpush1.msra.mxu0 0.0
  %7903 = vmatprep.subr.mxu0 0.0
  %7904 = vmatpush1.msra.mxu0 0.0
  %7905 = vmatprep.subr.mxu0 0.0
  %7906 = vmatpush1.msra.mxu0 0.0
  %7907 = vmatprep.subr.mxu0 0.0
  %7908 = vmatpush1.msra.mxu0 0.0
  %7909 = vmatprep.subr.mxu0 0.0
  %7910 = vmatpush1.msra.mxu0 0.0
  %7911 = vmatprep.subr.mxu0 0.0
  %7912 = vmatpush1.msra.mxu0 0.0
  %7913 = vmatprep.subr.mxu0 0.0
  %7914 = vmatpush1.msra.mxu0 0.0
  %7915 = vmatprep.subr.mxu0 0.0
  %7916 = vmatpush1.msra.mxu0 0.0
  %7917 = vmatprep.subr.mxu0 0.0
  %7918 = vmatpush1.msra.mxu0 0.0
  %7919 = vmatprep.subr.mxu0 0.0
  %7920 = vmatpush1.msra.mxu0 0.0
  %7921 = vmatprep.subr.mxu0 0.0
  %7922 = vmatpush1.msra.mxu0 0.0
  %7923 = vmatprep.subr.mxu0 0.0
  %7924 = vmatpush1.msra.mxu0 0.0
  %7925 = vmatprep.subr.mxu0 0.0
  %7926 = vmatpush1.msra.mxu0 0.0
  %7927 = vmatprep.subr.mxu0 0.0
  %7928 = vmatpush1.msra.mxu0 0.0
  %7929 = vmatprep.subr.mxu0 0.0
  %7930 = vmatpush1.msra.mxu0 0.0
  %7931 = vmatprep.subr.mxu0 0.0
  %7932 = vmatpush1.msra.mxu0 0.0
  %7933 = vmatprep.subr.mxu0 0.0
  %7934 = vmatpush1.msra.mxu0 0.0
  %7935 = vmatprep.subr.mxu0 0.0
  %7936 = vmatpush1.msra.mxu0 0.0
  %7937 = vmatprep.subr.mxu0 0.0
  %7938 = vmatpush1.msra.mxu0 0.0
  %7939 = vmatprep.subr.mxu0 0.0
  %7940 = vmatpush1.msra.mxu0 0.0
  %7941 = vmatprep.subr.mxu0 0.0
  %7942 = vmatpush1.msra.mxu0 0.0
  %7943 = vmatprep.subr.mxu0 0.0
  %7944 = vmatpush1.msra.mxu0 0.0
  %7945 = vmatprep.subr.mxu0 0.0
  %7946 = vmatpush1.msra.mxu0 0.0
  %7947 = vmatprep.subr.mxu0 0.0
  %7948 = vmatpush1.msra.mxu0 0.0
  %7949 = vmatprep.subr.mxu0 0.0
  %7950 = vmatpush1.msra.mxu0 0.0
  %7951 = vmatprep.subr.mxu0 0.0
  %7952 = vmatpush1.msra.mxu0 0.0
  %7953 = vmatprep.subr.mxu0 0.0
  %7954 = vmatpush1.msra.mxu0 0.0
  %7955 = vmatprep.subr.mxu0 0.0
  %7956 = vmatpush1.msra.mxu0 0.0
  %7957 = vmatprep.subr.mxu0 0.0
  %7958 = vmatpush1.msra.mxu0 0.0
  %7959 = vmatprep.subr.mxu0 0.0
  %7960 = vmatpush1.msra.mxu0 0.0
  %7961 = vmatprep.subr.mxu0 0.0
  %7962 = vmatpush1.msra.mxu0 0.0
  %7963 = vmatprep.mubr.f32.mxu0 0.0
  %7964 = vmatmul.mubr.f32.gmra.mrb[0].mxu0 %v7897
  %v7965 = vpop.f32.mrb[0].mxu0
  %v7966 = vadd.f32 0.0, %v7965
  %v7967 = vpop.f32.mrb[0].mxu0
  %7968 = vdwg.mxu0
  %7970 = vrot.lane.b32.xlu0 %v6945, 88
  %v7971 = vpop.permute.xlu0 %7970
  %v7974 = vsel %vm27, %v7630, 0
  %7976 = vmatprep.subr.mxu0 0.0
  %7977 = vmatpush1.msra.mxu0 %v7971
  %7978 = vmatprep.subr.mxu0 0.0
  %7979 = vmatpush1.msra.mxu0 0.0
  %7980 = vmatprep.subr.mxu0 0.0
  %7981 = vmatpush1.msra.mxu0 0.0
  %7982 = vmatprep.subr.mxu0 0.0
  %7983 = vmatpush1.msra.mxu0 0.0
  %7984 = vmatprep.subr.mxu0 0.0
  %7985 = vmatpush1.msra.mxu0 0.0
  %7986 = vmatprep.subr.mxu0 0.0
  %7987 = vmatpush1.msra.mxu0 0.0
  %7988 = vmatprep.subr.mxu0 0.0
  %7989 = vmatpush1.msra.mxu0 0.0
  %7990 = vmatprep.subr.mxu0 0.0
  %7991 = vmatpush1.msra.mxu0 0.0
  %7992 = vmatprep.subr.mxu0 0.0
  %7993 = vmatpush1.msra.mxu0 0.0
  %7994 = vmatprep.subr.mxu0 0.0
  %7995 = vmatpush1.msra.mxu0 0.0
  %7996 = vmatprep.subr.mxu0 0.0
  %7997 = vmatpush1.msra.mxu0 0.0
  %7998 = vmatprep.subr.mxu0 0.0
  %7999 = vmatpush1.msra.mxu0 0.0
  %8000 = vmatprep.subr.mxu0 0.0
  %8001 = vmatpush1.msra.mxu0 0.0
  %8002 = vmatprep.subr.mxu0 0.0
  %8003 = vmatpush1.msra.mxu0 0.0
  %8004 = vmatprep.subr.mxu0 0.0
  %8005 = vmatpush1.msra.mxu0 0.0
  %8006 = vmatprep.subr.mxu0 0.0
  %8007 = vmatpush1.msra.mxu0 0.0
  %8008 = vmatprep.subr.mxu0 0.0
  %8009 = vmatpush1.msra.mxu0 0.0
  %8010 = vmatprep.subr.mxu0 0.0
  %8011 = vmatpush1.msra.mxu0 0.0
  %8012 = vmatprep.subr.mxu0 0.0
  %8013 = vmatpush1.msra.mxu0 0.0
  %8014 = vmatprep.subr.mxu0 0.0
  %8015 = vmatpush1.msra.mxu0 0.0
  %8016 = vmatprep.subr.mxu0 0.0
  %8017 = vmatpush1.msra.mxu0 0.0
  %8018 = vmatprep.subr.mxu0 0.0
  %8019 = vmatpush1.msra.mxu0 0.0
  %8020 = vmatprep.subr.mxu0 0.0
  %8021 = vmatpush1.msra.mxu0 0.0
  %8022 = vmatprep.subr.mxu0 0.0
  %8023 = vmatpush1.msra.mxu0 0.0
  %8024 = vmatprep.subr.mxu0 0.0
  %8025 = vmatpush1.msra.mxu0 0.0
  %8026 = vmatprep.subr.mxu0 0.0
  %8027 = vmatpush1.msra.mxu0 0.0
  %8028 = vmatprep.subr.mxu0 0.0
  %8029 = vmatpush1.msra.mxu0 0.0
  %8030 = vmatprep.subr.mxu0 0.0
  %8031 = vmatpush1.msra.mxu0 0.0
  %8032 = vmatprep.subr.mxu0 0.0
  %8033 = vmatpush1.msra.mxu0 0.0
  %8034 = vmatprep.subr.mxu0 0.0
  %8035 = vmatpush1.msra.mxu0 0.0
  %8036 = vmatprep.subr.mxu0 0.0
  %8037 = vmatpush1.msra.mxu0 0.0
  %8038 = vmatprep.subr.mxu0 0.0
  %8039 = vmatpush1.msra.mxu0 0.0
  %8040 = vmatprep.mubr.f32.mxu0 0.0
  %8041 = vmatmul.mubr.f32.gmra.mrb[0].mxu0 %v7974
  %v8042 = vpop.f32.mrb[0].mxu0
  %v8043 = vadd.f32 0.0, %v8042
  %v8044 = vpop.f32.mrb[0].mxu0
  %8045 = vdwg.mxu0
  %8047 = vrot.lane.b32.xlu0 %v6946, 88
  %v8048 = vpop.permute.xlu0 %8047
  %v8051 = vsel %vm27, %v7632, 0
  %8053 = vmatprep.subr.mxu0 0.0
  %8054 = vmatpush1.msra.mxu0 %v8048
  %8055 = vmatprep.subr.mxu0 0.0
  %8056 = vmatpush1.msra.mxu0 0.0
  %8057 = vmatprep.subr.mxu0 0.0
  %8058 = vmatpush1.msra.mxu0 0.0
  %8059 = vmatprep.subr.mxu0 0.0
  %8060 = vmatpush1.msra.mxu0 0.0
  %8061 = vmatprep.subr.mxu0 0.0
  %8062 = vmatpush1.msra.mxu0 0.0
  %8063 = vmatprep.subr.mxu0 0.0
  %8064 = vmatpush1.msra.mxu0 0.0
  %8065 = vmatprep.subr.mxu0 0.0
  %8066 = vmatpush1.msra.mxu0 0.0
  %8067 = vmatprep.subr.mxu0 0.0
  %8068 = vmatpush1.msra.mxu0 0.0
  %8069 = vmatprep.subr.mxu0 0.0
  %8070 = vmatpush1.msra.mxu0 0.0
  %8071 = vmatprep.subr.mxu0 0.0
  %8072 = vmatpush1.msra.mxu0 0.0
  %8073 = vmatprep.subr.mxu0 0.0
  %8074 = vmatpush1.msra.mxu0 0.0
  %8075 = vmatprep.subr.mxu0 0.0
  %8076 = vmatpush1.msra.mxu0 0.0
  %8077 = vmatprep.subr.mxu0 0.0
  %8078 = vmatpush1.msra.mxu0 0.0
  %8079 = vmatprep.subr.mxu0 0.0
  %8080 = vmatpush1.msra.mxu0 0.0
  %8081 = vmatprep.subr.mxu0 0.0
  %8082 = vmatpush1.msra.mxu0 0.0
  %8083 = vmatprep.subr.mxu0 0.0
  %8084 = vmatpush1.msra.mxu0 0.0
  %8085 = vmatprep.subr.mxu0 0.0
  %8086 = vmatpush1.msra.mxu0 0.0
  %8087 = vmatprep.subr.mxu0 0.0
  %8088 = vmatpush1.msra.mxu0 0.0
  %8089 = vmatprep.subr.mxu0 0.0
  %8090 = vmatpush1.msra.mxu0 0.0
  %8091 = vmatprep.subr.mxu0 0.0
  %8092 = vmatpush1.msra.mxu0 0.0
  %8093 = vmatprep.subr.mxu0 0.0
  %8094 = vmatpush1.msra.mxu0 0.0
  %8095 = vmatprep.subr.mxu0 0.0
  %8096 = vmatpush1.msra.mxu0 0.0
  %8097 = vmatprep.subr.mxu0 0.0
  %8098 = vmatpush1.msra.mxu0 0.0
  %8099 = vmatprep.subr.mxu0 0.0
  %8100 = vmatpush1.msra.mxu0 0.0
  %8101 = vmatprep.subr.mxu0 0.0
  %8102 = vmatpush1.msra.mxu0 0.0
  %8103 = vmatprep.subr.mxu0 0.0
  %8104 = vmatpush1.msra.mxu0 0.0
  %8105 = vmatprep.subr.mxu0 0.0
  %8106 = vmatpush1.msra.mxu0 0.0
  %8107 = vmatprep.subr.mxu0 0.0
  %8108 = vmatpush1.msra.mxu0 0.0
  %8109 = vmatprep.subr.mxu0 0.0
  %8110 = vmatpush1.msra.mxu0 0.0
  %8111 = vmatprep.subr.mxu0 0.0
  %8112 = vmatpush1.msra.mxu0 0.0
  %8113 = vmatprep.subr.mxu0 0.0
  %8114 = vmatpush1.msra.mxu0 0.0
  %8115 = vmatprep.subr.mxu0 0.0
  %8116 = vmatpush1.msra.mxu0 0.0
  %8117 = vmatprep.mubr.f32.mxu0 0.0
  %8118 = vmatmul.mubr.f32.gmra.mrb[0].mxu0 %v8051
  %v8119 = vpop.f32.mrb[0].mxu0
  %v8120 = vadd.f32 0.0, %v8119
  %v8121 = vpop.f32.mrb[0].mxu0
  %8122 = vdwg.mxu0
  %8124 = vrot.lane.b32.xlu0 %v6947, 88
  %v8125 = vpop.permute.xlu0 %8124
  %v8128 = vsel %vm27, %v7634, 0
  %8130 = vmatprep.subr.mxu0 0.0
  %8131 = vmatpush1.msra.mxu0 %v8125
  %8132 = vmatprep.subr.mxu0 0.0
  %8133 = vmatpush1.msra.mxu0 0.0
  %8134 = vmatprep.subr.mxu0 0.0
  %8135 = vmatpush1.msra.mxu0 0.0
  %8136 = vmatprep.subr.mxu0 0.0
  %8137 = vmatpush1.msra.mxu0 0.0
  %8138 = vmatprep.subr.mxu0 0.0
  %8139 = vmatpush1.msra.mxu0 0.0
  %8140 = vmatprep.subr.mxu0 0.0
  %8141 = vmatpush1.msra.mxu0 0.0
  %8142 = vmatprep.subr.mxu0 0.0
  %8143 = vmatpush1.msra.mxu0 0.0
  %8144 = vmatprep.subr.mxu0 0.0
  %8145 = vmatpush1.msra.mxu0 0.0
  %8146 = vmatprep.subr.mxu0 0.0
  %8147 = vmatpush1.msra.mxu0 0.0
  %8148 = vmatprep.subr.mxu0 0.0
  %8149 = vmatpush1.msra.mxu0 0.0
  %8150 = vmatprep.subr.mxu0 0.0
  %8151 = vmatpush1.msra.mxu0 0.0
  %8152 = vmatprep.subr.mxu0 0.0
  %8153 = vmatpush1.msra.mxu0 0.0
  %8154 = vmatprep.subr.mxu0 0.0
  %8155 = vmatpush1.msra.mxu0 0.0
  %8156 = vmatprep.subr.mxu0 0.0
  %8157 = vmatpush1.msra.mxu0 0.0
  %8158 = vmatprep.subr.mxu0 0.0
  %8159 = vmatpush1.msra.mxu0 0.0
  %8160 = vmatprep.subr.mxu0 0.0
  %8161 = vmatpush1.msra.mxu0 0.0
  %8162 = vmatprep.subr.mxu0 0.0
  %8163 = vmatpush1.msra.mxu0 0.0
  %8164 = vmatprep.subr.mxu0 0.0
  %8165 = vmatpush1.msra.mxu0 0.0
  %8166 = vmatprep.subr.mxu0 0.0
  %8167 = vmatpush1.msra.mxu0 0.0
  %8168 = vmatprep.subr.mxu0 0.0
  %8169 = vmatpush1.msra.mxu0 0.0
  %8170 = vmatprep.subr.mxu0 0.0
  %8171 = vmatpush1.msra.mxu0 0.0
  %8172 = vmatprep.subr.mxu0 0.0
  %8173 = vmatpush1.msra.mxu0 0.0
  %8174 = vmatprep.subr.mxu0 0.0
  %8175 = vmatpush1.msra.mxu0 0.0
  %8176 = vmatprep.subr.mxu0 0.0
  %8177 = vmatpush1.msra.mxu0 0.0
  %8178 = vmatprep.subr.mxu0 0.0
  %8179 = vmatpush1.msra.mxu0 0.0
  %8180 = vmatprep.subr.mxu0 0.0
  %8181 = vmatpush1.msra.mxu0 0.0
  %8182 = vmatprep.subr.mxu0 0.0
  %8183 = vmatpush1.msra.mxu0 0.0
  %8184 = vmatprep.subr.mxu0 0.0
  %8185 = vmatpush1.msra.mxu0 0.0
  %8186 = vmatprep.subr.mxu0 0.0
  %8187 = vmatpush1.msra.mxu0 0.0
  %8188 = vmatprep.subr.mxu0 0.0
  %8189 = vmatpush1.msra.mxu0 0.0
  %8190 = vmatprep.subr.mxu0 0.0
  %8191 = vmatpush1.msra.mxu0 0.0
  %8192 = vmatprep.subr.mxu0 0.0
  %8193 = vmatpush1.msra.mxu0 0.0
  %8194 = vmatprep.mubr.f32.mxu0 0.0
  %8195 = vmatmul.mubr.f32.gmra.mrb[0].mxu0 %v8128
  %v8196 = vpop.f32.mrb[0].mxu0
  %v8197 = vadd.f32 0.0, %v8196
  %v8198 = vpop.f32.mrb[0].mxu0
  %8199 = vdwg.mxu0
  %8201 = vrot.lane.b32.xlu0 %v6948, 88
  %v8202 = vpop.permute.xlu0 %8201
  %v8205 = vsel %vm27, %v7636, 0
  %8207 = vmatprep.subr.mxu0 0.0
  %8208 = vmatpush1.msra.mxu0 %v8202
  %8209 = vmatprep.subr.mxu0 0.0
  %8210 = vmatpush1.msra.mxu0 0.0
  %8211 = vmatprep.subr.mxu0 0.0
  %8212 = vmatpush1.msra.mxu0 0.0
  %8213 = vmatprep.subr.mxu0 0.0
  %8214 = vmatpush1.msra.mxu0 0.0
  %8215 = vmatprep.subr.mxu0 0.0
  %8216 = vmatpush1.msra.mxu0 0.0
  %8217 = vmatprep.subr.mxu0 0.0
  %8218 = vmatpush1.msra.mxu0 0.0
  %8219 = vmatprep.subr.mxu0 0.0
  %8220 = vmatpush1.msra.mxu0 0.0
  %8221 = vmatprep.subr.mxu0 0.0
  %8222 = vmatpush1.msra.mxu0 0.0
  %8223 = vmatprep.subr.mxu0 0.0
  %8224 = vmatpush1.msra.mxu0 0.0
  %8225 = vmatprep.subr.mxu0 0.0
  %8226 = vmatpush1.msra.mxu0 0.0
  %8227 = vmatprep.subr.mxu0 0.0
  %8228 = vmatpush1.msra.mxu0 0.0
  %8229 = vmatprep.subr.mxu0 0.0
  %8230 = vmatpush1.msra.mxu0 0.0
  %8231 = vmatprep.subr.mxu0 0.0
  %8232 = vmatpush1.msra.mxu0 0.0
  %8233 = vmatprep.subr.mxu0 0.0
  %8234 = vmatpush1.msra.mxu0 0.0
  %8235 = vmatprep.subr.mxu0 0.0
  %8236 = vmatpush1.msra.mxu0 0.0
  %8237 = vmatprep.subr.mxu0 0.0
  %8238 = vmatpush1.msra.mxu0 0.0
  %8239 = vmatprep.subr.mxu0 0.0
  %8240 = vmatpush1.msra.mxu0 0.0
  %8241 = vmatprep.subr.mxu0 0.0
  %8242 = vmatpush1.msra.mxu0 0.0
  %8243 = vmatprep.subr.mxu0 0.0
  %8244 = vmatpush1.msra.mxu0 0.0
  %8245 = vmatprep.subr.mxu0 0.0
  %8246 = vmatpush1.msra.mxu0 0.0
  %8247 = vmatprep.subr.mxu0 0.0
  %8248 = vmatpush1.msra.mxu0 0.0
  %8249 = vmatprep.subr.mxu0 0.0
  %8250 = vmatpush1.msra.mxu0 0.0
  %8251 = vmatprep.subr.mxu0 0.0
  %8252 = vmatpush1.msra.mxu0 0.0
  %8253 = vmatprep.subr.mxu0 0.0
  %8254 = vmatpush1.msra.mxu0 0.0
  %8255 = vmatprep.subr.mxu0 0.0
  %8256 = vmatpush1.msra.mxu0 0.0
  %8257 = vmatprep.subr.mxu0 0.0
  %8258 = vmatpush1.msra.mxu0 0.0
  %8259 = vmatprep.subr.mxu0 0.0
  %8260 = vmatpush1.msra.mxu0 0.0
  %8261 = vmatprep.subr.mxu0 0.0
  %8262 = vmatpush1.msra.mxu0 0.0
  %8263 = vmatprep.subr.mxu0 0.0
  %8264 = vmatpush1.msra.mxu0 0.0
  %8265 = vmatprep.subr.mxu0 0.0
  %8266 = vmatpush1.msra.mxu0 0.0
  %8267 = vmatprep.subr.mxu0 0.0
  %8268 = vmatpush1.msra.mxu0 0.0
  %8269 = vmatprep.subr.mxu0 0.0
  %8270 = vmatpush1.msra.mxu0 0.0
  %8271 = vmatprep.mubr.f32.mxu0 0.0
  %8272 = vmatmul.mubr.f32.gmra.mrb[0].mxu0 %v8205
  %v8273 = vpop.f32.mrb[0].mxu0
  %v8274 = vadd.f32 0.0, %v8273
  %v8275 = vpop.f32.mrb[0].mxu0
  %8276 = vdwg.mxu0
  %v8277 = vrcp.pop %v7639
  %v8278 = vrcp.pop %v7642
  %v8279 = vrcp.pop %v7645
  %v8280 = vrcp.pop %v7648
  %v8281 = vrcp.pop %v7651
  %v8282 = vrcp.pop %v7654
  %v8283 = vrcp.pop %v7657
  %v8284 = vrcp.pop %v7660
  %v8285 = vmul.f32 %v7735, %v8277
  %v8286 = vmul.f32 %v7812, %v8278
  %v8287 = vmul.f32 %v7889, %v8279
  %v8288 = vmul.f32 %v7966, %v8280
  %v8289 = vmul.f32 %v8043, %v8281
  %v8290 = vmul.f32 %v8120, %v8282
  %v8291 = vmul.f32 %v8197, %v8283
  %v8292 = vmul.f32 %v8274, %v8284
  %8301 = vrot.lane.b32.xlu0 %v8285, 40
  %v8302 = vpop.permute.xlu0 %8301
  %8303 = vrot.lane.b32.xlu0 %v8286, 40
  %v8304 = vpop.permute.xlu0 %8303
  %8305 = vrot.lane.b32.xlu0 %v8287, 40
  %v8306 = vpop.permute.xlu0 %8305
  %8307 = vrot.lane.b32.xlu0 %v8288, 40
  %v8308 = vpop.permute.xlu0 %8307
  %8309 = vrot.lane.b32.xlu0 %v8289, 40
  %v8310 = vpop.permute.xlu0 %8309
  %8311 = vrot.lane.b32.xlu0 %v8290, 40
  %v8312 = vpop.permute.xlu0 %8311
  %8313 = vrot.lane.b32.xlu0 %v8291, 40
  %v8314 = vpop.permute.xlu0 %8313
  %8315 = vrot.lane.b32.xlu0 %v8292, 40
  %v8316 = vpop.permute.xlu0 %8315
  %vm8325 = vcmask 392512
  %8326 = vst.msk [vmem:[%s1] sm:$0xff] %vm8325, %v8302
  %8327 = vst.msk [vmem:[%s1 + $0x8] sm:$0xff] %vm8325, %v8304
  %8328 = vst.msk [vmem:[%s1 + $0x10] sm:$0xff] %vm8325, %v8306
  %8329 = vst.msk [vmem:[%s1 + $0x18] sm:$0xff] %vm8325, %v8308
  %8330 = vst.msk [vmem:[%s1 + $0x20] sm:$0xff] %vm8325, %v8310
  %8331 = vst.msk [vmem:[%s1 + $0x28] sm:$0xff] %vm8325, %v8312
  %8332 = vst.msk [vmem:[%s1 + $0x30] sm:$0xff] %vm8325, %v8314
  %8333 = vst.msk [vmem:[%s1 + $0x38] sm:$0xff] %vm8325, %v8316
  %v8334 = vld [vmem:[%s0] sm:$0xff]
  %v8335 = vld [vmem:[%s0 + $0x10] sm:$0xff]
  %v8336 = vld [vmem:[%s0 + $0x20] sm:$0xff]
  %v8337 = vld [vmem:[%s0 + $0x30] sm:$0xff]
  %v8338 = vld [vmem:[%s0 + $0x40] sm:$0xff]
  %v8339 = vld [vmem:[%s0 + $0x50] sm:$0xff]
  %v8340 = vld [vmem:[%s0 + $0x60] sm:$0xff]
  %v8341 = vld [vmem:[%s0 + $0x70] sm:$0xff]
  %v8342 = vld [vmem:[%s0 + $0x8] sm:$0xff]
  %v8343 = vld [vmem:[%s0 + $0x18] sm:$0xff]
  %v8344 = vld [vmem:[%s0 + $0x28] sm:$0xff]
  %v8345 = vld [vmem:[%s0 + $0x38] sm:$0xff]
  %v8346 = vld [vmem:[%s0 + $0x48] sm:$0xff]
  %v8347 = vld [vmem:[%s0 + $0x58] sm:$0xff]
  %v8348 = vld [vmem:[%s0 + $0x68] sm:$0xff]
  %v8349 = vld [vmem:[%s0 + $0x78] sm:$0xff]
  %8351 = vrot.lane.b32.xlu0 %v8334, 80
  %v8352 = vpop.permute.xlu0 %8351
  %8353 = vrot.lane.b32.xlu0 %v8334, 16
  %v8354 = vpop.permute.xlu0 %8353
  %v8355 = vsel %vm27, %v8352, 0
  %v8357 = vsel %vm27, %v8354, 0
  %8359 = vmatprep.subr.mxu0 0.0
  %8360 = vmatpush1.xpose.msra.mxu0 %v8357
  %8361 = vmatprep.subr.mxu0 0.0
  %8362 = vmatpush1.xpose.msra.mxu0 0.0
  %8363 = vmatprep.subr.mxu0 0.0
  %8364 = vmatpush1.xpose.msra.mxu0 0.0
  %8365 = vmatprep.subr.mxu0 0.0
  %8366 = vmatpush1.xpose.msra.mxu0 0.0
  %8367 = vmatprep.subr.mxu0 0.0
  %8368 = vmatpush1.xpose.msra.mxu0 0.0
  %8369 = vmatprep.subr.mxu0 0.0
  %8370 = vmatpush1.xpose.msra.mxu0 0.0
  %8371 = vmatprep.subr.mxu0 0.0
  %8372 = vmatpush1.xpose.msra.mxu0 0.0
  %8373 = vmatprep.subr.mxu0 0.0
  %8374 = vmatpush1.xpose.msra.mxu0 0.0
  %8375 = vmatprep.subr.mxu0 0.0
  %8376 = vmatpush1.xpose.msra.mxu0 0.0
  %8377 = vmatprep.subr.mxu0 0.0
  %8378 = vmatpush1.xpose.msra.mxu0 0.0
  %8379 = vmatprep.subr.mxu0 0.0
  %8380 = vmatpush1.xpose.msra.mxu0 0.0
  %8381 = vmatprep.subr.mxu0 0.0
  %8382 = vmatpush1.xpose.msra.mxu0 0.0
  %8383 = vmatprep.subr.mxu0 0.0
  %8384 = vmatpush1.xpose.msra.mxu0 0.0
  %8385 = vmatprep.subr.mxu0 0.0
  %8386 = vmatpush1.xpose.msra.mxu0 0.0
  %8387 = vmatprep.subr.mxu0 0.0
  %8388 = vmatpush1.xpose.msra.mxu0 0.0
  %8389 = vmatprep.subr.mxu0 0.0
  %8390 = vmatpush1.xpose.msra.mxu0 0.0
  %8391 = vmatprep.subr.mxu0 0.0
  %8392 = vmatpush1.xpose.msra.mxu0 0.0
  %8393 = vmatprep.subr.mxu0 0.0
  %8394 = vmatpush1.xpose.msra.mxu0 0.0
  %8395 = vmatprep.subr.mxu0 0.0
  %8396 = vmatpush1.xpose.msra.mxu0 0.0
  %8397 = vmatprep.subr.mxu0 0.0
  %8398 = vmatpush1.xpose.msra.mxu0 0.0
  %8399 = vmatprep.subr.mxu0 0.0
  %8400 = vmatpush1.xpose.msra.mxu0 0.0
  %8401 = vmatprep.subr.mxu0 0.0
  %8402 = vmatpush1.xpose.msra.mxu0 0.0
  %8403 = vmatprep.subr.mxu0 0.0
  %8404 = vmatpush1.xpose.msra.mxu0 0.0
  %8405 = vmatprep.subr.mxu0 0.0
  %8406 = vmatpush1.xpose.msra.mxu0 0.0
  %8407 = vmatprep.subr.mxu0 0.0
  %8408 = vmatpush1.xpose.msra.mxu0 0.0
  %8409 = vmatprep.subr.mxu0 0.0
  %8410 = vmatpush1.xpose.msra.mxu0 0.0
  %8411 = vmatprep.subr.mxu0 0.0
  %8412 = vmatpush1.xpose.msra.mxu0 0.0
  %8413 = vmatprep.subr.mxu0 0.0
  %8414 = vmatpush1.xpose.msra.mxu0 0.0
  %8415 = vmatprep.subr.mxu0 0.0
  %8416 = vmatpush1.xpose.msra.mxu0 0.0
  %8417 = vmatprep.subr.mxu0 0.0
  %8418 = vmatpush1.xpose.msra.mxu0 0.0
  %8419 = vmatprep.subr.mxu0 0.0
  %8420 = vmatpush1.xpose.msra.mxu0 0.0
  %8421 = vmatprep.subr.mxu0 0.0
  %8422 = vmatpush1.xpose.msra.mxu0 0.0
  %8423 = vmatprep.mubr.f32.mxu0 0.0
  %8424 = vmatmul.mubr.f32.gmra.mrb[0].mxu0 %v8355
  %v8425 = vpop.f32.mrb[0].mxu0
  %v8426 = vadd.f32 0.0, %v8425
  %v8427 = vpop.f32.mrb[0].mxu0
  %8428 = vdwg.mxu0
  %8430 = vrot.lane.b32.xlu0 %v8335, 80
  %v8431 = vpop.permute.xlu0 %8430
  %8432 = vrot.lane.b32.xlu0 %v8335, 16
  %v8433 = vpop.permute.xlu0 %8432
  %v8434 = vsel %vm27, %v8431, 0
  %v8436 = vsel %vm27, %v8433, 0
  %8438 = vmatprep.subr.mxu0 0.0
  %8439 = vmatpush1.xpose.msra.mxu0 %v8436
  %8440 = vmatprep.subr.mxu0 0.0
  %8441 = vmatpush1.xpose.msra.mxu0 0.0
  %8442 = vmatprep.subr.mxu0 0.0
  %8443 = vmatpush1.xpose.msra.mxu0 0.0
  %8444 = vmatprep.subr.mxu0 0.0
  %8445 = vmatpush1.xpose.msra.mxu0 0.0
  %8446 = vmatprep.subr.mxu0 0.0
  %8447 = vmatpush1.xpose.msra.mxu0 0.0
  %8448 = vmatprep.subr.mxu0 0.0
  %8449 = vmatpush1.xpose.msra.mxu0 0.0
  %8450 = vmatprep.subr.mxu0 0.0
  %8451 = vmatpush1.xpose.msra.mxu0 0.0
  %8452 = vmatprep.subr.mxu0 0.0
  %8453 = vmatpush1.xpose.msra.mxu0 0.0
  %8454 = vmatprep.subr.mxu0 0.0
  %8455 = vmatpush1.xpose.msra.mxu0 0.0
  %8456 = vmatprep.subr.mxu0 0.0
  %8457 = vmatpush1.xpose.msra.mxu0 0.0
  %8458 = vmatprep.subr.mxu0 0.0
  %8459 = vmatpush1.xpose.msra.mxu0 0.0
  %8460 = vmatprep.subr.mxu0 0.0
  %8461 = vmatpush1.xpose.msra.mxu0 0.0
  %8462 = vmatprep.subr.mxu0 0.0
  %8463 = vmatpush1.xpose.msra.mxu0 0.0
  %8464 = vmatprep.subr.mxu0 0.0
  %8465 = vmatpush1.xpose.msra.mxu0 0.0
  %8466 = vmatprep.subr.mxu0 0.0
  %8467 = vmatpush1.xpose.msra.mxu0 0.0
  %8468 = vmatprep.subr.mxu0 0.0
  %8469 = vmatpush1.xpose.msra.mxu0 0.0
  %8470 = vmatprep.subr.mxu0 0.0
  %8471 = vmatpush1.xpose.msra.mxu0 0.0
  %8472 = vmatprep.subr.mxu0 0.0
  %8473 = vmatpush1.xpose.msra.mxu0 0.0
  %8474 = vmatprep.subr.mxu0 0.0
  %8475 = vmatpush1.xpose.msra.mxu0 0.0
  %8476 = vmatprep.subr.mxu0 0.0
  %8477 = vmatpush1.xpose.msra.mxu0 0.0
  %8478 = vmatprep.subr.mxu0 0.0
  %8479 = vmatpush1.xpose.msra.mxu0 0.0
  %8480 = vmatprep.subr.mxu0 0.0
  %8481 = vmatpush1.xpose.msra.mxu0 0.0
  %8482 = vmatprep.subr.mxu0 0.0
  %8483 = vmatpush1.xpose.msra.mxu0 0.0
  %8484 = vmatprep.subr.mxu0 0.0
  %8485 = vmatpush1.xpose.msra.mxu0 0.0
  %8486 = vmatprep.subr.mxu0 0.0
  %8487 = vmatpush1.xpose.msra.mxu0 0.0
  %8488 = vmatprep.subr.mxu0 0.0
  %8489 = vmatpush1.xpose.msra.mxu0 0.0
  %8490 = vmatprep.subr.mxu0 0.0
  %8491 = vmatpush1.xpose.msra.mxu0 0.0
  %8492 = vmatprep.subr.mxu0 0.0
  %8493 = vmatpush1.xpose.msra.mxu0 0.0
  %8494 = vmatprep.subr.mxu0 0.0
  %8495 = vmatpush1.xpose.msra.mxu0 0.0
  %8496 = vmatprep.subr.mxu0 0.0
  %8497 = vmatpush1.xpose.msra.mxu0 0.0
  %8498 = vmatprep.subr.mxu0 0.0
  %8499 = vmatpush1.xpose.msra.mxu0 0.0
  %8500 = vmatprep.subr.mxu0 0.0
  %8501 = vmatpush1.xpose.msra.mxu0 0.0
  %8502 = vmatprep.mubr.f32.mxu0 0.0
  %8503 = vmatmul.mubr.f32.gmra.mrb[0].mxu0 %v8434
  %v8504 = vpop.f32.mrb[0].mxu0
  %v8505 = vadd.f32 0.0, %v8504
  %v8506 = vpop.f32.mrb[0].mxu0
  %8507 = vdwg.mxu0
  %8509 = vrot.lane.b32.xlu0 %v8336, 80
  %v8510 = vpop.permute.xlu0 %8509
  %8511 = vrot.lane.b32.xlu0 %v8336, 16
  %v8512 = vpop.permute.xlu0 %8511
  %v8513 = vsel %vm27, %v8510, 0
  %v8515 = vsel %vm27, %v8512, 0
  %8517 = vmatprep.subr.mxu0 0.0
  %8518 = vmatpush1.xpose.msra.mxu0 %v8515
  %8519 = vmatprep.subr.mxu0 0.0
  %8520 = vmatpush1.xpose.msra.mxu0 0.0
  %8521 = vmatprep.subr.mxu0 0.0
  %8522 = vmatpush1.xpose.msra.mxu0 0.0
  %8523 = vmatprep.subr.mxu0 0.0
  %8524 = vmatpush1.xpose.msra.mxu0 0.0
  %8525 = vmatprep.subr.mxu0 0.0
  %8526 = vmatpush1.xpose.msra.mxu0 0.0
  %8527 = vmatprep.subr.mxu0 0.0
  %8528 = vmatpush1.xpose.msra.mxu0 0.0
  %8529 = vmatprep.subr.mxu0 0.0
  %8530 = vmatpush1.xpose.msra.mxu0 0.0
  %8531 = vmatprep.subr.mxu0 0.0
  %8532 = vmatpush1.xpose.msra.mxu0 0.0
  %8533 = vmatprep.subr.mxu0 0.0
  %8534 = vmatpush1.xpose.msra.mxu0 0.0
  %8535 = vmatprep.subr.mxu0 0.0
  %8536 = vmatpush1.xpose.msra.mxu0 0.0
  %8537 = vmatprep.subr.mxu0 0.0
  %8538 = vmatpush1.xpose.msra.mxu0 0.0
  %8539 = vmatprep.subr.mxu0 0.0
  %8540 = vmatpush1.xpose.msra.mxu0 0.0
  %8541 = vmatprep.subr.mxu0 0.0
  %8542 = vmatpush1.xpose.msra.mxu0 0.0
  %8543 = vmatprep.subr.mxu0 0.0
  %8544 = vmatpush1.xpose.msra.mxu0 0.0
  %8545 = vmatprep.subr.mxu0 0.0
  %8546 = vmatpush1.xpose.msra.mxu0 0.0
  %8547 = vmatprep.subr.mxu0 0.0
  %8548 = vmatpush1.xpose.msra.mxu0 0.0
  %8549 = vmatprep.subr.mxu0 0.0
  %8550 = vmatpush1.xpose.msra.mxu0 0.0
  %8551 = vmatprep.subr.mxu0 0.0
  %8552 = vmatpush1.xpose.msra.mxu0 0.0
  %8553 = vmatprep.subr.mxu0 0.0
  %8554 = vmatpush1.xpose.msra.mxu0 0.0
  %8555 = vmatprep.subr.mxu0 0.0
  %8556 = vmatpush1.xpose.msra.mxu0 0.0
  %8557 = vmatprep.subr.mxu0 0.0
  %8558 = vmatpush1.xpose.msra.mxu0 0.0
  %8559 = vmatprep.subr.mxu0 0.0
  %8560 = vmatpush1.xpose.msra.mxu0 0.0
  %8561 = vmatprep.subr.mxu0 0.0
  %8562 = vmatpush1.xpose.msra.mxu0 0.0
  %8563 = vmatprep.subr.mxu0 0.0
  %8564 = vmatpush1.xpose.msra.mxu0 0.0
  %8565 = vmatprep.subr.mxu0 0.0
  %8566 = vmatpush1.xpose.msra.mxu0 0.0
  %8567 = vmatprep.subr.mxu0 0.0
  %8568 = vmatpush1.xpose.msra.mxu0 0.0
  %8569 = vmatprep.subr.mxu0 0.0
  %8570 = vmatpush1.xpose.msra.mxu0 0.0
  %8571 = vmatprep.subr.mxu0 0.0
  %8572 = vmatpush1.xpose.msra.mxu0 0.0
  %8573 = vmatprep.subr.mxu0 0.0
  %8574 = vmatpush1.xpose.msra.mxu0 0.0
  %8575 = vmatprep.subr.mxu0 0.0
  %8576 = vmatpush1.xpose.msra.mxu0 0.0
  %8577 = vmatprep.subr.mxu0 0.0
  %8578 = vmatpush1.xpose.msra.mxu0 0.0
  %8579 = vmatprep.subr.mxu0 0.0
  %8580 = vmatpush1.xpose.msra.mxu0 0.0
  %8581 = vmatprep.mubr.f32.mxu0 0.0
  %8582 = vmatmul.mubr.f32.gmra.mrb[0].mxu0 %v8513
  %v8583 = vpop.f32.mrb[0].mxu0
  %v8584 = vadd.f32 0.0, %v8583
  %v8585 = vpop.f32.mrb[0].mxu0
  %8586 = vdwg.mxu0
  %8588 = vrot.lane.b32.xlu0 %v8337, 80
  %v8589 = vpop.permute.xlu0 %8588
  %8590 = vrot.lane.b32.xlu0 %v8337, 16
  %v8591 = vpop.permute.xlu0 %8590
  %v8592 = vsel %vm27, %v8589, 0
  %v8594 = vsel %vm27, %v8591, 0
  %8596 = vmatprep.subr.mxu0 0.0
  %8597 = vmatpush1.xpose.msra.mxu0 %v8594
  %8598 = vmatprep.subr.mxu0 0.0
  %8599 = vmatpush1.xpose.msra.mxu0 0.0
  %8600 = vmatprep.subr.mxu0 0.0
  %8601 = vmatpush1.xpose.msra.mxu0 0.0
  %8602 = vmatprep.subr.mxu0 0.0
  %8603 = vmatpush1.xpose.msra.mxu0 0.0
  %8604 = vmatprep.subr.mxu0 0.0
  %8605 = vmatpush1.xpose.msra.mxu0 0.0
  %8606 = vmatprep.subr.mxu0 0.0
  %8607 = vmatpush1.xpose.msra.mxu0 0.0
  %8608 = vmatprep.subr.mxu0 0.0
  %8609 = vmatpush1.xpose.msra.mxu0 0.0
  %8610 = vmatprep.subr.mxu0 0.0
  %8611 = vmatpush1.xpose.msra.mxu0 0.0
  %8612 = vmatprep.subr.mxu0 0.0
  %8613 = vmatpush1.xpose.msra.mxu0 0.0
  %8614 = vmatprep.subr.mxu0 0.0
  %8615 = vmatpush1.xpose.msra.mxu0 0.0
  %8616 = vmatprep.subr.mxu0 0.0
  %8617 = vmatpush1.xpose.msra.mxu0 0.0
  %8618 = vmatprep.subr.mxu0 0.0
  %8619 = vmatpush1.xpose.msra.mxu0 0.0
  %8620 = vmatprep.subr.mxu0 0.0
  %8621 = vmatpush1.xpose.msra.mxu0 0.0
  %8622 = vmatprep.subr.mxu0 0.0
  %8623 = vmatpush1.xpose.msra.mxu0 0.0
  %8624 = vmatprep.subr.mxu0 0.0
  %8625 = vmatpush1.xpose.msra.mxu0 0.0
  %8626 = vmatprep.subr.mxu0 0.0
  %8627 = vmatpush1.xpose.msra.mxu0 0.0
  %8628 = vmatprep.subr.mxu0 0.0
  %8629 = vmatpush1.xpose.msra.mxu0 0.0
  %8630 = vmatprep.subr.mxu0 0.0
  %8631 = vmatpush1.xpose.msra.mxu0 0.0
  %8632 = vmatprep.subr.mxu0 0.0
  %8633 = vmatpush1.xpose.msra.mxu0 0.0
  %8634 = vmatprep.subr.mxu0 0.0
  %8635 = vmatpush1.xpose.msra.mxu0 0.0
  %8636 = vmatprep.subr.mxu0 0.0
  %8637 = vmatpush1.xpose.msra.mxu0 0.0
  %8638 = vmatprep.subr.mxu0 0.0
  %8639 = vmatpush1.xpose.msra.mxu0 0.0
  %8640 = vmatprep.subr.mxu0 0.0
  %8641 = vmatpush1.xpose.msra.mxu0 0.0
  %8642 = vmatprep.subr.mxu0 0.0
  %8643 = vmatpush1.xpose.msra.mxu0 0.0
  %8644 = vmatprep.subr.mxu0 0.0
  %8645 = vmatpush1.xpose.msra.mxu0 0.0
  %8646 = vmatprep.subr.mxu0 0.0
  %8647 = vmatpush1.xpose.msra.mxu0 0.0
  %8648 = vmatprep.subr.mxu0 0.0
  %8649 = vmatpush1.xpose.msra.mxu0 0.0
  %8650 = vmatprep.subr.mxu0 0.0
  %8651 = vmatpush1.xpose.msra.mxu0 0.0
  %8652 = vmatprep.subr.mxu0 0.0
  %8653 = vmatpush1.xpose.msra.mxu0 0.0
  %8654 = vmatprep.subr.mxu0 0.0
  %8655 = vmatpush1.xpose.msra.mxu0 0.0
  %8656 = vmatprep.subr.mxu0 0.0
  %8657 = vmatpush1.xpose.msra.mxu0 0.0
  %8658 = vmatprep.subr.mxu0 0.0
  %8659 = vmatpush1.xpose.msra.mxu0 0.0
  %8660 = vmatprep.mubr.f32.mxu0 0.0
  %8661 = vmatmul.mubr.f32.gmra.mrb[0].mxu0 %v8592
  %v8662 = vpop.f32.mrb[0].mxu0
  %v8663 = vadd.f32 0.0, %v8662
  %v8664 = vpop.f32.mrb[0].mxu0
  %8665 = vdwg.mxu0
  %8667 = vrot.lane.b32.xlu0 %v8338, 80
  %v8668 = vpop.permute.xlu0 %8667
  %8669 = vrot.lane.b32.xlu0 %v8338, 16
  %v8670 = vpop.permute.xlu0 %8669
  %v8671 = vsel %vm27, %v8668, 0
  %v8673 = vsel %vm27, %v8670, 0
  %8675 = vmatprep.subr.mxu0 0.0
  %8676 = vmatpush1.xpose.msra.mxu0 %v8673
  %8677 = vmatprep.subr.mxu0 0.0
  %8678 = vmatpush1.xpose.msra.mxu0 0.0
  %8679 = vmatprep.subr.mxu0 0.0
  %8680 = vmatpush1.xpose.msra.mxu0 0.0
  %8681 = vmatprep.subr.mxu0 0.0
  %8682 = vmatpush1.xpose.msra.mxu0 0.0
  %8683 = vmatprep.subr.mxu0 0.0
  %8684 = vmatpush1.xpose.msra.mxu0 0.0
  %8685 = vmatprep.subr.mxu0 0.0
  %8686 = vmatpush1.xpose.msra.mxu0 0.0
  %8687 = vmatprep.subr.mxu0 0.0
  %8688 = vmatpush1.xpose.msra.mxu0 0.0
  %8689 = vmatprep.subr.mxu0 0.0
  %8690 = vmatpush1.xpose.msra.mxu0 0.0
  %8691 = vmatprep.subr.mxu0 0.0
  %8692 = vmatpush1.xpose.msra.mxu0 0.0
  %8693 = vmatprep.subr.mxu0 0.0
  %8694 = vmatpush1.xpose.msra.mxu0 0.0
  %8695 = vmatprep.subr.mxu0 0.0
  %8696 = vmatpush1.xpose.msra.mxu0 0.0
  %8697 = vmatprep.subr.mxu0 0.0
  %8698 = vmatpush1.xpose.msra.mxu0 0.0
  %8699 = vmatprep.subr.mxu0 0.0
  %8700 = vmatpush1.xpose.msra.mxu0 0.0
  %8701 = vmatprep.subr.mxu0 0.0
  %8702 = vmatpush1.xpose.msra.mxu0 0.0
  %8703 = vmatprep.subr.mxu0 0.0
  %8704 = vmatpush1.xpose.msra.mxu0 0.0
  %8705 = vmatprep.subr.mxu0 0.0
  %8706 = vmatpush1.xpose.msra.mxu0 0.0
  %8707 = vmatprep.subr.mxu0 0.0
  %8708 = vmatpush1.xpose.msra.mxu0 0.0
  %8709 = vmatprep.subr.mxu0 0.0
  %8710 = vmatpush1.xpose.msra.mxu0 0.0
  %8711 = vmatprep.subr.mxu0 0.0
  %8712 = vmatpush1.xpose.msra.mxu0 0.0
  %8713 = vmatprep.subr.mxu0 0.0
  %8714 = vmatpush1.xpose.msra.mxu0 0.0
  %8715 = vmatprep.subr.mxu0 0.0
  %8716 = vmatpush1.xpose.msra.mxu0 0.0
  %8717 = vmatprep.subr.mxu0 0.0
  %8718 = vmatpush1.xpose.msra.mxu0 0.0
  %8719 = vmatprep.subr.mxu0 0.0
  %8720 = vmatpush1.xpose.msra.mxu0 0.0
  %8721 = vmatprep.subr.mxu0 0.0
  %8722 = vmatpush1.xpose.msra.mxu0 0.0
  %8723 = vmatprep.subr.mxu0 0.0
  %8724 = vmatpush1.xpose.msra.mxu0 0.0
  %8725 = vmatprep.subr.mxu0 0.0
  %8726 = vmatpush1.xpose.msra.mxu0 0.0
  %8727 = vmatprep.subr.mxu0 0.0
  %8728 = vmatpush1.xpose.msra.mxu0 0.0
  %8729 = vmatprep.subr.mxu0 0.0
  %8730 = vmatpush1.xpose.msra.mxu0 0.0
  %8731 = vmatprep.subr.mxu0 0.0
  %8732 = vmatpush1.xpose.msra.mxu0 0.0
  %8733 = vmatprep.subr.mxu0 0.0
  %8734 = vmatpush1.xpose.msra.mxu0 0.0
  %8735 = vmatprep.subr.mxu0 0.0
  %8736 = vmatpush1.xpose.msra.mxu0 0.0
  %8737 = vmatprep.subr.mxu0 0.0
  %8738 = vmatpush1.xpose.msra.mxu0 0.0
  %8739 = vmatprep.mubr.f32.mxu0 0.0
  %8740 = vmatmul.mubr.f32.gmra.mrb[0].mxu0 %v8671
  %v8741 = vpop.f32.mrb[0].mxu0
  %v8742 = vadd.f32 0.0, %v8741
  %v8743 = vpop.f32.mrb[0].mxu0
  %8744 = vdwg.mxu0
  %8746 = vrot.lane.b32.xlu0 %v8339, 80
  %v8747 = vpop.permute.xlu0 %8746
  %8748 = vrot.lane.b32.xlu0 %v8339, 16
  %v8749 = vpop.permute.xlu0 %8748
  %v8750 = vsel %vm27, %v8747, 0
  %v8752 = vsel %vm27, %v8749, 0
  %8754 = vmatprep.subr.mxu0 0.0
  %8755 = vmatpush1.xpose.msra.mxu0 %v8752
  %8756 = vmatprep.subr.mxu0 0.0
  %8757 = vmatpush1.xpose.msra.mxu0 0.0
  %8758 = vmatprep.subr.mxu0 0.0
  %8759 = vmatpush1.xpose.msra.mxu0 0.0
  %8760 = vmatprep.subr.mxu0 0.0
  %8761 = vmatpush1.xpose.msra.mxu0 0.0
  %8762 = vmatprep.subr.mxu0 0.0
  %8763 = vmatpush1.xpose.msra.mxu0 0.0
  %8764 = vmatprep.subr.mxu0 0.0
  %8765 = vmatpush1.xpose.msra.mxu0 0.0
  %8766 = vmatprep.subr.mxu0 0.0
  %8767 = vmatpush1.xpose.msra.mxu0 0.0
  %8768 = vmatprep.subr.mxu0 0.0
  %8769 = vmatpush1.xpose.msra.mxu0 0.0
  %8770 = vmatprep.subr.mxu0 0.0
  %8771 = vmatpush1.xpose.msra.mxu0 0.0
  %8772 = vmatprep.subr.mxu0 0.0
  %8773 = vmatpush1.xpose.msra.mxu0 0.0
  %8774 = vmatprep.subr.mxu0 0.0
  %8775 = vmatpush1.xpose.msra.mxu0 0.0
  %8776 = vmatprep.subr.mxu0 0.0
  %8777 = vmatpush1.xpose.msra.mxu0 0.0
  %8778 = vmatprep.subr.mxu0 0.0
  %8779 = vmatpush1.xpose.msra.mxu0 0.0
  %8780 = vmatprep.subr.mxu0 0.0
  %8781 = vmatpush1.xpose.msra.mxu0 0.0
  %8782 = vmatprep.subr.mxu0 0.0
  %8783 = vmatpush1.xpose.msra.mxu0 0.0
  %8784 = vmatprep.subr.mxu0 0.0
  %8785 = vmatpush1.xpose.msra.mxu0 0.0
  %8786 = vmatprep.subr.mxu0 0.0
  %8787 = vmatpush1.xpose.msra.mxu0 0.0
  %8788 = vmatprep.subr.mxu0 0.0
  %8789 = vmatpush1.xpose.msra.mxu0 0.0
  %8790 = vmatprep.subr.mxu0 0.0
  %8791 = vmatpush1.xpose.msra.mxu0 0.0
  %8792 = vmatprep.subr.mxu0 0.0
  %8793 = vmatpush1.xpose.msra.mxu0 0.0
  %8794 = vmatprep.subr.mxu0 0.0
  %8795 = vmatpush1.xpose.msra.mxu0 0.0
  %8796 = vmatprep.subr.mxu0 0.0
  %8797 = vmatpush1.xpose.msra.mxu0 0.0
  %8798 = vmatprep.subr.mxu0 0.0
  %8799 = vmatpush1.xpose.msra.mxu0 0.0
  %8800 = vmatprep.subr.mxu0 0.0
  %8801 = vmatpush1.xpose.msra.mxu0 0.0
  %8802 = vmatprep.subr.mxu0 0.0
  %8803 = vmatpush1.xpose.msra.mxu0 0.0
  %8804 = vmatprep.subr.mxu0 0.0
  %8805 = vmatpush1.xpose.msra.mxu0 0.0
  %8806 = vmatprep.subr.mxu0 0.0
  %8807 = vmatpush1.xpose.msra.mxu0 0.0
  %8808 = vmatprep.subr.mxu0 0.0
  %8809 = vmatpush1.xpose.msra.mxu0 0.0
  %8810 = vmatprep.subr.mxu0 0.0
  %8811 = vmatpush1.xpose.msra.mxu0 0.0
  %8812 = vmatprep.subr.mxu0 0.0
  %8813 = vmatpush1.xpose.msra.mxu0 0.0
  %8814 = vmatprep.subr.mxu0 0.0
  %8815 = vmatpush1.xpose.msra.mxu0 0.0
  %8816 = vmatprep.subr.mxu0 0.0
  %8817 = vmatpush1.xpose.msra.mxu0 0.0
  %8818 = vmatprep.mubr.f32.mxu0 0.0
  %8819 = vmatmul.mubr.f32.gmra.mrb[0].mxu0 %v8750
  %v8820 = vpop.f32.mrb[0].mxu0
  %v8821 = vadd.f32 0.0, %v8820
  %v8822 = vpop.f32.mrb[0].mxu0
  %8823 = vdwg.mxu0
  %8825 = vrot.lane.b32.xlu0 %v8340, 80
  %v8826 = vpop.permute.xlu0 %8825
  %8827 = vrot.lane.b32.xlu0 %v8340, 16
  %v8828 = vpop.permute.xlu0 %8827
  %v8829 = vsel %vm27, %v8826, 0
  %v8831 = vsel %vm27, %v8828, 0
  %8833 = vmatprep.subr.mxu0 0.0
  %8834 = vmatpush1.xpose.msra.mxu0 %v8831
  %8835 = vmatprep.subr.mxu0 0.0
  %8836 = vmatpush1.xpose.msra.mxu0 0.0
  %8837 = vmatprep.subr.mxu0 0.0
  %8838 = vmatpush1.xpose.msra.mxu0 0.0
  %8839 = vmatprep.subr.mxu0 0.0
  %8840 = vmatpush1.xpose.msra.mxu0 0.0
  %8841 = vmatprep.subr.mxu0 0.0
  %8842 = vmatpush1.xpose.msra.mxu0 0.0
  %8843 = vmatprep.subr.mxu0 0.0
  %8844 = vmatpush1.xpose.msra.mxu0 0.0
  %8845 = vmatprep.subr.mxu0 0.0
  %8846 = vmatpush1.xpose.msra.mxu0 0.0
  %8847 = vmatprep.subr.mxu0 0.0
  %8848 = vmatpush1.xpose.msra.mxu0 0.0
  %8849 = vmatprep.subr.mxu0 0.0
  %8850 = vmatpush1.xpose.msra.mxu0 0.0
  %8851 = vmatprep.subr.mxu0 0.0
  %8852 = vmatpush1.xpose.msra.mxu0 0.0
  %8853 = vmatprep.subr.mxu0 0.0
  %8854 = vmatpush1.xpose.msra.mxu0 0.0
  %8855 = vmatprep.subr.mxu0 0.0
  %8856 = vmatpush1.xpose.msra.mxu0 0.0
  %8857 = vmatprep.subr.mxu0 0.0
  %8858 = vmatpush1.xpose.msra.mxu0 0.0
  %8859 = vmatprep.subr.mxu0 0.0
  %8860 = vmatpush1.xpose.msra.mxu0 0.0
  %8861 = vmatprep.subr.mxu0 0.0
  %8862 = vmatpush1.xpose.msra.mxu0 0.0
  %8863 = vmatprep.subr.mxu0 0.0
  %8864 = vmatpush1.xpose.msra.mxu0 0.0
  %8865 = vmatprep.subr.mxu0 0.0
  %8866 = vmatpush1.xpose.msra.mxu0 0.0
  %8867 = vmatprep.subr.mxu0 0.0
  %8868 = vmatpush1.xpose.msra.mxu0 0.0
  %8869 = vmatprep.subr.mxu0 0.0
  %8870 = vmatpush1.xpose.msra.mxu0 0.0
  %8871 = vmatprep.subr.mxu0 0.0
  %8872 = vmatpush1.xpose.msra.mxu0 0.0
  %8873 = vmatprep.subr.mxu0 0.0
  %8874 = vmatpush1.xpose.msra.mxu0 0.0
  %8875 = vmatprep.subr.mxu0 0.0
  %8876 = vmatpush1.xpose.msra.mxu0 0.0
  %8877 = vmatprep.subr.mxu0 0.0
  %8878 = vmatpush1.xpose.msra.mxu0 0.0
  %8879 = vmatprep.subr.mxu0 0.0
  %8880 = vmatpush1.xpose.msra.mxu0 0.0
  %8881 = vmatprep.subr.mxu0 0.0
  %8882 = vmatpush1.xpose.msra.mxu0 0.0
  %8883 = vmatprep.subr.mxu0 0.0
  %8884 = vmatpush1.xpose.msra.mxu0 0.0
  %8885 = vmatprep.subr.mxu0 0.0
  %8886 = vmatpush1.xpose.msra.mxu0 0.0
  %8887 = vmatprep.subr.mxu0 0.0
  %8888 = vmatpush1.xpose.msra.mxu0 0.0
  %8889 = vmatprep.subr.mxu0 0.0
  %8890 = vmatpush1.xpose.msra.mxu0 0.0
  %8891 = vmatprep.subr.mxu0 0.0
  %8892 = vmatpush1.xpose.msra.mxu0 0.0
  %8893 = vmatprep.subr.mxu0 0.0
  %8894 = vmatpush1.xpose.msra.mxu0 0.0
  %8895 = vmatprep.subr.mxu0 0.0
  %8896 = vmatpush1.xpose.msra.mxu0 0.0
  %8897 = vmatprep.mubr.f32.mxu0 0.0
  %8898 = vmatmul.mubr.f32.gmra.mrb[0].mxu0 %v8829
  %v8899 = vpop.f32.mrb[0].mxu0
  %v8900 = vadd.f32 0.0, %v8899
  %v8901 = vpop.f32.mrb[0].mxu0
  %8902 = vdwg.mxu0
  %8904 = vrot.lane.b32.xlu0 %v8341, 80
  %v8905 = vpop.permute.xlu0 %8904
  %8906 = vrot.lane.b32.xlu0 %v8341, 16
  %v8907 = vpop.permute.xlu0 %8906
  %v8908 = vsel %vm27, %v8905, 0
  %v8910 = vsel %vm27, %v8907, 0
  %8912 = vmatprep.subr.mxu0 0.0
  %8913 = vmatpush1.xpose.msra.mxu0 %v8910
  %8914 = vmatprep.subr.mxu0 0.0
  %8915 = vmatpush1.xpose.msra.mxu0 0.0
  %8916 = vmatprep.subr.mxu0 0.0
  %8917 = vmatpush1.xpose.msra.mxu0 0.0
  %8918 = vmatprep.subr.mxu0 0.0
  %8919 = vmatpush1.xpose.msra.mxu0 0.0
  %8920 = vmatprep.subr.mxu0 0.0
  %8921 = vmatpush1.xpose.msra.mxu0 0.0
  %8922 = vmatprep.subr.mxu0 0.0
  %8923 = vmatpush1.xpose.msra.mxu0 0.0
  %8924 = vmatprep.subr.mxu0 0.0
  %8925 = vmatpush1.xpose.msra.mxu0 0.0
  %8926 = vmatprep.subr.mxu0 0.0
  %8927 = vmatpush1.xpose.msra.mxu0 0.0
  %8928 = vmatprep.subr.mxu0 0.0
  %8929 = vmatpush1.xpose.msra.mxu0 0.0
  %8930 = vmatprep.subr.mxu0 0.0
  %8931 = vmatpush1.xpose.msra.mxu0 0.0
  %8932 = vmatprep.subr.mxu0 0.0
  %8933 = vmatpush1.xpose.msra.mxu0 0.0
  %8934 = vmatprep.subr.mxu0 0.0
  %8935 = vmatpush1.xpose.msra.mxu0 0.0
  %8936 = vmatprep.subr.mxu0 0.0
  %8937 = vmatpush1.xpose.msra.mxu0 0.0
  %8938 = vmatprep.subr.mxu0 0.0
  %8939 = vmatpush1.xpose.msra.mxu0 0.0
  %8940 = vmatprep.subr.mxu0 0.0
  %8941 = vmatpush1.xpose.msra.mxu0 0.0
  %8942 = vmatprep.subr.mxu0 0.0
  %8943 = vmatpush1.xpose.msra.mxu0 0.0
  %8944 = vmatprep.subr.mxu0 0.0
  %8945 = vmatpush1.xpose.msra.mxu0 0.0
  %8946 = vmatprep.subr.mxu0 0.0
  %8947 = vmatpush1.xpose.msra.mxu0 0.0
  %8948 = vmatprep.subr.mxu0 0.0
  %8949 = vmatpush1.xpose.msra.mxu0 0.0
  %8950 = vmatprep.subr.mxu0 0.0
  %8951 = vmatpush1.xpose.msra.mxu0 0.0
  %8952 = vmatprep.subr.mxu0 0.0
  %8953 = vmatpush1.xpose.msra.mxu0 0.0
  %8954 = vmatprep.subr.mxu0 0.0
  %8955 = vmatpush1.xpose.msra.mxu0 0.0
  %8956 = vmatprep.subr.mxu0 0.0
  %8957 = vmatpush1.xpose.msra.mxu0 0.0
  %8958 = vmatprep.subr.mxu0 0.0
  %8959 = vmatpush1.xpose.msra.mxu0 0.0
  %8960 = vmatprep.subr.mxu0 0.0
  %8961 = vmatpush1.xpose.msra.mxu0 0.0
  %8962 = vmatprep.subr.mxu0 0.0
  %8963 = vmatpush1.xpose.msra.mxu0 0.0
  %8964 = vmatprep.subr.mxu0 0.0
  %8965 = vmatpush1.xpose.msra.mxu0 0.0
  %8966 = vmatprep.subr.mxu0 0.0
  %8967 = vmatpush1.xpose.msra.mxu0 0.0
  %8968 = vmatprep.subr.mxu0 0.0
  %8969 = vmatpush1.xpose.msra.mxu0 0.0
  %8970 = vmatprep.subr.mxu0 0.0
  %8971 = vmatpush1.xpose.msra.mxu0 0.0
  %8972 = vmatprep.subr.mxu0 0.0
  %8973 = vmatpush1.xpose.msra.mxu0 0.0
  %8974 = vmatprep.subr.mxu0 0.0
  %8975 = vmatpush1.xpose.msra.mxu0 0.0
  %8976 = vmatprep.mubr.f32.mxu0 0.0
  %8977 = vmatmul.mubr.f32.gmra.mrb[0].mxu0 %v8908
  %v8978 = vpop.f32.mrb[0].mxu0
  %v8979 = vadd.f32 0.0, %v8978
  %v8980 = vpop.f32.mrb[0].mxu0
  %8981 = vdwg.mxu0
  %v8982 = vmul.f32 %v8426, 0.35355338
  %v8983 = vmul.f32 %v8505, 0.35355338
  %v8984 = vmul.f32 %v8584, 0.35355338
  %v8985 = vmul.f32 %v8663, 0.35355338
  %v8986 = vmul.f32 %v8742, 0.35355338
  %v8987 = vmul.f32 %v8821, 0.35355338
  %v8988 = vmul.f32 %v8900, 0.35355338
  %v8989 = vmul.f32 %v8979, 0.35355338
  %v8990 = vsel %vm27, %v8982, -inf
  %8991 = vmax.xlane.f32.xlu0 %v8990
  %v8992 = vpop.xlane.xlu0 %8991
  %v8993 = vsel %vm27, %v8983, -inf
  %8994 = vmax.xlane.f32.xlu0 %v8993
  %v8995 = vpop.xlane.xlu0 %8994
  %v8996 = vsel %vm27, %v8984, -inf
  %8997 = vmax.xlane.f32.xlu0 %v8996
  %v8998 = vpop.xlane.xlu0 %8997
  %v8999 = vsel %vm27, %v8985, -inf
  %9000 = vmax.xlane.f32.xlu0 %v8999
  %v9001 = vpop.xlane.xlu0 %9000
  %v9002 = vsel %vm27, %v8986, -inf
  %9003 = vmax.xlane.f32.xlu0 %v9002
  %v9004 = vpop.xlane.xlu0 %9003
  %v9005 = vsel %vm27, %v8987, -inf
  %9006 = vmax.xlane.f32.xlu0 %v9005
  %v9007 = vpop.xlane.xlu0 %9006
  %v9008 = vsel %vm27, %v8988, -inf
  %9009 = vmax.xlane.f32.xlu0 %v9008
  %v9010 = vpop.xlane.xlu0 %9009
  %v9011 = vsel %vm27, %v8989, -inf
  %9012 = vmax.xlane.f32.xlu0 %v9011
  %v9013 = vpop.xlane.xlu0 %9012
  %v9014 = vsub.f32 %v8982, %v8992
  %v9015 = vsub.f32 %v8983, %v8995
  %v9016 = vsub.f32 %v8984, %v8998
  %v9017 = vsub.f32 %v8985, %v9001
  %v9018 = vsub.f32 %v8986, %v9004
  %v9019 = vsub.f32 %v8987, %v9007
  %v9020 = vsub.f32 %v8988, %v9010
  %v9021 = vsub.f32 %v8989, %v9013
  %v9022 = vmul.f32 %v9014, 1.442695
  %v9023 = vpow.pop %v9022
  %v9024 = vmul.f32 %v9015, 1.442695
  %v9025 = vpow.pop %v9024
  %v9026 = vmul.f32 %v9016, 1.442695
  %v9027 = vpow.pop %v9026
  %v9028 = vmul.f32 %v9017, 1.442695
  %v9029 = vpow.pop %v9028
  %v9030 = vmul.f32 %v9018, 1.442695
  %v9031 = vpow.pop %v9030
  %v9032 = vmul.f32 %v9019, 1.442695
  %v9033 = vpow.pop %v9032
  %v9034 = vmul.f32 %v9020, 1.442695
  %v9035 = vpow.pop %v9034
  %v9036 = vmul.f32 %v9021, 1.442695
  %v9037 = vpow.pop %v9036
  %v9038 = vsel %vm27, %v9023, 0.0
  %9039 = vadd.xlane.f32.xlu0 %v9038
  %v9040 = vpop.xlane.xlu0 %9039
  %v9041 = vsel %vm27, %v9025, 0.0
  %9042 = vadd.xlane.f32.xlu0 %v9041
  %v9043 = vpop.xlane.xlu0 %9042
  %v9044 = vsel %vm27, %v9027, 0.0
  %9045 = vadd.xlane.f32.xlu0 %v9044
  %v9046 = vpop.xlane.xlu0 %9045
  %v9047 = vsel %vm27, %v9029, 0.0
  %9048 = vadd.xlane.f32.xlu0 %v9047
  %v9049 = vpop.xlane.xlu0 %9048
  %v9050 = vsel %vm27, %v9031, 0.0
  %9051 = vadd.xlane.f32.xlu0 %v9050
  %v9052 = vpop.xlane.xlu0 %9051
  %v9053 = vsel %vm27, %v9033, 0.0
  %9054 = vadd.xlane.f32.xlu0 %v9053
  %v9055 = vpop.xlane.xlu0 %9054
  %v9056 = vsel %vm27, %v9035, 0.0
  %9057 = vadd.xlane.f32.xlu0 %v9056
  %v9058 = vpop.xlane.xlu0 %9057
  %v9059 = vsel %vm27, %v9037, 0.0
  %9060 = vadd.xlane.f32.xlu0 %v9059
  %v9061 = vpop.xlane.xlu0 %9060
  %9063 = vrot.lane.b32.xlu0 %v8342, 80
  %v9064 = vpop.permute.xlu0 %9063
  %v9067 = vsel %vm27, %v9023, 0
  %9069 = vmatprep.subr.mxu0 0.0
  %9070 = vmatpush1.msra.mxu0 %v9064
  %9071 = vmatprep.subr.mxu0 0.0
  %9072 = vmatpush1.msra.mxu0 0.0
  %9073 = vmatprep.subr.mxu0 0.0
  %9074 = vmatpush1.msra.mxu0 0.0
  %9075 = vmatprep.subr.mxu0 0.0
  %9076 = vmatpush1.msra.mxu0 0.0
  %9077 = vmatprep.subr.mxu0 0.0
  %9078 = vmatpush1.msra.mxu0 0.0
  %9079 = vmatprep.subr.mxu0 0.0
  %9080 = vmatpush1.msra.mxu0 0.0
  %9081 = vmatprep.subr.mxu0 0.0
  %9082 = vmatpush1.msra.mxu0 0.0
  %9083 = vmatprep.subr.mxu0 0.0
  %9084 = vmatpush1.msra.mxu0 0.0
  %9085 = vmatprep.subr.mxu0 0.0
  %9086 = vmatpush1.msra.mxu0 0.0
  %9087 = vmatprep.subr.mxu0 0.0
  %9088 = vmatpush1.msra.mxu0 0.0
  %9089 = vmatprep.subr.mxu0 0.0
  %9090 = vmatpush1.msra.mxu0 0.0
  %9091 = vmatprep.subr.mxu0 0.0
  %9092 = vmatpush1.msra.mxu0 0.0
  %9093 = vmatprep.subr.mxu0 0.0
  %9094 = vmatpush1.msra.mxu0 0.0
  %9095 = vmatprep.subr.mxu0 0.0
  %9096 = vmatpush1.msra.mxu0 0.0
  %9097 = vmatprep.subr.mxu0 0.0
  %9098 = vmatpush1.msra.mxu0 0.0
  %9099 = vmatprep.subr.mxu0 0.0
  %9100 = vmatpush1.msra.mxu0 0.0
  %9101 = vmatprep.subr.mxu0 0.0
  %9102 = vmatpush1.msra.mxu0 0.0
  %9103 = vmatprep.subr.mxu0 0.0
  %9104 = vmatpush1.msra.mxu0 0.0
  %9105 = vmatprep.subr.mxu0 0.0
  %9106 = vmatpush1.msra.mxu0 0.0
  %9107 = vmatprep.subr.mxu0 0.0
  %9108 = vmatpush1.msra.mxu0 0.0
  %9109 = vmatprep.subr.mxu0 0.0
  %9110 = vmatpush1.msra.mxu0 0.0
  %9111 = vmatprep.subr.mxu0 0.0
  %9112 = vmatpush1.msra.mxu0 0.0
  %9113 = vmatprep.subr.mxu0 0.0
  %9114 = vmatpush1.msra.mxu0 0.0
  %9115 = vmatprep.subr.mxu0 0.0
  %9116 = vmatpush1.msra.mxu0 0.0
  %9117 = vmatprep.subr.mxu0 0.0
  %9118 = vmatpush1.msra.mxu0 0.0
  %9119 = vmatprep.subr.mxu0 0.0
  %9120 = vmatpush1.msra.mxu0 0.0
  %9121 = vmatprep.subr.mxu0 0.0
  %9122 = vmatpush1.msra.mxu0 0.0
  %9123 = vmatprep.subr.mxu0 0.0
  %9124 = vmatpush1.msra.mxu0 0.0
  %9125 = vmatprep.subr.mxu0 0.0
  %9126 = vmatpush1.msra.mxu0 0.0
  %9127 = vmatprep.subr.mxu0 0.0
  %9128 = vmatpush1.msra.mxu0 0.0
  %9129 = vmatprep.subr.mxu0 0.0
  %9130 = vmatpush1.msra.mxu0 0.0
  %9131 = vmatprep.subr.mxu0 0.0
  %9132 = vmatpush1.msra.mxu0 0.0
  %9133 = vmatprep.mubr.f32.mxu0 0.0
  %9134 = vmatmul.mubr.f32.gmra.mrb[0].mxu0 %v9067
  %v9135 = vpop.f32.mrb[0].mxu0
  %v9136 = vadd.f32 0.0, %v9135
  %v9137 = vpop.f32.mrb[0].mxu0
  %9138 = vdwg.mxu0
  %9140 = vrot.lane.b32.xlu0 %v8343, 80
  %v9141 = vpop.permute.xlu0 %9140
  %v9144 = vsel %vm27, %v9025, 0
  %9146 = vmatprep.subr.mxu0 0.0
  %9147 = vmatpush1.msra.mxu0 %v9141
  %9148 = vmatprep.subr.mxu0 0.0
  %9149 = vmatpush1.msra.mxu0 0.0
  %9150 = vmatprep.subr.mxu0 0.0
  %9151 = vmatpush1.msra.mxu0 0.0
  %9152 = vmatprep.subr.mxu0 0.0
  %9153 = vmatpush1.msra.mxu0 0.0
  %9154 = vmatprep.subr.mxu0 0.0
  %9155 = vmatpush1.msra.mxu0 0.0
  %9156 = vmatprep.subr.mxu0 0.0
  %9157 = vmatpush1.msra.mxu0 0.0
  %9158 = vmatprep.subr.mxu0 0.0
  %9159 = vmatpush1.msra.mxu0 0.0
  %9160 = vmatprep.subr.mxu0 0.0
  %9161 = vmatpush1.msra.mxu0 0.0
  %9162 = vmatprep.subr.mxu0 0.0
  %9163 = vmatpush1.msra.mxu0 0.0
  %9164 = vmatprep.subr.mxu0 0.0
  %9165 = vmatpush1.msra.mxu0 0.0
  %9166 = vmatprep.subr.mxu0 0.0
  %9167 = vmatpush1.msra.mxu0 0.0
  %9168 = vmatprep.subr.mxu0 0.0
  %9169 = vmatpush1.msra.mxu0 0.0
  %9170 = vmatprep.subr.mxu0 0.0
  %9171 = vmatpush1.msra.mxu0 0.0
  %9172 = vmatprep.subr.mxu0 0.0
  %9173 = vmatpush1.msra.mxu0 0.0
  %9174 = vmatprep.subr.mxu0 0.0
  %9175 = vmatpush1.msra.mxu0 0.0
  %9176 = vmatprep.subr.mxu0 0.0
  %9177 = vmatpush1.msra.mxu0 0.0
  %9178 = vmatprep.subr.mxu0 0.0
  %9179 = vmatpush1.msra.mxu0 0.0
  %9180 = vmatprep.subr.mxu0 0.0
  %9181 = vmatpush1.msra.mxu0 0.0
  %9182 = vmatprep.subr.mxu0 0.0
  %9183 = vmatpush1.msra.mxu0 0.0
  %9184 = vmatprep.subr.mxu0 0.0
  %9185 = vmatpush1.msra.mxu0 0.0
  %9186 = vmatprep.subr.mxu0 0.0
  %9187 = vmatpush1.msra.mxu0 0.0
  %9188 = vmatprep.subr.mxu0 0.0
  %9189 = vmatpush1.msra.mxu0 0.0
  %9190 = vmatprep.subr.mxu0 0.0
  %9191 = vmatpush1.msra.mxu0 0.0
  %9192 = vmatprep.subr.mxu0 0.0
  %9193 = vmatpush1.msra.mxu0 0.0
  %9194 = vmatprep.subr.mxu0 0.0
  %9195 = vmatpush1.msra.mxu0 0.0
  %9196 = vmatprep.subr.mxu0 0.0
  %9197 = vmatpush1.msra.mxu0 0.0
  %9198 = vmatprep.subr.mxu0 0.0
  %9199 = vmatpush1.msra.mxu0 0.0
  %9200 = vmatprep.subr.mxu0 0.0
  %9201 = vmatpush1.msra.mxu0 0.0
  %9202 = vmatprep.subr.mxu0 0.0
  %9203 = vmatpush1.msra.mxu0 0.0
  %9204 = vmatprep.subr.mxu0 0.0
  %9205 = vmatpush1.msra.mxu0 0.0
  %9206 = vmatprep.subr.mxu0 0.0
  %9207 = vmatpush1.msra.mxu0 0.0
  %9208 = vmatprep.subr.mxu0 0.0
  %9209 = vmatpush1.msra.mxu0 0.0
  %9210 = vmatprep.mubr.f32.mxu0 0.0
  %9211 = vmatmul.mubr.f32.gmra.mrb[0].mxu0 %v9144
  %v9212 = vpop.f32.mrb[0].mxu0
  %v9213 = vadd.f32 0.0, %v9212
  %v9214 = vpop.f32.mrb[0].mxu0
  %9215 = vdwg.mxu0
  %9217 = vrot.lane.b32.xlu0 %v8344, 80
  %v9218 = vpop.permute.xlu0 %9217
  %v9221 = vsel %vm27, %v9027, 0
  %9223 = vmatprep.subr.mxu0 0.0
  %9224 = vmatpush1.msra.mxu0 %v9218
  %9225 = vmatprep.subr.mxu0 0.0
  %9226 = vmatpush1.msra.mxu0 0.0
  %9227 = vmatprep.subr.mxu0 0.0
  %9228 = vmatpush1.msra.mxu0 0.0
  %9229 = vmatprep.subr.mxu0 0.0
  %9230 = vmatpush1.msra.mxu0 0.0
  %9231 = vmatprep.subr.mxu0 0.0
  %9232 = vmatpush1.msra.mxu0 0.0
  %9233 = vmatprep.subr.mxu0 0.0
  %9234 = vmatpush1.msra.mxu0 0.0
  %9235 = vmatprep.subr.mxu0 0.0
  %9236 = vmatpush1.msra.mxu0 0.0
  %9237 = vmatprep.subr.mxu0 0.0
  %9238 = vmatpush1.msra.mxu0 0.0
  %9239 = vmatprep.subr.mxu0 0.0
  %9240 = vmatpush1.msra.mxu0 0.0
  %9241 = vmatprep.subr.mxu0 0.0
  %9242 = vmatpush1.msra.mxu0 0.0
  %9243 = vmatprep.subr.mxu0 0.0
  %9244 = vmatpush1.msra.mxu0 0.0
  %9245 = vmatprep.subr.mxu0 0.0
  %9246 = vmatpush1.msra.mxu0 0.0
  %9247 = vmatprep.subr.mxu0 0.0
  %9248 = vmatpush1.msra.mxu0 0.0
  %9249 = vmatprep.subr.mxu0 0.0
  %9250 = vmatpush1.msra.mxu0 0.0
  %9251 = vmatprep.subr.mxu0 0.0
  %9252 = vmatpush1.msra.mxu0 0.0
  %9253 = vmatprep.subr.mxu0 0.0
  %9254 = vmatpush1.msra.mxu0 0.0
  %9255 = vmatprep.subr.mxu0 0.0
  %9256 = vmatpush1.msra.mxu0 0.0
  %9257 = vmatprep.subr.mxu0 0.0
  %9258 = vmatpush1.msra.mxu0 0.0
  %9259 = vmatprep.subr.mxu0 0.0
  %9260 = vmatpush1.msra.mxu0 0.0
  %9261 = vmatprep.subr.mxu0 0.0
  %9262 = vmatpush1.msra.mxu0 0.0
  %9263 = vmatprep.subr.mxu0 0.0
  %9264 = vmatpush1.msra.mxu0 0.0
  %9265 = vmatprep.subr.mxu0 0.0
  %9266 = vmatpush1.msra.mxu0 0.0
  %9267 = vmatprep.subr.mxu0 0.0
  %9268 = vmatpush1.msra.mxu0 0.0
  %9269 = vmatprep.subr.mxu0 0.0
  %9270 = vmatpush1.msra.mxu0 0.0
  %9271 = vmatprep.subr.mxu0 0.0
  %9272 = vmatpush1.msra.mxu0 0.0
  %9273 = vmatprep.subr.mxu0 0.0
  %9274 = vmatpush1.msra.mxu0 0.0
  %9275 = vmatprep.subr.mxu0 0.0
  %9276 = vmatpush1.msra.mxu0 0.0
  %9277 = vmatprep.subr.mxu0 0.0
  %9278 = vmatpush1.msra.mxu0 0.0
  %9279 = vmatprep.subr.mxu0 0.0
  %9280 = vmatpush1.msra.mxu0 0.0
  %9281 = vmatprep.subr.mxu0 0.0
  %9282 = vmatpush1.msra.mxu0 0.0
  %9283 = vmatprep.subr.mxu0 0.0
  %9284 = vmatpush1.msra.mxu0 0.0
  %9285 = vmatprep.subr.mxu0 0.0
  %9286 = vmatpush1.msra.mxu0 0.0
  %9287 = vmatprep.mubr.f32.mxu0 0.0
  %9288 = vmatmul.mubr.f32.gmra.mrb[0].mxu0 %v9221
  %v9289 = vpop.f32.mrb[0].mxu0
  %v9290 = vadd.f32 0.0, %v9289
  %v9291 = vpop.f32.mrb[0].mxu0
  %9292 = vdwg.mxu0
  %9294 = vrot.lane.b32.xlu0 %v8345, 80
  %v9295 = vpop.permute.xlu0 %9294
  %v9298 = vsel %vm27, %v9029, 0
  %9300 = vmatprep.subr.mxu0 0.0
  %9301 = vmatpush1.msra.mxu0 %v9295
  %9302 = vmatprep.subr.mxu0 0.0
  %9303 = vmatpush1.msra.mxu0 0.0
  %9304 = vmatprep.subr.mxu0 0.0
  %9305 = vmatpush1.msra.mxu0 0.0
  %9306 = vmatprep.subr.mxu0 0.0
  %9307 = vmatpush1.msra.mxu0 0.0
  %9308 = vmatprep.subr.mxu0 0.0
  %9309 = vmatpush1.msra.mxu0 0.0
  %9310 = vmatprep.subr.mxu0 0.0
  %9311 = vmatpush1.msra.mxu0 0.0
  %9312 = vmatprep.subr.mxu0 0.0
  %9313 = vmatpush1.msra.mxu0 0.0
  %9314 = vmatprep.subr.mxu0 0.0
  %9315 = vmatpush1.msra.mxu0 0.0
  %9316 = vmatprep.subr.mxu0 0.0
  %9317 = vmatpush1.msra.mxu0 0.0
  %9318 = vmatprep.subr.mxu0 0.0
  %9319 = vmatpush1.msra.mxu0 0.0
  %9320 = vmatprep.subr.mxu0 0.0
  %9321 = vmatpush1.msra.mxu0 0.0
  %9322 = vmatprep.subr.mxu0 0.0
  %9323 = vmatpush1.msra.mxu0 0.0
  %9324 = vmatprep.subr.mxu0 0.0
  %9325 = vmatpush1.msra.mxu0 0.0
  %9326 = vmatprep.subr.mxu0 0.0
  %9327 = vmatpush1.msra.mxu0 0.0
  %9328 = vmatprep.subr.mxu0 0.0
  %9329 = vmatpush1.msra.mxu0 0.0
  %9330 = vmatprep.subr.mxu0 0.0
  %9331 = vmatpush1.msra.mxu0 0.0
  %9332 = vmatprep.subr.mxu0 0.0
  %9333 = vmatpush1.msra.mxu0 0.0
  %9334 = vmatprep.subr.mxu0 0.0
  %9335 = vmatpush1.msra.mxu0 0.0
  %9336 = vmatprep.subr.mxu0 0.0
  %9337 = vmatpush1.msra.mxu0 0.0
  %9338 = vmatprep.subr.mxu0 0.0
  %9339 = vmatpush1.msra.mxu0 0.0
  %9340 = vmatprep.subr.mxu0 0.0
  %9341 = vmatpush1.msra.mxu0 0.0
  %9342 = vmatprep.subr.mxu0 0.0
  %9343 = vmatpush1.msra.mxu0 0.0
  %9344 = vmatprep.subr.mxu0 0.0
  %9345 = vmatpush1.msra.mxu0 0.0
  %9346 = vmatprep.subr.mxu0 0.0
  %9347 = vmatpush1.msra.mxu0 0.0
  %9348 = vmatprep.subr.mxu0 0.0
  %9349 = vmatpush1.msra.mxu0 0.0
  %9350 = vmatprep.subr.mxu0 0.0
  %9351 = vmatpush1.msra.mxu0 0.0
  %9352 = vmatprep.subr.mxu0 0.0
  %9353 = vmatpush1.msra.mxu0 0.0
  %9354 = vmatprep.subr.mxu0 0.0
  %9355 = vmatpush1.msra.mxu0 0.0
  %9356 = vmatprep.subr.mxu0 0.0
  %9357 = vmatpush1.msra.mxu0 0.0
  %9358 = vmatprep.subr.mxu0 0.0
  %9359 = vmatpush1.msra.mxu0 0.0
  %9360 = vmatprep.subr.mxu0 0.0
  %9361 = vmatpush1.msra.mxu0 0.0
  %9362 = vmatprep.subr.mxu0 0.0
  %9363 = vmatpush1.msra.mxu0 0.0
  %9364 = vmatprep.mubr.f32.mxu0 0.0
  %9365 = vmatmul.mubr.f32.gmra.mrb[0].mxu0 %v9298
  %v9366 = vpop.f32.mrb[0].mxu0
  %v9367 = vadd.f32 0.0, %v9366
  %v9368 = vpop.f32.mrb[0].mxu0
  %9369 = vdwg.mxu0
  %9371 = vrot.lane.b32.xlu0 %v8346, 80
  %v9372 = vpop.permute.xlu0 %9371
  %v9375 = vsel %vm27, %v9031, 0
  %9377 = vmatprep.subr.mxu0 0.0
  %9378 = vmatpush1.msra.mxu0 %v9372
  %9379 = vmatprep.subr.mxu0 0.0
  %9380 = vmatpush1.msra.mxu0 0.0
  %9381 = vmatprep.subr.mxu0 0.0
  %9382 = vmatpush1.msra.mxu0 0.0
  %9383 = vmatprep.subr.mxu0 0.0
  %9384 = vmatpush1.msra.mxu0 0.0
  %9385 = vmatprep.subr.mxu0 0.0
  %9386 = vmatpush1.msra.mxu0 0.0
  %9387 = vmatprep.subr.mxu0 0.0
  %9388 = vmatpush1.msra.mxu0 0.0
  %9389 = vmatprep.subr.mxu0 0.0
  %9390 = vmatpush1.msra.mxu0 0.0
  %9391 = vmatprep.subr.mxu0 0.0
  %9392 = vmatpush1.msra.mxu0 0.0
  %9393 = vmatprep.subr.mxu0 0.0
  %9394 = vmatpush1.msra.mxu0 0.0
  %9395 = vmatprep.subr.mxu0 0.0
  %9396 = vmatpush1.msra.mxu0 0.0
  %9397 = vmatprep.subr.mxu0 0.0
  %9398 = vmatpush1.msra.mxu0 0.0
  %9399 = vmatprep.subr.mxu0 0.0
  %9400 = vmatpush1.msra.mxu0 0.0
  %9401 = vmatprep.subr.mxu0 0.0
  %9402 = vmatpush1.msra.mxu0 0.0
  %9403 = vmatprep.subr.mxu0 0.0
  %9404 = vmatpush1.msra.mxu0 0.0
  %9405 = vmatprep.subr.mxu0 0.0
  %9406 = vmatpush1.msra.mxu0 0.0
  %9407 = vmatprep.subr.mxu0 0.0
  %9408 = vmatpush1.msra.mxu0 0.0
  %9409 = vmatprep.subr.mxu0 0.0
  %9410 = vmatpush1.msra.mxu0 0.0
  %9411 = vmatprep.subr.mxu0 0.0
  %9412 = vmatpush1.msra.mxu0 0.0
  %9413 = vmatprep.subr.mxu0 0.0
  %9414 = vmatpush1.msra.mxu0 0.0
  %9415 = vmatprep.subr.mxu0 0.0
  %9416 = vmatpush1.msra.mxu0 0.0
  %9417 = vmatprep.subr.mxu0 0.0
  %9418 = vmatpush1.msra.mxu0 0.0
  %9419 = vmatprep.subr.mxu0 0.0
  %9420 = vmatpush1.msra.mxu0 0.0
  %9421 = vmatprep.subr.mxu0 0.0
  %9422 = vmatpush1.msra.mxu0 0.0
  %9423 = vmatprep.subr.mxu0 0.0
  %9424 = vmatpush1.msra.mxu0 0.0
  %9425 = vmatprep.subr.mxu0 0.0
  %9426 = vmatpush1.msra.mxu0 0.0
  %9427 = vmatprep.subr.mxu0 0.0
  %9428 = vmatpush1.msra.mxu0 0.0
  %9429 = vmatprep.subr.mxu0 0.0
  %9430 = vmatpush1.msra.mxu0 0.0
  %9431 = vmatprep.subr.mxu0 0.0
  %9432 = vmatpush1.msra.mxu0 0.0
  %9433 = vmatprep.subr.mxu0 0.0
  %9434 = vmatpush1.msra.mxu0 0.0
  %9435 = vmatprep.subr.mxu0 0.0
  %9436 = vmatpush1.msra.mxu0 0.0
  %9437 = vmatprep.subr.mxu0 0.0
  %9438 = vmatpush1.msra.mxu0 0.0
  %9439 = vmatprep.subr.mxu0 0.0
  %9440 = vmatpush1.msra.mxu0 0.0
  %9441 = vmatprep.mubr.f32.mxu0 0.0
  %9442 = vmatmul.mubr.f32.gmra.mrb[0].mxu0 %v9375
  %v9443 = vpop.f32.mrb[0].mxu0
  %v9444 = vadd.f32 0.0, %v9443
  %v9445 = vpop.f32.mrb[0].mxu0
  %9446 = vdwg.mxu0
  %9448 = vrot.lane.b32.xlu0 %v8347, 80
  %v9449 = vpop.permute.xlu0 %9448
  %v9452 = vsel %vm27, %v9033, 0
  %9454 = vmatprep.subr.mxu0 0.0
  %9455 = vmatpush1.msra.mxu0 %v9449
  %9456 = vmatprep.subr.mxu0 0.0
  %9457 = vmatpush1.msra.mxu0 0.0
  %9458 = vmatprep.subr.mxu0 0.0
  %9459 = vmatpush1.msra.mxu0 0.0
  %9460 = vmatprep.subr.mxu0 0.0
  %9461 = vmatpush1.msra.mxu0 0.0
  %9462 = vmatprep.subr.mxu0 0.0
  %9463 = vmatpush1.msra.mxu0 0.0
  %9464 = vmatprep.subr.mxu0 0.0
  %9465 = vmatpush1.msra.mxu0 0.0
  %9466 = vmatprep.subr.mxu0 0.0
  %9467 = vmatpush1.msra.mxu0 0.0
  %9468 = vmatprep.subr.mxu0 0.0
  %9469 = vmatpush1.msra.mxu0 0.0
  %9470 = vmatprep.subr.mxu0 0.0
  %9471 = vmatpush1.msra.mxu0 0.0
  %9472 = vmatprep.subr.mxu0 0.0
  %9473 = vmatpush1.msra.mxu0 0.0
  %9474 = vmatprep.subr.mxu0 0.0
  %9475 = vmatpush1.msra.mxu0 0.0
  %9476 = vmatprep.subr.mxu0 0.0
  %9477 = vmatpush1.msra.mxu0 0.0
  %9478 = vmatprep.subr.mxu0 0.0
  %9479 = vmatpush1.msra.mxu0 0.0
  %9480 = vmatprep.subr.mxu0 0.0
  %9481 = vmatpush1.msra.mxu0 0.0
  %9482 = vmatprep.subr.mxu0 0.0
  %9483 = vmatpush1.msra.mxu0 0.0
  %9484 = vmatprep.subr.mxu0 0.0
  %9485 = vmatpush1.msra.mxu0 0.0
  %9486 = vmatprep.subr.mxu0 0.0
  %9487 = vmatpush1.msra.mxu0 0.0
  %9488 = vmatprep.subr.mxu0 0.0
  %9489 = vmatpush1.msra.mxu0 0.0
  %9490 = vmatprep.subr.mxu0 0.0
  %9491 = vmatpush1.msra.mxu0 0.0
  %9492 = vmatprep.subr.mxu0 0.0
  %9493 = vmatpush1.msra.mxu0 0.0
  %9494 = vmatprep.subr.mxu0 0.0
  %9495 = vmatpush1.msra.mxu0 0.0
  %9496 = vmatprep.subr.mxu0 0.0
  %9497 = vmatpush1.msra.mxu0 0.0
  %9498 = vmatprep.subr.mxu0 0.0
  %9499 = vmatpush1.msra.mxu0 0.0
  %9500 = vmatprep.subr.mxu0 0.0
  %9501 = vmatpush1.msra.mxu0 0.0
  %9502 = vmatprep.subr.mxu0 0.0
  %9503 = vmatpush1.msra.mxu0 0.0
  %9504 = vmatprep.subr.mxu0 0.0
  %9505 = vmatpush1.msra.mxu0 0.0
  %9506 = vmatprep.subr.mxu0 0.0
  %9507 = vmatpush1.msra.mxu0 0.0
  %9508 = vmatprep.subr.mxu0 0.0
  %9509 = vmatpush1.msra.mxu0 0.0
  %9510 = vmatprep.subr.mxu0 0.0
  %9511 = vmatpush1.msra.mxu0 0.0
  %9512 = vmatprep.subr.mxu0 0.0
  %9513 = vmatpush1.msra.mxu0 0.0
  %9514 = vmatprep.subr.mxu0 0.0
  %9515 = vmatpush1.msra.mxu0 0.0
  %9516 = vmatprep.subr.mxu0 0.0
  %9517 = vmatpush1.msra.mxu0 0.0
  %9518 = vmatprep.mubr.f32.mxu0 0.0
  %9519 = vmatmul.mubr.f32.gmra.mrb[0].mxu0 %v9452
  %v9520 = vpop.f32.mrb[0].mxu0
  %v9521 = vadd.f32 0.0, %v9520
  %v9522 = vpop.f32.mrb[0].mxu0
  %9523 = vdwg.mxu0
  %9525 = vrot.lane.b32.xlu0 %v8348, 80
  %v9526 = vpop.permute.xlu0 %9525
  %v9529 = vsel %vm27, %v9035, 0
  %9531 = vmatprep.subr.mxu0 0.0
  %9532 = vmatpush1.msra.mxu0 %v9526
  %9533 = vmatprep.subr.mxu0 0.0
  %9534 = vmatpush1.msra.mxu0 0.0
  %9535 = vmatprep.subr.mxu0 0.0
  %9536 = vmatpush1.msra.mxu0 0.0
  %9537 = vmatprep.subr.mxu0 0.0
  %9538 = vmatpush1.msra.mxu0 0.0
  %9539 = vmatprep.subr.mxu0 0.0
  %9540 = vmatpush1.msra.mxu0 0.0
  %9541 = vmatprep.subr.mxu0 0.0
  %9542 = vmatpush1.msra.mxu0 0.0
  %9543 = vmatprep.subr.mxu0 0.0
  %9544 = vmatpush1.msra.mxu0 0.0
  %9545 = vmatprep.subr.mxu0 0.0
  %9546 = vmatpush1.msra.mxu0 0.0
  %9547 = vmatprep.subr.mxu0 0.0
  %9548 = vmatpush1.msra.mxu0 0.0
  %9549 = vmatprep.subr.mxu0 0.0
  %9550 = vmatpush1.msra.mxu0 0.0
  %9551 = vmatprep.subr.mxu0 0.0
  %9552 = vmatpush1.msra.mxu0 0.0
  %9553 = vmatprep.subr.mxu0 0.0
  %9554 = vmatpush1.msra.mxu0 0.0
  %9555 = vmatprep.subr.mxu0 0.0
  %9556 = vmatpush1.msra.mxu0 0.0
  %9557 = vmatprep.subr.mxu0 0.0
  %9558 = vmatpush1.msra.mxu0 0.0
  %9559 = vmatprep.subr.mxu0 0.0
  %9560 = vmatpush1.msra.mxu0 0.0
  %9561 = vmatprep.subr.mxu0 0.0
  %9562 = vmatpush1.msra.mxu0 0.0
  %9563 = vmatprep.subr.mxu0 0.0
  %9564 = vmatpush1.msra.mxu0 0.0
  %9565 = vmatprep.subr.mxu0 0.0
  %9566 = vmatpush1.msra.mxu0 0.0
  %9567 = vmatprep.subr.mxu0 0.0
  %9568 = vmatpush1.msra.mxu0 0.0
  %9569 = vmatprep.subr.mxu0 0.0
  %9570 = vmatpush1.msra.mxu0 0.0
  %9571 = vmatprep.subr.mxu0 0.0
  %9572 = vmatpush1.msra.mxu0 0.0
  %9573 = vmatprep.subr.mxu0 0.0
  %9574 = vmatpush1.msra.mxu0 0.0
  %9575 = vmatprep.subr.mxu0 0.0
  %9576 = vmatpush1.msra.mxu0 0.0
  %9577 = vmatprep.subr.mxu0 0.0
  %9578 = vmatpush1.msra.mxu0 0.0
  %9579 = vmatprep.subr.mxu0 0.0
  %9580 = vmatpush1.msra.mxu0 0.0
  %9581 = vmatprep.subr.mxu0 0.0
  %9582 = vmatpush1.msra.mxu0 0.0
  %9583 = vmatprep.subr.mxu0 0.0
  %9584 = vmatpush1.msra.mxu0 0.0
  %9585 = vmatprep.subr.mxu0 0.0
  %9586 = vmatpush1.msra.mxu0 0.0
  %9587 = vmatprep.subr.mxu0 0.0
  %9588 = vmatpush1.msra.mxu0 0.0
  %9589 = vmatprep.subr.mxu0 0.0
  %9590 = vmatpush1.msra.mxu0 0.0
  %9591 = vmatprep.subr.mxu0 0.0
  %9592 = vmatpush1.msra.mxu0 0.0
  %9593 = vmatprep.subr.mxu0 0.0
  %9594 = vmatpush1.msra.mxu0 0.0
  %9595 = vmatprep.mubr.f32.mxu0 0.0
  %9596 = vmatmul.mubr.f32.gmra.mrb[0].mxu0 %v9529
  %v9597 = vpop.f32.mrb[0].mxu0
  %v9598 = vadd.f32 0.0, %v9597
  %v9599 = vpop.f32.mrb[0].mxu0
  %9600 = vdwg.mxu0
  %9602 = vrot.lane.b32.xlu0 %v8349, 80
  %v9603 = vpop.permute.xlu0 %9602
  %v9606 = vsel %vm27, %v9037, 0
  %9608 = vmatprep.subr.mxu0 0.0
  %9609 = vmatpush1.msra.mxu0 %v9603
  %9610 = vmatprep.subr.mxu0 0.0
  %9611 = vmatpush1.msra.mxu0 0.0
  %9612 = vmatprep.subr.mxu0 0.0
  %9613 = vmatpush1.msra.mxu0 0.0
  %9614 = vmatprep.subr.mxu0 0.0
  %9615 = vmatpush1.msra.mxu0 0.0
  %9616 = vmatprep.subr.mxu0 0.0
  %9617 = vmatpush1.msra.mxu0 0.0
  %9618 = vmatprep.subr.mxu0 0.0
  %9619 = vmatpush1.msra.mxu0 0.0
  %9620 = vmatprep.subr.mxu0 0.0
  %9621 = vmatpush1.msra.mxu0 0.0
  %9622 = vmatprep.subr.mxu0 0.0
  %9623 = vmatpush1.msra.mxu0 0.0
  %9624 = vmatprep.subr.mxu0 0.0
  %9625 = vmatpush1.msra.mxu0 0.0
  %9626 = vmatprep.subr.mxu0 0.0
  %9627 = vmatpush1.msra.mxu0 0.0
  %9628 = vmatprep.subr.mxu0 0.0
  %9629 = vmatpush1.msra.mxu0 0.0
  %9630 = vmatprep.subr.mxu0 0.0
  %9631 = vmatpush1.msra.mxu0 0.0
  %9632 = vmatprep.subr.mxu0 0.0
  %9633 = vmatpush1.msra.mxu0 0.0
  %9634 = vmatprep.subr.mxu0 0.0
  %9635 = vmatpush1.msra.mxu0 0.0
  %9636 = vmatprep.subr.mxu0 0.0
  %9637 = vmatpush1.msra.mxu0 0.0
  %9638 = vmatprep.subr.mxu0 0.0
  %9639 = vmatpush1.msra.mxu0 0.0
  %9640 = vmatprep.subr.mxu0 0.0
  %9641 = vmatpush1.msra.mxu0 0.0
  %9642 = vmatprep.subr.mxu0 0.0
  %9643 = vmatpush1.msra.mxu0 0.0
  %9644 = vmatprep.subr.mxu0 0.0
  %9645 = vmatpush1.msra.mxu0 0.0
  %9646 = vmatprep.subr.mxu0 0.0
  %9647 = vmatpush1.msra.mxu0 0.0
  %9648 = vmatprep.subr.mxu0 0.0
  %9649 = vmatpush1.msra.mxu0 0.0
  %9650 = vmatprep.subr.mxu0 0.0
  %9651 = vmatpush1.msra.mxu0 0.0
  %9652 = vmatprep.subr.mxu0 0.0
  %9653 = vmatpush1.msra.mxu0 0.0
  %9654 = vmatprep.subr.mxu0 0.0
  %9655 = vmatpush1.msra.mxu0 0.0
  %9656 = vmatprep.subr.mxu0 0.0
  %9657 = vmatpush1.msra.mxu0 0.0
  %9658 = vmatprep.subr.mxu0 0.0
  %9659 = vmatpush1.msra.mxu0 0.0
  %9660 = vmatprep.subr.mxu0 0.0
  %9661 = vmatpush1.msra.mxu0 0.0
  %9662 = vmatprep.subr.mxu0 0.0
  %9663 = vmatpush1.msra.mxu0 0.0
  %9664 = vmatprep.subr.mxu0 0.0
  %9665 = vmatpush1.msra.mxu0 0.0
  %9666 = vmatprep.subr.mxu0 0.0
  %9667 = vmatpush1.msra.mxu0 0.0
  %9668 = vmatprep.subr.mxu0 0.0
  %9669 = vmatpush1.msra.mxu0 0.0
  %9670 = vmatprep.subr.mxu0 0.0
  %9671 = vmatpush1.msra.mxu0 0.0
  %9672 = vmatprep.mubr.f32.mxu0 0.0
  %9673 = vmatmul.mubr.f32.gmra.mrb[0].mxu0 %v9606
  %v9674 = vpop.f32.mrb[0].mxu0
  %v9675 = vadd.f32 0.0, %v9674
  %v9676 = vpop.f32.mrb[0].mxu0
  %9677 = vdwg.mxu0
  %v9678 = vrcp.pop %v9040
  %v9679 = vrcp.pop %v9043
  %v9680 = vrcp.pop %v9046
  %v9681 = vrcp.pop %v9049
  %v9682 = vrcp.pop %v9052
  %v9683 = vrcp.pop %v9055
  %v9684 = vrcp.pop %v9058
  %v9685 = vrcp.pop %v9061
  %v9686 = vmul.f32 %v9136, %v9678
  %v9687 = vmul.f32 %v9213, %v9679
  %v9688 = vmul.f32 %v9290, %v9680
  %v9689 = vmul.f32 %v9367, %v9681
  %v9690 = vmul.f32 %v9444, %v9682
  %v9691 = vmul.f32 %v9521, %v9683
  %v9692 = vmul.f32 %v9598, %v9684
  %v9693 = vmul.f32 %v9675, %v9685
  %9702 = vrot.lane.b32.xlu0 %v9686, 48
  %v9703 = vpop.permute.xlu0 %9702
  %9704 = vrot.lane.b32.xlu0 %v9687, 48
  %v9705 = vpop.permute.xlu0 %9704
  %9706 = vrot.lane.b32.xlu0 %v9688, 48
  %v9707 = vpop.permute.xlu0 %9706
  %9708 = vrot.lane.b32.xlu0 %v9689, 48
  %v9709 = vpop.permute.xlu0 %9708
  %9710 = vrot.lane.b32.xlu0 %v9690, 48
  %v9711 = vpop.permute.xlu0 %9710
  %9712 = vrot.lane.b32.xlu0 %v9691, 48
  %v9713 = vpop.permute.xlu0 %9712
  %9714 = vrot.lane.b32.xlu0 %v9692, 48
  %v9715 = vpop.permute.xlu0 %9714
  %9716 = vrot.lane.b32.xlu0 %v9693, 48
  %v9717 = vpop.permute.xlu0 %9716
  %vm9726 = vcmask 458112
  %9727 = vst.msk [vmem:[%s1] sm:$0xff] %vm9726, %v9703
  %9728 = vst.msk [vmem:[%s1 + $0x8] sm:$0xff] %vm9726, %v9705
  %9729 = vst.msk [vmem:[%s1 + $0x10] sm:$0xff] %vm9726, %v9707
  %9730 = vst.msk [vmem:[%s1 + $0x18] sm:$0xff] %vm9726, %v9709
  %9731 = vst.msk [vmem:[%s1 + $0x20] sm:$0xff] %vm9726, %v9711
  %9732 = vst.msk [vmem:[%s1 + $0x28] sm:$0xff] %vm9726, %v9713
  %9733 = vst.msk [vmem:[%s1 + $0x30] sm:$0xff] %vm9726, %v9715
  %9734 = vst.msk [vmem:[%s1 + $0x38] sm:$0xff] %vm9726, %v9717
  %v9735 = vld [vmem:[%s0] sm:$0xff]
  %v9736 = vld [vmem:[%s0 + $0x10] sm:$0xff]
  %v9737 = vld [vmem:[%s0 + $0x20] sm:$0xff]
  %v9738 = vld [vmem:[%s0 + $0x30] sm:$0xff]
  %v9739 = vld [vmem:[%s0 + $0x40] sm:$0xff]
  %v9740 = vld [vmem:[%s0 + $0x50] sm:$0xff]
  %v9741 = vld [vmem:[%s0 + $0x60] sm:$0xff]
  %v9742 = vld [vmem:[%s0 + $0x70] sm:$0xff]
  %v9743 = vld [vmem:[%s0 + $0x8] sm:$0xff]
  %v9744 = vld [vmem:[%s0 + $0x18] sm:$0xff]
  %v9745 = vld [vmem:[%s0 + $0x28] sm:$0xff]
  %v9746 = vld [vmem:[%s0 + $0x38] sm:$0xff]
  %v9747 = vld [vmem:[%s0 + $0x48] sm:$0xff]
  %v9748 = vld [vmem:[%s0 + $0x58] sm:$0xff]
  %v9749 = vld [vmem:[%s0 + $0x68] sm:$0xff]
  %v9750 = vld [vmem:[%s0 + $0x78] sm:$0xff]
  %9752 = vrot.lane.b32.xlu0 %v9735, 72
  %v9753 = vpop.permute.xlu0 %9752
  %9754 = vrot.lane.b32.xlu0 %v9735, 8
  %v9755 = vpop.permute.xlu0 %9754
  %v9756 = vsel %vm27, %v9753, 0
  %v9758 = vsel %vm27, %v9755, 0
  %9760 = vmatprep.subr.mxu0 0.0
  %9761 = vmatpush1.xpose.msra.mxu0 %v9758
  %9762 = vmatprep.subr.mxu0 0.0
  %9763 = vmatpush1.xpose.msra.mxu0 0.0
  %9764 = vmatprep.subr.mxu0 0.0
  %9765 = vmatpush1.xpose.msra.mxu0 0.0
  %9766 = vmatprep.subr.mxu0 0.0
  %9767 = vmatpush1.xpose.msra.mxu0 0.0
  %9768 = vmatprep.subr.mxu0 0.0
  %9769 = vmatpush1.xpose.msra.mxu0 0.0
  %9770 = vmatprep.subr.mxu0 0.0
  %9771 = vmatpush1.xpose.msra.mxu0 0.0
  %9772 = vmatprep.subr.mxu0 0.0
  %9773 = vmatpush1.xpose.msra.mxu0 0.0
  %9774 = vmatprep.subr.mxu0 0.0
  %9775 = vmatpush1.xpose.msra.mxu0 0.0
  %9776 = vmatprep.subr.mxu0 0.0
  %9777 = vmatpush1.xpose.msra.mxu0 0.0
  %9778 = vmatprep.subr.mxu0 0.0
  %9779 = vmatpush1.xpose.msra.mxu0 0.0
  %9780 = vmatprep.subr.mxu0 0.0
  %9781 = vmatpush1.xpose.msra.mxu0 0.0
  %9782 = vmatprep.subr.mxu0 0.0
  %9783 = vmatpush1.xpose.msra.mxu0 0.0
  %9784 = vmatprep.subr.mxu0 0.0
  %9785 = vmatpush1.xpose.msra.mxu0 0.0
  %9786 = vmatprep.subr.mxu0 0.0
  %9787 = vmatpush1.xpose.msra.mxu0 0.0
  %9788 = vmatprep.subr.mxu0 0.0
  %9789 = vmatpush1.xpose.msra.mxu0 0.0
  %9790 = vmatprep.subr.mxu0 0.0
  %9791 = vmatpush1.xpose.msra.mxu0 0.0
  %9792 = vmatprep.subr.mxu0 0.0
  %9793 = vmatpush1.xpose.msra.mxu0 0.0
  %9794 = vmatprep.subr.mxu0 0.0
  %9795 = vmatpush1.xpose.msra.mxu0 0.0
  %9796 = vmatprep.subr.mxu0 0.0
  %9797 = vmatpush1.xpose.msra.mxu0 0.0
  %9798 = vmatprep.subr.mxu0 0.0
  %9799 = vmatpush1.xpose.msra.mxu0 0.0
  %9800 = vmatprep.subr.mxu0 0.0
  %9801 = vmatpush1.xpose.msra.mxu0 0.0
  %9802 = vmatprep.subr.mxu0 0.0
  %9803 = vmatpush1.xpose.msra.mxu0 0.0
  %9804 = vmatprep.subr.mxu0 0.0
  %9805 = vmatpush1.xpose.msra.mxu0 0.0
  %9806 = vmatprep.subr.mxu0 0.0
  %9807 = vmatpush1.xpose.msra.mxu0 0.0
  %9808 = vmatprep.subr.mxu0 0.0
  %9809 = vmatpush1.xpose.msra.mxu0 0.0
  %9810 = vmatprep.subr.mxu0 0.0
  %9811 = vmatpush1.xpose.msra.mxu0 0.0
  %9812 = vmatprep.subr.mxu0 0.0
  %9813 = vmatpush1.xpose.msra.mxu0 0.0
  %9814 = vmatprep.subr.mxu0 0.0
  %9815 = vmatpush1.xpose.msra.mxu0 0.0
  %9816 = vmatprep.subr.mxu0 0.0
  %9817 = vmatpush1.xpose.msra.mxu0 0.0
  %9818 = vmatprep.subr.mxu0 0.0
  %9819 = vmatpush1.xpose.msra.mxu0 0.0
  %9820 = vmatprep.subr.mxu0 0.0
  %9821 = vmatpush1.xpose.msra.mxu0 0.0
  %9822 = vmatprep.subr.mxu0 0.0
  %9823 = vmatpush1.xpose.msra.mxu0 0.0
  %9824 = vmatprep.mubr.f32.mxu0 0.0
  %9825 = vmatmul.mubr.f32.gmra.mrb[0].mxu0 %v9756
  %v9826 = vpop.f32.mrb[0].mxu0
  %v9827 = vadd.f32 0.0, %v9826
  %v9828 = vpop.f32.mrb[0].mxu0
  %9829 = vdwg.mxu0
  %9831 = vrot.lane.b32.xlu0 %v9736, 72
  %v9832 = vpop.permute.xlu0 %9831
  %9833 = vrot.lane.b32.xlu0 %v9736, 8
  %v9834 = vpop.permute.xlu0 %9833
  %v9835 = vsel %vm27, %v9832, 0
  %v9837 = vsel %vm27, %v9834, 0
  %9839 = vmatprep.subr.mxu0 0.0
  %9840 = vmatpush1.xpose.msra.mxu0 %v9837
  %9841 = vmatprep.subr.mxu0 0.0
  %9842 = vmatpush1.xpose.msra.mxu0 0.0
  %9843 = vmatprep.subr.mxu0 0.0
  %9844 = vmatpush1.xpose.msra.mxu0 0.0
  %9845 = vmatprep.subr.mxu0 0.0
  %9846 = vmatpush1.xpose.msra.mxu0 0.0
  %9847 = vmatprep.subr.mxu0 0.0
  %9848 = vmatpush1.xpose.msra.mxu0 0.0
  %9849 = vmatprep.subr.mxu0 0.0
  %9850 = vmatpush1.xpose.msra.mxu0 0.0
  %9851 = vmatprep.subr.mxu0 0.0
  %9852 = vmatpush1.xpose.msra.mxu0 0.0
  %9853 = vmatprep.subr.mxu0 0.0
  %9854 = vmatpush1.xpose.msra.mxu0 0.0
  %9855 = vmatprep.subr.mxu0 0.0
  %9856 = vmatpush1.xpose.msra.mxu0 0.0
  %9857 = vmatprep.subr.mxu0 0.0
  %9858 = vmatpush1.xpose.msra.mxu0 0.0
  %9859 = vmatprep.subr.mxu0 0.0
  %9860 = vmatpush1.xpose.msra.mxu0 0.0
  %9861 = vmatprep.subr.mxu0 0.0
  %9862 = vmatpush1.xpose.msra.mxu0 0.0
  %9863 = vmatprep.subr.mxu0 0.0
  %9864 = vmatpush1.xpose.msra.mxu0 0.0
  %9865 = vmatprep.subr.mxu0 0.0
  %9866 = vmatpush1.xpose.msra.mxu0 0.0
  %9867 = vmatprep.subr.mxu0 0.0
  %9868 = vmatpush1.xpose.msra.mxu0 0.0
  %9869 = vmatprep.subr.mxu0 0.0
  %9870 = vmatpush1.xpose.msra.mxu0 0.0
  %9871 = vmatprep.subr.mxu0 0.0
  %9872 = vmatpush1.xpose.msra.mxu0 0.0
  %9873 = vmatprep.subr.mxu0 0.0
  %9874 = vmatpush1.xpose.msra.mxu0 0.0
  %9875 = vmatprep.subr.mxu0 0.0
  %9876 = vmatpush1.xpose.msra.mxu0 0.0
  %9877 = vmatprep.subr.mxu0 0.0
  %9878 = vmatpush1.xpose.msra.mxu0 0.0
  %9879 = vmatprep.subr.mxu0 0.0
  %9880 = vmatpush1.xpose.msra.mxu0 0.0
  %9881 = vmatprep.subr.mxu0 0.0
  %9882 = vmatpush1.xpose.msra.mxu0 0.0
  %9883 = vmatprep.subr.mxu0 0.0
  %9884 = vmatpush1.xpose.msra.mxu0 0.0
  %9885 = vmatprep.subr.mxu0 0.0
  %9886 = vmatpush1.xpose.msra.mxu0 0.0
  %9887 = vmatprep.subr.mxu0 0.0
  %9888 = vmatpush1.xpose.msra.mxu0 0.0
  %9889 = vmatprep.subr.mxu0 0.0
  %9890 = vmatpush1.xpose.msra.mxu0 0.0
  %9891 = vmatprep.subr.mxu0 0.0
  %9892 = vmatpush1.xpose.msra.mxu0 0.0
  %9893 = vmatprep.subr.mxu0 0.0
  %9894 = vmatpush1.xpose.msra.mxu0 0.0
  %9895 = vmatprep.subr.mxu0 0.0
  %9896 = vmatpush1.xpose.msra.mxu0 0.0
  %9897 = vmatprep.subr.mxu0 0.0
  %9898 = vmatpush1.xpose.msra.mxu0 0.0
  %9899 = vmatprep.subr.mxu0 0.0
  %9900 = vmatpush1.xpose.msra.mxu0 0.0
  %9901 = vmatprep.subr.mxu0 0.0
  %9902 = vmatpush1.xpose.msra.mxu0 0.0
  %9903 = vmatprep.mubr.f32.mxu0 0.0
  %9904 = vmatmul.mubr.f32.gmra.mrb[0].mxu0 %v9835
  %v9905 = vpop.f32.mrb[0].mxu0
  %v9906 = vadd.f32 0.0, %v9905
  %v9907 = vpop.f32.mrb[0].mxu0
  %9908 = vdwg.mxu0
  %9910 = vrot.lane.b32.xlu0 %v9737, 72
  %v9911 = vpop.permute.xlu0 %9910
  %9912 = vrot.lane.b32.xlu0 %v9737, 8
  %v9913 = vpop.permute.xlu0 %9912
  %v9914 = vsel %vm27, %v9911, 0
  %v9916 = vsel %vm27, %v9913, 0
  %9918 = vmatprep.subr.mxu0 0.0
  %9919 = vmatpush1.xpose.msra.mxu0 %v9916
  %9920 = vmatprep.subr.mxu0 0.0
  %9921 = vmatpush1.xpose.msra.mxu0 0.0
  %9922 = vmatprep.subr.mxu0 0.0
  %9923 = vmatpush1.xpose.msra.mxu0 0.0
  %9924 = vmatprep.subr.mxu0 0.0
  %9925 = vmatpush1.xpose.msra.mxu0 0.0
  %9926 = vmatprep.subr.mxu0 0.0
  %9927 = vmatpush1.xpose.msra.mxu0 0.0
  %9928 = vmatprep.subr.mxu0 0.0
  %9929 = vmatpush1.xpose.msra.mxu0 0.0
  %9930 = vmatprep.subr.mxu0 0.0
  %9931 = vmatpush1.xpose.msra.mxu0 0.0
  %9932 = vmatprep.subr.mxu0 0.0
  %9933 = vmatpush1.xpose.msra.mxu0 0.0
  %9934 = vmatprep.subr.mxu0 0.0
  %9935 = vmatpush1.xpose.msra.mxu0 0.0
  %9936 = vmatprep.subr.mxu0 0.0
  %9937 = vmatpush1.xpose.msra.mxu0 0.0
  %9938 = vmatprep.subr.mxu0 0.0
  %9939 = vmatpush1.xpose.msra.mxu0 0.0
  %9940 = vmatprep.subr.mxu0 0.0
  %9941 = vmatpush1.xpose.msra.mxu0 0.0
  %9942 = vmatprep.subr.mxu0 0.0
  %9943 = vmatpush1.xpose.msra.mxu0 0.0
  %9944 = vmatprep.subr.mxu0 0.0
  %9945 = vmatpush1.xpose.msra.mxu0 0.0
  %9946 = vmatprep.subr.mxu0 0.0
  %9947 = vmatpush1.xpose.msra.mxu0 0.0
  %9948 = vmatprep.subr.mxu0 0.0
  %9949 = vmatpush1.xpose.msra.mxu0 0.0
  %9950 = vmatprep.subr.mxu0 0.0
  %9951 = vmatpush1.xpose.msra.mxu0 0.0
  %9952 = vmatprep.subr.mxu0 0.0
  %9953 = vmatpush1.xpose.msra.mxu0 0.0
  %9954 = vmatprep.subr.mxu0 0.0
  %9955 = vmatpush1.xpose.msra.mxu0 0.0
  %9956 = vmatprep.subr.mxu0 0.0
  %9957 = vmatpush1.xpose.msra.mxu0 0.0
  %9958 = vmatprep.subr.mxu0 0.0
  %9959 = vmatpush1.xpose.msra.mxu0 0.0
  %9960 = vmatprep.subr.mxu0 0.0
  %9961 = vmatpush1.xpose.msra.mxu0 0.0
  %9962 = vmatprep.subr.mxu0 0.0
  %9963 = vmatpush1.xpose.msra.mxu0 0.0
  %9964 = vmatprep.subr.mxu0 0.0
  %9965 = vmatpush1.xpose.msra.mxu0 0.0
  %9966 = vmatprep.subr.mxu0 0.0
  %9967 = vmatpush1.xpose.msra.mxu0 0.0
  %9968 = vmatprep.subr.mxu0 0.0
  %9969 = vmatpush1.xpose.msra.mxu0 0.0
  %9970 = vmatprep.subr.mxu0 0.0
  %9971 = vmatpush1.xpose.msra.mxu0 0.0
  %9972 = vmatprep.subr.mxu0 0.0
  %9973 = vmatpush1.xpose.msra.mxu0 0.0
  %9974 = vmatprep.subr.mxu0 0.0
  %9975 = vmatpush1.xpose.msra.mxu0 0.0
  %9976 = vmatprep.subr.mxu0 0.0
  %9977 = vmatpush1.xpose.msra.mxu0 0.0
  %9978 = vmatprep.subr.mxu0 0.0
  %9979 = vmatpush1.xpose.msra.mxu0 0.0
  %9980 = vmatprep.subr.mxu0 0.0
  %9981 = vmatpush1.xpose.msra.mxu0 0.0
  %9982 = vmatprep.mubr.f32.mxu0 0.0
  %9983 = vmatmul.mubr.f32.gmra.mrb[0].mxu0 %v9914
  %v9984 = vpop.f32.mrb[0].mxu0
  %v9985 = vadd.f32 0.0, %v9984
  %v9986 = vpop.f32.mrb[0].mxu0
  %9987 = vdwg.mxu0
  %9989 = vrot.lane.b32.xlu0 %v9738, 72
  %v9990 = vpop.permute.xlu0 %9989
  %9991 = vrot.lane.b32.xlu0 %v9738, 8
  %v9992 = vpop.permute.xlu0 %9991
  %v9993 = vsel %vm27, %v9990, 0
  %v9995 = vsel %vm27, %v9992, 0
  %9997 = vmatprep.subr.mxu0 0.0
  %9998 = vmatpush1.xpose.msra.mxu0 %v9995
  %9999 = vmatprep.subr.mxu0 0.0
  %10000 = vmatpush1.xpose.msra.mxu0 0.0
  %10001 = vmatprep.subr.mxu0 0.0
  %10002 = vmatpush1.xpose.msra.mxu0 0.0
  %10003 = vmatprep.subr.mxu0 0.0
  %10004 = vmatpush1.xpose.msra.mxu0 0.0
  %10005 = vmatprep.subr.mxu0 0.0
  %10006 = vmatpush1.xpose.msra.mxu0 0.0
  %10007 = vmatprep.subr.mxu0 0.0
  %10008 = vmatpush1.xpose.msra.mxu0 0.0
  %10009 = vmatprep.subr.mxu0 0.0
  %10010 = vmatpush1.xpose.msra.mxu0 0.0
  %10011 = vmatprep.subr.mxu0 0.0
  %10012 = vmatpush1.xpose.msra.mxu0 0.0
  %10013 = vmatprep.subr.mxu0 0.0
  %10014 = vmatpush1.xpose.msra.mxu0 0.0
  %10015 = vmatprep.subr.mxu0 0.0
  %10016 = vmatpush1.xpose.msra.mxu0 0.0
  %10017 = vmatprep.subr.mxu0 0.0
  %10018 = vmatpush1.xpose.msra.mxu0 0.0
  %10019 = vmatprep.subr.mxu0 0.0
  %10020 = vmatpush1.xpose.msra.mxu0 0.0
  %10021 = vmatprep.subr.mxu0 0.0
  %10022 = vmatpush1.xpose.msra.mxu0 0.0
  %10023 = vmatprep.subr.mxu0 0.0
  %10024 = vmatpush1.xpose.msra.mxu0 0.0
  %10025 = vmatprep.subr.mxu0 0.0
  %10026 = vmatpush1.xpose.msra.mxu0 0.0
  %10027 = vmatprep.subr.mxu0 0.0
  %10028 = vmatpush1.xpose.msra.mxu0 0.0
  %10029 = vmatprep.subr.mxu0 0.0
  %10030 = vmatpush1.xpose.msra.mxu0 0.0
  %10031 = vmatprep.subr.mxu0 0.0
  %10032 = vmatpush1.xpose.msra.mxu0 0.0
  %10033 = vmatprep.subr.mxu0 0.0
  %10034 = vmatpush1.xpose.msra.mxu0 0.0
  %10035 = vmatprep.subr.mxu0 0.0
  %10036 = vmatpush1.xpose.msra.mxu0 0.0
  %10037 = vmatprep.subr.mxu0 0.0
  %10038 = vmatpush1.xpose.msra.mxu0 0.0
  %10039 = vmatprep.subr.mxu0 0.0
  %10040 = vmatpush1.xpose.msra.mxu0 0.0
  %10041 = vmatprep.subr.mxu0 0.0
  %10042 = vmatpush1.xpose.msra.mxu0 0.0
  %10043 = vmatprep.subr.mxu0 0.0
  %10044 = vmatpush1.xpose.msra.mxu0 0.0
  %10045 = vmatprep.subr.mxu0 0.0
  %10046 = vmatpush1.xpose.msra.mxu0 0.0
  %10047 = vmatprep.subr.mxu0 0.0
  %10048 = vmatpush1.xpose.msra.mxu0 0.0
  %10049 = vmatprep.subr.mxu0 0.0
  %10050 = vmatpush1.xpose.msra.mxu0 0.0
  %10051 = vmatprep.subr.mxu0 0.0
  %10052 = vmatpush1.xpose.msra.mxu0 0.0
  %10053 = vmatprep.subr.mxu0 0.0
  %10054 = vmatpush1.xpose.msra.mxu0 0.0
  %10055 = vmatprep.subr.mxu0 0.0
  %10056 = vmatpush1.xpose.msra.mxu0 0.0
  %10057 = vmatprep.subr.mxu0 0.0
  %10058 = vmatpush1.xpose.msra.mxu0 0.0
  %10059 = vmatprep.subr.mxu0 0.0
  %10060 = vmatpush1.xpose.msra.mxu0 0.0
  %10061 = vmatprep.mubr.f32.mxu0 0.0
  %10062 = vmatmul.mubr.f32.gmra.mrb[0].mxu0 %v9993
  %v10063 = vpop.f32.mrb[0].mxu0
  %v10064 = vadd.f32 0.0, %v10063
  %v10065 = vpop.f32.mrb[0].mxu0
  %10066 = vdwg.mxu0
  %10068 = vrot.lane.b32.xlu0 %v9739, 72
  %v10069 = vpop.permute.xlu0 %10068
  %10070 = vrot.lane.b32.xlu0 %v9739, 8
  %v10071 = vpop.permute.xlu0 %10070
  %v10072 = vsel %vm27, %v10069, 0
  %v10074 = vsel %vm27, %v10071, 0
  %10076 = vmatprep.subr.mxu0 0.0
  %10077 = vmatpush1.xpose.msra.mxu0 %v10074
  %10078 = vmatprep.subr.mxu0 0.0
  %10079 = vmatpush1.xpose.msra.mxu0 0.0
  %10080 = vmatprep.subr.mxu0 0.0
  %10081 = vmatpush1.xpose.msra.mxu0 0.0
  %10082 = vmatprep.subr.mxu0 0.0
  %10083 = vmatpush1.xpose.msra.mxu0 0.0
  %10084 = vmatprep.subr.mxu0 0.0
  %10085 = vmatpush1.xpose.msra.mxu0 0.0
  %10086 = vmatprep.subr.mxu0 0.0
  %10087 = vmatpush1.xpose.msra.mxu0 0.0
  %10088 = vmatprep.subr.mxu0 0.0
  %10089 = vmatpush1.xpose.msra.mxu0 0.0
  %10090 = vmatprep.subr.mxu0 0.0
  %10091 = vmatpush1.xpose.msra.mxu0 0.0
  %10092 = vmatprep.subr.mxu0 0.0
  %10093 = vmatpush1.xpose.msra.mxu0 0.0
  %10094 = vmatprep.subr.mxu0 0.0
  %10095 = vmatpush1.xpose.msra.mxu0 0.0
  %10096 = vmatprep.subr.mxu0 0.0
  %10097 = vmatpush1.xpose.msra.mxu0 0.0
  %10098 = vmatprep.subr.mxu0 0.0
  %10099 = vmatpush1.xpose.msra.mxu0 0.0
  %10100 = vmatprep.subr.mxu0 0.0
  %10101 = vmatpush1.xpose.msra.mxu0 0.0
  %10102 = vmatprep.subr.mxu0 0.0
  %10103 = vmatpush1.xpose.msra.mxu0 0.0
  %10104 = vmatprep.subr.mxu0 0.0
  %10105 = vmatpush1.xpose.msra.mxu0 0.0
  %10106 = vmatprep.subr.mxu0 0.0
  %10107 = vmatpush1.xpose.msra.mxu0 0.0
  %10108 = vmatprep.subr.mxu0 0.0
  %10109 = vmatpush1.xpose.msra.mxu0 0.0
  %10110 = vmatprep.subr.mxu0 0.0
  %10111 = vmatpush1.xpose.msra.mxu0 0.0
  %10112 = vmatprep.subr.mxu0 0.0
  %10113 = vmatpush1.xpose.msra.mxu0 0.0
  %10114 = vmatprep.subr.mxu0 0.0
  %10115 = vmatpush1.xpose.msra.mxu0 0.0
  %10116 = vmatprep.subr.mxu0 0.0
  %10117 = vmatpush1.xpose.msra.mxu0 0.0
  %10118 = vmatprep.subr.mxu0 0.0
  %10119 = vmatpush1.xpose.msra.mxu0 0.0
  %10120 = vmatprep.subr.mxu0 0.0
  %10121 = vmatpush1.xpose.msra.mxu0 0.0
  %10122 = vmatprep.subr.mxu0 0.0
  %10123 = vmatpush1.xpose.msra.mxu0 0.0
  %10124 = vmatprep.subr.mxu0 0.0
  %10125 = vmatpush1.xpose.msra.mxu0 0.0
  %10126 = vmatprep.subr.mxu0 0.0
  %10127 = vmatpush1.xpose.msra.mxu0 0.0
  %10128 = vmatprep.subr.mxu0 0.0
  %10129 = vmatpush1.xpose.msra.mxu0 0.0
  %10130 = vmatprep.subr.mxu0 0.0
  %10131 = vmatpush1.xpose.msra.mxu0 0.0
  %10132 = vmatprep.subr.mxu0 0.0
  %10133 = vmatpush1.xpose.msra.mxu0 0.0
  %10134 = vmatprep.subr.mxu0 0.0
  %10135 = vmatpush1.xpose.msra.mxu0 0.0
  %10136 = vmatprep.subr.mxu0 0.0
  %10137 = vmatpush1.xpose.msra.mxu0 0.0
  %10138 = vmatprep.subr.mxu0 0.0
  %10139 = vmatpush1.xpose.msra.mxu0 0.0
  %10140 = vmatprep.mubr.f32.mxu0 0.0
  %10141 = vmatmul.mubr.f32.gmra.mrb[0].mxu0 %v10072
  %v10142 = vpop.f32.mrb[0].mxu0
  %v10143 = vadd.f32 0.0, %v10142
  %v10144 = vpop.f32.mrb[0].mxu0
  %10145 = vdwg.mxu0
  %10147 = vrot.lane.b32.xlu0 %v9740, 72
  %v10148 = vpop.permute.xlu0 %10147
  %10149 = vrot.lane.b32.xlu0 %v9740, 8
  %v10150 = vpop.permute.xlu0 %10149
  %v10151 = vsel %vm27, %v10148, 0
  %v10153 = vsel %vm27, %v10150, 0
  %10155 = vmatprep.subr.mxu0 0.0
  %10156 = vmatpush1.xpose.msra.mxu0 %v10153
  %10157 = vmatprep.subr.mxu0 0.0
  %10158 = vmatpush1.xpose.msra.mxu0 0.0
  %10159 = vmatprep.subr.mxu0 0.0
  %10160 = vmatpush1.xpose.msra.mxu0 0.0
  %10161 = vmatprep.subr.mxu0 0.0
  %10162 = vmatpush1.xpose.msra.mxu0 0.0
  %10163 = vmatprep.subr.mxu0 0.0
  %10164 = vmatpush1.xpose.msra.mxu0 0.0
  %10165 = vmatprep.subr.mxu0 0.0
  %10166 = vmatpush1.xpose.msra.mxu0 0.0
  %10167 = vmatprep.subr.mxu0 0.0
  %10168 = vmatpush1.xpose.msra.mxu0 0.0
  %10169 = vmatprep.subr.mxu0 0.0
  %10170 = vmatpush1.xpose.msra.mxu0 0.0
  %10171 = vmatprep.subr.mxu0 0.0
  %10172 = vmatpush1.xpose.msra.mxu0 0.0
  %10173 = vmatprep.subr.mxu0 0.0
  %10174 = vmatpush1.xpose.msra.mxu0 0.0
  %10175 = vmatprep.subr.mxu0 0.0
  %10176 = vmatpush1.xpose.msra.mxu0 0.0
  %10177 = vmatprep.subr.mxu0 0.0
  %10178 = vmatpush1.xpose.msra.mxu0 0.0
  %10179 = vmatprep.subr.mxu0 0.0
  %10180 = vmatpush1.xpose.msra.mxu0 0.0
  %10181 = vmatprep.subr.mxu0 0.0
  %10182 = vmatpush1.xpose.msra.mxu0 0.0
  %10183 = vmatprep.subr.mxu0 0.0
  %10184 = vmatpush1.xpose.msra.mxu0 0.0
  %10185 = vmatprep.subr.mxu0 0.0
  %10186 = vmatpush1.xpose.msra.mxu0 0.0
  %10187 = vmatprep.subr.mxu0 0.0
  %10188 = vmatpush1.xpose.msra.mxu0 0.0
  %10189 = vmatprep.subr.mxu0 0.0
  %10190 = vmatpush1.xpose.msra.mxu0 0.0
  %10191 = vmatprep.subr.mxu0 0.0
  %10192 = vmatpush1.xpose.msra.mxu0 0.0
  %10193 = vmatprep.subr.mxu0 0.0
  %10194 = vmatpush1.xpose.msra.mxu0 0.0
  %10195 = vmatprep.subr.mxu0 0.0
  %10196 = vmatpush1.xpose.msra.mxu0 0.0
  %10197 = vmatprep.subr.mxu0 0.0
  %10198 = vmatpush1.xpose.msra.mxu0 0.0
  %10199 = vmatprep.subr.mxu0 0.0
  %10200 = vmatpush1.xpose.msra.mxu0 0.0
  %10201 = vmatprep.subr.mxu0 0.0
  %10202 = vmatpush1.xpose.msra.mxu0 0.0
  %10203 = vmatprep.subr.mxu0 0.0
  %10204 = vmatpush1.xpose.msra.mxu0 0.0
  %10205 = vmatprep.subr.mxu0 0.0
  %10206 = vmatpush1.xpose.msra.mxu0 0.0
  %10207 = vmatprep.subr.mxu0 0.0
  %10208 = vmatpush1.xpose.msra.mxu0 0.0
  %10209 = vmatprep.subr.mxu0 0.0
  %10210 = vmatpush1.xpose.msra.mxu0 0.0
  %10211 = vmatprep.subr.mxu0 0.0
  %10212 = vmatpush1.xpose.msra.mxu0 0.0
  %10213 = vmatprep.subr.mxu0 0.0
  %10214 = vmatpush1.xpose.msra.mxu0 0.0
  %10215 = vmatprep.subr.mxu0 0.0
  %10216 = vmatpush1.xpose.msra.mxu0 0.0
  %10217 = vmatprep.subr.mxu0 0.0
  %10218 = vmatpush1.xpose.msra.mxu0 0.0
  %10219 = vmatprep.mubr.f32.mxu0 0.0
  %10220 = vmatmul.mubr.f32.gmra.mrb[0].mxu0 %v10151
  %v10221 = vpop.f32.mrb[0].mxu0
  %v10222 = vadd.f32 0.0, %v10221
  %v10223 = vpop.f32.mrb[0].mxu0
  %10224 = vdwg.mxu0
  %10226 = vrot.lane.b32.xlu0 %v9741, 72
  %v10227 = vpop.permute.xlu0 %10226
  %10228 = vrot.lane.b32.xlu0 %v9741, 8
  %v10229 = vpop.permute.xlu0 %10228
  %v10230 = vsel %vm27, %v10227, 0
  %v10232 = vsel %vm27, %v10229, 0
  %10234 = vmatprep.subr.mxu0 0.0
  %10235 = vmatpush1.xpose.msra.mxu0 %v10232
  %10236 = vmatprep.subr.mxu0 0.0
  %10237 = vmatpush1.xpose.msra.mxu0 0.0
  %10238 = vmatprep.subr.mxu0 0.0
  %10239 = vmatpush1.xpose.msra.mxu0 0.0
  %10240 = vmatprep.subr.mxu0 0.0
  %10241 = vmatpush1.xpose.msra.mxu0 0.0
  %10242 = vmatprep.subr.mxu0 0.0
  %10243 = vmatpush1.xpose.msra.mxu0 0.0
  %10244 = vmatprep.subr.mxu0 0.0
  %10245 = vmatpush1.xpose.msra.mxu0 0.0
  %10246 = vmatprep.subr.mxu0 0.0
  %10247 = vmatpush1.xpose.msra.mxu0 0.0
  %10248 = vmatprep.subr.mxu0 0.0
  %10249 = vmatpush1.xpose.msra.mxu0 0.0
  %10250 = vmatprep.subr.mxu0 0.0
  %10251 = vmatpush1.xpose.msra.mxu0 0.0
  %10252 = vmatprep.subr.mxu0 0.0
  %10253 = vmatpush1.xpose.msra.mxu0 0.0
  %10254 = vmatprep.subr.mxu0 0.0
  %10255 = vmatpush1.xpose.msra.mxu0 0.0
  %10256 = vmatprep.subr.mxu0 0.0
  %10257 = vmatpush1.xpose.msra.mxu0 0.0
  %10258 = vmatprep.subr.mxu0 0.0
  %10259 = vmatpush1.xpose.msra.mxu0 0.0
  %10260 = vmatprep.subr.mxu0 0.0
  %10261 = vmatpush1.xpose.msra.mxu0 0.0
  %10262 = vmatprep.subr.mxu0 0.0
  %10263 = vmatpush1.xpose.msra.mxu0 0.0
  %10264 = vmatprep.subr.mxu0 0.0
  %10265 = vmatpush1.xpose.msra.mxu0 0.0
  %10266 = vmatprep.subr.mxu0 0.0
  %10267 = vmatpush1.xpose.msra.mxu0 0.0
  %10268 = vmatprep.subr.mxu0 0.0
  %10269 = vmatpush1.xpose.msra.mxu0 0.0
  %10270 = vmatprep.subr.mxu0 0.0
  %10271 = vmatpush1.xpose.msra.mxu0 0.0
  %10272 = vmatprep.subr.mxu0 0.0
  %10273 = vmatpush1.xpose.msra.mxu0 0.0
  %10274 = vmatprep.subr.mxu0 0.0
  %10275 = vmatpush1.xpose.msra.mxu0 0.0
  %10276 = vmatprep.subr.mxu0 0.0
  %10277 = vmatpush1.xpose.msra.mxu0 0.0
  %10278 = vmatprep.subr.mxu0 0.0
  %10279 = vmatpush1.xpose.msra.mxu0 0.0
  %10280 = vmatprep.subr.mxu0 0.0
  %10281 = vmatpush1.xpose.msra.mxu0 0.0
  %10282 = vmatprep.subr.mxu0 0.0
  %10283 = vmatpush1.xpose.msra.mxu0 0.0
  %10284 = vmatprep.subr.mxu0 0.0
  %10285 = vmatpush1.xpose.msra.mxu0 0.0
  %10286 = vmatprep.subr.mxu0 0.0
  %10287 = vmatpush1.xpose.msra.mxu0 0.0
  %10288 = vmatprep.subr.mxu0 0.0
  %10289 = vmatpush1.xpose.msra.mxu0 0.0
  %10290 = vmatprep.subr.mxu0 0.0
  %10291 = vmatpush1.xpose.msra.mxu0 0.0
  %10292 = vmatprep.subr.mxu0 0.0
  %10293 = vmatpush1.xpose.msra.mxu0 0.0
  %10294 = vmatprep.subr.mxu0 0.0
  %10295 = vmatpush1.xpose.msra.mxu0 0.0
  %10296 = vmatprep.subr.mxu0 0.0
  %10297 = vmatpush1.xpose.msra.mxu0 0.0
  %10298 = vmatprep.mubr.f32.mxu0 0.0
  %10299 = vmatmul.mubr.f32.gmra.mrb[0].mxu0 %v10230
  %v10300 = vpop.f32.mrb[0].mxu0
  %v10301 = vadd.f32 0.0, %v10300
  %v10302 = vpop.f32.mrb[0].mxu0
  %10303 = vdwg.mxu0
  %10305 = vrot.lane.b32.xlu0 %v9742, 72
  %v10306 = vpop.permute.xlu0 %10305
  %10307 = vrot.lane.b32.xlu0 %v9742, 8
  %v10308 = vpop.permute.xlu0 %10307
  %v10309 = vsel %vm27, %v10306, 0
  %v10311 = vsel %vm27, %v10308, 0
  %10313 = vmatprep.subr.mxu0 0.0
  %10314 = vmatpush1.xpose.msra.mxu0 %v10311
  %10315 = vmatprep.subr.mxu0 0.0
  %10316 = vmatpush1.xpose.msra.mxu0 0.0
  %10317 = vmatprep.subr.mxu0 0.0
  %10318 = vmatpush1.xpose.msra.mxu0 0.0
  %10319 = vmatprep.subr.mxu0 0.0
  %10320 = vmatpush1.xpose.msra.mxu0 0.0
  %10321 = vmatprep.subr.mxu0 0.0
  %10322 = vmatpush1.xpose.msra.mxu0 0.0
  %10323 = vmatprep.subr.mxu0 0.0
  %10324 = vmatpush1.xpose.msra.mxu0 0.0
  %10325 = vmatprep.subr.mxu0 0.0
  %10326 = vmatpush1.xpose.msra.mxu0 0.0
  %10327 = vmatprep.subr.mxu0 0.0
  %10328 = vmatpush1.xpose.msra.mxu0 0.0
  %10329 = vmatprep.subr.mxu0 0.0
  %10330 = vmatpush1.xpose.msra.mxu0 0.0
  %10331 = vmatprep.subr.mxu0 0.0
  %10332 = vmatpush1.xpose.msra.mxu0 0.0
  %10333 = vmatprep.subr.mxu0 0.0
  %10334 = vmatpush1.xpose.msra.mxu0 0.0
  %10335 = vmatprep.subr.mxu0 0.0
  %10336 = vmatpush1.xpose.msra.mxu0 0.0
  %10337 = vmatprep.subr.mxu0 0.0
  %10338 = vmatpush1.xpose.msra.mxu0 0.0
  %10339 = vmatprep.subr.mxu0 0.0
  %10340 = vmatpush1.xpose.msra.mxu0 0.0
  %10341 = vmatprep.subr.mxu0 0.0
  %10342 = vmatpush1.xpose.msra.mxu0 0.0
  %10343 = vmatprep.subr.mxu0 0.0
  %10344 = vmatpush1.xpose.msra.mxu0 0.0
  %10345 = vmatprep.subr.mxu0 0.0
  %10346 = vmatpush1.xpose.msra.mxu0 0.0
  %10347 = vmatprep.subr.mxu0 0.0
  %10348 = vmatpush1.xpose.msra.mxu0 0.0
  %10349 = vmatprep.subr.mxu0 0.0
  %10350 = vmatpush1.xpose.msra.mxu0 0.0
  %10351 = vmatprep.subr.mxu0 0.0
  %10352 = vmatpush1.xpose.msra.mxu0 0.0
  %10353 = vmatprep.subr.mxu0 0.0
  %10354 = vmatpush1.xpose.msra.mxu0 0.0
  %10355 = vmatprep.subr.mxu0 0.0
  %10356 = vmatpush1.xpose.msra.mxu0 0.0
  %10357 = vmatprep.subr.mxu0 0.0
  %10358 = vmatpush1.xpose.msra.mxu0 0.0
  %10359 = vmatprep.subr.mxu0 0.0
  %10360 = vmatpush1.xpose.msra.mxu0 0.0
  %10361 = vmatprep.subr.mxu0 0.0
  %10362 = vmatpush1.xpose.msra.mxu0 0.0
  %10363 = vmatprep.subr.mxu0 0.0
  %10364 = vmatpush1.xpose.msra.mxu0 0.0
  %10365 = vmatprep.subr.mxu0 0.0
  %10366 = vmatpush1.xpose.msra.mxu0 0.0
  %10367 = vmatprep.subr.mxu0 0.0
  %10368 = vmatpush1.xpose.msra.mxu0 0.0
  %10369 = vmatprep.subr.mxu0 0.0
  %10370 = vmatpush1.xpose.msra.mxu0 0.0
  %10371 = vmatprep.subr.mxu0 0.0
  %10372 = vmatpush1.xpose.msra.mxu0 0.0
  %10373 = vmatprep.subr.mxu0 0.0
  %10374 = vmatpush1.xpose.msra.mxu0 0.0
  %10375 = vmatprep.subr.mxu0 0.0
  %10376 = vmatpush1.xpose.msra.mxu0 0.0
  %10377 = vmatprep.mubr.f32.mxu0 0.0
  %10378 = vmatmul.mubr.f32.gmra.mrb[0].mxu0 %v10309
  %v10379 = vpop.f32.mrb[0].mxu0
  %v10380 = vadd.f32 0.0, %v10379
  %v10381 = vpop.f32.mrb[0].mxu0
  %10382 = vdwg.mxu0
  %v10383 = vmul.f32 %v9827, 0.35355338
  %v10384 = vmul.f32 %v9906, 0.35355338
  %v10385 = vmul.f32 %v9985, 0.35355338
  %v10386 = vmul.f32 %v10064, 0.35355338
  %v10387 = vmul.f32 %v10143, 0.35355338
  %v10388 = vmul.f32 %v10222, 0.35355338
  %v10389 = vmul.f32 %v10301, 0.35355338
  %v10390 = vmul.f32 %v10380, 0.35355338
  %v10391 = vsel %vm27, %v10383, -inf
  %10392 = vmax.xlane.f32.xlu0 %v10391
  %v10393 = vpop.xlane.xlu0 %10392
  %v10394 = vsel %vm27, %v10384, -inf
  %10395 = vmax.xlane.f32.xlu0 %v10394
  %v10396 = vpop.xlane.xlu0 %10395
  %v10397 = vsel %vm27, %v10385, -inf
  %10398 = vmax.xlane.f32.xlu0 %v10397
  %v10399 = vpop.xlane.xlu0 %10398
  %v10400 = vsel %vm27, %v10386, -inf
  %10401 = vmax.xlane.f32.xlu0 %v10400
  %v10402 = vpop.xlane.xlu0 %10401
  %v10403 = vsel %vm27, %v10387, -inf
  %10404 = vmax.xlane.f32.xlu0 %v10403
  %v10405 = vpop.xlane.xlu0 %10404
  %v10406 = vsel %vm27, %v10388, -inf
  %10407 = vmax.xlane.f32.xlu0 %v10406
  %v10408 = vpop.xlane.xlu0 %10407
  %v10409 = vsel %vm27, %v10389, -inf
  %10410 = vmax.xlane.f32.xlu0 %v10409
  %v10411 = vpop.xlane.xlu0 %10410
  %v10412 = vsel %vm27, %v10390, -inf
  %10413 = vmax.xlane.f32.xlu0 %v10412
  %v10414 = vpop.xlane.xlu0 %10413
  %v10415 = vsub.f32 %v10383, %v10393
  %v10416 = vsub.f32 %v10384, %v10396
  %v10417 = vsub.f32 %v10385, %v10399
  %v10418 = vsub.f32 %v10386, %v10402
  %v10419 = vsub.f32 %v10387, %v10405
  %v10420 = vsub.f32 %v10388, %v10408
  %v10421 = vsub.f32 %v10389, %v10411
  %v10422 = vsub.f32 %v10390, %v10414
  %v10423 = vmul.f32 %v10415, 1.442695
  %v10424 = vpow.pop %v10423
  %v10425 = vmul.f32 %v10416, 1.442695
  %v10426 = vpow.pop %v10425
  %v10427 = vmul.f32 %v10417, 1.442695
  %v10428 = vpow.pop %v10427
  %v10429 = vmul.f32 %v10418, 1.442695
  %v10430 = vpow.pop %v10429
  %v10431 = vmul.f32 %v10419, 1.442695
  %v10432 = vpow.pop %v10431
  %v10433 = vmul.f32 %v10420, 1.442695
  %v10434 = vpow.pop %v10433
  %v10435 = vmul.f32 %v10421, 1.442695
  %v10436 = vpow.pop %v10435
  %v10437 = vmul.f32 %v10422, 1.442695
  %v10438 = vpow.pop %v10437
  %v10439 = vsel %vm27, %v10424, 0.0
  %10440 = vadd.xlane.f32.xlu0 %v10439
  %v10441 = vpop.xlane.xlu0 %10440
  %v10442 = vsel %vm27, %v10426, 0.0
  %10443 = vadd.xlane.f32.xlu0 %v10442
  %v10444 = vpop.xlane.xlu0 %10443
  %v10445 = vsel %vm27, %v10428, 0.0
  %10446 = vadd.xlane.f32.xlu0 %v10445
  %v10447 = vpop.xlane.xlu0 %10446
  %v10448 = vsel %vm27, %v10430, 0.0
  %10449 = vadd.xlane.f32.xlu0 %v10448
  %v10450 = vpop.xlane.xlu0 %10449
  %v10451 = vsel %vm27, %v10432, 0.0
  %10452 = vadd.xlane.f32.xlu0 %v10451
  %v10453 = vpop.xlane.xlu0 %10452
  %v10454 = vsel %vm27, %v10434, 0.0
  %10455 = vadd.xlane.f32.xlu0 %v10454
  %v10456 = vpop.xlane.xlu0 %10455
  %v10457 = vsel %vm27, %v10436, 0.0
  %10458 = vadd.xlane.f32.xlu0 %v10457
  %v10459 = vpop.xlane.xlu0 %10458
  %v10460 = vsel %vm27, %v10438, 0.0
  %10461 = vadd.xlane.f32.xlu0 %v10460
  %v10462 = vpop.xlane.xlu0 %10461
  %10464 = vrot.lane.b32.xlu0 %v9743, 72
  %v10465 = vpop.permute.xlu0 %10464
  %v10468 = vsel %vm27, %v10424, 0
  %10470 = vmatprep.subr.mxu0 0.0
  %10471 = vmatpush1.msra.mxu0 %v10465
  %10472 = vmatprep.subr.mxu0 0.0
  %10473 = vmatpush1.msra.mxu0 0.0
  %10474 = vmatprep.subr.mxu0 0.0
  %10475 = vmatpush1.msra.mxu0 0.0
  %10476 = vmatprep.subr.mxu0 0.0
  %10477 = vmatpush1.msra.mxu0 0.0
  %10478 = vmatprep.subr.mxu0 0.0
  %10479 = vmatpush1.msra.mxu0 0.0
  %10480 = vmatprep.subr.mxu0 0.0
  %10481 = vmatpush1.msra.mxu0 0.0
  %10482 = vmatprep.subr.mxu0 0.0
  %10483 = vmatpush1.msra.mxu0 0.0
  %10484 = vmatprep.subr.mxu0 0.0
  %10485 = vmatpush1.msra.mxu0 0.0
  %10486 = vmatprep.subr.mxu0 0.0
  %10487 = vmatpush1.msra.mxu0 0.0
  %10488 = vmatprep.subr.mxu0 0.0
  %10489 = vmatpush1.msra.mxu0 0.0
  %10490 = vmatprep.subr.mxu0 0.0
  %10491 = vmatpush1.msra.mxu0 0.0
  %10492 = vmatprep.subr.mxu0 0.0
  %10493 = vmatpush1.msra.mxu0 0.0
  %10494 = vmatprep.subr.mxu0 0.0
  %10495 = vmatpush1.msra.mxu0 0.0
  %10496 = vmatprep.subr.mxu0 0.0
  %10497 = vmatpush1.msra.mxu0 0.0
  %10498 = vmatprep.subr.mxu0 0.0
  %10499 = vmatpush1.msra.mxu0 0.0
  %10500 = vmatprep.subr.mxu0 0.0
  %10501 = vmatpush1.msra.mxu0 0.0
  %10502 = vmatprep.subr.mxu0 0.0
  %10503 = vmatpush1.msra.mxu0 0.0
  %10504 = vmatprep.subr.mxu0 0.0
  %10505 = vmatpush1.msra.mxu0 0.0
  %10506 = vmatprep.subr.mxu0 0.0
  %10507 = vmatpush1.msra.mxu0 0.0
  %10508 = vmatprep.subr.mxu0 0.0
  %10509 = vmatpush1.msra.mxu0 0.0
  %10510 = vmatprep.subr.mxu0 0.0
  %10511 = vmatpush1.msra.mxu0 0.0
  %10512 = vmatprep.subr.mxu0 0.0
  %10513 = vmatpush1.msra.mxu0 0.0
  %10514 = vmatprep.subr.mxu0 0.0
  %10515 = vmatpush1.msra.mxu0 0.0
  %10516 = vmatprep.subr.mxu0 0.0
  %10517 = vmatpush1.msra.mxu0 0.0
  %10518 = vmatprep.subr.mxu0 0.0
  %10519 = vmatpush1.msra.mxu0 0.0
  %10520 = vmatprep.subr.mxu0 0.0
  %10521 = vmatpush1.msra.mxu0 0.0
  %10522 = vmatprep.subr.mxu0 0.0
  %10523 = vmatpush1.msra.mxu0 0.0
  %10524 = vmatprep.subr.mxu0 0.0
  %10525 = vmatpush1.msra.mxu0 0.0
  %10526 = vmatprep.subr.mxu0 0.0
  %10527 = vmatpush1.msra.mxu0 0.0
  %10528 = vmatprep.subr.mxu0 0.0
  %10529 = vmatpush1.msra.mxu0 0.0
  %10530 = vmatprep.subr.mxu0 0.0
  %10531 = vmatpush1.msra.mxu0 0.0
  %10532 = vmatprep.subr.mxu0 0.0
  %10533 = vmatpush1.msra.mxu0 0.0
  %10534 = vmatprep.mubr.f32.mxu0 0.0
  %10535 = vmatmul.mubr.f32.gmra.mrb[0].mxu0 %v10468
  %v10536 = vpop.f32.mrb[0].mxu0
  %v10537 = vadd.f32 0.0, %v10536
  %v10538 = vpop.f32.mrb[0].mxu0
  %10539 = vdwg.mxu0
  %10541 = vrot.lane.b32.xlu0 %v9744, 72
  %v10542 = vpop.permute.xlu0 %10541
  %v10545 = vsel %vm27, %v10426, 0
  %10547 = vmatprep.subr.mxu0 0.0
  %10548 = vmatpush1.msra.mxu0 %v10542
  %10549 = vmatprep.subr.mxu0 0.0
  %10550 = vmatpush1.msra.mxu0 0.0
  %10551 = vmatprep.subr.mxu0 0.0
  %10552 = vmatpush1.msra.mxu0 0.0
  %10553 = vmatprep.subr.mxu0 0.0
  %10554 = vmatpush1.msra.mxu0 0.0
  %10555 = vmatprep.subr.mxu0 0.0
  %10556 = vmatpush1.msra.mxu0 0.0
  %10557 = vmatprep.subr.mxu0 0.0
  %10558 = vmatpush1.msra.mxu0 0.0
  %10559 = vmatprep.subr.mxu0 0.0
  %10560 = vmatpush1.msra.mxu0 0.0
  %10561 = vmatprep.subr.mxu0 0.0
  %10562 = vmatpush1.msra.mxu0 0.0
  %10563 = vmatprep.subr.mxu0 0.0
  %10564 = vmatpush1.msra.mxu0 0.0
  %10565 = vmatprep.subr.mxu0 0.0
  %10566 = vmatpush1.msra.mxu0 0.0
  %10567 = vmatprep.subr.mxu0 0.0
  %10568 = vmatpush1.msra.mxu0 0.0
  %10569 = vmatprep.subr.mxu0 0.0
  %10570 = vmatpush1.msra.mxu0 0.0
  %10571 = vmatprep.subr.mxu0 0.0
  %10572 = vmatpush1.msra.mxu0 0.0
  %10573 = vmatprep.subr.mxu0 0.0
  %10574 = vmatpush1.msra.mxu0 0.0
  %10575 = vmatprep.subr.mxu0 0.0
  %10576 = vmatpush1.msra.mxu0 0.0
  %10577 = vmatprep.subr.mxu0 0.0
  %10578 = vmatpush1.msra.mxu0 0.0
  %10579 = vmatprep.subr.mxu0 0.0
  %10580 = vmatpush1.msra.mxu0 0.0
  %10581 = vmatprep.subr.mxu0 0.0
  %10582 = vmatpush1.msra.mxu0 0.0
  %10583 = vmatprep.subr.mxu0 0.0
  %10584 = vmatpush1.msra.mxu0 0.0
  %10585 = vmatprep.subr.mxu0 0.0
  %10586 = vmatpush1.msra.mxu0 0.0
  %10587 = vmatprep.subr.mxu0 0.0
  %10588 = vmatpush1.msra.mxu0 0.0
  %10589 = vmatprep.subr.mxu0 0.0
  %10590 = vmatpush1.msra.mxu0 0.0
  %10591 = vmatprep.subr.mxu0 0.0
  %10592 = vmatpush1.msra.mxu0 0.0
  %10593 = vmatprep.subr.mxu0 0.0
  %10594 = vmatpush1.msra.mxu0 0.0
  %10595 = vmatprep.subr.mxu0 0.0
  %10596 = vmatpush1.msra.mxu0 0.0
  %10597 = vmatprep.subr.mxu0 0.0
  %10598 = vmatpush1.msra.mxu0 0.0
  %10599 = vmatprep.subr.mxu0 0.0
  %10600 = vmatpush1.msra.mxu0 0.0
  %10601 = vmatprep.subr.mxu0 0.0
  %10602 = vmatpush1.msra.mxu0 0.0
  %10603 = vmatprep.subr.mxu0 0.0
  %10604 = vmatpush1.msra.mxu0 0.0
  %10605 = vmatprep.subr.mxu0 0.0
  %10606 = vmatpush1.msra.mxu0 0.0
  %10607 = vmatprep.subr.mxu0 0.0
  %10608 = vmatpush1.msra.mxu0 0.0
  %10609 = vmatprep.subr.mxu0 0.0
  %10610 = vmatpush1.msra.mxu0 0.0
  %10611 = vmatprep.mubr.f32.mxu0 0.0
  %10612 = vmatmul.mubr.f32.gmra.mrb[0].mxu0 %v10545
  %v10613 = vpop.f32.mrb[0].mxu0
  %v10614 = vadd.f32 0.0, %v10613
  %v10615 = vpop.f32.mrb[0].mxu0
  %10616 = vdwg.mxu0
  %10618 = vrot.lane.b32.xlu0 %v9745, 72
  %v10619 = vpop.permute.xlu0 %10618
  %v10622 = vsel %vm27, %v10428, 0
  %10624 = vmatprep.subr.mxu0 0.0
  %10625 = vmatpush1.msra.mxu0 %v10619
  %10626 = vmatprep.subr.mxu0 0.0
  %10627 = vmatpush1.msra.mxu0 0.0
  %10628 = vmatprep.subr.mxu0 0.0
  %10629 = vmatpush1.msra.mxu0 0.0
  %10630 = vmatprep.subr.mxu0 0.0
  %10631 = vmatpush1.msra.mxu0 0.0
  %10632 = vmatprep.subr.mxu0 0.0
  %10633 = vmatpush1.msra.mxu0 0.0
  %10634 = vmatprep.subr.mxu0 0.0
  %10635 = vmatpush1.msra.mxu0 0.0
  %10636 = vmatprep.subr.mxu0 0.0
  %10637 = vmatpush1.msra.mxu0 0.0
  %10638 = vmatprep.subr.mxu0 0.0
  %10639 = vmatpush1.msra.mxu0 0.0
  %10640 = vmatprep.subr.mxu0 0.0
  %10641 = vmatpush1.msra.mxu0 0.0
  %10642 = vmatprep.subr.mxu0 0.0
  %10643 = vmatpush1.msra.mxu0 0.0
  %10644 = vmatprep.subr.mxu0 0.0
  %10645 = vmatpush1.msra.mxu0 0.0
  %10646 = vmatprep.subr.mxu0 0.0
  %10647 = vmatpush1.msra.mxu0 0.0
  %10648 = vmatprep.subr.mxu0 0.0
  %10649 = vmatpush1.msra.mxu0 0.0
  %10650 = vmatprep.subr.mxu0 0.0
  %10651 = vmatpush1.msra.mxu0 0.0
  %10652 = vmatprep.subr.mxu0 0.0
  %10653 = vmatpush1.msra.mxu0 0.0
  %10654 = vmatprep.subr.mxu0 0.0
  %10655 = vmatpush1.msra.mxu0 0.0
  %10656 = vmatprep.subr.mxu0 0.0
  %10657 = vmatpush1.msra.mxu0 0.0
  %10658 = vmatprep.subr.mxu0 0.0
  %10659 = vmatpush1.msra.mxu0 0.0
  %10660 = vmatprep.subr.mxu0 0.0
  %10661 = vmatpush1.msra.mxu0 0.0
  %10662 = vmatprep.subr.mxu0 0.0
  %10663 = vmatpush1.msra.mxu0 0.0
  %10664 = vmatprep.subr.mxu0 0.0
  %10665 = vmatpush1.msra.mxu0 0.0
  %10666 = vmatprep.subr.mxu0 0.0
  %10667 = vmatpush1.msra.mxu0 0.0
  %10668 = vmatprep.subr.mxu0 0.0
  %10669 = vmatpush1.msra.mxu0 0.0
  %10670 = vmatprep.subr.mxu0 0.0
  %10671 = vmatpush1.msra.mxu0 0.0
  %10672 = vmatprep.subr.mxu0 0.0
  %10673 = vmatpush1.msra.mxu0 0.0
  %10674 = vmatprep.subr.mxu0 0.0
  %10675 = vmatpush1.msra.mxu0 0.0
  %10676 = vmatprep.subr.mxu0 0.0
  %10677 = vmatpush1.msra.mxu0 0.0
  %10678 = vmatprep.subr.mxu0 0.0
  %10679 = vmatpush1.msra.mxu0 0.0
  %10680 = vmatprep.subr.mxu0 0.0
  %10681 = vmatpush1.msra.mxu0 0.0
  %10682 = vmatprep.subr.mxu0 0.0
  %10683 = vmatpush1.msra.mxu0 0.0
  %10684 = vmatprep.subr.mxu0 0.0
  %10685 = vmatpush1.msra.mxu0 0.0
  %10686 = vmatprep.subr.mxu0 0.0
  %10687 = vmatpush1.msra.mxu0 0.0
  %10688 = vmatprep.mubr.f32.mxu0 0.0
  %10689 = vmatmul.mubr.f32.gmra.mrb[0].mxu0 %v10622
  %v10690 = vpop.f32.mrb[0].mxu0
  %v10691 = vadd.f32 0.0, %v10690
  %v10692 = vpop.f32.mrb[0].mxu0
  %10693 = vdwg.mxu0
  %10695 = vrot.lane.b32.xlu0 %v9746, 72
  %v10696 = vpop.permute.xlu0 %10695
  %v10699 = vsel %vm27, %v10430, 0
  %10701 = vmatprep.subr.mxu0 0.0
  %10702 = vmatpush1.msra.mxu0 %v10696
  %10703 = vmatprep.subr.mxu0 0.0
  %10704 = vmatpush1.msra.mxu0 0.0
  %10705 = vmatprep.subr.mxu0 0.0
  %10706 = vmatpush1.msra.mxu0 0.0
  %10707 = vmatprep.subr.mxu0 0.0
  %10708 = vmatpush1.msra.mxu0 0.0
  %10709 = vmatprep.subr.mxu0 0.0
  %10710 = vmatpush1.msra.mxu0 0.0
  %10711 = vmatprep.subr.mxu0 0.0
  %10712 = vmatpush1.msra.mxu0 0.0
  %10713 = vmatprep.subr.mxu0 0.0
  %10714 = vmatpush1.msra.mxu0 0.0
  %10715 = vmatprep.subr.mxu0 0.0
  %10716 = vmatpush1.msra.mxu0 0.0
  %10717 = vmatprep.subr.mxu0 0.0
  %10718 = vmatpush1.msra.mxu0 0.0
  %10719 = vmatprep.subr.mxu0 0.0
  %10720 = vmatpush1.msra.mxu0 0.0
  %10721 = vmatprep.subr.mxu0 0.0
  %10722 = vmatpush1.msra.mxu0 0.0
  %10723 = vmatprep.subr.mxu0 0.0
  %10724 = vmatpush1.msra.mxu0 0.0
  %10725 = vmatprep.subr.mxu0 0.0
  %10726 = vmatpush1.msra.mxu0 0.0
  %10727 = vmatprep.subr.mxu0 0.0
  %10728 = vmatpush1.msra.mxu0 0.0
  %10729 = vmatprep.subr.mxu0 0.0
  %10730 = vmatpush1.msra.mxu0 0.0
  %10731 = vmatprep.subr.mxu0 0.0
  %10732 = vmatpush1.msra.mxu0 0.0
  %10733 = vmatprep.subr.mxu0 0.0
  %10734 = vmatpush1.msra.mxu0 0.0
  %10735 = vmatprep.subr.mxu0 0.0
  %10736 = vmatpush1.msra.mxu0 0.0
  %10737 = vmatprep.subr.mxu0 0.0
  %10738 = vmatpush1.msra.mxu0 0.0
  %10739 = vmatprep.subr.mxu0 0.0
  %10740 = vmatpush1.msra.mxu0 0.0
  %10741 = vmatprep.subr.mxu0 0.0
  %10742 = vmatpush1.msra.mxu0 0.0
  %10743 = vmatprep.subr.mxu0 0.0
  %10744 = vmatpush1.msra.mxu0 0.0
  %10745 = vmatprep.subr.mxu0 0.0
  %10746 = vmatpush1.msra.mxu0 0.0
  %10747 = vmatprep.subr.mxu0 0.0
  %10748 = vmatpush1.msra.mxu0 0.0
  %10749 = vmatprep.subr.mxu0 0.0
  %10750 = vmatpush1.msra.mxu0 0.0
  %10751 = vmatprep.subr.mxu0 0.0
  %10752 = vmatpush1.msra.mxu0 0.0
  %10753 = vmatprep.subr.mxu0 0.0
  %10754 = vmatpush1.msra.mxu0 0.0
  %10755 = vmatprep.subr.mxu0 0.0
  %10756 = vmatpush1.msra.mxu0 0.0
  %10757 = vmatprep.subr.mxu0 0.0
  %10758 = vmatpush1.msra.mxu0 0.0
  %10759 = vmatprep.subr.mxu0 0.0
  %10760 = vmatpush1.msra.mxu0 0.0
  %10761 = vmatprep.subr.mxu0 0.0
  %10762 = vmatpush1.msra.mxu0 0.0
  %10763 = vmatprep.subr.mxu0 0.0
  %10764 = vmatpush1.msra.mxu0 0.0
  %10765 = vmatprep.mubr.f32.mxu0 0.0
  %10766 = vmatmul.mubr.f32.gmra.mrb[0].mxu0 %v10699
  %v10767 = vpop.f32.mrb[0].mxu0
  %v10768 = vadd.f32 0.0, %v10767
  %v10769 = vpop.f32.mrb[0].mxu0
  %10770 = vdwg.mxu0
  %10772 = vrot.lane.b32.xlu0 %v9747, 72
  %v10773 = vpop.permute.xlu0 %10772
  %v10776 = vsel %vm27, %v10432, 0
  %10778 = vmatprep.subr.mxu0 0.0
  %10779 = vmatpush1.msra.mxu0 %v10773
  %10780 = vmatprep.subr.mxu0 0.0
  %10781 = vmatpush1.msra.mxu0 0.0
  %10782 = vmatprep.subr.mxu0 0.0
  %10783 = vmatpush1.msra.mxu0 0.0
  %10784 = vmatprep.subr.mxu0 0.0
  %10785 = vmatpush1.msra.mxu0 0.0
  %10786 = vmatprep.subr.mxu0 0.0
  %10787 = vmatpush1.msra.mxu0 0.0
  %10788 = vmatprep.subr.mxu0 0.0
  %10789 = vmatpush1.msra.mxu0 0.0
  %10790 = vmatprep.subr.mxu0 0.0
  %10791 = vmatpush1.msra.mxu0 0.0
  %10792 = vmatprep.subr.mxu0 0.0
  %10793 = vmatpush1.msra.mxu0 0.0
  %10794 = vmatprep.subr.mxu0 0.0
  %10795 = vmatpush1.msra.mxu0 0.0
  %10796 = vmatprep.subr.mxu0 0.0
  %10797 = vmatpush1.msra.mxu0 0.0
  %10798 = vmatprep.subr.mxu0 0.0
  %10799 = vmatpush1.msra.mxu0 0.0
  %10800 = vmatprep.subr.mxu0 0.0
  %10801 = vmatpush1.msra.mxu0 0.0
  %10802 = vmatprep.subr.mxu0 0.0
  %10803 = vmatpush1.msra.mxu0 0.0
  %10804 = vmatprep.subr.mxu0 0.0
  %10805 = vmatpush1.msra.mxu0 0.0
  %10806 = vmatprep.subr.mxu0 0.0
  %10807 = vmatpush1.msra.mxu0 0.0
  %10808 = vmatprep.subr.mxu0 0.0
  %10809 = vmatpush1.msra.mxu0 0.0
  %10810 = vmatprep.subr.mxu0 0.0
  %10811 = vmatpush1.msra.mxu0 0.0
  %10812 = vmatprep.subr.mxu0 0.0
  %10813 = vmatpush1.msra.mxu0 0.0
  %10814 = vmatprep.subr.mxu0 0.0
  %10815 = vmatpush1.msra.mxu0 0.0
  %10816 = vmatprep.subr.mxu0 0.0
  %10817 = vmatpush1.msra.mxu0 0.0
  %10818 = vmatprep.subr.mxu0 0.0
  %10819 = vmatpush1.msra.mxu0 0.0
  %10820 = vmatprep.subr.mxu0 0.0
  %10821 = vmatpush1.msra.mxu0 0.0
  %10822 = vmatprep.subr.mxu0 0.0
  %10823 = vmatpush1.msra.mxu0 0.0
  %10824 = vmatprep.subr.mxu0 0.0
  %10825 = vmatpush1.msra.mxu0 0.0
  %10826 = vmatprep.subr.mxu0 0.0
  %10827 = vmatpush1.msra.mxu0 0.0
  %10828 = vmatprep.subr.mxu0 0.0
  %10829 = vmatpush1.msra.mxu0 0.0
  %10830 = vmatprep.subr.mxu0 0.0
  %10831 = vmatpush1.msra.mxu0 0.0
  %10832 = vmatprep.subr.mxu0 0.0
  %10833 = vmatpush1.msra.mxu0 0.0
  %10834 = vmatprep.subr.mxu0 0.0
  %10835 = vmatpush1.msra.mxu0 0.0
  %10836 = vmatprep.subr.mxu0 0.0
  %10837 = vmatpush1.msra.mxu0 0.0
  %10838 = vmatprep.subr.mxu0 0.0
  %10839 = vmatpush1.msra.mxu0 0.0
  %10840 = vmatprep.subr.mxu0 0.0
  %10841 = vmatpush1.msra.mxu0 0.0
  %10842 = vmatprep.mubr.f32.mxu0 0.0
  %10843 = vmatmul.mubr.f32.gmra.mrb[0].mxu0 %v10776
  %v10844 = vpop.f32.mrb[0].mxu0
  %v10845 = vadd.f32 0.0, %v10844
  %v10846 = vpop.f32.mrb[0].mxu0
  %10847 = vdwg.mxu0
  %10849 = vrot.lane.b32.xlu0 %v9748, 72
  %v10850 = vpop.permute.xlu0 %10849
  %v10853 = vsel %vm27, %v10434, 0
  %10855 = vmatprep.subr.mxu0 0.0
  %10856 = vmatpush1.msra.mxu0 %v10850
  %10857 = vmatprep.subr.mxu0 0.0
  %10858 = vmatpush1.msra.mxu0 0.0
  %10859 = vmatprep.subr.mxu0 0.0
  %10860 = vmatpush1.msra.mxu0 0.0
  %10861 = vmatprep.subr.mxu0 0.0
  %10862 = vmatpush1.msra.mxu0 0.0
  %10863 = vmatprep.subr.mxu0 0.0
  %10864 = vmatpush1.msra.mxu0 0.0
  %10865 = vmatprep.subr.mxu0 0.0
  %10866 = vmatpush1.msra.mxu0 0.0
  %10867 = vmatprep.subr.mxu0 0.0
  %10868 = vmatpush1.msra.mxu0 0.0
  %10869 = vmatprep.subr.mxu0 0.0
  %10870 = vmatpush1.msra.mxu0 0.0
  %10871 = vmatprep.subr.mxu0 0.0
  %10872 = vmatpush1.msra.mxu0 0.0
  %10873 = vmatprep.subr.mxu0 0.0
  %10874 = vmatpush1.msra.mxu0 0.0
  %10875 = vmatprep.subr.mxu0 0.0
  %10876 = vmatpush1.msra.mxu0 0.0
  %10877 = vmatprep.subr.mxu0 0.0
  %10878 = vmatpush1.msra.mxu0 0.0
  %10879 = vmatprep.subr.mxu0 0.0
  %10880 = vmatpush1.msra.mxu0 0.0
  %10881 = vmatprep.subr.mxu0 0.0
  %10882 = vmatpush1.msra.mxu0 0.0
  %10883 = vmatprep.subr.mxu0 0.0
  %10884 = vmatpush1.msra.mxu0 0.0
  %10885 = vmatprep.subr.mxu0 0.0
  %10886 = vmatpush1.msra.mxu0 0.0
  %10887 = vmatprep.subr.mxu0 0.0
  %10888 = vmatpush1.msra.mxu0 0.0
  %10889 = vmatprep.subr.mxu0 0.0
  %10890 = vmatpush1.msra.mxu0 0.0
  %10891 = vmatprep.subr.mxu0 0.0
  %10892 = vmatpush1.msra.mxu0 0.0
  %10893 = vmatprep.subr.mxu0 0.0
  %10894 = vmatpush1.msra.mxu0 0.0
  %10895 = vmatprep.subr.mxu0 0.0
  %10896 = vmatpush1.msra.mxu0 0.0
  %10897 = vmatprep.subr.mxu0 0.0
  %10898 = vmatpush1.msra.mxu0 0.0
  %10899 = vmatprep.subr.mxu0 0.0
  %10900 = vmatpush1.msra.mxu0 0.0
  %10901 = vmatprep.subr.mxu0 0.0
  %10902 = vmatpush1.msra.mxu0 0.0
  %10903 = vmatprep.subr.mxu0 0.0
  %10904 = vmatpush1.msra.mxu0 0.0
  %10905 = vmatprep.subr.mxu0 0.0
  %10906 = vmatpush1.msra.mxu0 0.0
  %10907 = vmatprep.subr.mxu0 0.0
  %10908 = vmatpush1.msra.mxu0 0.0
  %10909 = vmatprep.subr.mxu0 0.0
  %10910 = vmatpush1.msra.mxu0 0.0
  %10911 = vmatprep.subr.mxu0 0.0
  %10912 = vmatpush1.msra.mxu0 0.0
  %10913 = vmatprep.subr.mxu0 0.0
  %10914 = vmatpush1.msra.mxu0 0.0
  %10915 = vmatprep.subr.mxu0 0.0
  %10916 = vmatpush1.msra.mxu0 0.0
  %10917 = vmatprep.subr.mxu0 0.0
  %10918 = vmatpush1.msra.mxu0 0.0
  %10919 = vmatprep.mubr.f32.mxu0 0.0
  %10920 = vmatmul.mubr.f32.gmra.mrb[0].mxu0 %v10853
  %v10921 = vpop.f32.mrb[0].mxu0
  %v10922 = vadd.f32 0.0, %v10921
  %v10923 = vpop.f32.mrb[0].mxu0
  %10924 = vdwg.mxu0
  %10926 = vrot.lane.b32.xlu0 %v9749, 72
  %v10927 = vpop.permute.xlu0 %10926
  %v10930 = vsel %vm27, %v10436, 0
  %10932 = vmatprep.subr.mxu0 0.0
  %10933 = vmatpush1.msra.mxu0 %v10927
  %10934 = vmatprep.subr.mxu0 0.0
  %10935 = vmatpush1.msra.mxu0 0.0
  %10936 = vmatprep.subr.mxu0 0.0
  %10937 = vmatpush1.msra.mxu0 0.0
  %10938 = vmatprep.subr.mxu0 0.0
  %10939 = vmatpush1.msra.mxu0 0.0
  %10940 = vmatprep.subr.mxu0 0.0
  %10941 = vmatpush1.msra.mxu0 0.0
  %10942 = vmatprep.subr.mxu0 0.0
  %10943 = vmatpush1.msra.mxu0 0.0
  %10944 = vmatprep.subr.mxu0 0.0
  %10945 = vmatpush1.msra.mxu0 0.0
  %10946 = vmatprep.subr.mxu0 0.0
  %10947 = vmatpush1.msra.mxu0 0.0
  %10948 = vmatprep.subr.mxu0 0.0
  %10949 = vmatpush1.msra.mxu0 0.0
  %10950 = vmatprep.subr.mxu0 0.0
  %10951 = vmatpush1.msra.mxu0 0.0
  %10952 = vmatprep.subr.mxu0 0.0
  %10953 = vmatpush1.msra.mxu0 0.0
  %10954 = vmatprep.subr.mxu0 0.0
  %10955 = vmatpush1.msra.mxu0 0.0
  %10956 = vmatprep.subr.mxu0 0.0
  %10957 = vmatpush1.msra.mxu0 0.0
  %10958 = vmatprep.subr.mxu0 0.0
  %10959 = vmatpush1.msra.mxu0 0.0
  %10960 = vmatprep.subr.mxu0 0.0
  %10961 = vmatpush1.msra.mxu0 0.0
  %10962 = vmatprep.subr.mxu0 0.0
  %10963 = vmatpush1.msra.mxu0 0.0
  %10964 = vmatprep.subr.mxu0 0.0
  %10965 = vmatpush1.msra.mxu0 0.0
  %10966 = vmatprep.subr.mxu0 0.0
  %10967 = vmatpush1.msra.mxu0 0.0
  %10968 = vmatprep.subr.mxu0 0.0
  %10969 = vmatpush1.msra.mxu0 0.0
  %10970 = vmatprep.subr.mxu0 0.0
  %10971 = vmatpush1.msra.mxu0 0.0
  %10972 = vmatprep.subr.mxu0 0.0
  %10973 = vmatpush1.msra.mxu0 0.0
  %10974 = vmatprep.subr.mxu0 0.0
  %10975 = vmatpush1.msra.mxu0 0.0
  %10976 = vmatprep.subr.mxu0 0.0
  %10977 = vmatpush1.msra.mxu0 0.0
  %10978 = vmatprep.subr.mxu0 0.0
  %10979 = vmatpush1.msra.mxu0 0.0
  %10980 = vmatprep.subr.mxu0 0.0
  %10981 = vmatpush1.msra.mxu0 0.0
  %10982 = vmatprep.subr.mxu0 0.0
  %10983 = vmatpush1.msra.mxu0 0.0
  %10984 = vmatprep.subr.mxu0 0.0
  %10985 = vmatpush1.msra.mxu0 0.0
  %10986 = vmatprep.subr.mxu0 0.0
  %10987 = vmatpush1.msra.mxu0 0.0
  %10988 = vmatprep.subr.mxu0 0.0
  %10989 = vmatpush1.msra.mxu0 0.0
  %10990 = vmatprep.subr.mxu0 0.0
  %10991 = vmatpush1.msra.mxu0 0.0
  %10992 = vmatprep.subr.mxu0 0.0
  %10993 = vmatpush1.msra.mxu0 0.0
  %10994 = vmatprep.subr.mxu0 0.0
  %10995 = vmatpush1.msra.mxu0 0.0
  %10996 = vmatprep.mubr.f32.mxu0 0.0
  %10997 = vmatmul.mubr.f32.gmra.mrb[0].mxu0 %v10930
  %v10998 = vpop.f32.mrb[0].mxu0
  %v10999 = vadd.f32 0.0, %v10998
  %v11000 = vpop.f32.mrb[0].mxu0
  %11001 = vdwg.mxu0
  %11003 = vrot.lane.b32.xlu0 %v9750, 72
  %v11004 = vpop.permute.xlu0 %11003
  %v11007 = vsel %vm27, %v10438, 0
  %11009 = vmatprep.subr.mxu0 0.0
  %11010 = vmatpush1.msra.mxu0 %v11004
  %11011 = vmatprep.subr.mxu0 0.0
  %11012 = vmatpush1.msra.mxu0 0.0
  %11013 = vmatprep.subr.mxu0 0.0
  %11014 = vmatpush1.msra.mxu0 0.0
  %11015 = vmatprep.subr.mxu0 0.0
  %11016 = vmatpush1.msra.mxu0 0.0
  %11017 = vmatprep.subr.mxu0 0.0
  %11018 = vmatpush1.msra.mxu0 0.0
  %11019 = vmatprep.subr.mxu0 0.0
  %11020 = vmatpush1.msra.mxu0 0.0
  %11021 = vmatprep.subr.mxu0 0.0
  %11022 = vmatpush1.msra.mxu0 0.0
  %11023 = vmatprep.subr.mxu0 0.0
  %11024 = vmatpush1.msra.mxu0 0.0
  %11025 = vmatprep.subr.mxu0 0.0
  %11026 = vmatpush1.msra.mxu0 0.0
  %11027 = vmatprep.subr.mxu0 0.0
  %11028 = vmatpush1.msra.mxu0 0.0
  %11029 = vmatprep.subr.mxu0 0.0
  %11030 = vmatpush1.msra.mxu0 0.0
  %11031 = vmatprep.subr.mxu0 0.0
  %11032 = vmatpush1.msra.mxu0 0.0
  %11033 = vmatprep.subr.mxu0 0.0
  %11034 = vmatpush1.msra.mxu0 0.0
  %11035 = vmatprep.subr.mxu0 0.0
  %11036 = vmatpush1.msra.mxu0 0.0
  %11037 = vmatprep.subr.mxu0 0.0
  %11038 = vmatpush1.msra.mxu0 0.0
  %11039 = vmatprep.subr.mxu0 0.0
  %11040 = vmatpush1.msra.mxu0 0.0
  %11041 = vmatprep.subr.mxu0 0.0
  %11042 = vmatpush1.msra.mxu0 0.0
  %11043 = vmatprep.subr.mxu0 0.0
  %11044 = vmatpush1.msra.mxu0 0.0
  %11045 = vmatprep.subr.mxu0 0.0
  %11046 = vmatpush1.msra.mxu0 0.0
  %11047 = vmatprep.subr.mxu0 0.0
  %11048 = vmatpush1.msra.mxu0 0.0
  %11049 = vmatprep.subr.mxu0 0.0
  %11050 = vmatpush1.msra.mxu0 0.0
  %11051 = vmatprep.subr.mxu0 0.0
  %11052 = vmatpush1.msra.mxu0 0.0
  %11053 = vmatprep.subr.mxu0 0.0
  %11054 = vmatpush1.msra.mxu0 0.0
  %11055 = vmatprep.subr.mxu0 0.0
  %11056 = vmatpush1.msra.mxu0 0.0
  %11057 = vmatprep.subr.mxu0 0.0
  %11058 = vmatpush1.msra.mxu0 0.0
  %11059 = vmatprep.subr.mxu0 0.0
  %11060 = vmatpush1.msra.mxu0 0.0
  %11061 = vmatprep.subr.mxu0 0.0
  %11062 = vmatpush1.msra.mxu0 0.0
  %11063 = vmatprep.subr.mxu0 0.0
  %11064 = vmatpush1.msra.mxu0 0.0
  %11065 = vmatprep.subr.mxu0 0.0
  %11066 = vmatpush1.msra.mxu0 0.0
  %11067 = vmatprep.subr.mxu0 0.0
  %11068 = vmatpush1.msra.mxu0 0.0
  %11069 = vmatprep.subr.mxu0 0.0
  %11070 = vmatpush1.msra.mxu0 0.0
  %11071 = vmatprep.subr.mxu0 0.0
  %11072 = vmatpush1.msra.mxu0 0.0
  %11073 = vmatprep.mubr.f32.mxu0 0.0
  %11074 = vmatmul.mubr.f32.gmra.mrb[0].mxu0 %v11007
  %v11075 = vpop.f32.mrb[0].mxu0
  %v11076 = vadd.f32 0.0, %v11075
  %v11077 = vpop.f32.mrb[0].mxu0
  %11078 = vdwg.mxu0
  %v11079 = vrcp.pop %v10441
  %v11080 = vrcp.pop %v10444
  %v11081 = vrcp.pop %v10447
  %v11082 = vrcp.pop %v10450
  %v11083 = vrcp.pop %v10453
  %v11084 = vrcp.pop %v10456
  %v11085 = vrcp.pop %v10459
  %v11086 = vrcp.pop %v10462
  %v11087 = vmul.f32 %v10537, %v11079
  %v11088 = vmul.f32 %v10614, %v11080
  %v11089 = vmul.f32 %v10691, %v11081
  %v11090 = vmul.f32 %v10768, %v11082
  %v11091 = vmul.f32 %v10845, %v11083
  %v11092 = vmul.f32 %v10922, %v11084
  %v11093 = vmul.f32 %v10999, %v11085
  %v11094 = vmul.f32 %v11076, %v11086
  %11103 = vrot.lane.b32.xlu0 %v11087, 56
  %v11104 = vpop.permute.xlu0 %11103
  %11105 = vrot.lane.b32.xlu0 %v11088, 56
  %v11106 = vpop.permute.xlu0 %11105
  %11107 = vrot.lane.b32.xlu0 %v11089, 56
  %v11108 = vpop.permute.xlu0 %11107
  %11109 = vrot.lane.b32.xlu0 %v11090, 56
  %v11110 = vpop.permute.xlu0 %11109
  %11111 = vrot.lane.b32.xlu0 %v11091, 56
  %v11112 = vpop.permute.xlu0 %11111
  %11113 = vrot.lane.b32.xlu0 %v11092, 56
  %v11114 = vpop.permute.xlu0 %11113
  %11115 = vrot.lane.b32.xlu0 %v11093, 56
  %v11116 = vpop.permute.xlu0 %11115
  %11117 = vrot.lane.b32.xlu0 %v11094, 56
  %v11118 = vpop.permute.xlu0 %11117
  %vm11127 = vcmask 523712
  %11128 = vst.msk [vmem:[%s1] sm:$0xff] %vm11127, %v11104
  %11129 = vst.msk [vmem:[%s1 + $0x8] sm:$0xff] %vm11127, %v11106
  %11130 = vst.msk [vmem:[%s1 + $0x10] sm:$0xff] %vm11127, %v11108
  %11131 = vst.msk [vmem:[%s1 + $0x18] sm:$0xff] %vm11127, %v11110
  %11132 = vst.msk [vmem:[%s1 + $0x20] sm:$0xff] %vm11127, %v11112
  %11133 = vst.msk [vmem:[%s1 + $0x28] sm:$0xff] %vm11127, %v11114
  %11134 = vst.msk [vmem:[%s1 + $0x30] sm:$0xff] %vm11127, %v11116
  %11135 = vst.msk [vmem:[%s1 + $0x38] sm:$0xff] %vm11127, %v11118
  // Predicated region
  $region6: #{_forward.4} parent=0 // pred_check
    _
  $region7: #{_forward.4} parent=0 // pred_check_branch
    %11137 = sbr.rel (0) target = $region9
  $region8: #{_forward.4} parent=0 // pred_region
    _
  $region9: #{_forward.4} parent=0 // pred_fallthru
    _
  // Predicated region
  $region10: #{_forward.4} parent=0 // pred_check
    _
  $region11: #{_forward.4} parent=0 // pred_check_branch
    %11139 = sbr.rel (0) target = $region13
  $region12: #{_forward.4} parent=0 // pred_region
    _
  $region13: #{_forward.4} parent=0 // pred_fallthru
    _

</llo_original>
